<compile_context>
chip_gen: v7x
topology: tpu7x:2x2x1
jax: 0.10.0
libtpu: 0.0.40
codegen_flags: <defaults>
</compile_context>

<pallas_src>
import numpy as np
import jax
import jax.numpy as jnp
from jax import lax
from jax.experimental import pallas as pl
from jax.experimental.pallas import tpu as pltpu

HIDDEN = 512          # conv3x3 output channels (fixed by the module)


def _round_up(x, m):
    return (x + m - 1) // m * m


def _tpu_vmem_bytes():
    """Best-effort per-core VMEM capacity query with a conservative fallback."""
    try:
        info = pltpu.get_tpu_info()
        for name in ("vmem_capacity_bytes", "vmem_bytes", "vmem_size_bytes"):
            v = getattr(info, name, None)
            if v:
                return int(v)
    except Exception:
        pass
    return 64 * 1024 * 1024   # v7x per-TC VMEM: safe lower bound everywhere


def naive_rpn_head(x_nchw, params):
    """x_nchw: [B, Cin, H, W] float32.  Returns (pred_cls, pred_loc, pred_var)
    in NCHW, matching the PyTorch module."""
    w3, b3, wh, bh, cc, cl = params        # cc/cl are python ints
    B, Cin, H, W = x_nchw.shape
    Wp = W + 2                             # padded width
    Q = H * Wp                             # flattened conv-output rows (2 junk cols/row)
    NPAD = wh.shape[1]                     # lane-dense fused head width (>=128)

    # Generation-aware sizing (v7x: 64 MiB VMEM/TC, v5e/v6e: 128 MiB).
    vmem_cap = _tpu_vmem_bytes()
    row_cap = 8192 if vmem_cap >= 100 * 1024 * 1024 else 2048
    vmem_limit = min((vmem_cap * 3) // 4, 100 * 1024 * 1024)

    # A conv tap (dy, dx) reads flattened row q + dy*Wp + dx -> halo of
    # 2*Wp + 2 rows past the tile; round to 16 to keep bf16 blocks aligned.
    HALO = _round_up(2 * Wp + 2, 16)
    TQ = min(_round_up(Q, HALO), _round_up(row_cap, HALO))
    NT = -(-Q // TQ)
    if B * NT < 2:                         # keep both v7x TensorCores busy
        tq2 = _round_up(-(-Q // 2), HALO)
        if tq2 < TQ:
            TQ, NT = tq2, -(-Q // tq2)
    assert TQ % HALO == 0 and HALO >= 2 * Wp + 2, "tile/halo invariant violated"
    R = NT * TQ + HALO                     # max flattened row the kernel touches

    # ---- glue: bf16 cast + NCHW->NHWC, then ONE pad covering both the 3x3
    # zero border and the flattened-row tail the last halo block reads. ----
    x_nhwc = jnp.transpose(x_nchw.astype(jnp.bfloat16), (0, 2, 3, 1))
    pad_bottom = 1 + -(-(R - (H + 2) * Wp) // Wp)      # R > (H+2)*Wp always
    x_pad = jnp.pad(x_nhwc, ((0, 0), (1, pad_bottom), (1, 1), (0, 0)))
    xf = x_pad.reshape(B, (H + 1 + pad_bottom) * Wp, Cin)

    offs = tuple(dy * Wp + dx for dy in range(3) for dx in range(3))

    def kernel(x_ref, halo_ref, w3_ref, b3_ref, wh_ref, bh_ref, out_ref):
        # x_ref:    (1, TQ, Cin)   bf16, flattened rows [t*TQ, (t+1)*TQ)
        # halo_ref: (1, HALO, Cin) bf16, flattened rows [(t+1)*TQ, (t+1)*TQ+HALO)
        xcat = jnp.concatenate([x_ref[0], halo_ref[0]], axis=0)  # one bf16 copy

        # In-VMEM im2col: lane-pack the 9 shifted tap views -> (TQ, 9*Cin),
        # then contract the full 3x3xCin window in a single MXU matmul with
        # f32 accumulation (K = 9*Cin instead of nine K=Cin matmuls).
        im2col = jnp.concatenate([xcat[off:off + TQ, :] for off in offs], axis=1)
        feat = jnp.dot(im2col, w3_ref[...], preferred_element_type=jnp.float32)
        feat = jnp.maximum(feat + b3_ref[...], 0.0)

        # Fused 1x1 heads: one lane-dense (512, NPAD) matmul; sigmoid on the
        # variation lanes only; single unmasked 128-lane-wide store.
        heads = jnp.dot(feat.astype(jnp.bfloat16), wh_ref[...],
                        preferred_element_type=jnp.float32) + bh_ref[...]
        col = lax.broadcasted_iota(jnp.int32, (1, NPAD), 1)
        var_cols = (col >= cc + cl) & (col < cc + 2 * cl)
        out_ref[0] = jnp.where(var_cols, jax.nn.sigmoid(heads), heads)

    def weight_spec(shape, single_buffer):
        # Constant index_map: block never changes across the grid.
        if single_buffer:
            return pl.BlockSpec(shape, lambda b, t: (0,) * len(shape),
                                pipeline_mode=pl.Buffered(1))
        return pl.BlockSpec(shape, lambda b, t: (0,) * len(shape))

    def make_call(single_buffer_weights):
        grid_spec = pltpu.PrefetchScalarGridSpec(
            num_scalar_prefetch=0,
            grid=(B, NT),
            in_specs=[
                # main row tile + small halo view (covers the 3x3 overlap)
                pl.BlockSpec((1, TQ, Cin), lambda b, t: (b, t, 0)),
                pl.BlockSpec((1, HALO, Cin),
                             lambda b, t: (b, (t + 1) * (TQ // HALO), 0)),
                weight_spec((9 * Cin, HIDDEN), single_buffer_weights),  # w3 bf16
                weight_spec((1, HIDDEN), single_buffer_weights),        # b3 f32
                weight_spec((HIDDEN, NPAD), single_buffer_weights),     # heads W bf16
                weight_spec((1, NPAD), single_buffer_weights),          # heads b f32
            ],
            out_specs=pl.BlockSpec((1, TQ, NPAD), lambda b, t: (b, t, 0)),
        )
        return pl.pallas_call(
            kernel,
            out_shape=jax.ShapeDtypeStruct((B, NT * TQ, NPAD), jnp.float32),
            grid_spec=grid_spec,
            compiler_params=pltpu.CompilerParams(
                dimension_semantics=("parallel", "parallel"),
                vmem_limit_bytes=vmem_limit),
        )

    try:
        out = make_call(True)(xf, xf, w3, b3, wh, bh)
    except Exception:
        # TODO(synk): drop this fallback once pl.Buffered(1) on constant-index
        # weight blocks is guaranteed on all deployed jax versions.
        out = make_call(False)(xf, xf, w3, b3, wh, bh)

    # ---- glue: drop junk rows/cols, split fused heads, back to NCHW ----
    z = out[:, :Q, :].reshape(B, H, Wp, NPAD)[:, :, :W, :]
    to_nchw = lambda t: jnp.transpose(t, (0, 3, 1, 2))
    pred_cls = to_nchw(z[..., :cc])
    pred_loc = to_nchw(z[..., cc:cc + cl])
    pred_var = to_nchw(z[..., cc + cl:cc + 2 * cl])
    return pred_cls, pred_loc, pred_var


def make_params(key, inplanes, num_classes, num_anchors):
    """Deterministic synthetic parameters in PyTorch layouts, converted to the
    layouts the kernel expects."""
    ks = jax.random.split(key, 8)
    Cc = num_anchors * num_classes
    Cl = num_anchors * 7
    # PyTorch layouts: conv weight (out, in, kh, kw), bias (out,)
    Wt3 = jax.random.normal(ks[0], (HIDDEN, inplanes, 3, 3), jnp.float32) * 0.05
    b3v = jax.random.normal(ks[1], (HIDDEN,), jnp.float32) * 0.05
    Wtc = jax.random.normal(ks[2], (Cc, HIDDEN, 1, 1), jnp.float32) * 0.05
    bcv = jax.random.normal(ks[3], (Cc,), jnp.float32) * 0.05
    Wtl = jax.random.normal(ks[4], (Cl, HIDDEN, 1, 1), jnp.float32) * 0.05
    blv = jax.random.normal(ks[5], (Cl,), jnp.float32) * 0.05
    Wtv = jax.random.normal(ks[6], (Cl, HIDDEN, 1, 1), jnp.float32) * 0.05
    bvv = jax.random.normal(ks[7], (Cl,), jnp.float32) * 0.05

    # conv3x3 weight -> im2col rows (tap-major, channel-minor):
    # (O,C,KH,KW) -> (KH,KW,C,O) -> (9*Cin, 512)
    w3 = jnp.transpose(Wt3, (2, 3, 1, 0)).reshape(9 * inplanes, HIDDEN)
    # fused 1x1 heads: columns = [cls | loc | var | zero pad] (lane-dense >=128)
    wh = jnp.concatenate([Wtc[:, :, 0, 0].T, Wtl[:, :, 0, 0].T, Wtv[:, :, 0, 0].T],
                         axis=1)
    bh = jnp.concatenate([bcv, blv, bvv])[None, :]
    CH = Cc + 2 * Cl
    NPAD = _round_up(max(CH, 128), 128)
    wh = jnp.pad(wh, ((0, 0), (0, NPAD - CH)))
    bh = jnp.pad(bh, ((0, 0), (0, NPAD - CH)))

    kernel_params = (w3.astype(jnp.bfloat16), b3v[None, :],
                     wh.astype(jnp.bfloat16), bh, Cc, Cl)
    torch_params = (Wt3, b3v, Wtc, bcv, Wtl, blv, Wtv, bvv)
    return kernel_params, torch_params


def reference(x, torch_params):
    """Pure-JAX f32 reference mirroring the PyTorch forward (NCHW convs)."""
    Wt3, b3v, Wtc, bcv, Wtl, blv, Wtv, bvv = torch_params
    dn = ('NCHW', 'OIHW', 'NCHW')
    y = lax.conv_general_dilated(x, Wt3, (1, 1), 'SAME', dimension_numbers=dn,
                                 precision=lax.Precision.HIGHEST)
    y = jnp.maximum(y + b3v[None, :, None, None], 0.0)

    def head(Wm, b):
        return lax.conv_general_dilated(y, Wm, (1, 1), 'SAME',
                                        dimension_numbers=dn,
                                        precision=lax.Precision.HIGHEST) \
               + b[None, :, None, None]

    return head(Wtc, bcv), head(Wtl, blv), jax.nn.sigmoid(head(Wtv, bvv))


if __name__ == "__main__":
    B, inplanes, H, W = 2, 32, 16, 16
    num_classes, num_anchors = 2, 3

    key = jax.random.PRNGKey(0)
    kx, kp = jax.random.split(key)
    x = jax.random.normal(kx, (B, inplanes, H, W), jnp.float32)
    kernel_params, torch_params = make_params(kp, inplanes, num_classes, num_anchors)

    cls, loc, var = naive_rpn_head(x, kernel_params)
    jax.block_until_ready((cls, loc, var))

    # sanity check against an f32 reference of the PyTorch forward (the kernel
    # feeds the MXU bf16 inputs with f32 accumulation, hence relaxed tolerance).
    cls_r, loc_r, var_r = reference(x, torch_params)
    assert cls.shape == (B, num_anchors * num_classes, H, W)
    assert loc.shape == (B, num_anchors * 7, H, W)
    assert var.shape == (B, num_anchors * 7, H, W)
    np.testing.assert_allclose(np.asarray(cls), np.asarray(cls_r), atol=3e-2, rtol=3e-2)
    np.testing.assert_allclose(np.asarray(loc), np.asarray(loc_r), atol=3e-2, rtol=3e-2)
    np.testing.assert_allclose(np.asarray(var), np.asarray(var_r), atol=3e-2, rtol=3e-2)

    print("KERNEL_OK")
</pallas_src>

<mosaic_0001>
module attributes {stable_mosaic.version = 11 : i64} {
  func.func @kernel(%arg0: i32, %arg1: i32, %arg2: memref<1x288x32xbf16, #tpu.memory_space<vmem>>, %arg3: memref<1x48x32xbf16, #tpu.memory_space<vmem>>, %arg4: memref<288x512xbf16, #tpu.memory_space<vmem>>, %arg5: memref<1x512xf32, #tpu.memory_space<vmem>>, %arg6: memref<512x128xbf16, #tpu.memory_space<vmem>>, %arg7: memref<1x128xf32, #tpu.memory_space<vmem>>, %arg8: memref<1x288x128xf32, #tpu.memory_space<vmem>>) attributes {dimension_semantics = [#tpu.dimension_semantics<parallel>, #tpu.dimension_semantics<parallel>], iteration_bounds = array<i64: 2, 1>, scalar_prefetch = 0 : i64, scratch_operands = 0 : i64, tpu.core_type = #tpu.core_type<tc>, window_params = [{transform_indices = @transform_0, window_bounds = array<i64: 1, 288, 32>}, {transform_indices = @transform_1, window_bounds = array<i64: 1, 48, 32>}, {pipeline_mode = #tpu.pipeline_mode<synchronous>, transform_indices = @transform_2, window_bounds = array<i64: 288, 512>}, {pipeline_mode = #tpu.pipeline_mode<synchronous>, transform_indices = @transform_3, window_bounds = array<i64: 1, 512>}, {pipeline_mode = #tpu.pipeline_mode<synchronous>, transform_indices = @transform_4, window_bounds = array<i64: 512, 128>}, {pipeline_mode = #tpu.pipeline_mode<synchronous>, transform_indices = @transform_5, window_bounds = array<i64: 1, 128>}, {transform_indices = @transform_6, window_bounds = array<i64: 1, 288, 128>}]} {
    %c0 = arith.constant 0 : index
    %c0_0 = arith.constant 0 : index
    %c0_1 = arith.constant 0 : index
    %0 = vector.load %arg2[%c0, %c0_0, %c0_1] : memref<1x288x32xbf16, #tpu.memory_space<vmem>>, vector<1x288x32xbf16>
    %1 = vector.shape_cast %0 : vector<1x288x32xbf16> to vector<288x32xbf16>
    %c0_2 = arith.constant 0 : index
    %c0_3 = arith.constant 0 : index
    %c0_4 = arith.constant 0 : index
    %2 = vector.load %arg3[%c0_2, %c0_3, %c0_4] : memref<1x48x32xbf16, #tpu.memory_space<vmem>>, vector<1x48x32xbf16>
    %3 = vector.shape_cast %2 : vector<1x48x32xbf16> to vector<48x32xbf16>
    %4 = tpu.concatenate %1, %3 in 0 : vector<288x32xbf16>, vector<48x32xbf16> -> vector<336x32xbf16>
    %5 = vector.extract_strided_slice %4 {offsets = [0, 0], sizes = [288, 32], strides = [1, 1]} : vector<336x32xbf16> to vector<288x32xbf16>
    %6 = vector.extract_strided_slice %4 {offsets = [1, 0], sizes = [288, 32], strides = [1, 1]} : vector<336x32xbf16> to vector<288x32xbf16>
    %7 = vector.extract_strided_slice %4 {offsets = [2, 0], sizes = [288, 32], strides = [1, 1]} : vector<336x32xbf16> to vector<288x32xbf16>
    %8 = vector.extract_strided_slice %4 {offsets = [18, 0], sizes = [288, 32], strides = [1, 1]} : vector<336x32xbf16> to vector<288x32xbf16>
    %9 = vector.extract_strided_slice %4 {offsets = [19, 0], sizes = [288, 32], strides = [1, 1]} : vector<336x32xbf16> to vector<288x32xbf16>
    %10 = vector.extract_strided_slice %4 {offsets = [20, 0], sizes = [288, 32], strides = [1, 1]} : vector<336x32xbf16> to vector<288x32xbf16>
    %11 = vector.extract_strided_slice %4 {offsets = [36, 0], sizes = [288, 32], strides = [1, 1]} : vector<336x32xbf16> to vector<288x32xbf16>
    %12 = vector.extract_strided_slice %4 {offsets = [37, 0], sizes = [288, 32], strides = [1, 1]} : vector<336x32xbf16> to vector<288x32xbf16>
    %13 = vector.extract_strided_slice %4 {offsets = [38, 0], sizes = [288, 32], strides = [1, 1]} : vector<336x32xbf16> to vector<288x32xbf16>
    %14 = tpu.concatenate %5, %6, %7, %8, %9, %10, %11, %12, %13 in 1 : vector<288x32xbf16>, vector<288x32xbf16>, vector<288x32xbf16>, vector<288x32xbf16>, vector<288x32xbf16>, vector<288x32xbf16>, vector<288x32xbf16>, vector<288x32xbf16>, vector<288x32xbf16> -> vector<288x288xbf16>
    %c0_5 = arith.constant 0 : index
    %c0_6 = arith.constant 0 : index
    %15 = vector.load %arg4[%c0_5, %c0_6] : memref<288x512xbf16, #tpu.memory_space<vmem>>, vector<288x512xbf16>
    %cst = arith.constant dense<0.000000e+00> : vector<288x512xf32>
    %16 = tpu.matmul %14, %15, %cst {dimension_numbers = #tpu.dot_dimension_numbers<[1], [0], [0], [1], [0, 0, 1, 1], [], []>} : vector<288x288xbf16>, vector<288x512xbf16>, vector<288x512xf32> -> vector<288x512xf32>
    %c0_7 = arith.constant 0 : index
    %c0_8 = arith.constant 0 : index
    %17 = vector.load %arg5[%c0_7, %c0_8] : memref<1x512xf32, #tpu.memory_space<vmem>>, vector<1x512xf32>
    %18 = vector.broadcast %17 : vector<1x512xf32> to vector<288x512xf32>
    %19 = arith.addf %16, %18 : vector<288x512xf32>
    %cst_9 = arith.constant 0.000000e+00 : f32
    %20 = vector.broadcast %cst_9 : f32 to vector<288x512xf32>
    %21 = arith.maximumf %19, %20 : vector<288x512xf32>
    %22 = arith.truncf %21 : vector<288x512xf32> to vector<288x512xbf16>
    %c0_10 = arith.constant 0 : index
    %c0_11 = arith.constant 0 : index
    %23 = vector.load %arg6[%c0_10, %c0_11] : memref<512x128xbf16, #tpu.memory_space<vmem>>, vector<512x128xbf16>
    %cst_12 = arith.constant dense<0.000000e+00> : vector<288x128xf32>
    %24 = tpu.matmul %22, %23, %cst_12 {dimension_numbers = #tpu.dot_dimension_numbers<[1], [0], [0], [1], [0, 0, 1, 1], [], []>} : vector<288x512xbf16>, vector<512x128xbf16>, vector<288x128xf32> -> vector<288x128xf32>
    %c0_13 = arith.constant 0 : index
    %c0_14 = arith.constant 0 : index
    %25 = vector.load %arg7[%c0_13, %c0_14] : memref<1x128xf32, #tpu.memory_space<vmem>>, vector<1x128xf32>
    %26 = vector.broadcast %25 : vector<1x128xf32> to vector<288x128xf32>
    %27 = arith.addf %24, %26 : vector<288x128xf32>
    %28 = tpu.iota {dimensions = array<i32: 1>} : vector<1x128xi32>
    %c27_i32 = arith.constant 27 : i32
    %29 = vector.broadcast %c27_i32 : i32 to vector<1x128xi32>
    %30 = arith.cmpi sge, %28, %29 : vector<1x128xi32>
    %c48_i32 = arith.constant 48 : i32
    %31 = vector.broadcast %c48_i32 : i32 to vector<1x128xi32>
    %32 = arith.cmpi slt, %28, %31 : vector<1x128xi32>
    %33 = arith.andi %30, %32 : vector<1x128xi1>
    %34 = arith.negf %27 : vector<288x128xf32>
    %35 = math.exp %34 : vector<288x128xf32>
    %cst_15 = arith.constant 1.000000e+00 : f32
    %36 = vector.broadcast %cst_15 : f32 to vector<288x128xf32>
    %37 = arith.addf %36, %35 : vector<288x128xf32>
    %38 = arith.divf %36, %37 : vector<288x128xf32>
    %39 = vector.shape_cast %33 : vector<1x128xi1> to vector<1x128xi1>
    %40 = vector.broadcast %39 : vector<1x128xi1> to vector<288x128xi1>
    %41 = arith.select %40, %38, %27 : vector<288x128xi1>, vector<288x128xf32>
    %c0_16 = arith.constant 0 : index
    %c0_17 = arith.constant 0 : index
    %c0_18 = arith.constant 0 : index
    %42 = vector.load %arg8[%c0_16, %c0_17, %c0_18] : memref<1x288x128xf32, #tpu.memory_space<vmem>>, vector<1x288x128xf32>
    %43 = vector.shape_cast %42 : vector<1x288x128xf32> to vector<288x128xf32>
    %44 = vector.shape_cast %41 : vector<288x128xf32> to vector<1x288x128xf32>
    tpu.vector_store %arg8[%c0_16, %c0_17, %c0_18], %44 {strides = array<i32>} : memref<1x288x128xf32, #tpu.memory_space<vmem>>, vector<1x288x128xf32>,
    return
  }
  func.func @transform_0(%arg0: i32, %arg1: i32) -> (i32, i32, i32) {
    %c0_i32 = arith.constant 0 : i32
    %c0_i32_0 = arith.constant 0 : i32
    return %arg0, %arg1, %c0_i32 : i32, i32, i32
  }
  func.func @transform_1(%arg0: i32, %arg1: i32) -> (i32, i32, i32) {
    %c1_i32 = arith.constant 1 : i32
    %0 = arith.addi %arg1, %c1_i32 : i32
    %c6_i32 = arith.constant 6 : i32
    %1 = arith.muli %0, %c6_i32 : i32
    %c0_i32 = arith.constant 0 : i32
    %c0_i32_0 = arith.constant 0 : i32
    return %arg0, %1, %c0_i32 : i32, i32, i32
  }
  func.func @transform_2(%arg0: i32, %arg1: i32) -> (i32, i32) {
    %c0_i32 = arith.constant 0 : i32
    %c0_i32_0 = arith.constant 0 : i32
    %c0_i32_1 = arith.constant 0 : i32
    return %c0_i32, %c0_i32_0 : i32, i32
  }
  func.func @transform_3(%arg0: i32, %arg1: i32) -> (i32, i32) {
    %c0_i32 = arith.constant 0 : i32
    %c0_i32_0 = arith.constant 0 : i32
    %c0_i32_1 = arith.constant 0 : i32
    return %c0_i32, %c0_i32_0 : i32, i32
  }
  func.func @transform_4(%arg0: i32, %arg1: i32) -> (i32, i32) {
    %c0_i32 = arith.constant 0 : i32
    %c0_i32_0 = arith.constant 0 : i32
    %c0_i32_1 = arith.constant 0 : i32
    return %c0_i32, %c0_i32_0 : i32, i32
  }
  func.func @transform_5(%arg0: i32, %arg1: i32) -> (i32, i32) {
    %c0_i32 = arith.constant 0 : i32
    %c0_i32_0 = arith.constant 0 : i32
    %c0_i32_1 = arith.constant 0 : i32
    return %c0_i32, %c0_i32_0 : i32, i32
  }
  func.func @transform_6(%arg0: i32, %arg1: i32) -> (i32, i32, i32) {
    %c0_i32 = arith.constant 0 : i32
    %c0_i32_0 = arith.constant 0 : i32
    return %arg0, %arg1, %c0_i32 : i32, i32, i32
  }
}

module attributes {stable_mosaic.version = 11 : i64} {
  func.func @kernel(%arg0: i32, %arg1: i32, %arg2: memref<1x288x32xbf16, #tpu.memory_space<vmem>>, %arg3: memref<1x48x32xbf16, #tpu.memory_space<vmem>>, %arg4: memref<288x512xbf16, #tpu.memory_space<vmem>>, %arg5: memref<1x512xf32, #tpu.memory_space<vmem>>, %arg6: memref<512x128xbf16, #tpu.memory_space<vmem>>, %arg7: memref<1x128xf32, #tpu.memory_space<vmem>>, %arg8: memref<1x288x128xf32, #tpu.memory_space<vmem>>) attributes {dimension_semantics = [#tpu.dimension_semantics<parallel>, #tpu.dimension_semantics<parallel>], iteration_bounds = array<i64: 2, 1>, scalar_prefetch = 0 : i64, scratch_operands = 0 : i64, tpu.core_type = #tpu.core_type<tc>, window_params = [{transform_indices = @transform_0, window_bounds = array<i64: 1, 288, 32>}, {transform_indices = @transform_1, window_bounds = array<i64: 1, 48, 32>}, {pipeline_mode = #tpu.pipeline_mode<synchronous>, transform_indices = @transform_2, window_bounds = array<i64: 288, 512>}, {pipeline_mode = #tpu.pipeline_mode<synchronous>, transform_indices = @transform_3, window_bounds = array<i64: 1, 512>}, {pipeline_mode = #tpu.pipeline_mode<synchronous>, transform_indices = @transform_4, window_bounds = array<i64: 512, 128>}, {pipeline_mode = #tpu.pipeline_mode<synchronous>, transform_indices = @transform_5, window_bounds = array<i64: 1, 128>}, {transform_indices = @transform_6, window_bounds = array<i64: 1, 288, 128>}]} {
    %c0 = arith.constant 0 : index
    %c0_0 = arith.constant 0 : index
    %c0_1 = arith.constant 0 : index
    %0 = vector.load %arg2[%c0, %c0_0, %c0_1] : memref<1x288x32xbf16, #tpu.memory_space<vmem>>, vector<1x288x32xbf16>
    %1 = vector.shape_cast %0 : vector<1x288x32xbf16> to vector<288x32xbf16>
    %c0_2 = arith.constant 0 : index
    %c0_3 = arith.constant 0 : index
    %c0_4 = arith.constant 0 : index
    %2 = vector.load %arg3[%c0_2, %c0_3, %c0_4] : memref<1x48x32xbf16, #tpu.memory_space<vmem>>, vector<1x48x32xbf16>
    %3 = vector.shape_cast %2 : vector<1x48x32xbf16> to vector<48x32xbf16>
    %4 = tpu.concatenate %1, %3 in 0 : vector<288x32xbf16>, vector<48x32xbf16> -> vector<336x32xbf16>
    %5 = vector.extract_strided_slice %4 {offsets = [0, 0], sizes = [288, 32], strides = [1, 1]} : vector<336x32xbf16> to vector<288x32xbf16>
    %6 = vector.extract_strided_slice %4 {offsets = [1, 0], sizes = [288, 32], strides = [1, 1]} : vector<336x32xbf16> to vector<288x32xbf16>
    %7 = vector.extract_strided_slice %4 {offsets = [2, 0], sizes = [288, 32], strides = [1, 1]} : vector<336x32xbf16> to vector<288x32xbf16>
    %8 = vector.extract_strided_slice %4 {offsets = [18, 0], sizes = [288, 32], strides = [1, 1]} : vector<336x32xbf16> to vector<288x32xbf16>
    %9 = vector.extract_strided_slice %4 {offsets = [19, 0], sizes = [288, 32], strides = [1, 1]} : vector<336x32xbf16> to vector<288x32xbf16>
    %10 = vector.extract_strided_slice %4 {offsets = [20, 0], sizes = [288, 32], strides = [1, 1]} : vector<336x32xbf16> to vector<288x32xbf16>
    %11 = vector.extract_strided_slice %4 {offsets = [36, 0], sizes = [288, 32], strides = [1, 1]} : vector<336x32xbf16> to vector<288x32xbf16>
    %12 = vector.extract_strided_slice %4 {offsets = [37, 0], sizes = [288, 32], strides = [1, 1]} : vector<336x32xbf16> to vector<288x32xbf16>
    %13 = vector.extract_strided_slice %4 {offsets = [38, 0], sizes = [288, 32], strides = [1, 1]} : vector<336x32xbf16> to vector<288x32xbf16>
    %14 = tpu.concatenate %5, %6, %7, %8, %9, %10, %11, %12, %13 in 1 : vector<288x32xbf16>, vector<288x32xbf16>, vector<288x32xbf16>, vector<288x32xbf16>, vector<288x32xbf16>, vector<288x32xbf16>, vector<288x32xbf16>, vector<288x32xbf16>, vector<288x32xbf16> -> vector<288x288xbf16>
    %c0_5 = arith.constant 0 : index
    %c0_6 = arith.constant 0 : index
    %15 = vector.load %arg4[%c0_5, %c0_6] : memref<288x512xbf16, #tpu.memory_space<vmem>>, vector<288x512xbf16>
    %cst = arith.constant dense<0.000000e+00> : vector<288x512xf32>
    %16 = tpu.matmul %14, %15, %cst {dimension_numbers = #tpu.dot_dimension_numbers<[1], [0], [0], [1], [0, 0, 1, 1], [], []>} : vector<288x288xbf16>, vector<288x512xbf16>, vector<288x512xf32> -> vector<288x512xf32>
    %c0_7 = arith.constant 0 : index
    %c0_8 = arith.constant 0 : index
    %17 = vector.load %arg5[%c0_7, %c0_8] : memref<1x512xf32, #tpu.memory_space<vmem>>, vector<1x512xf32>
    %18 = vector.broadcast %17 : vector<1x512xf32> to vector<288x512xf32>
    %19 = arith.addf %16, %18 : vector<288x512xf32>
    %cst_9 = arith.constant 0.000000e+00 : f32
    %20 = vector.broadcast %cst_9 : f32 to vector<288x512xf32>
    %21 = arith.maximumf %19, %20 : vector<288x512xf32>
    %22 = arith.truncf %21 : vector<288x512xf32> to vector<288x512xbf16>
    %c0_10 = arith.constant 0 : index
    %c0_11 = arith.constant 0 : index
    %23 = vector.load %arg6[%c0_10, %c0_11] : memref<512x128xbf16, #tpu.memory_space<vmem>>, vector<512x128xbf16>
    %cst_12 = arith.constant dense<0.000000e+00> : vector<288x128xf32>
    %24 = tpu.matmul %22, %23, %cst_12 {dimension_numbers = #tpu.dot_dimension_numbers<[1], [0], [0], [1], [0, 0, 1, 1], [], []>} : vector<288x512xbf16>, vector<512x128xbf16>, vector<288x128xf32> -> vector<288x128xf32>
    %c0_13 = arith.constant 0 : index
    %c0_14 = arith.constant 0 : index
    %25 = vector.load %arg7[%c0_13, %c0_14] : memref<1x128xf32, #tpu.memory_space<vmem>>, vector<1x128xf32>
    %26 = vector.broadcast %25 : vector<1x128xf32> to vector<288x128xf32>
    %27 = arith.addf %24, %26 : vector<288x128xf32>
    %28 = tpu.iota {dimensions = array<i32: 1>} : vector<1x128xi32>
    %c27_i32 = arith.constant 27 : i32
    %29 = vector.broadcast %c27_i32 : i32 to vector<1x128xi32>
    %30 = arith.cmpi sge, %28, %29 : vector<1x128xi32>
    %c48_i32 = arith.constant 48 : i32
    %31 = vector.broadcast %c48_i32 : i32 to vector<1x128xi32>
    %32 = arith.cmpi slt, %28, %31 : vector<1x128xi32>
    %33 = arith.andi %30, %32 : vector<1x128xi1>
    %34 = arith.negf %27 : vector<288x128xf32>
    %35 = math.exp %34 : vector<288x128xf32>
    %cst_15 = arith.constant 1.000000e+00 : f32
    %36 = vector.broadcast %cst_15 : f32 to vector<288x128xf32>
    %37 = arith.addf %36, %35 : vector<288x128xf32>
    %38 = arith.divf %36, %37 : vector<288x128xf32>
    %39 = vector.shape_cast %33 : vector<1x128xi1> to vector<1x128xi1>
    %40 = vector.broadcast %39 : vector<1x128xi1> to vector<288x128xi1>
    %41 = arith.select %40, %38, %27 : vector<288x128xi1>, vector<288x128xf32>
    %c0_16 = arith.constant 0 : index
    %c0_17 = arith.constant 0 : index
    %c0_18 = arith.constant 0 : index
    %42 = vector.load %arg8[%c0_16, %c0_17, %c0_18] : memref<1x288x128xf32, #tpu.memory_space<vmem>>, vector<1x288x128xf32>
    %43 = vector.shape_cast %42 : vector<1x288x128xf32> to vector<288x128xf32>
    %44 = vector.shape_cast %41 : vector<288x128xf32> to vector<1x288x128xf32>
    tpu.vector_store %arg8[%c0_16, %c0_17, %c0_18], %44 {strides = array<i32>} : memref<1x288x128xf32, #tpu.memory_space<vmem>>, vector<1x288x128xf32>,
    return
  }
  func.func @transform_0(%arg0: i32, %arg1: i32) -> (i32, i32, i32) {
    %c0_i32 = arith.constant 0 : i32
    %c0_i32_0 = arith.constant 0 : i32
    return %arg0, %arg1, %c0_i32 : i32, i32, i32
  }
  func.func @transform_1(%arg0: i32, %arg1: i32) -> (i32, i32, i32) {
    %c1_i32 = arith.constant 1 : i32
    %0 = arith.addi %arg1, %c1_i32 : i32
    %c6_i32 = arith.constant 6 : i32
    %1 = arith.muli %0, %c6_i32 : i32
    %c0_i32 = arith.constant 0 : i32
    %c0_i32_0 = arith.constant 0 : i32
    return %arg0, %1, %c0_i32 : i32, i32, i32
  }
  func.func @transform_2(%arg0: i32, %arg1: i32) -> (i32, i32) {
    %c0_i32 = arith.constant 0 : i32
    %c0_i32_0 = arith.constant 0 : i32
    %c0_i32_1 = arith.constant 0 : i32
    return %c0_i32, %c0_i32_0 : i32, i32
  }
  func.func @transform_3(%arg0: i32, %arg1: i32) -> (i32, i32) {
    %c0_i32 = arith.constant 0 : i32
    %c0_i32_0 = arith.constant 0 : i32
    %c0_i32_1 = arith.constant 0 : i32
    return %c0_i32, %c0_i32_0 : i32, i32
  }
  func.func @transform_4(%arg0: i32, %arg1: i32) -> (i32, i32) {
    %c0_i32 = arith.constant 0 : i32
    %c0_i32_0 = arith.constant 0 : i32
    %c0_i32_1 = arith.constant 0 : i32
    return %c0_i32, %c0_i32_0 : i32, i32
  }
  func.func @transform_5(%arg0: i32, %arg1: i32) -> (i32, i32) {
    %c0_i32 = arith.constant 0 : i32
    %c0_i32_0 = arith.constant 0 : i32
    %c0_i32_1 = arith.constant 0 : i32
    return %c0_i32, %c0_i32_0 : i32, i32
  }
  func.func @transform_6(%arg0: i32, %arg1: i32) -> (i32, i32, i32) {
    %c0_i32 = arith.constant 0 : i32
    %c0_i32_0 = arith.constant 0 : i32
    return %arg0, %arg1, %c0_i32 : i32, i32, i32
  }
}

</mosaic_0001>

<llo_original>
// kernel: tpu_custom_call.1
$region0: #{tpu_custom_call.1}
  #allocation0 [shape = 'u32[]', space=smem, size = 0x4, offset = 0x4, fixed_abs, tag = 'smem constant byte address 0x4 - core index']
  #allocation1 [shape = 'u32[144,128]{1,0:T(1,128)}', space=vmem, size = 0x12000, scoped, tag = 'internal scratch']
  %s0 = inlined_call_operand.vmem [shape: bf16[2,342,32], index: 0, kind: input, shape index: {}]
  %s1 = inlined_call_operand.vmem [shape: bf16[2,342,32], index: 1, kind: input, shape index: {}]
  %s2 = inlined_call_operand.vmem [shape: bf16[288,512], index: 2, kind: input, shape index: {}]
  %s3 = inlined_call_operand.vmem [shape: f32[1,512], index: 3, kind: input, shape index: {}]
  %s4 = inlined_call_operand.vmem [shape: bf16[512,128], index: 4, kind: input, shape index: {}]
  %s5 = inlined_call_operand.vmem [shape: f32[1,128], index: 5, kind: input, shape index: {}]
  %s6 = inlined_call_operand.hbm [shape: f32[2,288,128], index: 6, kind: output, shape index: {}]
  %s7 = sld [smem:[#allocation0]]
  $region57: #{tpu_custom_call.1} parent=0
    _
  %s9 = ssub.s32 1, %s7
  %s10 = scalar_select 0, %s9, %s7
  $region1: #{tpu_custom_call.1} parent=0
    #allocation2 [shape = 'u8[294912]{0}', space=vmem, size = 0x48000, scoped, tag = 'output window, operand 0']
    #allocation3 [shape = 's32[2]{0}', space=sflag, size = 0x8, scoped, tag = 'scoped memory for tpu_custom_call.1']
    %11 = vsyncpa [#allocation3], 0
    %s12 = scalar_lea.sflag [#allocation3], 1
    %13 = vsyncpa %s12, 0
    loop: start=0, step=1, limit=4
    $region2: #{tpu_custom_call.1} parent=1 // loop_pre_header
      _
    $region3: #{tpu_custom_call.1} parent=1 // loop_header
      %s15 = sphi 0, %s19
      %p16 = scmp.ge.s32.totalorder %s15, 4
      %s22 = sphi 0, %s34
      %s23 = sphi 0, %s30
      %s24 = sphi 0, %s22
      %s25 = sphi 0, %s23
      %s26 = sphi 0, %s24
      %s27 = sphi 0, %s25
      %s39 = sphi 0, %s41
      %s42 = sphi 0, %s39
      %s43 = sphi 0, %s42
      %s59 = sphi 0, %s43
      %s71 = sphi 0, %s73
      %s74 = sphi 0, %s71
      %s75 = sphi 0, %s74
      %s91 = sphi 0, %s75
      %s95 = sphi 0, %s95
      %s97 = sphi 0, %s95
      %s98 = sphi 0, %s97
      %s112 = sphi 0, %s98
      %s116 = sphi 0, %s116
      %s118 = sphi 0, %s116
      %s119 = sphi 0, %s118
      %s133 = sphi 0, %s119
      %s137 = sphi 0, %s137
      %s139 = sphi 0, %s137
      %s140 = sphi 0, %s139
      %s154 = sphi 0, %s140
      %s158 = sphi 0, %s158
      %s160 = sphi 0, %s158
      %s161 = sphi 0, %s160
      %s175 = sphi 0, %s161
      %s183 = sphi 0, %s185
      %s186 = sphi 0, %s183
      %s187 = sphi 0, %s186
      %s203 = sphi 0, %s187
    $region4: #{tpu_custom_call.1} parent=1 // loop_header_branch
      %18 = sbr.rel (%p16) target = $region8
    $region5: #{tpu_custom_call.1} parent=1 // loop_body
      %s20 = ssub.s32 %s15, 1
      %s21 = ssub.s32 %s15, 2
      %s28 = sadd.s32 1, %s23
      %p29 = scmp.ge.s32.totalorder %s28, 1
      %s30 = scalar_select %p29, 0, %s28
      %s31 = sadd.s32 1, %s22
      %s32 = scalar_select %p29, %s31, %s22
      %p33 = scmp.ge.s32.totalorder %s32, 2
      %s34 = scalar_select %p33, 0, %s32
      %s35 = ssub.s32 %s22, %s34
      %s36 = ssub.s32 %s23, %s30
      %s37 = sor.u32 %s35, %s36
      %p38 = scmp.eq.s32.totalorder %s37, 0
      %s40 = sadd.s32 %s39, 1
      %s41 = scalar_select %p38, %s39, %s40
      %p44 = pneg %p38
      %p45 = scmp.eq.s32.totalorder %s15, 1
      %p46 = por %p44, %p45
      %p47 = scmp.ne.s32.totalorder %s39, %s42
      %p48 = scmp.eq.s32.totalorder %s15, 0
      %p49 = por %p47, %p48
      %p50 = scmp.ne.s32.totalorder %s39, %s42
      %p51 = scmp.eq.s32.totalorder %s20, 1
      %p52 = por %p50, %p51
      %p53 = scmp.ne.s32.totalorder %s42, %s43
      %p54 = scmp.eq.s32.totalorder %s20, 0
      %p55 = por %p53, %p54
      %p56 = scmp.ne.s32.totalorder %s42, %s43
      %p57 = scmp.eq.s32.totalorder %s21, 1
      %p58 = por %p56, %p57
      %p60 = scmp.ne.s32.totalorder %s43, %s59
      %p61 = scmp.eq.s32.totalorder %s21, 0
      %p62 = por %p60, %p61
      %s63 = sadd.s32 %s23, 1
      %s64 = smul.u32 %s63, 6
      %s65 = sadd.s32 %s30, 1
      %s66 = smul.u32 %s65, 6
      %s67 = ssub.s32 %s22, %s34
      %s68 = ssub.s32 %s64, %s66
      %s69 = sor.u32 %s67, %s68
      %p70 = scmp.eq.s32.totalorder %s69, 0
      %s72 = sadd.s32 %s71, 1
      %s73 = scalar_select %p70, %s71, %s72
      %p76 = pneg %p70
      %p77 = scmp.eq.s32.totalorder %s15, 1
      %p78 = por %p76, %p77
      %p79 = scmp.ne.s32.totalorder %s71, %s74
      %p80 = scmp.eq.s32.totalorder %s15, 0
      %p81 = por %p79, %p80
      %p82 = scmp.ne.s32.totalorder %s71, %s74
      %p83 = scmp.eq.s32.totalorder %s20, 1
      %p84 = por %p82, %p83
      %p85 = scmp.ne.s32.totalorder %s74, %s75
      %p86 = scmp.eq.s32.totalorder %s20, 0
      %p87 = por %p85, %p86
      %p88 = scmp.ne.s32.totalorder %s74, %s75
      %p89 = scmp.eq.s32.totalorder %s21, 1
      %p90 = por %p88, %p89
      %p92 = scmp.ne.s32.totalorder %s75, %s91
      %p93 = scmp.eq.s32.totalorder %s21, 0
      %p94 = por %p92, %p93
      %s96 = sadd.s32 %s95, 1
      %p99 = scmp.eq.s32.totalorder %s15, 1
      %p100 = scmp.ne.s32.totalorder %s95, %s97
      %p101 = scmp.eq.s32.totalorder %s15, 0
      %p102 = por %p100, %p101
      %p103 = scmp.ne.s32.totalorder %s95, %s97
      %p104 = scmp.eq.s32.totalorder %s20, 1
      %p105 = por %p103, %p104
      %p106 = scmp.ne.s32.totalorder %s97, %s98
      %p107 = scmp.eq.s32.totalorder %s20, 0
      %p108 = por %p106, %p107
      %p109 = scmp.ne.s32.totalorder %s97, %s98
      %p110 = scmp.eq.s32.totalorder %s21, 1
      %p111 = por %p109, %p110
      %p113 = scmp.ne.s32.totalorder %s98, %s112
      %p114 = scmp.eq.s32.totalorder %s21, 0
      %p115 = por %p113, %p114
      %s117 = sadd.s32 %s116, 1
      %p120 = scmp.eq.s32.totalorder %s15, 1
      %p121 = scmp.ne.s32.totalorder %s116, %s118
      %p122 = scmp.eq.s32.totalorder %s15, 0
      %p123 = por %p121, %p122
      %p124 = scmp.ne.s32.totalorder %s116, %s118
      %p125 = scmp.eq.s32.totalorder %s20, 1
      %p126 = por %p124, %p125
      %p127 = scmp.ne.s32.totalorder %s118, %s119
      %p128 = scmp.eq.s32.totalorder %s20, 0
      %p129 = por %p127, %p128
      %p130 = scmp.ne.s32.totalorder %s118, %s119
      %p131 = scmp.eq.s32.totalorder %s21, 1
      %p132 = por %p130, %p131
      %p134 = scmp.ne.s32.totalorder %s119, %s133
      %p135 = scmp.eq.s32.totalorder %s21, 0
      %p136 = por %p134, %p135
      %s138 = sadd.s32 %s137, 1
      %p141 = scmp.eq.s32.totalorder %s15, 1
      %p142 = scmp.ne.s32.totalorder %s137, %s139
      %p143 = scmp.eq.s32.totalorder %s15, 0
      %p144 = por %p142, %p143
      %p145 = scmp.ne.s32.totalorder %s137, %s139
      %p146 = scmp.eq.s32.totalorder %s20, 1
      %p147 = por %p145, %p146
      %p148 = scmp.ne.s32.totalorder %s139, %s140
      %p149 = scmp.eq.s32.totalorder %s20, 0
      %p150 = por %p148, %p149
      %p151 = scmp.ne.s32.totalorder %s139, %s140
      %p152 = scmp.eq.s32.totalorder %s21, 1
      %p153 = por %p151, %p152
      %p155 = scmp.ne.s32.totalorder %s140, %s154
      %p156 = scmp.eq.s32.totalorder %s21, 0
      %p157 = por %p155, %p156
      %s159 = sadd.s32 %s158, 1
      %p162 = scmp.eq.s32.totalorder %s15, 1
      %p163 = scmp.ne.s32.totalorder %s158, %s160
      %p164 = scmp.eq.s32.totalorder %s15, 0
      %p165 = por %p163, %p164
      %p166 = scmp.ne.s32.totalorder %s158, %s160
      %p167 = scmp.eq.s32.totalorder %s20, 1
      %p168 = por %p166, %p167
      %p169 = scmp.ne.s32.totalorder %s160, %s161
      %p170 = scmp.eq.s32.totalorder %s20, 0
      %p171 = por %p169, %p170
      %p172 = scmp.ne.s32.totalorder %s160, %s161
      %p173 = scmp.eq.s32.totalorder %s21, 1
      %p174 = por %p172, %p173
      %p176 = scmp.ne.s32.totalorder %s161, %s175
      %p177 = scmp.eq.s32.totalorder %s21, 0
      %p178 = por %p176, %p177
      %s179 = ssub.s32 %s22, %s34
      %s180 = ssub.s32 %s23, %s30
      %s181 = sor.u32 %s179, %s180
      %p182 = scmp.eq.s32.totalorder %s181, 0
      %s184 = sadd.s32 %s183, 1
      %s185 = scalar_select %p182, %s183, %s184
      %p188 = pneg %p182
      %p189 = scmp.eq.s32.totalorder %s15, 1
      %p190 = por %p188, %p189
      %p191 = scmp.ne.s32.totalorder %s183, %s186
      %p192 = scmp.eq.s32.totalorder %s15, 0
      %p193 = por %p191, %p192
      %p194 = scmp.ne.s32.totalorder %s183, %s186
      %p195 = scmp.eq.s32.totalorder %s20, 1
      %p196 = por %p194, %p195
      %p197 = scmp.ne.s32.totalorder %s186, %s187
      %p198 = scmp.eq.s32.totalorder %s20, 0
      %p199 = por %p197, %p198
      %p200 = scmp.ne.s32.totalorder %s186, %s187
      %p201 = scmp.eq.s32.totalorder %s21, 1
      %p202 = por %p200, %p201
      %p204 = scmp.ne.s32.totalorder %s187, %s203
      %p205 = scmp.eq.s32.totalorder %s21, 0
      %p206 = por %p204, %p205
      %p207 = scmp.le.s32.totalorder 1, %s15
      %p208 = scmp.lt.s32.totalorder %s15, 3
      %p209 = pnand %p207, %p208
      %p210 = pneg %p209
      // Predicated region
      $region9: #{tpu_custom_call.1} parent=5 // pred_check
        _
      $region10: #{tpu_custom_call.1} parent=5 // pred_check_branch
        %212 = sbr.rel (%p209) target = $region12
      $region11: #{tpu_custom_call.1} parent=5 // pred_region
        %s213 = ssub.s32 %s15, 1
        // Predicated region
        $region13: #{tpu_custom_call.1} parent=11 // pred_check
          %p214 = pneg %p108
        $region14: #{tpu_custom_call.1} parent=11 // pred_check_branch
          %216 = sbr.rel (%p214) target = $region16
        $region15: #{tpu_custom_call.1} parent=11 // pred_region
          _
        $region16: #{tpu_custom_call.1} parent=11 // pred_fallthru
          _
        // Predicated region
        $region17: #{tpu_custom_call.1} parent=11 // pred_check
          %p217 = pneg %p129
        $region18: #{tpu_custom_call.1} parent=11 // pred_check_branch
          %219 = sbr.rel (%p217) target = $region20
        $region19: #{tpu_custom_call.1} parent=11 // pred_region
          _
        $region20: #{tpu_custom_call.1} parent=11 // pred_fallthru
          _
        // Predicated region
        $region21: #{tpu_custom_call.1} parent=11 // pred_check
          %p220 = pneg %p150
        $region22: #{tpu_custom_call.1} parent=11 // pred_check_branch
          %222 = sbr.rel (%p220) target = $region24
        $region23: #{tpu_custom_call.1} parent=11 // pred_region
          _
        $region24: #{tpu_custom_call.1} parent=11 // pred_fallthru
          _
        // Predicated region
        $region25: #{tpu_custom_call.1} parent=11 // pred_check
          %p223 = pneg %p171
        $region26: #{tpu_custom_call.1} parent=11 // pred_check_branch
          %225 = sbr.rel (%p223) target = $region28
        $region27: #{tpu_custom_call.1} parent=11 // pred_region
          _
        $region28: #{tpu_custom_call.1} parent=11 // pred_fallthru
          _
      $region12: #{tpu_custom_call.1} parent=5 // pred_fallthru
        _
      %p226 = scmp.lt.s32.totalorder %s15, 2
      // Predicated region
      $region29: #{tpu_custom_call.1} parent=5 // pred_check
        %p227 = pneg %p226
      $region30: #{tpu_custom_call.1} parent=5 // pred_check_branch
        %229 = sbr.rel (%p227) target = $region32
      $region31: #{tpu_custom_call.1} parent=5 // pred_region
        // Predicated region
        $region33: #{tpu_custom_call.1} parent=31 // pred_check
          %p230 = pneg %p49
        $region34: #{tpu_custom_call.1} parent=31 // pred_check_branch
          %232 = sbr.rel (%p230) target = $region36
        $region35: #{tpu_custom_call.1} parent=31 // pred_region
          %s233 = smul.u32 36, %s23
          %s234 = ssub.s32 43, %s233
          %p235 = scmp.lt.s32.totalorder %s234, 36
          %s236 = scalar_select %p235, %s234, 36
          %s237 = smul.u32 64, %s236
          %p238 = scmp.lt.s32.totalorder %s22, 1
          %s239 = scalar_select %p238, %s22, 1
          %p240 = scmp.lt.s32.totalorder %s233, 42
          %s241 = scalar_select %p240, %s233, 42
          %s242 = smul.addr %s239, 43
          %s243 = sadd.s32 %s241, %s242
          %s244 = smul.addr %s243, 4
          %s245 = scalar_lea.vmem %s0, %s244
          %s246 = smul.u32 36, %s23
          %s247 = ssub.s32 43, %s246
          %p248 = scmp.lt.s32.totalorder %s247, 36
          %s249 = scalar_select %p248, %s247, 36
          %s250 = smul.u32 64, %s249
        $region36: #{tpu_custom_call.1} parent=31 // pred_fallthru
          _
        // Predicated region
        $region37: #{tpu_custom_call.1} parent=31 // pred_check
          %p251 = pneg %p81
        $region38: #{tpu_custom_call.1} parent=31 // pred_check_branch
          %253 = sbr.rel (%p251) target = $region40
        $region39: #{tpu_custom_call.1} parent=31 // pred_region
          %s254 = sadd.s32 %s23, 1
          %s255 = smul.u32 %s254, 6
          %s256 = smul.u32 6, %s255
          %s257 = ssub.s32 43, %s256
          %p258 = scmp.lt.s32.totalorder %s257, 6
          %s259 = scalar_select %p258, %s257, 6
          %s260 = smul.u32 64, %s259
          %p261 = scmp.lt.s32.totalorder %s22, 1
          %s262 = scalar_select %p261, %s22, 1
          %p263 = scmp.lt.s32.totalorder %s256, 42
          %s264 = scalar_select %p263, %s256, 42
          %s265 = smul.addr %s262, 43
          %s266 = sadd.s32 %s264, %s265
          %s267 = smul.addr %s266, 4
          %s268 = scalar_lea.vmem %s1, %s267
          %s269 = sadd.s32 %s23, 1
          %s270 = smul.u32 %s269, 6
          %s271 = smul.u32 6, %s270
          %s272 = ssub.s32 43, %s271
          %p273 = scmp.lt.s32.totalorder %s272, 6
          %s274 = scalar_select %p273, %s272, 6
          %s275 = smul.u32 64, %s274
        $region40: #{tpu_custom_call.1} parent=31 // pred_fallthru
          _
      $region32: #{tpu_custom_call.1} parent=5 // pred_fallthru
        _
      %p276 = scmp.le.s32.totalorder 1, %s15
      %p277 = scmp.lt.s32.totalorder %s15, 3
      %p278 = pnand %p276, %p277
      %p279 = pneg %p278
      // Predicated region
      $region41: #{tpu_custom_call.1} parent=5 // pred_check
        _
      $region42: #{tpu_custom_call.1} parent=5 // pred_check_branch
        %281 = sbr.rel (%p278) target = $region44
      $region43: #{tpu_custom_call.1} parent=5 // pred_region
        %s282 = ssub.s32 %s15, 1
        %s283 = smul.u32 36, %s25
        %s284 = ssub.s32 43, %s283
        %p285 = scmp.lt.s32.totalorder %s284, 36
        %s286 = scalar_select %p285, %s284, 36
        %s287 = smul.u32 64, %s286
        %p288 = scmp.lt.s32.totalorder %s24, 1
        %s289 = scalar_select %p288, %s24, 1
        %p290 = scmp.lt.s32.totalorder %s283, 42
        %s291 = scalar_select %p290, %s283, 42
        %s292 = smul.addr %s289, 43
        %s293 = sadd.s32 %s291, %s292
        %s294 = smul.addr %s293, 4
        %s295 = scalar_lea.vmem %s0, %s294
        %p296 = pneg %p55
        %p297 = pneg %p52
        %s298 = sadd.s32 %s25, 1
        %s299 = smul.u32 %s298, 6
        %s300 = smul.u32 6, %s299
        %s301 = ssub.s32 43, %s300
        %p302 = scmp.lt.s32.totalorder %s301, 6
        %s303 = scalar_select %p302, %s301, 6
        %s304 = smul.u32 64, %s303
        %p305 = scmp.lt.s32.totalorder %s24, 1
        %s306 = scalar_select %p305, %s24, 1
        %p307 = scmp.lt.s32.totalorder %s300, 42
        %s308 = scalar_select %p307, %s300, 42
        %s309 = smul.addr %s306, 43
        %s310 = sadd.s32 %s308, %s309
        %s311 = smul.addr %s310, 4
        %s312 = scalar_lea.vmem %s1, %s311
        %p313 = pneg %p87
        %p314 = pneg %p84
        %p315 = pneg %p108
        %p316 = pneg %p105
        %p317 = pneg %p129
        %p318 = pneg %p126
        %p319 = pneg %p150
        %p320 = pneg %p147
        %p321 = pneg %p171
        %p322 = pneg %p168
        %p323 = pneg %p199
        %p324 = pneg %p196
        %s325 = sand.u32 %s186, 1
        %s326 = scalar_lea.sflag [#allocation3], %s325
        %s327 = sand.u32 %s186, 1
        %s328 = smul.addr %s327, 288
        %s329 = scalar_lea.vmem [#allocation2], %s328
        %s330 = smul.u32 36, %s25
        %s331 = ssub.s32 43, %s330
        %p332 = scmp.lt.s32.totalorder %s331, 36
        %s333 = scalar_select %p332, %s331, 36
        %s334 = smul.u32 64, %s333
        %p335 = scmp.lt.s32.totalorder %s24, 1
        %s336 = scalar_select %p335, %s24, 1
        %p337 = scmp.lt.s32.totalorder %s330, 42
        %s338 = scalar_select %p337, %s330, 42
        %s339 = smul.addr %s336, 43
        %s340 = sadd.s32 %s338, %s339
        %s341 = smul.addr %s340, 4
        %s342 = scalar_lea.vmem %s0, %s341
        %s343 = smul.u32 36, %s25
        %s344 = ssub.s32 43, %s343
        %p345 = scmp.lt.s32.totalorder %s344, 36
        %s346 = scalar_select %p345, %s344, 36
        %s347 = smul.u32 64, %s346
        %s348 = sadd.s32 %s25, 1
        %s349 = smul.u32 %s348, 6
        %s350 = smul.u32 6, %s349
        %s351 = ssub.s32 43, %s350
        %p352 = scmp.lt.s32.totalorder %s351, 6
        %s353 = scalar_select %p352, %s351, 6
        %s354 = smul.u32 64, %s353
        %p355 = scmp.lt.s32.totalorder %s24, 1
        %s356 = scalar_select %p355, %s24, 1
        %p357 = scmp.lt.s32.totalorder %s350, 42
        %s358 = scalar_select %p357, %s350, 42
        %s359 = smul.addr %s356, 43
        %s360 = sadd.s32 %s358, %s359
        %s361 = smul.addr %s360, 4
        %s362 = scalar_lea.vmem %s1, %s361
        %s363 = sadd.s32 %s25, 1
        %s364 = smul.u32 %s363, 6
        %s365 = smul.u32 6, %s364
        %s366 = ssub.s32 43, %s365
        %p367 = scmp.lt.s32.totalorder %s366, 6
        %s368 = scalar_select %p367, %s366, 6
        %s369 = smul.u32 64, %s368
        %s370 = smul.u32 36, %s25
        %v372 = vld [vmem:[%s342] sm:$0xf]
        %v373 = vld [vmem:[%s342 + $0x4] sm:$0xf]
        %v374 = vld [vmem:[%s342 + $0x8] sm:$0xf]
        %v375 = vld [vmem:[%s342 + $0xc] sm:$0xf]
        %v376 = vld [vmem:[%s342 + $0x10] sm:$0xf]
        %v377 = vld [vmem:[%s342 + $0x14] sm:$0xf]
        %v378 = vld [vmem:[%s342 + $0x18] sm:$0xf]
        %v379 = vld [vmem:[%s342 + $0x1c] sm:$0xf]
        %v380 = vld [vmem:[%s342 + $0x20] sm:$0xf]
        %v381 = vld [vmem:[%s342 + $0x24] sm:$0xf]
        %v382 = vld [vmem:[%s342 + $0x28] sm:$0xf]
        %v383 = vld [vmem:[%s342 + $0x2c] sm:$0xf]
        %v384 = vld [vmem:[%s342 + $0x30] sm:$0xf]
        %v385 = vld [vmem:[%s342 + $0x34] sm:$0xf]
        %v386 = vld [vmem:[%s342 + $0x38] sm:$0xf]
        %v387 = vld [vmem:[%s342 + $0x3c] sm:$0xf]
        %v388 = vld [vmem:[%s342 + $0x40] sm:$0xf]
        %v389 = vld [vmem:[%s342 + $0x44] sm:$0xf]
        %v390 = vld [vmem:[%s342 + $0x48] sm:$0xf]
        %v391 = vld [vmem:[%s342 + $0x4c] sm:$0xf]
        %v392 = vld [vmem:[%s342 + $0x50] sm:$0xf]
        %v393 = vld [vmem:[%s342 + $0x54] sm:$0xf]
        %v394 = vld [vmem:[%s342 + $0x58] sm:$0xf]
        %v395 = vld [vmem:[%s342 + $0x5c] sm:$0xf]
        %v396 = vld [vmem:[%s342 + $0x60] sm:$0xf]
        %v397 = vld [vmem:[%s342 + $0x64] sm:$0xf]
        %v398 = vld [vmem:[%s342 + $0x68] sm:$0xf]
        %v399 = vld [vmem:[%s342 + $0x6c] sm:$0xf]
        %v400 = vld [vmem:[%s342 + $0x70] sm:$0xf]
        %v401 = vld [vmem:[%s342 + $0x74] sm:$0xf]
        %v402 = vld [vmem:[%s342 + $0x78] sm:$0xf]
        %v403 = vld [vmem:[%s342 + $0x7c] sm:$0xf]
        %v404 = vld [vmem:[%s342 + $0x80] sm:$0xf]
        %v405 = vld [vmem:[%s342 + $0x84] sm:$0xf]
        %v406 = vld [vmem:[%s342 + $0x88] sm:$0xf]
        %v407 = vld [vmem:[%s342 + $0x8c] sm:$0xf]
        %v408 = vld [vmem:[%s362] sm:$0xf]
        %v409 = vld [vmem:[%s362 + $0x4] sm:$0xf]
        %v410 = vld [vmem:[%s362 + $0x8] sm:$0xf]
        %v411 = vld [vmem:[%s362 + $0xc] sm:$0xf]
        %v412 = vld [vmem:[%s362 + $0x10] sm:$0xf]
        %v413 = vld [vmem:[%s362 + $0x14] sm:$0xf]
        %v450 = vunpack.c.l.b16 %v372
        %v451 = vunpack.c.l.b16 %v373
        %v452 = vunpack.c.l.b16 %v374
        %v453 = vunpack.c.l.b16 %v375
        %v454 = vunpack.c.l.b16 %v376
        %v455 = vunpack.c.l.b16 %v377
        %v456 = vunpack.c.l.b16 %v378
        %v457 = vunpack.c.l.b16 %v379
        %v458 = vunpack.c.l.b16 %v380
        %v459 = vunpack.c.l.b16 %v381
        %v460 = vunpack.c.l.b16 %v382
        %v461 = vunpack.c.l.b16 %v383
        %v462 = vunpack.c.l.b16 %v384
        %v463 = vunpack.c.l.b16 %v385
        %v464 = vunpack.c.l.b16 %v386
        %v465 = vunpack.c.l.b16 %v387
        %v466 = vunpack.c.l.b16 %v388
        %v467 = vunpack.c.l.b16 %v389
        %v468 = vunpack.c.l.b16 %v390
        %v469 = vunpack.c.l.b16 %v391
        %v470 = vunpack.c.l.b16 %v392
        %v471 = vunpack.c.l.b16 %v393
        %v472 = vunpack.c.l.b16 %v394
        %v473 = vunpack.c.l.b16 %v395
        %v474 = vunpack.c.l.b16 %v396
        %v475 = vunpack.c.l.b16 %v397
        %v476 = vunpack.c.l.b16 %v398
        %v477 = vunpack.c.l.b16 %v399
        %v478 = vunpack.c.l.b16 %v400
        %v479 = vunpack.c.l.b16 %v401
        %v480 = vunpack.c.l.b16 %v402
        %v481 = vunpack.c.l.b16 %v403
        %v482 = vunpack.c.l.b16 %v404
        %v483 = vunpack.c.l.b16 %v405
        %v484 = vunpack.c.l.b16 %v406
        %v485 = vunpack.c.l.b16 %v407
        %v486 = vpack.c.b16 %v451, %v450
        %v487 = vpack.c.b16 %v453, %v452
        %v488 = vpack.c.b16 %v455, %v454
        %v489 = vpack.c.b16 %v457, %v456
        %v490 = vpack.c.b16 %v459, %v458
        %v491 = vpack.c.b16 %v461, %v460
        %v492 = vpack.c.b16 %v463, %v462
        %v493 = vpack.c.b16 %v465, %v464
        %v494 = vpack.c.b16 %v467, %v466
        %v495 = vpack.c.b16 %v469, %v468
        %v496 = vpack.c.b16 %v471, %v470
        %v497 = vpack.c.b16 %v473, %v472
        %v498 = vpack.c.b16 %v475, %v474
        %v499 = vpack.c.b16 %v477, %v476
        %v500 = vpack.c.b16 %v479, %v478
        %v501 = vpack.c.b16 %v481, %v480
        %v502 = vpack.c.b16 %v483, %v482
        %v503 = vpack.c.b16 %v485, %v484
        %v510 = vunpack.c.l.b16 %v408
        %v511 = vunpack.c.l.b16 %v409
        %v512 = vunpack.c.l.b16 %v410
        %v513 = vunpack.c.l.b16 %v411
        %v514 = vunpack.c.l.b16 %v412
        %v515 = vunpack.c.l.b16 %v413
        %v516 = vpack.c.b16 %v511, %v510
        %v517 = vpack.c.b16 %v513, %v512
        %v518 = vpack.c.b16 %v515, %v514
        %vm519 = vsmask.f32 7424
        %v521 = vshrl.u32 %v486, 16
        %v523 = vshll.u32 %v486, 16
        %v525 = vrot.slane %v523, 1
        %v526 = vor.u32 %v521, %v525
        %v528 = vshll.u32 %v487, 16
        %v530 = vrot.slane %v528, 1
        %v531 = vsel %vm519, %v526, %v530
        %v532 = vshrl.u32 %v487, 16
        %v534 = vor.u32 %v532, %v530
        %v536 = vshll.u32 %v488, 16
        %v538 = vrot.slane %v536, 1
        %v539 = vsel %vm519, %v534, %v538
        %v540 = vshrl.u32 %v488, 16
        %v542 = vor.u32 %v540, %v538
        %v544 = vshll.u32 %v489, 16
        %v546 = vrot.slane %v544, 1
        %v547 = vsel %vm519, %v542, %v546
        %v548 = vshrl.u32 %v489, 16
        %v550 = vor.u32 %v548, %v546
        %v552 = vshll.u32 %v490, 16
        %v554 = vrot.slane %v552, 1
        %v555 = vsel %vm519, %v550, %v554
        %v556 = vshrl.u32 %v490, 16
        %v558 = vor.u32 %v556, %v554
        %v560 = vshll.u32 %v491, 16
        %v562 = vrot.slane %v560, 1
        %v563 = vsel %vm519, %v558, %v562
        %v564 = vshrl.u32 %v491, 16
        %v566 = vor.u32 %v564, %v562
        %v568 = vshll.u32 %v492, 16
        %v570 = vrot.slane %v568, 1
        %v571 = vsel %vm519, %v566, %v570
        %v572 = vshrl.u32 %v492, 16
        %v574 = vor.u32 %v572, %v570
        %v576 = vshll.u32 %v493, 16
        %v578 = vrot.slane %v576, 1
        %v579 = vsel %vm519, %v574, %v578
        %v580 = vshrl.u32 %v493, 16
        %v582 = vor.u32 %v580, %v578
        %v584 = vshll.u32 %v494, 16
        %v586 = vrot.slane %v584, 1
        %v587 = vsel %vm519, %v582, %v586
        %v588 = vshrl.u32 %v494, 16
        %v590 = vor.u32 %v588, %v586
        %v592 = vshll.u32 %v495, 16
        %v594 = vrot.slane %v592, 1
        %v595 = vsel %vm519, %v590, %v594
        %v596 = vshrl.u32 %v495, 16
        %v598 = vor.u32 %v596, %v594
        %v600 = vshll.u32 %v496, 16
        %v602 = vrot.slane %v600, 1
        %v603 = vsel %vm519, %v598, %v602
        %v604 = vshrl.u32 %v496, 16
        %v606 = vor.u32 %v604, %v602
        %v608 = vshll.u32 %v497, 16
        %v610 = vrot.slane %v608, 1
        %v611 = vsel %vm519, %v606, %v610
        %v612 = vshrl.u32 %v497, 16
        %v614 = vor.u32 %v612, %v610
        %v616 = vshll.u32 %v498, 16
        %v618 = vrot.slane %v616, 1
        %v619 = vsel %vm519, %v614, %v618
        %v620 = vshrl.u32 %v498, 16
        %v622 = vor.u32 %v620, %v618
        %v624 = vshll.u32 %v499, 16
        %v626 = vrot.slane %v624, 1
        %v627 = vsel %vm519, %v622, %v626
        %v628 = vshrl.u32 %v499, 16
        %v630 = vor.u32 %v628, %v626
        %v632 = vshll.u32 %v500, 16
        %v634 = vrot.slane %v632, 1
        %v635 = vsel %vm519, %v630, %v634
        %v636 = vshrl.u32 %v500, 16
        %v638 = vor.u32 %v636, %v634
        %v640 = vshll.u32 %v501, 16
        %v642 = vrot.slane %v640, 1
        %v643 = vsel %vm519, %v638, %v642
        %v644 = vshrl.u32 %v501, 16
        %v646 = vor.u32 %v644, %v642
        %v648 = vshll.u32 %v502, 16
        %v650 = vrot.slane %v648, 1
        %v651 = vsel %vm519, %v646, %v650
        %v652 = vshrl.u32 %v502, 16
        %v654 = vor.u32 %v652, %v650
        %v656 = vshll.u32 %v503, 16
        %v658 = vrot.slane %v656, 1
        %v659 = vsel %vm519, %v654, %v658
        %v660 = vshrl.u32 %v503, 16
        %v662 = vor.u32 %v660, %v658
        %v664 = vshll.u32 %v516, 16
        %v666 = vrot.slane %v664, 1
        %v667 = vsel %vm519, %v662, %v666
        %668 = vrot.lane.b32.xlu0 %v531, 32
        %v669 = vpop.permute.xlu0 %668
        %670 = vrot.lane.b32.xlu0 %v539, 32
        %v671 = vpop.permute.xlu0 %670
        %672 = vrot.lane.b32.xlu0 %v547, 32
        %v673 = vpop.permute.xlu0 %672
        %674 = vrot.lane.b32.xlu0 %v555, 32
        %v675 = vpop.permute.xlu0 %674
        %676 = vrot.lane.b32.xlu0 %v563, 32
        %v677 = vpop.permute.xlu0 %676
        %678 = vrot.lane.b32.xlu0 %v571, 32
        %v679 = vpop.permute.xlu0 %678
        %680 = vrot.lane.b32.xlu0 %v579, 32
        %v681 = vpop.permute.xlu0 %680
        %682 = vrot.lane.b32.xlu0 %v587, 32
        %v683 = vpop.permute.xlu0 %682
        %684 = vrot.lane.b32.xlu0 %v595, 32
        %v685 = vpop.permute.xlu0 %684
        %686 = vrot.lane.b32.xlu0 %v603, 32
        %v687 = vpop.permute.xlu0 %686
        %688 = vrot.lane.b32.xlu0 %v611, 32
        %v689 = vpop.permute.xlu0 %688
        %690 = vrot.lane.b32.xlu0 %v619, 32
        %v691 = vpop.permute.xlu0 %690
        %692 = vrot.lane.b32.xlu0 %v627, 32
        %v693 = vpop.permute.xlu0 %692
        %694 = vrot.lane.b32.xlu0 %v635, 32
        %v695 = vpop.permute.xlu0 %694
        %696 = vrot.lane.b32.xlu0 %v643, 32
        %v697 = vpop.permute.xlu0 %696
        %698 = vrot.lane.b32.xlu0 %v651, 32
        %v699 = vpop.permute.xlu0 %698
        %700 = vrot.lane.b32.xlu0 %v659, 32
        %v701 = vpop.permute.xlu0 %700
        %702 = vrot.lane.b32.xlu0 %v667, 32
        %v703 = vpop.permute.xlu0 %702
        %vm704 = vcmask 1046528
        %v705 = vrot.slane %v486, 1
        %v706 = vrot.slane %v487, 1
        %v707 = vsel %vm704, %v705, %v706
        %v708 = vrot.slane %v488, 1
        %v709 = vsel %vm704, %v706, %v708
        %v710 = vrot.slane %v489, 1
        %v711 = vsel %vm704, %v708, %v710
        %v712 = vrot.slane %v490, 1
        %v713 = vsel %vm704, %v710, %v712
        %v714 = vrot.slane %v491, 1
        %v715 = vsel %vm704, %v712, %v714
        %v716 = vrot.slane %v492, 1
        %v717 = vsel %vm704, %v714, %v716
        %v718 = vrot.slane %v493, 1
        %v719 = vsel %vm704, %v716, %v718
        %v720 = vrot.slane %v494, 1
        %v721 = vsel %vm704, %v718, %v720
        %v722 = vrot.slane %v495, 1
        %v723 = vsel %vm704, %v720, %v722
        %v724 = vrot.slane %v496, 1
        %v725 = vsel %vm704, %v722, %v724
        %v726 = vrot.slane %v497, 1
        %v727 = vsel %vm704, %v724, %v726
        %v728 = vrot.slane %v498, 1
        %v729 = vsel %vm704, %v726, %v728
        %v730 = vrot.slane %v499, 1
        %v731 = vsel %vm704, %v728, %v730
        %v732 = vrot.slane %v500, 1
        %v733 = vsel %vm704, %v730, %v732
        %v734 = vrot.slane %v501, 1
        %v735 = vsel %vm704, %v732, %v734
        %v736 = vrot.slane %v502, 1
        %v737 = vsel %vm704, %v734, %v736
        %v738 = vrot.slane %v503, 1
        %v739 = vsel %vm704, %v736, %v738
        %v740 = vrot.slane %v516, 1
        %v741 = vsel %vm704, %v738, %v740
        %742 = vrot.lane.b32.xlu0 %v707, 64
        %v743 = vpop.permute.xlu0 %742
        %744 = vrot.lane.b32.xlu0 %v709, 64
        %v745 = vpop.permute.xlu0 %744
        %746 = vrot.lane.b32.xlu0 %v711, 64
        %v747 = vpop.permute.xlu0 %746
        %748 = vrot.lane.b32.xlu0 %v713, 64
        %v749 = vpop.permute.xlu0 %748
        %750 = vrot.lane.b32.xlu0 %v715, 64
        %v751 = vpop.permute.xlu0 %750
        %752 = vrot.lane.b32.xlu0 %v717, 64
        %v753 = vpop.permute.xlu0 %752
        %754 = vrot.lane.b32.xlu0 %v719, 64
        %v755 = vpop.permute.xlu0 %754
        %756 = vrot.lane.b32.xlu0 %v721, 64
        %v757 = vpop.permute.xlu0 %756
        %758 = vrot.lane.b32.xlu0 %v723, 64
        %v759 = vpop.permute.xlu0 %758
        %760 = vrot.lane.b32.xlu0 %v725, 64
        %v761 = vpop.permute.xlu0 %760
        %762 = vrot.lane.b32.xlu0 %v727, 64
        %v763 = vpop.permute.xlu0 %762
        %764 = vrot.lane.b32.xlu0 %v729, 64
        %v765 = vpop.permute.xlu0 %764
        %766 = vrot.lane.b32.xlu0 %v731, 64
        %v767 = vpop.permute.xlu0 %766
        %768 = vrot.lane.b32.xlu0 %v733, 64
        %v769 = vpop.permute.xlu0 %768
        %770 = vrot.lane.b32.xlu0 %v735, 64
        %v771 = vpop.permute.xlu0 %770
        %772 = vrot.lane.b32.xlu0 %v737, 64
        %v773 = vpop.permute.xlu0 %772
        %774 = vrot.lane.b32.xlu0 %v739, 64
        %v775 = vpop.permute.xlu0 %774
        %776 = vrot.lane.b32.xlu0 %v741, 64
        %v777 = vpop.permute.xlu0 %776
        %v778 = vrot.slane %v517, 1
        %v779 = vsel %vm704, %v740, %v778
        %780 = vrot.lane.b32.xlu0 %v709, 96
        %v781 = vpop.permute.xlu0 %780
        %782 = vrot.lane.b32.xlu0 %v711, 96
        %v783 = vpop.permute.xlu0 %782
        %784 = vrot.lane.b32.xlu0 %v713, 96
        %v785 = vpop.permute.xlu0 %784
        %786 = vrot.lane.b32.xlu0 %v715, 96
        %v787 = vpop.permute.xlu0 %786
        %788 = vrot.lane.b32.xlu0 %v717, 96
        %v789 = vpop.permute.xlu0 %788
        %790 = vrot.lane.b32.xlu0 %v719, 96
        %v791 = vpop.permute.xlu0 %790
        %792 = vrot.lane.b32.xlu0 %v721, 96
        %v793 = vpop.permute.xlu0 %792
        %794 = vrot.lane.b32.xlu0 %v723, 96
        %v795 = vpop.permute.xlu0 %794
        %796 = vrot.lane.b32.xlu0 %v725, 96
        %v797 = vpop.permute.xlu0 %796
        %798 = vrot.lane.b32.xlu0 %v727, 96
        %v799 = vpop.permute.xlu0 %798
        %800 = vrot.lane.b32.xlu0 %v729, 96
        %v801 = vpop.permute.xlu0 %800
        %802 = vrot.lane.b32.xlu0 %v731, 96
        %v803 = vpop.permute.xlu0 %802
        %804 = vrot.lane.b32.xlu0 %v733, 96
        %v805 = vpop.permute.xlu0 %804
        %806 = vrot.lane.b32.xlu0 %v735, 96
        %v807 = vpop.permute.xlu0 %806
        %808 = vrot.lane.b32.xlu0 %v737, 96
        %v809 = vpop.permute.xlu0 %808
        %810 = vrot.lane.b32.xlu0 %v739, 96
        %v811 = vpop.permute.xlu0 %810
        %812 = vrot.lane.b32.xlu0 %v741, 96
        %v813 = vpop.permute.xlu0 %812
        %814 = vrot.lane.b32.xlu0 %v779, 96
        %v815 = vpop.permute.xlu0 %814
        %vm816 = vsmask.f32 6400
        %v817 = vrot.slane %v532, 1
        %v818 = vrot.slane %v528, 2
        %v819 = vor.u32 %v817, %v818
        %v820 = vrot.slane %v540, 1
        %v821 = vrot.slane %v536, 2
        %v822 = vor.u32 %v820, %v821
        %v823 = vsel %vm816, %v819, %v822
        %v824 = vrot.slane %v548, 1
        %v825 = vrot.slane %v544, 2
        %v826 = vor.u32 %v824, %v825
        %v827 = vsel %vm816, %v822, %v826
        %v828 = vrot.slane %v556, 1
        %v829 = vrot.slane %v552, 2
        %v830 = vor.u32 %v828, %v829
        %v831 = vsel %vm816, %v826, %v830
        %v832 = vrot.slane %v564, 1
        %v833 = vrot.slane %v560, 2
        %v834 = vor.u32 %v832, %v833
        %v835 = vsel %vm816, %v830, %v834
        %v836 = vrot.slane %v572, 1
        %v837 = vrot.slane %v568, 2
        %v838 = vor.u32 %v836, %v837
        %v839 = vsel %vm816, %v834, %v838
        %v840 = vrot.slane %v580, 1
        %v841 = vrot.slane %v576, 2
        %v842 = vor.u32 %v840, %v841
        %v843 = vsel %vm816, %v838, %v842
        %v844 = vrot.slane %v588, 1
        %v845 = vrot.slane %v584, 2
        %v846 = vor.u32 %v844, %v845
        %v847 = vsel %vm816, %v842, %v846
        %v848 = vrot.slane %v596, 1
        %v849 = vrot.slane %v592, 2
        %v850 = vor.u32 %v848, %v849
        %v851 = vsel %vm816, %v846, %v850
        %v852 = vrot.slane %v604, 1
        %v853 = vrot.slane %v600, 2
        %v854 = vor.u32 %v852, %v853
        %v855 = vsel %vm816, %v850, %v854
        %v856 = vrot.slane %v612, 1
        %v857 = vrot.slane %v608, 2
        %v858 = vor.u32 %v856, %v857
        %v859 = vsel %vm816, %v854, %v858
        %v860 = vrot.slane %v620, 1
        %v861 = vrot.slane %v616, 2
        %v862 = vor.u32 %v860, %v861
        %v863 = vsel %vm816, %v858, %v862
        %v864 = vrot.slane %v628, 1
        %v865 = vrot.slane %v624, 2
        %v866 = vor.u32 %v864, %v865
        %v867 = vsel %vm816, %v862, %v866
        %v868 = vrot.slane %v636, 1
        %v869 = vrot.slane %v632, 2
        %v870 = vor.u32 %v868, %v869
        %v871 = vsel %vm816, %v866, %v870
        %v872 = vrot.slane %v644, 1
        %v873 = vrot.slane %v640, 2
        %v874 = vor.u32 %v872, %v873
        %v875 = vsel %vm816, %v870, %v874
        %v876 = vrot.slane %v652, 1
        %v877 = vrot.slane %v648, 2
        %v878 = vor.u32 %v876, %v877
        %v879 = vsel %vm816, %v874, %v878
        %v880 = vrot.slane %v660, 1
        %v881 = vrot.slane %v656, 2
        %v882 = vor.u32 %v880, %v881
        %v883 = vsel %vm816, %v878, %v882
        %v884 = vshrl.u32 %v516, 16
        %v886 = vrot.slane %v884, 1
        %v887 = vrot.slane %v664, 2
        %v888 = vor.u32 %v886, %v887
        %v889 = vsel %vm816, %v882, %v888
        %v891 = vshrl.u32 %v517, 16
        %v893 = vrot.slane %v891, 1
        %v894 = vshll.u32 %v517, 16
        %v896 = vrot.slane %v894, 2
        %v897 = vor.u32 %v893, %v896
        %v898 = vsel %vm816, %v888, %v897
        %vm899 = vcmask 1045504
        %v900 = vrot.slane %v487, 2
        %v901 = vrot.slane %v488, 2
        %v902 = vsel %vm899, %v900, %v901
        %v903 = vrot.slane %v489, 2
        %v904 = vsel %vm899, %v901, %v903
        %v905 = vrot.slane %v490, 2
        %v906 = vsel %vm899, %v903, %v905
        %v907 = vrot.slane %v491, 2
        %v908 = vsel %vm899, %v905, %v907
        %v909 = vrot.slane %v492, 2
        %v910 = vsel %vm899, %v907, %v909
        %v911 = vrot.slane %v493, 2
        %v912 = vsel %vm899, %v909, %v911
        %v913 = vrot.slane %v494, 2
        %v914 = vsel %vm899, %v911, %v913
        %v915 = vrot.slane %v495, 2
        %v916 = vsel %vm899, %v913, %v915
        %v917 = vrot.slane %v496, 2
        %v918 = vsel %vm899, %v915, %v917
        %v919 = vrot.slane %v497, 2
        %v920 = vsel %vm899, %v917, %v919
        %v921 = vrot.slane %v498, 2
        %v922 = vsel %vm899, %v919, %v921
        %v923 = vrot.slane %v499, 2
        %v924 = vsel %vm899, %v921, %v923
        %v925 = vrot.slane %v500, 2
        %v926 = vsel %vm899, %v923, %v925
        %v927 = vrot.slane %v501, 2
        %v928 = vsel %vm899, %v925, %v927
        %v929 = vrot.slane %v502, 2
        %v930 = vsel %vm899, %v927, %v929
        %v931 = vrot.slane %v503, 2
        %v932 = vsel %vm899, %v929, %v931
        %v933 = vrot.slane %v516, 2
        %v934 = vsel %vm899, %v931, %v933
        %v935 = vrot.slane %v517, 2
        %v936 = vsel %vm899, %v933, %v935
        %937 = vrot.lane.b32.xlu0 %v902, 32
        %v938 = vpop.permute.xlu0 %937
        %939 = vrot.lane.b32.xlu0 %v904, 32
        %v940 = vpop.permute.xlu0 %939
        %941 = vrot.lane.b32.xlu0 %v906, 32
        %v942 = vpop.permute.xlu0 %941
        %943 = vrot.lane.b32.xlu0 %v908, 32
        %v944 = vpop.permute.xlu0 %943
        %945 = vrot.lane.b32.xlu0 %v910, 32
        %v946 = vpop.permute.xlu0 %945
        %947 = vrot.lane.b32.xlu0 %v912, 32
        %v948 = vpop.permute.xlu0 %947
        %949 = vrot.lane.b32.xlu0 %v914, 32
        %v950 = vpop.permute.xlu0 %949
        %951 = vrot.lane.b32.xlu0 %v916, 32
        %v952 = vpop.permute.xlu0 %951
        %953 = vrot.lane.b32.xlu0 %v918, 32
        %v954 = vpop.permute.xlu0 %953
        %955 = vrot.lane.b32.xlu0 %v920, 32
        %v956 = vpop.permute.xlu0 %955
        %957 = vrot.lane.b32.xlu0 %v922, 32
        %v958 = vpop.permute.xlu0 %957
        %959 = vrot.lane.b32.xlu0 %v924, 32
        %v960 = vpop.permute.xlu0 %959
        %961 = vrot.lane.b32.xlu0 %v926, 32
        %v962 = vpop.permute.xlu0 %961
        %963 = vrot.lane.b32.xlu0 %v928, 32
        %v964 = vpop.permute.xlu0 %963
        %965 = vrot.lane.b32.xlu0 %v930, 32
        %v966 = vpop.permute.xlu0 %965
        %967 = vrot.lane.b32.xlu0 %v932, 32
        %v968 = vpop.permute.xlu0 %967
        %969 = vrot.lane.b32.xlu0 %v934, 32
        %v970 = vpop.permute.xlu0 %969
        %971 = vrot.lane.b32.xlu0 %v936, 32
        %v972 = vpop.permute.xlu0 %971
        %v973 = vrot.slane %v518, 2
        %v974 = vsel %vm899, %v935, %v973
        %975 = vrot.lane.b32.xlu0 %v904, 64
        %v976 = vpop.permute.xlu0 %975
        %977 = vrot.lane.b32.xlu0 %v906, 64
        %v978 = vpop.permute.xlu0 %977
        %979 = vrot.lane.b32.xlu0 %v908, 64
        %v980 = vpop.permute.xlu0 %979
        %981 = vrot.lane.b32.xlu0 %v910, 64
        %v982 = vpop.permute.xlu0 %981
        %983 = vrot.lane.b32.xlu0 %v912, 64
        %v984 = vpop.permute.xlu0 %983
        %985 = vrot.lane.b32.xlu0 %v914, 64
        %v986 = vpop.permute.xlu0 %985
        %987 = vrot.lane.b32.xlu0 %v916, 64
        %v988 = vpop.permute.xlu0 %987
        %989 = vrot.lane.b32.xlu0 %v918, 64
        %v990 = vpop.permute.xlu0 %989
        %991 = vrot.lane.b32.xlu0 %v920, 64
        %v992 = vpop.permute.xlu0 %991
        %993 = vrot.lane.b32.xlu0 %v922, 64
        %v994 = vpop.permute.xlu0 %993
        %995 = vrot.lane.b32.xlu0 %v924, 64
        %v996 = vpop.permute.xlu0 %995
        %997 = vrot.lane.b32.xlu0 %v926, 64
        %v998 = vpop.permute.xlu0 %997
        %999 = vrot.lane.b32.xlu0 %v928, 64
        %v1000 = vpop.permute.xlu0 %999
        %1001 = vrot.lane.b32.xlu0 %v930, 64
        %v1002 = vpop.permute.xlu0 %1001
        %1003 = vrot.lane.b32.xlu0 %v932, 64
        %v1004 = vpop.permute.xlu0 %1003
        %1005 = vrot.lane.b32.xlu0 %v934, 64
        %v1006 = vpop.permute.xlu0 %1005
        %1007 = vrot.lane.b32.xlu0 %v936, 64
        %v1008 = vpop.permute.xlu0 %1007
        %1009 = vrot.lane.b32.xlu0 %v974, 64
        %v1010 = vpop.permute.xlu0 %1009
        %vm1011 = vsmask.f32 5376
        %v1012 = vrot.slane %v540, 2
        %v1013 = vrot.slane %v536, 3
        %v1014 = vor.u32 %v1012, %v1013
        %v1015 = vrot.slane %v548, 2
        %v1016 = vrot.slane %v544, 3
        %v1017 = vor.u32 %v1015, %v1016
        %v1018 = vsel %vm1011, %v1014, %v1017
        %v1019 = vrot.slane %v556, 2
        %v1020 = vrot.slane %v552, 3
        %v1021 = vor.u32 %v1019, %v1020
        %v1022 = vsel %vm1011, %v1017, %v1021
        %v1023 = vrot.slane %v564, 2
        %v1024 = vrot.slane %v560, 3
        %v1025 = vor.u32 %v1023, %v1024
        %v1026 = vsel %vm1011, %v1021, %v1025
        %v1027 = vrot.slane %v572, 2
        %v1028 = vrot.slane %v568, 3
        %v1029 = vor.u32 %v1027, %v1028
        %v1030 = vsel %vm1011, %v1025, %v1029
        %v1031 = vrot.slane %v580, 2
        %v1032 = vrot.slane %v576, 3
        %v1033 = vor.u32 %v1031, %v1032
        %v1034 = vsel %vm1011, %v1029, %v1033
        %v1035 = vrot.slane %v588, 2
        %v1036 = vrot.slane %v584, 3
        %v1037 = vor.u32 %v1035, %v1036
        %v1038 = vsel %vm1011, %v1033, %v1037
        %v1039 = vrot.slane %v596, 2
        %v1040 = vrot.slane %v592, 3
        %v1041 = vor.u32 %v1039, %v1040
        %v1042 = vsel %vm1011, %v1037, %v1041
        %v1043 = vrot.slane %v604, 2
        %v1044 = vrot.slane %v600, 3
        %v1045 = vor.u32 %v1043, %v1044
        %v1046 = vsel %vm1011, %v1041, %v1045
        %v1047 = vrot.slane %v612, 2
        %v1048 = vrot.slane %v608, 3
        %v1049 = vor.u32 %v1047, %v1048
        %v1050 = vsel %vm1011, %v1045, %v1049
        %v1051 = vrot.slane %v620, 2
        %v1052 = vrot.slane %v616, 3
        %v1053 = vor.u32 %v1051, %v1052
        %v1054 = vsel %vm1011, %v1049, %v1053
        %v1055 = vrot.slane %v628, 2
        %v1056 = vrot.slane %v624, 3
        %v1057 = vor.u32 %v1055, %v1056
        %v1058 = vsel %vm1011, %v1053, %v1057
        %v1059 = vrot.slane %v636, 2
        %v1060 = vrot.slane %v632, 3
        %v1061 = vor.u32 %v1059, %v1060
        %v1062 = vsel %vm1011, %v1057, %v1061
        %v1063 = vrot.slane %v644, 2
        %v1064 = vrot.slane %v640, 3
        %v1065 = vor.u32 %v1063, %v1064
        %v1066 = vsel %vm1011, %v1061, %v1065
        %v1067 = vrot.slane %v652, 2
        %v1068 = vrot.slane %v648, 3
        %v1069 = vor.u32 %v1067, %v1068
        %v1070 = vsel %vm1011, %v1065, %v1069
        %v1071 = vrot.slane %v660, 2
        %v1072 = vrot.slane %v656, 3
        %v1073 = vor.u32 %v1071, %v1072
        %v1074 = vsel %vm1011, %v1069, %v1073
        %v1075 = vrot.slane %v884, 2
        %v1076 = vrot.slane %v664, 3
        %v1077 = vor.u32 %v1075, %v1076
        %v1078 = vsel %vm1011, %v1073, %v1077
        %v1079 = vrot.slane %v891, 2
        %v1080 = vrot.slane %v894, 3
        %v1081 = vor.u32 %v1079, %v1080
        %v1082 = vsel %vm1011, %v1077, %v1081
        %v1084 = vshrl.u32 %v518, 16
        %v1086 = vrot.slane %v1084, 2
        %v1087 = vshll.u32 %v518, 16
        %v1089 = vrot.slane %v1087, 3
        %v1090 = vor.u32 %v1086, %v1089
        %v1091 = vsel %vm1011, %v1081, %v1090
        %1092 = vrot.lane.b32.xlu0 %v1018, 96
        %v1093 = vpop.permute.xlu0 %1092
        %1094 = vrot.lane.b32.xlu0 %v1022, 96
        %v1095 = vpop.permute.xlu0 %1094
        %1096 = vrot.lane.b32.xlu0 %v1026, 96
        %v1097 = vpop.permute.xlu0 %1096
        %1098 = vrot.lane.b32.xlu0 %v1030, 96
        %v1099 = vpop.permute.xlu0 %1098
        %1100 = vrot.lane.b32.xlu0 %v1034, 96
        %v1101 = vpop.permute.xlu0 %1100
        %1102 = vrot.lane.b32.xlu0 %v1038, 96
        %v1103 = vpop.permute.xlu0 %1102
        %1104 = vrot.lane.b32.xlu0 %v1042, 96
        %v1105 = vpop.permute.xlu0 %1104
        %1106 = vrot.lane.b32.xlu0 %v1046, 96
        %v1107 = vpop.permute.xlu0 %1106
        %1108 = vrot.lane.b32.xlu0 %v1050, 96
        %v1109 = vpop.permute.xlu0 %1108
        %1110 = vrot.lane.b32.xlu0 %v1054, 96
        %v1111 = vpop.permute.xlu0 %1110
        %1112 = vrot.lane.b32.xlu0 %v1058, 96
        %v1113 = vpop.permute.xlu0 %1112
        %1114 = vrot.lane.b32.xlu0 %v1062, 96
        %v1115 = vpop.permute.xlu0 %1114
        %1116 = vrot.lane.b32.xlu0 %v1066, 96
        %v1117 = vpop.permute.xlu0 %1116
        %1118 = vrot.lane.b32.xlu0 %v1070, 96
        %v1119 = vpop.permute.xlu0 %1118
        %1120 = vrot.lane.b32.xlu0 %v1074, 96
        %v1121 = vpop.permute.xlu0 %1120
        %1122 = vrot.lane.b32.xlu0 %v1078, 96
        %v1123 = vpop.permute.xlu0 %1122
        %1124 = vrot.lane.b32.xlu0 %v1082, 96
        %v1125 = vpop.permute.xlu0 %1124
        %1126 = vrot.lane.b32.xlu0 %v1091, 96
        %v1127 = vpop.permute.xlu0 %1126
        %vm1128 = vcmask 1044480
        %v1129 = vrot.slane %v488, 3
        %v1130 = vrot.slane %v489, 3
        %v1131 = vsel %vm1128, %v1129, %v1130
        %v1132 = vrot.slane %v490, 3
        %v1133 = vsel %vm1128, %v1130, %v1132
        %v1134 = vrot.slane %v491, 3
        %v1135 = vsel %vm1128, %v1132, %v1134
        %v1136 = vrot.slane %v492, 3
        %v1137 = vsel %vm1128, %v1134, %v1136
        %v1138 = vrot.slane %v493, 3
        %v1139 = vsel %vm1128, %v1136, %v1138
        %v1140 = vrot.slane %v494, 3
        %v1141 = vsel %vm1128, %v1138, %v1140
        %v1142 = vrot.slane %v495, 3
        %v1143 = vsel %vm1128, %v1140, %v1142
        %v1144 = vrot.slane %v496, 3
        %v1145 = vsel %vm1128, %v1142, %v1144
        %v1146 = vrot.slane %v497, 3
        %v1147 = vsel %vm1128, %v1144, %v1146
        %v1148 = vrot.slane %v498, 3
        %v1149 = vsel %vm1128, %v1146, %v1148
        %v1150 = vrot.slane %v499, 3
        %v1151 = vsel %vm1128, %v1148, %v1150
        %v1152 = vrot.slane %v500, 3
        %v1153 = vsel %vm1128, %v1150, %v1152
        %v1154 = vrot.slane %v501, 3
        %v1155 = vsel %vm1128, %v1152, %v1154
        %v1156 = vrot.slane %v502, 3
        %v1157 = vsel %vm1128, %v1154, %v1156
        %v1158 = vrot.slane %v503, 3
        %v1159 = vsel %vm1128, %v1156, %v1158
        %v1160 = vrot.slane %v516, 3
        %v1161 = vsel %vm1128, %v1158, %v1160
        %v1162 = vrot.slane %v517, 3
        %v1163 = vsel %vm1128, %v1160, %v1162
        %v1164 = vrot.slane %v518, 3
        %v1165 = vsel %vm1128, %v1162, %v1164
        %vm1166 = vcmask 261120
        %v1168 = vsel %vm1166, %v486, %v669
        %v1170 = vsel %vm1166, %v487, %v671
        %v1172 = vsel %vm1166, %v488, %v673
        %v1174 = vsel %vm1166, %v489, %v675
        %v1176 = vsel %vm1166, %v490, %v677
        %v1178 = vsel %vm1166, %v491, %v679
        %v1180 = vsel %vm1166, %v492, %v681
        %v1182 = vsel %vm1166, %v493, %v683
        %v1184 = vsel %vm1166, %v494, %v685
        %v1186 = vsel %vm1166, %v495, %v687
        %v1188 = vsel %vm1166, %v496, %v689
        %v1190 = vsel %vm1166, %v497, %v691
        %v1192 = vsel %vm1166, %v498, %v693
        %v1194 = vsel %vm1166, %v499, %v695
        %v1196 = vsel %vm1166, %v500, %v697
        %v1198 = vsel %vm1166, %v501, %v699
        %v1200 = vsel %vm1166, %v502, %v701
        %v1202 = vsel %vm1166, %v503, %v703
        %vm1203 = vcmask 523264
        %v1205 = vsel %vm1203, %v1168, %v743
        %v1207 = vsel %vm1203, %v1170, %v745
        %v1209 = vsel %vm1203, %v1172, %v747
        %v1211 = vsel %vm1203, %v1174, %v749
        %v1213 = vsel %vm1203, %v1176, %v751
        %v1215 = vsel %vm1203, %v1178, %v753
        %v1217 = vsel %vm1203, %v1180, %v755
        %v1219 = vsel %vm1203, %v1182, %v757
        %v1221 = vsel %vm1203, %v1184, %v759
        %v1223 = vsel %vm1203, %v1186, %v761
        %v1225 = vsel %vm1203, %v1188, %v763
        %v1227 = vsel %vm1203, %v1190, %v765
        %v1229 = vsel %vm1203, %v1192, %v767
        %v1231 = vsel %vm1203, %v1194, %v769
        %v1233 = vsel %vm1203, %v1196, %v771
        %v1235 = vsel %vm1203, %v1198, %v773
        %v1237 = vsel %vm1203, %v1200, %v775
        %v1239 = vsel %vm1203, %v1202, %v777
        %vm1240 = vcmask 785408
        %v1242 = vsel %vm1240, %v1205, %v781
        %v1245 = vsel %vm1240, %v1207, %v783
        %v1248 = vsel %vm1240, %v1209, %v785
        %v1251 = vsel %vm1240, %v1211, %v787
        %v1254 = vsel %vm1240, %v1213, %v789
        %v1257 = vsel %vm1240, %v1215, %v791
        %v1260 = vsel %vm1240, %v1217, %v793
        %v1263 = vsel %vm1240, %v1219, %v795
        %v1266 = vsel %vm1240, %v1221, %v797
        %v1269 = vsel %vm1240, %v1223, %v799
        %v1272 = vsel %vm1240, %v1225, %v801
        %v1275 = vsel %vm1240, %v1227, %v803
        %v1278 = vsel %vm1240, %v1229, %v805
        %v1281 = vsel %vm1240, %v1231, %v807
        %v1284 = vsel %vm1240, %v1233, %v809
        %v1287 = vsel %vm1240, %v1235, %v811
        %v1290 = vsel %vm1240, %v1237, %v813
        %v1293 = vsel %vm1240, %v1239, %v815
        %v1297 = vsel %vm1166, %v823, %v938
        %v1300 = vsel %vm1166, %v827, %v940
        %v1303 = vsel %vm1166, %v831, %v942
        %v1306 = vsel %vm1166, %v835, %v944
        %v1309 = vsel %vm1166, %v839, %v946
        %v1312 = vsel %vm1166, %v843, %v948
        %v1315 = vsel %vm1166, %v847, %v950
        %v1318 = vsel %vm1166, %v851, %v952
        %v1321 = vsel %vm1166, %v855, %v954
        %v1324 = vsel %vm1166, %v859, %v956
        %v1327 = vsel %vm1166, %v863, %v958
        %v1330 = vsel %vm1166, %v867, %v960
        %v1333 = vsel %vm1166, %v871, %v962
        %v1336 = vsel %vm1166, %v875, %v964
        %v1339 = vsel %vm1166, %v879, %v966
        %v1342 = vsel %vm1166, %v883, %v968
        %v1345 = vsel %vm1166, %v889, %v970
        %v1348 = vsel %vm1166, %v898, %v972
        %v1350 = vsel %vm1203, %v1297, %v976
        %v1352 = vsel %vm1203, %v1300, %v978
        %v1354 = vsel %vm1203, %v1303, %v980
        %v1356 = vsel %vm1203, %v1306, %v982
        %v1358 = vsel %vm1203, %v1309, %v984
        %v1360 = vsel %vm1203, %v1312, %v986
        %v1362 = vsel %vm1203, %v1315, %v988
        %v1364 = vsel %vm1203, %v1318, %v990
        %v1366 = vsel %vm1203, %v1321, %v992
        %v1368 = vsel %vm1203, %v1324, %v994
        %v1370 = vsel %vm1203, %v1327, %v996
        %v1372 = vsel %vm1203, %v1330, %v998
        %v1374 = vsel %vm1203, %v1333, %v1000
        %v1376 = vsel %vm1203, %v1336, %v1002
        %v1378 = vsel %vm1203, %v1339, %v1004
        %v1380 = vsel %vm1203, %v1342, %v1006
        %v1382 = vsel %vm1203, %v1345, %v1008
        %v1384 = vsel %vm1203, %v1348, %v1010
        %v1386 = vsel %vm1240, %v1350, %v1093
        %v1389 = vsel %vm1240, %v1352, %v1095
        %v1392 = vsel %vm1240, %v1354, %v1097
        %v1395 = vsel %vm1240, %v1356, %v1099
        %v1398 = vsel %vm1240, %v1358, %v1101
        %v1401 = vsel %vm1240, %v1360, %v1103
        %v1404 = vsel %vm1240, %v1362, %v1105
        %v1407 = vsel %vm1240, %v1364, %v1107
        %v1410 = vsel %vm1240, %v1366, %v1109
        %v1413 = vsel %vm1240, %v1368, %v1111
        %v1416 = vsel %vm1240, %v1370, %v1113
        %v1419 = vsel %vm1240, %v1372, %v1115
        %v1422 = vsel %vm1240, %v1374, %v1117
        %v1425 = vsel %vm1240, %v1376, %v1119
        %v1428 = vsel %vm1240, %v1378, %v1121
        %v1431 = vsel %vm1240, %v1380, %v1123
        %v1434 = vsel %vm1240, %v1382, %v1125
        %v1437 = vsel %vm1240, %v1384, %v1127
        %v1439 = vld [vmem:[%s2] sm:$0xff]
        %v1440 = vld [vmem:[%s2 + $0x8] sm:$0xff]
        %v1441 = vld [vmem:[%s2 + $0x10] sm:$0xff]
        %v1442 = vld [vmem:[%s2 + $0x18] sm:$0xff]
        %v1443 = vld [vmem:[%s2 + $0x20] sm:$0xff]
        %v1444 = vld [vmem:[%s2 + $0x28] sm:$0xff]
        %v1445 = vld [vmem:[%s2 + $0x30] sm:$0xff]
        %v1446 = vld [vmem:[%s2 + $0x38] sm:$0xff]
        %v1447 = vld [vmem:[%s2 + $0x40] sm:$0xff]
        %v1448 = vld [vmem:[%s2 + $0x48] sm:$0xff]
        %v1449 = vld [vmem:[%s2 + $0x50] sm:$0xff]
        %v1450 = vld [vmem:[%s2 + $0x58] sm:$0xff]
        %v1451 = vld [vmem:[%s2 + $0x60] sm:$0xff]
        %v1452 = vld [vmem:[%s2 + $0x68] sm:$0xff]
        %v1453 = vld [vmem:[%s2 + $0x70] sm:$0xff]
        %v1454 = vld [vmem:[%s2 + $0x78] sm:$0xff]
        %v1455 = vld [vmem:[%s2 + $0x80] sm:$0xff]
        %v1456 = vld [vmem:[%s2 + $0x88] sm:$0xff]
        %v1457 = vld [vmem:[%s2 + $0x90] sm:$0xff]
        %v1458 = vld [vmem:[%s2 + $0x98] sm:$0xff]
        %v1459 = vld [vmem:[%s2 + $0xa0] sm:$0xff]
        %v1460 = vld [vmem:[%s2 + $0xa8] sm:$0xff]
        %v1461 = vld [vmem:[%s2 + $0xb0] sm:$0xff]
        %v1462 = vld [vmem:[%s2 + $0xb8] sm:$0xff]
        %v1463 = vld [vmem:[%s2 + $0xc0] sm:$0xff]
        %v1464 = vld [vmem:[%s2 + $0xc8] sm:$0xff]
        %v1465 = vld [vmem:[%s2 + $0xd0] sm:$0xff]
        %v1466 = vld [vmem:[%s2 + $0xd8] sm:$0xff]
        %v1467 = vld [vmem:[%s2 + $0xe0] sm:$0xff]
        %v1468 = vld [vmem:[%s2 + $0xe8] sm:$0xff]
        %v1469 = vld [vmem:[%s2 + $0xf0] sm:$0xff]
        %v1470 = vld [vmem:[%s2 + $0xf8] sm:$0xff]
        %v1471 = vld [vmem:[%s2 + $0x100] sm:$0xff]
        %v1472 = vld [vmem:[%s2 + $0x108] sm:$0xff]
        %v1473 = vld [vmem:[%s2 + $0x110] sm:$0xff]
        %v1474 = vld [vmem:[%s2 + $0x118] sm:$0xff]
        %v1475 = vld [vmem:[%s2 + $0x120] sm:$0xff]
        %v1476 = vld [vmem:[%s2 + $0x128] sm:$0xff]
        %v1477 = vld [vmem:[%s2 + $0x130] sm:$0xff]
        %v1478 = vld [vmem:[%s2 + $0x138] sm:$0xff]
        %v1479 = vld [vmem:[%s2 + $0x140] sm:$0xff]
        %v1480 = vld [vmem:[%s2 + $0x148] sm:$0xff]
        %v1481 = vld [vmem:[%s2 + $0x150] sm:$0xff]
        %v1482 = vld [vmem:[%s2 + $0x158] sm:$0xff]
        %v1483 = vld [vmem:[%s2 + $0x160] sm:$0xff]
        %v1484 = vld [vmem:[%s2 + $0x168] sm:$0xff]
        %v1485 = vld [vmem:[%s2 + $0x170] sm:$0xff]
        %v1486 = vld [vmem:[%s2 + $0x178] sm:$0xff]
        %v1487 = vld [vmem:[%s2 + $0x180] sm:$0xff]
        %v1488 = vld [vmem:[%s2 + $0x188] sm:$0xff]
        %v1489 = vld [vmem:[%s2 + $0x190] sm:$0xff]
        %v1490 = vld [vmem:[%s2 + $0x198] sm:$0xff]
        %v1491 = vld [vmem:[%s2 + $0x1a0] sm:$0xff]
        %v1492 = vld [vmem:[%s2 + $0x1a8] sm:$0xff]
        %v1493 = vld [vmem:[%s2 + $0x1b0] sm:$0xff]
        %v1494 = vld [vmem:[%s2 + $0x1b8] sm:$0xff]
        %v1495 = vld [vmem:[%s2 + $0x1c0] sm:$0xff]
        %v1496 = vld [vmem:[%s2 + $0x1c8] sm:$0xff]
        %v1497 = vld [vmem:[%s2 + $0x1d0] sm:$0xff]
        %v1498 = vld [vmem:[%s2 + $0x1d8] sm:$0xff]
        %v1499 = vld [vmem:[%s2 + $0x1e0] sm:$0xff]
        %v1500 = vld [vmem:[%s2 + $0x1e8] sm:$0xff]
        %v1501 = vld [vmem:[%s2 + $0x1f0] sm:$0xff]
        %v1502 = vld [vmem:[%s2 + $0x1f8] sm:$0xff]
        %v1503 = vld [vmem:[%s2 + $0x200] sm:$0xff]
        %v1504 = vld [vmem:[%s2 + $0x208] sm:$0xff]
        %v1505 = vld [vmem:[%s2 + $0x210] sm:$0xff]
        %v1506 = vld [vmem:[%s2 + $0x218] sm:$0xff]
        %v1507 = vld [vmem:[%s2 + $0x220] sm:$0xff]
        %v1508 = vld [vmem:[%s2 + $0x228] sm:$0xff]
        %v1509 = vld [vmem:[%s2 + $0x230] sm:$0xff]
        %v1510 = vld [vmem:[%s2 + $0x238] sm:$0xff]
        %v1511 = vld [vmem:[%s3] sm:$0xf]
        %v1513 = vlaneseq
        %v1514 = vshrl.u32 %v1513, 7
        %v1515 = vsub.s32 0, %v1514
        %v1516 = vrot.slane %v1511, %v1515
        %v1517 = vlaneseq
        %v1518 = vshrl.u32 %v1517, 7
        %v1519 = vsub.s32 1, %v1518
        %v1520 = vrot.slane %v1511, %v1519
        %v1521 = vlaneseq
        %v1522 = vshrl.u32 %v1521, 7
        %v1523 = vsub.s32 2, %v1522
        %v1524 = vrot.slane %v1511, %v1523
        %v1525 = vlaneseq
        %v1526 = vshrl.u32 %v1525, 7
        %v1527 = vsub.s32 3, %v1526
        %v1528 = vrot.slane %v1511, %v1527
        %v1605 = vunpack.c.l.b16 %v1439
        %v1606 = vunpack.c.h.b16 %v1439
        %v1607 = vunpack.c.l.b16 %v1440
        %v1608 = vunpack.c.h.b16 %v1440
        %v1609 = vunpack.c.l.b16 %v1441
        %v1610 = vunpack.c.h.b16 %v1441
        %v1611 = vunpack.c.l.b16 %v1442
        %v1612 = vunpack.c.h.b16 %v1442
        %v1613 = vunpack.c.l.b16 %v1443
        %v1614 = vunpack.c.h.b16 %v1443
        %v1615 = vunpack.c.l.b16 %v1444
        %v1616 = vunpack.c.h.b16 %v1444
        %v1617 = vunpack.c.l.b16 %v1445
        %v1618 = vunpack.c.h.b16 %v1445
        %v1619 = vunpack.c.l.b16 %v1446
        %v1620 = vunpack.c.h.b16 %v1446
        %v1621 = vunpack.c.l.b16 %v1447
        %v1622 = vunpack.c.h.b16 %v1447
        %v1623 = vunpack.c.l.b16 %v1448
        %v1624 = vunpack.c.h.b16 %v1448
        %v1625 = vunpack.c.l.b16 %v1449
        %v1626 = vunpack.c.h.b16 %v1449
        %v1627 = vunpack.c.l.b16 %v1450
        %v1628 = vunpack.c.h.b16 %v1450
        %v1629 = vunpack.c.l.b16 %v1451
        %v1630 = vunpack.c.h.b16 %v1451
        %v1631 = vunpack.c.l.b16 %v1452
        %v1632 = vunpack.c.h.b16 %v1452
        %v1633 = vunpack.c.l.b16 %v1453
        %v1634 = vunpack.c.h.b16 %v1453
        %v1635 = vunpack.c.l.b16 %v1454
        %v1636 = vunpack.c.h.b16 %v1454
        %v1637 = vunpack.c.l.b16 %v1455
        %v1638 = vunpack.c.h.b16 %v1455
        %v1639 = vunpack.c.l.b16 %v1456
        %v1640 = vunpack.c.h.b16 %v1456
        %v1641 = vunpack.c.l.b16 %v1457
        %v1642 = vunpack.c.h.b16 %v1457
        %v1643 = vunpack.c.l.b16 %v1458
        %v1644 = vunpack.c.h.b16 %v1458
        %v1645 = vunpack.c.l.b16 %v1459
        %v1646 = vunpack.c.h.b16 %v1459
        %v1647 = vunpack.c.l.b16 %v1460
        %v1648 = vunpack.c.h.b16 %v1460
        %v1649 = vunpack.c.l.b16 %v1461
        %v1650 = vunpack.c.h.b16 %v1461
        %v1651 = vunpack.c.l.b16 %v1462
        %v1652 = vunpack.c.h.b16 %v1462
        %v1653 = vunpack.c.l.b16 %v1463
        %v1654 = vunpack.c.h.b16 %v1463
        %v1655 = vunpack.c.l.b16 %v1464
        %v1656 = vunpack.c.h.b16 %v1464
        %v1657 = vunpack.c.l.b16 %v1465
        %v1658 = vunpack.c.h.b16 %v1465
        %v1659 = vunpack.c.l.b16 %v1466
        %v1660 = vunpack.c.h.b16 %v1466
        %v1661 = vunpack.c.l.b16 %v1467
        %v1662 = vunpack.c.h.b16 %v1467
        %v1663 = vunpack.c.l.b16 %v1468
        %v1664 = vunpack.c.h.b16 %v1468
        %v1665 = vunpack.c.l.b16 %v1469
        %v1666 = vunpack.c.h.b16 %v1469
        %v1667 = vunpack.c.l.b16 %v1470
        %v1668 = vunpack.c.h.b16 %v1470
        %v1669 = vunpack.c.l.b16 %v1471
        %v1670 = vunpack.c.h.b16 %v1471
        %v1671 = vunpack.c.l.b16 %v1472
        %v1672 = vunpack.c.h.b16 %v1472
        %v1673 = vunpack.c.l.b16 %v1473
        %v1674 = vunpack.c.h.b16 %v1473
        %v1675 = vunpack.c.l.b16 %v1474
        %v1676 = vunpack.c.h.b16 %v1474
        %v1677 = vunpack.c.l.b16 %v1475
        %v1678 = vunpack.c.h.b16 %v1475
        %v1679 = vunpack.c.l.b16 %v1476
        %v1680 = vunpack.c.h.b16 %v1476
        %v1681 = vunpack.c.l.b16 %v1477
        %v1682 = vunpack.c.h.b16 %v1477
        %v1683 = vunpack.c.l.b16 %v1478
        %v1684 = vunpack.c.h.b16 %v1478
        %v1685 = vunpack.c.l.b16 %v1479
        %v1686 = vunpack.c.h.b16 %v1479
        %v1687 = vunpack.c.l.b16 %v1480
        %v1688 = vunpack.c.h.b16 %v1480
        %v1689 = vunpack.c.l.b16 %v1481
        %v1690 = vunpack.c.h.b16 %v1481
        %v1691 = vunpack.c.l.b16 %v1482
        %v1692 = vunpack.c.h.b16 %v1482
        %v1693 = vunpack.c.l.b16 %v1483
        %v1694 = vunpack.c.h.b16 %v1483
        %v1695 = vunpack.c.l.b16 %v1484
        %v1696 = vunpack.c.h.b16 %v1484
        %v1697 = vunpack.c.l.b16 %v1485
        %v1698 = vunpack.c.h.b16 %v1485
        %v1699 = vunpack.c.l.b16 %v1486
        %v1700 = vunpack.c.h.b16 %v1486
        %v1701 = vunpack.c.l.b16 %v1487
        %v1702 = vunpack.c.h.b16 %v1487
        %v1703 = vunpack.c.l.b16 %v1488
        %v1704 = vunpack.c.h.b16 %v1488
        %v1705 = vunpack.c.l.b16 %v1489
        %v1706 = vunpack.c.h.b16 %v1489
        %v1707 = vunpack.c.l.b16 %v1490
        %v1708 = vunpack.c.h.b16 %v1490
        %v1709 = vunpack.c.l.b16 %v1491
        %v1710 = vunpack.c.h.b16 %v1491
        %v1711 = vunpack.c.l.b16 %v1492
        %v1712 = vunpack.c.h.b16 %v1492
        %v1713 = vunpack.c.l.b16 %v1493
        %v1714 = vunpack.c.h.b16 %v1493
        %v1715 = vunpack.c.l.b16 %v1494
        %v1716 = vunpack.c.h.b16 %v1494
        %v1717 = vunpack.c.l.b16 %v1495
        %v1718 = vunpack.c.h.b16 %v1495
        %v1719 = vunpack.c.l.b16 %v1496
        %v1720 = vunpack.c.h.b16 %v1496
        %v1721 = vunpack.c.l.b16 %v1497
        %v1722 = vunpack.c.h.b16 %v1497
        %v1723 = vunpack.c.l.b16 %v1498
        %v1724 = vunpack.c.h.b16 %v1498
        %v1725 = vunpack.c.l.b16 %v1499
        %v1726 = vunpack.c.h.b16 %v1499
        %v1727 = vunpack.c.l.b16 %v1500
        %v1728 = vunpack.c.h.b16 %v1500
        %v1729 = vunpack.c.l.b16 %v1501
        %v1730 = vunpack.c.h.b16 %v1501
        %v1731 = vunpack.c.l.b16 %v1502
        %v1732 = vunpack.c.h.b16 %v1502
        %v1733 = vunpack.c.l.b16 %v1503
        %v1734 = vunpack.c.h.b16 %v1503
        %v1735 = vunpack.c.l.b16 %v1504
        %v1736 = vunpack.c.h.b16 %v1504
        %v1737 = vunpack.c.l.b16 %v1505
        %v1738 = vunpack.c.h.b16 %v1505
        %v1739 = vunpack.c.l.b16 %v1506
        %v1740 = vunpack.c.h.b16 %v1506
        %v1741 = vunpack.c.l.b16 %v1507
        %v1742 = vunpack.c.h.b16 %v1507
        %v1743 = vunpack.c.l.b16 %v1508
        %v1744 = vunpack.c.h.b16 %v1508
        %v1745 = vunpack.c.l.b16 %v1509
        %v1746 = vunpack.c.h.b16 %v1509
        %v1747 = vunpack.c.l.b16 %v1510
        %v1748 = vunpack.c.h.b16 %v1510
        %v1749 = vpack.c.b16 %v1609, %v1605
        %v1750 = vpack.c.b16 %v1610, %v1606
        %v1751 = vpack.c.b16 %v1611, %v1607
        %v1752 = vpack.c.b16 %v1612, %v1608
        %v1753 = vpack.c.b16 %v1617, %v1613
        %v1754 = vpack.c.b16 %v1618, %v1614
        %v1755 = vpack.c.b16 %v1619, %v1615
        %v1756 = vpack.c.b16 %v1620, %v1616
        %v1757 = vpack.c.b16 %v1625, %v1621
        %v1758 = vpack.c.b16 %v1626, %v1622
        %v1759 = vpack.c.b16 %v1627, %v1623
        %v1760 = vpack.c.b16 %v1628, %v1624
        %v1761 = vpack.c.b16 %v1633, %v1629
        %v1762 = vpack.c.b16 %v1634, %v1630
        %v1763 = vpack.c.b16 %v1635, %v1631
        %v1764 = vpack.c.b16 %v1636, %v1632
        %v1765 = vpack.c.b16 %v1641, %v1637
        %v1766 = vpack.c.b16 %v1642, %v1638
        %v1767 = vpack.c.b16 %v1643, %v1639
        %v1768 = vpack.c.b16 %v1644, %v1640
        %v1769 = vpack.c.b16 %v1649, %v1645
        %v1770 = vpack.c.b16 %v1650, %v1646
        %v1771 = vpack.c.b16 %v1651, %v1647
        %v1772 = vpack.c.b16 %v1652, %v1648
        %v1773 = vpack.c.b16 %v1657, %v1653
        %v1774 = vpack.c.b16 %v1658, %v1654
        %v1775 = vpack.c.b16 %v1659, %v1655
        %v1776 = vpack.c.b16 %v1660, %v1656
        %v1777 = vpack.c.b16 %v1665, %v1661
        %v1778 = vpack.c.b16 %v1666, %v1662
        %v1779 = vpack.c.b16 %v1667, %v1663
        %v1780 = vpack.c.b16 %v1668, %v1664
        %v1781 = vpack.c.b16 %v1673, %v1669
        %v1782 = vpack.c.b16 %v1674, %v1670
        %v1783 = vpack.c.b16 %v1675, %v1671
        %v1784 = vpack.c.b16 %v1676, %v1672
        %v1785 = vpack.c.b16 %v1681, %v1677
        %v1786 = vpack.c.b16 %v1682, %v1678
        %v1787 = vpack.c.b16 %v1683, %v1679
        %v1788 = vpack.c.b16 %v1684, %v1680
        %v1789 = vpack.c.b16 %v1689, %v1685
        %v1790 = vpack.c.b16 %v1690, %v1686
        %v1791 = vpack.c.b16 %v1691, %v1687
        %v1792 = vpack.c.b16 %v1692, %v1688
        %v1793 = vpack.c.b16 %v1697, %v1693
        %v1794 = vpack.c.b16 %v1698, %v1694
        %v1795 = vpack.c.b16 %v1699, %v1695
        %v1796 = vpack.c.b16 %v1700, %v1696
        %v1797 = vpack.c.b16 %v1705, %v1701
        %v1798 = vpack.c.b16 %v1706, %v1702
        %v1799 = vpack.c.b16 %v1707, %v1703
        %v1800 = vpack.c.b16 %v1708, %v1704
        %v1801 = vpack.c.b16 %v1713, %v1709
        %v1802 = vpack.c.b16 %v1714, %v1710
        %v1803 = vpack.c.b16 %v1715, %v1711
        %v1804 = vpack.c.b16 %v1716, %v1712
        %v1805 = vpack.c.b16 %v1721, %v1717
        %v1806 = vpack.c.b16 %v1722, %v1718
        %v1807 = vpack.c.b16 %v1723, %v1719
        %v1808 = vpack.c.b16 %v1724, %v1720
        %v1809 = vpack.c.b16 %v1729, %v1725
        %v1810 = vpack.c.b16 %v1730, %v1726
        %v1811 = vpack.c.b16 %v1731, %v1727
        %v1812 = vpack.c.b16 %v1732, %v1728
        %v1813 = vpack.c.b16 %v1737, %v1733
        %v1814 = vpack.c.b16 %v1738, %v1734
        %v1815 = vpack.c.b16 %v1739, %v1735
        %v1816 = vpack.c.b16 %v1740, %v1736
        %v1817 = vpack.c.b16 %v1745, %v1741
        %v1818 = vpack.c.b16 %v1746, %v1742
        %v1819 = vpack.c.b16 %v1747, %v1743
        %v1820 = vpack.c.b16 %v1748, %v1744
        %v1894 = vsel %vm1166, %v1131, 0
        %v1897 = vsel %vm1166, %v1133, 0
        %v1900 = vsel %vm1166, %v1135, 0
        %v1903 = vsel %vm1166, %v1137, 0
        %v1906 = vsel %vm1166, %v1139, 0
        %v1909 = vsel %vm1166, %v1141, 0
        %v1912 = vsel %vm1166, %v1143, 0
        %v1915 = vsel %vm1166, %v1145, 0
        %v1918 = vsel %vm1166, %v1147, 0
        %v1921 = vsel %vm1166, %v1149, 0
        %v1924 = vsel %vm1166, %v1151, 0
        %v1927 = vsel %vm1166, %v1153, 0
        %v1930 = vsel %vm1166, %v1155, 0
        %v1933 = vsel %vm1166, %v1157, 0
        %v1936 = vsel %vm1166, %v1159, 0
        %v1939 = vsel %vm1166, %v1161, 0
        %v1942 = vsel %vm1166, %v1163, 0
        %v1945 = vsel %vm1166, %v1165, 0
        %1947 = vmatprep.subr.bf16.mxu0 %v1750
        %1948 = vmatpush1.bf16.msra.mxu0 %v1749
        %1949 = vmatprep.subr.bf16.mxu0 %v1754
        %1950 = vmatpush1.bf16.msra.mxu0 %v1753
        %1951 = vmatprep.subr.bf16.mxu0 %v1758
        %1952 = vmatpush1.bf16.msra.mxu0 %v1757
        %1953 = vmatprep.subr.bf16.mxu0 %v1762
        %1954 = vmatpush1.bf16.msra.mxu0 %v1761
        %1955 = vmatprep.subr.bf16.mxu0 %v1766
        %1956 = vmatpush1.bf16.msra.mxu0 %v1765
        %1957 = vmatprep.subr.bf16.mxu0 %v1770
        %1958 = vmatpush1.bf16.msra.mxu0 %v1769
        %1959 = vmatprep.subr.bf16.mxu0 %v1774
        %1960 = vmatpush1.bf16.msra.mxu0 %v1773
        %1961 = vmatprep.subr.bf16.mxu0 %v1778
        %1962 = vmatpush1.bf16.msra.mxu0 %v1777
        %1963 = vmatprep.subr.bf16.mxu0 %v1782
        %1964 = vmatpush1.bf16.msra.mxu0 %v1781
        %1965 = vmatprep.subr.bf16.mxu0 %v1786
        %1966 = vmatpush1.bf16.msra.mxu0 %v1785
        %1967 = vmatprep.subr.bf16.mxu0 %v1790
        %1968 = vmatpush1.bf16.msra.mxu0 %v1789
        %1969 = vmatprep.subr.bf16.mxu0 %v1794
        %1970 = vmatpush1.bf16.msra.mxu0 %v1793
        %1971 = vmatprep.subr.bf16.mxu0 %v1798
        %1972 = vmatpush1.bf16.msra.mxu0 %v1797
        %1973 = vmatprep.subr.bf16.mxu0 %v1802
        %1974 = vmatpush1.bf16.msra.mxu0 %v1801
        %1975 = vmatprep.subr.bf16.mxu0 %v1806
        %1976 = vmatpush1.bf16.msra.mxu0 %v1805
        %1977 = vmatprep.subr.bf16.mxu0 %v1810
        %1978 = vmatpush1.bf16.msra.mxu0 %v1809
        %1979 = vmatprep.mubr.bf16.mxu0 %v1386
        %1980 = vmatmul.mubr.bf16.gmra.mrb[0].mxu0 %v1242
        %v1981 = vpop.f32.mrb[0].mxu0
        %v1982 = vadd.f32 %v1516, %v1981
        %v1983 = vpop.f32.mrb[0].mxu0
        %v1984 = vadd.f32 %v1520, %v1983
        %v1985 = vpop.f32.mrb[0].mxu0
        %v1986 = vadd.f32 %v1516, %v1985
        %v1987 = vpop.f32.mrb[0].mxu0
        %v1988 = vadd.f32 %v1520, %v1987
        %1989 = vmatprep.mubr.bf16.mxu0 %v1389
        %1990 = vmatmul.mubr.bf16.gmra.mrb[0].mxu0 %v1245
        %v1991 = vpop.f32.mrb[0].mxu0
        %v1992 = vadd.f32 %v1516, %v1991
        %v1993 = vpop.f32.mrb[0].mxu0
        %v1994 = vadd.f32 %v1520, %v1993
        %v1995 = vpop.f32.mrb[0].mxu0
        %v1996 = vadd.f32 %v1516, %v1995
        %v1997 = vpop.f32.mrb[0].mxu0
        %v1998 = vadd.f32 %v1520, %v1997
        %1999 = vmatprep.mubr.bf16.mxu0 %v1392
        %2000 = vmatmul.mubr.bf16.gmra.mrb[0].mxu0 %v1248
        %v2001 = vpop.f32.mrb[0].mxu0
        %v2002 = vadd.f32 %v1516, %v2001
        %v2003 = vpop.f32.mrb[0].mxu0
        %v2004 = vadd.f32 %v1520, %v2003
        %v2005 = vpop.f32.mrb[0].mxu0
        %v2006 = vadd.f32 %v1516, %v2005
        %v2007 = vpop.f32.mrb[0].mxu0
        %v2008 = vadd.f32 %v1520, %v2007
        %2009 = vmatprep.mubr.bf16.mxu0 %v1395
        %2010 = vmatmul.mubr.bf16.gmra.mrb[0].mxu0 %v1251
        %v2011 = vpop.f32.mrb[0].mxu0
        %v2012 = vadd.f32 %v1516, %v2011
        %v2013 = vpop.f32.mrb[0].mxu0
        %v2014 = vadd.f32 %v1520, %v2013
        %v2015 = vpop.f32.mrb[0].mxu0
        %v2016 = vadd.f32 %v1516, %v2015
        %v2017 = vpop.f32.mrb[0].mxu0
        %v2018 = vadd.f32 %v1520, %v2017
        %2019 = vmatprep.mubr.bf16.mxu0 %v1398
        %2020 = vmatmul.mubr.bf16.gmra.mrb[0].mxu0 %v1254
        %v2021 = vpop.f32.mrb[0].mxu0
        %v2022 = vadd.f32 %v1516, %v2021
        %v2023 = vpop.f32.mrb[0].mxu0
        %v2024 = vadd.f32 %v1520, %v2023
        %v2025 = vpop.f32.mrb[0].mxu0
        %v2026 = vadd.f32 %v1516, %v2025
        %v2027 = vpop.f32.mrb[0].mxu0
        %v2028 = vadd.f32 %v1520, %v2027
        %2029 = vmatprep.mubr.bf16.mxu0 %v1401
        %2030 = vmatmul.mubr.bf16.gmra.mrb[0].mxu0 %v1257
        %v2031 = vpop.f32.mrb[0].mxu0
        %v2032 = vadd.f32 %v1516, %v2031
        %v2033 = vpop.f32.mrb[0].mxu0
        %v2034 = vadd.f32 %v1520, %v2033
        %v2035 = vpop.f32.mrb[0].mxu0
        %v2036 = vadd.f32 %v1516, %v2035
        %v2037 = vpop.f32.mrb[0].mxu0
        %v2038 = vadd.f32 %v1520, %v2037
        %2039 = vmatprep.mubr.bf16.mxu0 %v1404
        %2040 = vmatmul.mubr.bf16.gmra.mrb[0].mxu0 %v1260
        %v2041 = vpop.f32.mrb[0].mxu0
        %v2042 = vadd.f32 %v1516, %v2041
        %v2043 = vpop.f32.mrb[0].mxu0
        %v2044 = vadd.f32 %v1520, %v2043
        %v2045 = vpop.f32.mrb[0].mxu0
        %v2046 = vadd.f32 %v1516, %v2045
        %v2047 = vpop.f32.mrb[0].mxu0
        %v2048 = vadd.f32 %v1520, %v2047
        %2049 = vmatprep.mubr.bf16.mxu0 %v1407
        %2050 = vmatmul.mubr.bf16.gmra.mrb[0].mxu0 %v1263
        %v2051 = vpop.f32.mrb[0].mxu0
        %v2052 = vadd.f32 %v1516, %v2051
        %v2053 = vpop.f32.mrb[0].mxu0
        %v2054 = vadd.f32 %v1520, %v2053
        %v2055 = vpop.f32.mrb[0].mxu0
        %v2056 = vadd.f32 %v1516, %v2055
        %v2057 = vpop.f32.mrb[0].mxu0
        %v2058 = vadd.f32 %v1520, %v2057
        %2059 = vmatprep.mubr.bf16.mxu0 %v1410
        %2060 = vmatmul.mubr.bf16.gmra.mrb[0].mxu0 %v1266
        %v2061 = vpop.f32.mrb[0].mxu0
        %v2062 = vadd.f32 %v1516, %v2061
        %v2063 = vpop.f32.mrb[0].mxu0
        %v2064 = vadd.f32 %v1520, %v2063
        %v2065 = vpop.f32.mrb[0].mxu0
        %v2066 = vadd.f32 %v1516, %v2065
        %v2067 = vpop.f32.mrb[0].mxu0
        %v2068 = vadd.f32 %v1520, %v2067
        %2069 = vmatprep.mubr.bf16.mxu0 %v1413
        %2070 = vmatmul.mubr.bf16.gmra.mrb[0].mxu0 %v1269
        %v2071 = vpop.f32.mrb[0].mxu0
        %v2072 = vadd.f32 %v1516, %v2071
        %v2073 = vpop.f32.mrb[0].mxu0
        %v2074 = vadd.f32 %v1520, %v2073
        %v2075 = vpop.f32.mrb[0].mxu0
        %v2076 = vadd.f32 %v1516, %v2075
        %v2077 = vpop.f32.mrb[0].mxu0
        %v2078 = vadd.f32 %v1520, %v2077
        %2079 = vmatprep.mubr.bf16.mxu0 %v1416
        %2080 = vmatmul.mubr.bf16.gmra.mrb[0].mxu0 %v1272
        %v2081 = vpop.f32.mrb[0].mxu0
        %v2082 = vadd.f32 %v1516, %v2081
        %v2083 = vpop.f32.mrb[0].mxu0
        %v2084 = vadd.f32 %v1520, %v2083
        %v2085 = vpop.f32.mrb[0].mxu0
        %v2086 = vadd.f32 %v1516, %v2085
        %v2087 = vpop.f32.mrb[0].mxu0
        %v2088 = vadd.f32 %v1520, %v2087
        %2089 = vmatprep.mubr.bf16.mxu0 %v1419
        %2090 = vmatmul.mubr.bf16.gmra.mrb[0].mxu0 %v1275
        %v2091 = vpop.f32.mrb[0].mxu0
        %v2092 = vadd.f32 %v1516, %v2091
        %v2093 = vpop.f32.mrb[0].mxu0
        %v2094 = vadd.f32 %v1520, %v2093
        %v2095 = vpop.f32.mrb[0].mxu0
        %v2096 = vadd.f32 %v1516, %v2095
        %v2097 = vpop.f32.mrb[0].mxu0
        %v2098 = vadd.f32 %v1520, %v2097
        %2099 = vmatprep.mubr.bf16.mxu0 %v1422
        %2100 = vmatmul.mubr.bf16.gmra.mrb[0].mxu0 %v1278
        %v2101 = vpop.f32.mrb[0].mxu0
        %v2102 = vadd.f32 %v1516, %v2101
        %v2103 = vpop.f32.mrb[0].mxu0
        %v2104 = vadd.f32 %v1520, %v2103
        %v2105 = vpop.f32.mrb[0].mxu0
        %v2106 = vadd.f32 %v1516, %v2105
        %v2107 = vpop.f32.mrb[0].mxu0
        %v2108 = vadd.f32 %v1520, %v2107
        %2109 = vmatprep.mubr.bf16.mxu0 %v1425
        %2110 = vmatmul.mubr.bf16.gmra.mrb[0].mxu0 %v1281
        %v2111 = vpop.f32.mrb[0].mxu0
        %v2112 = vadd.f32 %v1516, %v2111
        %v2113 = vpop.f32.mrb[0].mxu0
        %v2114 = vadd.f32 %v1520, %v2113
        %v2115 = vpop.f32.mrb[0].mxu0
        %v2116 = vadd.f32 %v1516, %v2115
        %v2117 = vpop.f32.mrb[0].mxu0
        %v2118 = vadd.f32 %v1520, %v2117
        %2119 = vmatprep.mubr.bf16.mxu0 %v1428
        %2120 = vmatmul.mubr.bf16.gmra.mrb[0].mxu0 %v1284
        %v2121 = vpop.f32.mrb[0].mxu0
        %v2122 = vadd.f32 %v1516, %v2121
        %v2123 = vpop.f32.mrb[0].mxu0
        %v2124 = vadd.f32 %v1520, %v2123
        %v2125 = vpop.f32.mrb[0].mxu0
        %v2126 = vadd.f32 %v1516, %v2125
        %v2127 = vpop.f32.mrb[0].mxu0
        %v2128 = vadd.f32 %v1520, %v2127
        %2129 = vmatprep.mubr.bf16.mxu0 %v1431
        %2130 = vmatmul.mubr.bf16.gmra.mrb[0].mxu0 %v1287
        %v2131 = vpop.f32.mrb[0].mxu0
        %v2132 = vadd.f32 %v1516, %v2131
        %v2133 = vpop.f32.mrb[0].mxu0
        %v2134 = vadd.f32 %v1520, %v2133
        %v2135 = vpop.f32.mrb[0].mxu0
        %v2136 = vadd.f32 %v1516, %v2135
        %v2137 = vpop.f32.mrb[0].mxu0
        %v2138 = vadd.f32 %v1520, %v2137
        %2139 = vmatprep.mubr.bf16.mxu0 %v1434
        %2140 = vmatmul.mubr.bf16.gmra.mrb[0].mxu0 %v1290
        %v2141 = vpop.f32.mrb[0].mxu0
        %v2142 = vadd.f32 %v1516, %v2141
        %v2143 = vpop.f32.mrb[0].mxu0
        %v2144 = vadd.f32 %v1520, %v2143
        %v2145 = vpop.f32.mrb[0].mxu0
        %v2146 = vadd.f32 %v1516, %v2145
        %v2147 = vpop.f32.mrb[0].mxu0
        %v2148 = vadd.f32 %v1520, %v2147
        %2149 = vmatprep.mubr.bf16.mxu0 %v1437
        %2150 = vmatmul.mubr.bf16.gmra.mrb[0].mxu0 %v1293
        %v2151 = vpop.f32.mrb[0].mxu0
        %v2152 = vadd.f32 %v1516, %v2151
        %v2153 = vpop.f32.mrb[0].mxu0
        %v2154 = vadd.f32 %v1520, %v2153
        %v2155 = vpop.f32.mrb[0].mxu0
        %v2156 = vadd.f32 %v1516, %v2155
        %v2157 = vpop.f32.mrb[0].mxu0
        %v2158 = vadd.f32 %v1520, %v2157
        %2159 = vdwg.mxu0
        %2160 = vmatprep.subr.bf16.mxu0 %v1814
        %2161 = vmatpush1.bf16.msra.mxu0 %v1813
        %2162 = vmatprep.subr.bf16.mxu0 %v1818
        %2163 = vmatpush1.bf16.msra.mxu0 %v1817
        %2164 = vmatprep.subr.bf16.mxu0 0
        %2165 = vmatpush1.bf16.msra.mxu0 0
        %2166 = vmatprep.subr.bf16.mxu0 0
        %2167 = vmatpush1.bf16.msra.mxu0 0
        %2168 = vmatprep.subr.bf16.mxu0 0
        %2169 = vmatpush1.bf16.msra.mxu0 0
        %2170 = vmatprep.subr.bf16.mxu0 0
        %2171 = vmatpush1.bf16.msra.mxu0 0
        %2172 = vmatprep.subr.bf16.mxu0 0
        %2173 = vmatpush1.bf16.msra.mxu0 0
        %2174 = vmatprep.subr.bf16.mxu0 0
        %2175 = vmatpush1.bf16.msra.mxu0 0
        %2176 = vmatprep.subr.bf16.mxu0 0
        %2177 = vmatpush1.bf16.msra.mxu0 0
        %2178 = vmatprep.subr.bf16.mxu0 0
        %2179 = vmatpush1.bf16.msra.mxu0 0
        %2180 = vmatprep.subr.bf16.mxu0 0
        %2181 = vmatpush1.bf16.msra.mxu0 0
        %2182 = vmatprep.subr.bf16.mxu0 0
        %2183 = vmatpush1.bf16.msra.mxu0 0
        %2184 = vmatprep.subr.bf16.mxu0 0
        %2185 = vmatpush1.bf16.msra.mxu0 0
        %2186 = vmatprep.subr.bf16.mxu0 0
        %2187 = vmatpush1.bf16.msra.mxu0 0
        %2188 = vmatprep.subr.bf16.mxu0 0
        %2189 = vmatpush1.bf16.msra.mxu0 0
        %2190 = vmatprep.subr.bf16.mxu0 0
        %2191 = vmatpush1.bf16.msra.mxu0 0
        %2192 = vmatprep.mubr.bf16.mxu0 0
        %2193 = vmatmul.mubr.bf16.gmra.mrb[0].mxu0 %v1894
        %v2194 = vpop.f32.mrb[0].mxu0
        %v2195 = vadd.f32 %v1982, %v2194
        %v2196 = vpop.f32.mrb[0].mxu0
        %v2197 = vadd.f32 %v1984, %v2196
        %v2198 = vpop.f32.mrb[0].mxu0
        %v2199 = vadd.f32 %v1986, %v2198
        %v2200 = vpop.f32.mrb[0].mxu0
        %v2201 = vadd.f32 %v1988, %v2200
        %2202 = vmatprep.mubr.bf16.mxu0 0
        %2203 = vmatmul.mubr.bf16.gmra.mrb[0].mxu0 %v1897
        %v2204 = vpop.f32.mrb[0].mxu0
        %v2205 = vadd.f32 %v1992, %v2204
        %v2206 = vpop.f32.mrb[0].mxu0
        %v2207 = vadd.f32 %v1994, %v2206
        %v2208 = vpop.f32.mrb[0].mxu0
        %v2209 = vadd.f32 %v1996, %v2208
        %v2210 = vpop.f32.mrb[0].mxu0
        %v2211 = vadd.f32 %v1998, %v2210
        %2212 = vmatprep.mubr.bf16.mxu0 0
        %2213 = vmatmul.mubr.bf16.gmra.mrb[0].mxu0 %v1900
        %v2214 = vpop.f32.mrb[0].mxu0
        %v2215 = vadd.f32 %v2002, %v2214
        %v2216 = vpop.f32.mrb[0].mxu0
        %v2217 = vadd.f32 %v2004, %v2216
        %v2218 = vpop.f32.mrb[0].mxu0
        %v2219 = vadd.f32 %v2006, %v2218
        %v2220 = vpop.f32.mrb[0].mxu0
        %v2221 = vadd.f32 %v2008, %v2220
        %2222 = vmatprep.mubr.bf16.mxu0 0
        %2223 = vmatmul.mubr.bf16.gmra.mrb[0].mxu0 %v1903
        %v2224 = vpop.f32.mrb[0].mxu0
        %v2225 = vadd.f32 %v2012, %v2224
        %v2226 = vpop.f32.mrb[0].mxu0
        %v2227 = vadd.f32 %v2014, %v2226
        %v2228 = vpop.f32.mrb[0].mxu0
        %v2229 = vadd.f32 %v2016, %v2228
        %v2230 = vpop.f32.mrb[0].mxu0
        %v2231 = vadd.f32 %v2018, %v2230
        %2232 = vmatprep.mubr.bf16.mxu0 0
        %2233 = vmatmul.mubr.bf16.gmra.mrb[0].mxu0 %v1906
        %v2234 = vpop.f32.mrb[0].mxu0
        %v2235 = vadd.f32 %v2022, %v2234
        %v2236 = vpop.f32.mrb[0].mxu0
        %v2237 = vadd.f32 %v2024, %v2236
        %v2238 = vpop.f32.mrb[0].mxu0
        %v2239 = vadd.f32 %v2026, %v2238
        %v2240 = vpop.f32.mrb[0].mxu0
        %v2241 = vadd.f32 %v2028, %v2240
        %2242 = vmatprep.mubr.bf16.mxu0 0
        %2243 = vmatmul.mubr.bf16.gmra.mrb[0].mxu0 %v1909
        %v2244 = vpop.f32.mrb[0].mxu0
        %v2245 = vadd.f32 %v2032, %v2244
        %v2246 = vpop.f32.mrb[0].mxu0
        %v2247 = vadd.f32 %v2034, %v2246
        %v2248 = vpop.f32.mrb[0].mxu0
        %v2249 = vadd.f32 %v2036, %v2248
        %v2250 = vpop.f32.mrb[0].mxu0
        %v2251 = vadd.f32 %v2038, %v2250
        %2252 = vmatprep.mubr.bf16.mxu0 0
        %2253 = vmatmul.mubr.bf16.gmra.mrb[0].mxu0 %v1912
        %v2254 = vpop.f32.mrb[0].mxu0
        %v2255 = vadd.f32 %v2042, %v2254
        %v2256 = vpop.f32.mrb[0].mxu0
        %v2257 = vadd.f32 %v2044, %v2256
        %v2258 = vpop.f32.mrb[0].mxu0
        %v2259 = vadd.f32 %v2046, %v2258
        %v2260 = vpop.f32.mrb[0].mxu0
        %v2261 = vadd.f32 %v2048, %v2260
        %2262 = vmatprep.mubr.bf16.mxu0 0
        %2263 = vmatmul.mubr.bf16.gmra.mrb[0].mxu0 %v1915
        %v2264 = vpop.f32.mrb[0].mxu0
        %v2265 = vadd.f32 %v2052, %v2264
        %v2266 = vpop.f32.mrb[0].mxu0
        %v2267 = vadd.f32 %v2054, %v2266
        %v2268 = vpop.f32.mrb[0].mxu0
        %v2269 = vadd.f32 %v2056, %v2268
        %v2270 = vpop.f32.mrb[0].mxu0
        %v2271 = vadd.f32 %v2058, %v2270
        %2272 = vmatprep.mubr.bf16.mxu0 0
        %2273 = vmatmul.mubr.bf16.gmra.mrb[0].mxu0 %v1918
        %v2274 = vpop.f32.mrb[0].mxu0
        %v2275 = vadd.f32 %v2062, %v2274
        %v2276 = vpop.f32.mrb[0].mxu0
        %v2277 = vadd.f32 %v2064, %v2276
        %v2278 = vpop.f32.mrb[0].mxu0
        %v2279 = vadd.f32 %v2066, %v2278
        %v2280 = vpop.f32.mrb[0].mxu0
        %v2281 = vadd.f32 %v2068, %v2280
        %2282 = vmatprep.mubr.bf16.mxu0 0
        %2283 = vmatmul.mubr.bf16.gmra.mrb[0].mxu0 %v1921
        %v2284 = vpop.f32.mrb[0].mxu0
        %v2285 = vadd.f32 %v2072, %v2284
        %v2286 = vpop.f32.mrb[0].mxu0
        %v2287 = vadd.f32 %v2074, %v2286
        %v2288 = vpop.f32.mrb[0].mxu0
        %v2289 = vadd.f32 %v2076, %v2288
        %v2290 = vpop.f32.mrb[0].mxu0
        %v2291 = vadd.f32 %v2078, %v2290
        %2292 = vmatprep.mubr.bf16.mxu0 0
        %2293 = vmatmul.mubr.bf16.gmra.mrb[0].mxu0 %v1924
        %v2294 = vpop.f32.mrb[0].mxu0
        %v2295 = vadd.f32 %v2082, %v2294
        %v2296 = vpop.f32.mrb[0].mxu0
        %v2297 = vadd.f32 %v2084, %v2296
        %v2298 = vpop.f32.mrb[0].mxu0
        %v2299 = vadd.f32 %v2086, %v2298
        %v2300 = vpop.f32.mrb[0].mxu0
        %v2301 = vadd.f32 %v2088, %v2300
        %2302 = vmatprep.mubr.bf16.mxu0 0
        %2303 = vmatmul.mubr.bf16.gmra.mrb[0].mxu0 %v1927
        %v2304 = vpop.f32.mrb[0].mxu0
        %v2305 = vadd.f32 %v2092, %v2304
        %v2306 = vpop.f32.mrb[0].mxu0
        %v2307 = vadd.f32 %v2094, %v2306
        %v2308 = vpop.f32.mrb[0].mxu0
        %v2309 = vadd.f32 %v2096, %v2308
        %v2310 = vpop.f32.mrb[0].mxu0
        %v2311 = vadd.f32 %v2098, %v2310
        %2312 = vmatprep.mubr.bf16.mxu0 0
        %2313 = vmatmul.mubr.bf16.gmra.mrb[0].mxu0 %v1930
        %v2314 = vpop.f32.mrb[0].mxu0
        %v2315 = vadd.f32 %v2102, %v2314
        %v2316 = vpop.f32.mrb[0].mxu0
        %v2317 = vadd.f32 %v2104, %v2316
        %v2318 = vpop.f32.mrb[0].mxu0
        %v2319 = vadd.f32 %v2106, %v2318
        %v2320 = vpop.f32.mrb[0].mxu0
        %v2321 = vadd.f32 %v2108, %v2320
        %2322 = vmatprep.mubr.bf16.mxu0 0
        %2323 = vmatmul.mubr.bf16.gmra.mrb[0].mxu0 %v1933
        %v2324 = vpop.f32.mrb[0].mxu0
        %v2325 = vadd.f32 %v2112, %v2324
        %v2326 = vpop.f32.mrb[0].mxu0
        %v2327 = vadd.f32 %v2114, %v2326
        %v2328 = vpop.f32.mrb[0].mxu0
        %v2329 = vadd.f32 %v2116, %v2328
        %v2330 = vpop.f32.mrb[0].mxu0
        %v2331 = vadd.f32 %v2118, %v2330
        %2332 = vmatprep.mubr.bf16.mxu0 0
        %2333 = vmatmul.mubr.bf16.gmra.mrb[0].mxu0 %v1936
        %v2334 = vpop.f32.mrb[0].mxu0
        %v2335 = vadd.f32 %v2122, %v2334
        %v2336 = vpop.f32.mrb[0].mxu0
        %v2337 = vadd.f32 %v2124, %v2336
        %v2338 = vpop.f32.mrb[0].mxu0
        %v2339 = vadd.f32 %v2126, %v2338
        %v2340 = vpop.f32.mrb[0].mxu0
        %v2341 = vadd.f32 %v2128, %v2340
        %2342 = vmatprep.mubr.bf16.mxu0 0
        %2343 = vmatmul.mubr.bf16.gmra.mrb[0].mxu0 %v1939
        %v2344 = vpop.f32.mrb[0].mxu0
        %v2345 = vadd.f32 %v2132, %v2344
        %v2346 = vpop.f32.mrb[0].mxu0
        %v2347 = vadd.f32 %v2134, %v2346
        %v2348 = vpop.f32.mrb[0].mxu0
        %v2349 = vadd.f32 %v2136, %v2348
        %v2350 = vpop.f32.mrb[0].mxu0
        %v2351 = vadd.f32 %v2138, %v2350
        %2352 = vmatprep.mubr.bf16.mxu0 0
        %2353 = vmatmul.mubr.bf16.gmra.mrb[0].mxu0 %v1942
        %v2354 = vpop.f32.mrb[0].mxu0
        %v2355 = vadd.f32 %v2142, %v2354
        %v2356 = vpop.f32.mrb[0].mxu0
        %v2357 = vadd.f32 %v2144, %v2356
        %v2358 = vpop.f32.mrb[0].mxu0
        %v2359 = vadd.f32 %v2146, %v2358
        %v2360 = vpop.f32.mrb[0].mxu0
        %v2361 = vadd.f32 %v2148, %v2360
        %2362 = vmatprep.mubr.bf16.mxu0 0
        %2363 = vmatmul.mubr.bf16.gmra.mrb[0].mxu0 %v1945
        %v2364 = vpop.f32.mrb[0].mxu0
        %v2365 = vadd.f32 %v2152, %v2364
        %v2366 = vpop.f32.mrb[0].mxu0
        %v2367 = vadd.f32 %v2154, %v2366
        %v2368 = vpop.f32.mrb[0].mxu0
        %v2369 = vadd.f32 %v2156, %v2368
        %v2370 = vpop.f32.mrb[0].mxu0
        %v2371 = vadd.f32 %v2158, %v2370
        %2372 = vdwg.mxu0
        %2373 = vmatprep.subr.bf16.mxu0 %v1752
        %2374 = vmatpush1.bf16.msra.mxu0 %v1751
        %2375 = vmatprep.subr.bf16.mxu0 %v1756
        %2376 = vmatpush1.bf16.msra.mxu0 %v1755
        %2377 = vmatprep.subr.bf16.mxu0 %v1760
        %2378 = vmatpush1.bf16.msra.mxu0 %v1759
        %2379 = vmatprep.subr.bf16.mxu0 %v1764
        %2380 = vmatpush1.bf16.msra.mxu0 %v1763
        %2381 = vmatprep.subr.bf16.mxu0 %v1768
        %2382 = vmatpush1.bf16.msra.mxu0 %v1767
        %2383 = vmatprep.subr.bf16.mxu0 %v1772
        %2384 = vmatpush1.bf16.msra.mxu0 %v1771
        %2385 = vmatprep.subr.bf16.mxu0 %v1776
        %2386 = vmatpush1.bf16.msra.mxu0 %v1775
        %2387 = vmatprep.subr.bf16.mxu0 %v1780
        %2388 = vmatpush1.bf16.msra.mxu0 %v1779
        %2389 = vmatprep.subr.bf16.mxu0 %v1784
        %2390 = vmatpush1.bf16.msra.mxu0 %v1783
        %2391 = vmatprep.subr.bf16.mxu0 %v1788
        %2392 = vmatpush1.bf16.msra.mxu0 %v1787
        %2393 = vmatprep.subr.bf16.mxu0 %v1792
        %2394 = vmatpush1.bf16.msra.mxu0 %v1791
        %2395 = vmatprep.subr.bf16.mxu0 %v1796
        %2396 = vmatpush1.bf16.msra.mxu0 %v1795
        %2397 = vmatprep.subr.bf16.mxu0 %v1800
        %2398 = vmatpush1.bf16.msra.mxu0 %v1799
        %2399 = vmatprep.subr.bf16.mxu0 %v1804
        %2400 = vmatpush1.bf16.msra.mxu0 %v1803
        %2401 = vmatprep.subr.bf16.mxu0 %v1808
        %2402 = vmatpush1.bf16.msra.mxu0 %v1807
        %2403 = vmatprep.subr.bf16.mxu0 %v1812
        %2404 = vmatpush1.bf16.msra.mxu0 %v1811
        %2405 = vmatprep.mubr.bf16.mxu0 %v1386
        %2406 = vmatmul.mubr.bf16.gmra.mrb[0].mxu0 %v1242
        %v2407 = vpop.f32.mrb[0].mxu0
        %v2408 = vadd.f32 %v1524, %v2407
        %v2409 = vpop.f32.mrb[0].mxu0
        %v2410 = vadd.f32 %v1528, %v2409
        %v2411 = vpop.f32.mrb[0].mxu0
        %v2412 = vadd.f32 %v1524, %v2411
        %v2413 = vpop.f32.mrb[0].mxu0
        %v2414 = vadd.f32 %v1528, %v2413
        %2415 = vmatprep.mubr.bf16.mxu0 %v1389
        %2416 = vmatmul.mubr.bf16.gmra.mrb[0].mxu0 %v1245
        %v2417 = vpop.f32.mrb[0].mxu0
        %v2418 = vadd.f32 %v1524, %v2417
        %v2419 = vpop.f32.mrb[0].mxu0
        %v2420 = vadd.f32 %v1528, %v2419
        %v2421 = vpop.f32.mrb[0].mxu0
        %v2422 = vadd.f32 %v1524, %v2421
        %v2423 = vpop.f32.mrb[0].mxu0
        %v2424 = vadd.f32 %v1528, %v2423
        %2425 = vmatprep.mubr.bf16.mxu0 %v1392
        %2426 = vmatmul.mubr.bf16.gmra.mrb[0].mxu0 %v1248
        %v2427 = vpop.f32.mrb[0].mxu0
        %v2428 = vadd.f32 %v1524, %v2427
        %v2429 = vpop.f32.mrb[0].mxu0
        %v2430 = vadd.f32 %v1528, %v2429
        %v2431 = vpop.f32.mrb[0].mxu0
        %v2432 = vadd.f32 %v1524, %v2431
        %v2433 = vpop.f32.mrb[0].mxu0
        %v2434 = vadd.f32 %v1528, %v2433
        %2435 = vmatprep.mubr.bf16.mxu0 %v1395
        %2436 = vmatmul.mubr.bf16.gmra.mrb[0].mxu0 %v1251
        %v2437 = vpop.f32.mrb[0].mxu0
        %v2438 = vadd.f32 %v1524, %v2437
        %v2439 = vpop.f32.mrb[0].mxu0
        %v2440 = vadd.f32 %v1528, %v2439
        %v2441 = vpop.f32.mrb[0].mxu0
        %v2442 = vadd.f32 %v1524, %v2441
        %v2443 = vpop.f32.mrb[0].mxu0
        %v2444 = vadd.f32 %v1528, %v2443
        %2445 = vmatprep.mubr.bf16.mxu0 %v1398
        %2446 = vmatmul.mubr.bf16.gmra.mrb[0].mxu0 %v1254
        %v2447 = vpop.f32.mrb[0].mxu0
        %v2448 = vadd.f32 %v1524, %v2447
        %v2449 = vpop.f32.mrb[0].mxu0
        %v2450 = vadd.f32 %v1528, %v2449
        %v2451 = vpop.f32.mrb[0].mxu0
        %v2452 = vadd.f32 %v1524, %v2451
        %v2453 = vpop.f32.mrb[0].mxu0
        %v2454 = vadd.f32 %v1528, %v2453
        %2455 = vmatprep.mubr.bf16.mxu0 %v1401
        %2456 = vmatmul.mubr.bf16.gmra.mrb[0].mxu0 %v1257
        %v2457 = vpop.f32.mrb[0].mxu0
        %v2458 = vadd.f32 %v1524, %v2457
        %v2459 = vpop.f32.mrb[0].mxu0
        %v2460 = vadd.f32 %v1528, %v2459
        %v2461 = vpop.f32.mrb[0].mxu0
        %v2462 = vadd.f32 %v1524, %v2461
        %v2463 = vpop.f32.mrb[0].mxu0
        %v2464 = vadd.f32 %v1528, %v2463
        %2465 = vmatprep.mubr.bf16.mxu0 %v1404
        %2466 = vmatmul.mubr.bf16.gmra.mrb[0].mxu0 %v1260
        %v2467 = vpop.f32.mrb[0].mxu0
        %v2468 = vadd.f32 %v1524, %v2467
        %v2469 = vpop.f32.mrb[0].mxu0
        %v2470 = vadd.f32 %v1528, %v2469
        %v2471 = vpop.f32.mrb[0].mxu0
        %v2472 = vadd.f32 %v1524, %v2471
        %v2473 = vpop.f32.mrb[0].mxu0
        %v2474 = vadd.f32 %v1528, %v2473
        %2475 = vmatprep.mubr.bf16.mxu0 %v1407
        %2476 = vmatmul.mubr.bf16.gmra.mrb[0].mxu0 %v1263
        %v2477 = vpop.f32.mrb[0].mxu0
        %v2478 = vadd.f32 %v1524, %v2477
        %v2479 = vpop.f32.mrb[0].mxu0
        %v2480 = vadd.f32 %v1528, %v2479
        %v2481 = vpop.f32.mrb[0].mxu0
        %v2482 = vadd.f32 %v1524, %v2481
        %v2483 = vpop.f32.mrb[0].mxu0
        %v2484 = vadd.f32 %v1528, %v2483
        %2485 = vmatprep.mubr.bf16.mxu0 %v1410
        %2486 = vmatmul.mubr.bf16.gmra.mrb[0].mxu0 %v1266
        %v2487 = vpop.f32.mrb[0].mxu0
        %v2488 = vadd.f32 %v1524, %v2487
        %v2489 = vpop.f32.mrb[0].mxu0
        %v2490 = vadd.f32 %v1528, %v2489
        %v2491 = vpop.f32.mrb[0].mxu0
        %v2492 = vadd.f32 %v1524, %v2491
        %v2493 = vpop.f32.mrb[0].mxu0
        %v2494 = vadd.f32 %v1528, %v2493
        %2495 = vmatprep.mubr.bf16.mxu0 %v1413
        %2496 = vmatmul.mubr.bf16.gmra.mrb[0].mxu0 %v1269
        %v2497 = vpop.f32.mrb[0].mxu0
        %v2498 = vadd.f32 %v1524, %v2497
        %v2499 = vpop.f32.mrb[0].mxu0
        %v2500 = vadd.f32 %v1528, %v2499
        %v2501 = vpop.f32.mrb[0].mxu0
        %v2502 = vadd.f32 %v1524, %v2501
        %v2503 = vpop.f32.mrb[0].mxu0
        %v2504 = vadd.f32 %v1528, %v2503
        %2505 = vmatprep.mubr.bf16.mxu0 %v1416
        %2506 = vmatmul.mubr.bf16.gmra.mrb[0].mxu0 %v1272
        %v2507 = vpop.f32.mrb[0].mxu0
        %v2508 = vadd.f32 %v1524, %v2507
        %v2509 = vpop.f32.mrb[0].mxu0
        %v2510 = vadd.f32 %v1528, %v2509
        %v2511 = vpop.f32.mrb[0].mxu0
        %v2512 = vadd.f32 %v1524, %v2511
        %v2513 = vpop.f32.mrb[0].mxu0
        %v2514 = vadd.f32 %v1528, %v2513
        %2515 = vmatprep.mubr.bf16.mxu0 %v1419
        %2516 = vmatmul.mubr.bf16.gmra.mrb[0].mxu0 %v1275
        %v2517 = vpop.f32.mrb[0].mxu0
        %v2518 = vadd.f32 %v1524, %v2517
        %v2519 = vpop.f32.mrb[0].mxu0
        %v2520 = vadd.f32 %v1528, %v2519
        %v2521 = vpop.f32.mrb[0].mxu0
        %v2522 = vadd.f32 %v1524, %v2521
        %v2523 = vpop.f32.mrb[0].mxu0
        %v2524 = vadd.f32 %v1528, %v2523
        %2525 = vmatprep.mubr.bf16.mxu0 %v1422
        %2526 = vmatmul.mubr.bf16.gmra.mrb[0].mxu0 %v1278
        %v2527 = vpop.f32.mrb[0].mxu0
        %v2528 = vadd.f32 %v1524, %v2527
        %v2529 = vpop.f32.mrb[0].mxu0
        %v2530 = vadd.f32 %v1528, %v2529
        %v2531 = vpop.f32.mrb[0].mxu0
        %v2532 = vadd.f32 %v1524, %v2531
        %v2533 = vpop.f32.mrb[0].mxu0
        %v2534 = vadd.f32 %v1528, %v2533
        %2535 = vmatprep.mubr.bf16.mxu0 %v1425
        %2536 = vmatmul.mubr.bf16.gmra.mrb[0].mxu0 %v1281
        %v2537 = vpop.f32.mrb[0].mxu0
        %v2538 = vadd.f32 %v1524, %v2537
        %v2539 = vpop.f32.mrb[0].mxu0
        %v2540 = vadd.f32 %v1528, %v2539
        %v2541 = vpop.f32.mrb[0].mxu0
        %v2542 = vadd.f32 %v1524, %v2541
        %v2543 = vpop.f32.mrb[0].mxu0
        %v2544 = vadd.f32 %v1528, %v2543
        %2545 = vmatprep.mubr.bf16.mxu0 %v1428
        %2546 = vmatmul.mubr.bf16.gmra.mrb[0].mxu0 %v1284
        %v2547 = vpop.f32.mrb[0].mxu0
        %v2548 = vadd.f32 %v1524, %v2547
        %v2549 = vpop.f32.mrb[0].mxu0
        %v2550 = vadd.f32 %v1528, %v2549
        %v2551 = vpop.f32.mrb[0].mxu0
        %v2552 = vadd.f32 %v1524, %v2551
        %v2553 = vpop.f32.mrb[0].mxu0
        %v2554 = vadd.f32 %v1528, %v2553
        %2555 = vmatprep.mubr.bf16.mxu0 %v1431
        %2556 = vmatmul.mubr.bf16.gmra.mrb[0].mxu0 %v1287
        %v2557 = vpop.f32.mrb[0].mxu0
        %v2558 = vadd.f32 %v1524, %v2557
        %v2559 = vpop.f32.mrb[0].mxu0
        %v2560 = vadd.f32 %v1528, %v2559
        %v2561 = vpop.f32.mrb[0].mxu0
        %v2562 = vadd.f32 %v1524, %v2561
        %v2563 = vpop.f32.mrb[0].mxu0
        %v2564 = vadd.f32 %v1528, %v2563
        %2565 = vmatprep.mubr.bf16.mxu0 %v1434
        %2566 = vmatmul.mubr.bf16.gmra.mrb[0].mxu0 %v1290
        %v2567 = vpop.f32.mrb[0].mxu0
        %v2568 = vadd.f32 %v1524, %v2567
        %v2569 = vpop.f32.mrb[0].mxu0
        %v2570 = vadd.f32 %v1528, %v2569
        %v2571 = vpop.f32.mrb[0].mxu0
        %v2572 = vadd.f32 %v1524, %v2571
        %v2573 = vpop.f32.mrb[0].mxu0
        %v2574 = vadd.f32 %v1528, %v2573
        %2575 = vmatprep.mubr.bf16.mxu0 %v1437
        %2576 = vmatmul.mubr.bf16.gmra.mrb[0].mxu0 %v1293
        %v2577 = vpop.f32.mrb[0].mxu0
        %v2578 = vadd.f32 %v1524, %v2577
        %v2579 = vpop.f32.mrb[0].mxu0
        %v2580 = vadd.f32 %v1528, %v2579
        %v2581 = vpop.f32.mrb[0].mxu0
        %v2582 = vadd.f32 %v1524, %v2581
        %v2583 = vpop.f32.mrb[0].mxu0
        %v2584 = vadd.f32 %v1528, %v2583
        %2585 = vdwg.mxu0
        %2586 = vmatprep.subr.bf16.mxu0 %v1816
        %2587 = vmatpush1.bf16.msra.mxu0 %v1815
        %2588 = vmatprep.subr.bf16.mxu0 %v1820
        %2589 = vmatpush1.bf16.msra.mxu0 %v1819
        %2590 = vmatprep.subr.bf16.mxu0 0
        %2591 = vmatpush1.bf16.msra.mxu0 0
        %2592 = vmatprep.subr.bf16.mxu0 0
        %2593 = vmatpush1.bf16.msra.mxu0 0
        %2594 = vmatprep.subr.bf16.mxu0 0
        %2595 = vmatpush1.bf16.msra.mxu0 0
        %2596 = vmatprep.subr.bf16.mxu0 0
        %2597 = vmatpush1.bf16.msra.mxu0 0
        %2598 = vmatprep.subr.bf16.mxu0 0
        %2599 = vmatpush1.bf16.msra.mxu0 0
        %2600 = vmatprep.subr.bf16.mxu0 0
        %2601 = vmatpush1.bf16.msra.mxu0 0
        %2602 = vmatprep.subr.bf16.mxu0 0
        %2603 = vmatpush1.bf16.msra.mxu0 0
        %2604 = vmatprep.subr.bf16.mxu0 0
        %2605 = vmatpush1.bf16.msra.mxu0 0
        %2606 = vmatprep.subr.bf16.mxu0 0
        %2607 = vmatpush1.bf16.msra.mxu0 0
        %2608 = vmatprep.subr.bf16.mxu0 0
        %2609 = vmatpush1.bf16.msra.mxu0 0
        %2610 = vmatprep.subr.bf16.mxu0 0
        %2611 = vmatpush1.bf16.msra.mxu0 0
        %2612 = vmatprep.subr.bf16.mxu0 0
        %2613 = vmatpush1.bf16.msra.mxu0 0
        %2614 = vmatprep.subr.bf16.mxu0 0
        %2615 = vmatpush1.bf16.msra.mxu0 0
        %2616 = vmatprep.subr.bf16.mxu0 0
        %2617 = vmatpush1.bf16.msra.mxu0 0
        %2618 = vmatprep.mubr.bf16.mxu0 0
        %2619 = vmatmul.mubr.bf16.gmra.mrb[0].mxu0 %v1894
        %v2620 = vpop.f32.mrb[0].mxu0
        %v2621 = vadd.f32 %v2408, %v2620
        %v2622 = vpop.f32.mrb[0].mxu0
        %v2623 = vadd.f32 %v2410, %v2622
        %v2624 = vpop.f32.mrb[0].mxu0
        %v2625 = vadd.f32 %v2412, %v2624
        %v2626 = vpop.f32.mrb[0].mxu0
        %v2627 = vadd.f32 %v2414, %v2626
        %2628 = vmatprep.mubr.bf16.mxu0 0
        %2629 = vmatmul.mubr.bf16.gmra.mrb[0].mxu0 %v1897
        %v2630 = vpop.f32.mrb[0].mxu0
        %v2631 = vadd.f32 %v2418, %v2630
        %v2632 = vpop.f32.mrb[0].mxu0
        %v2633 = vadd.f32 %v2420, %v2632
        %v2634 = vpop.f32.mrb[0].mxu0
        %v2635 = vadd.f32 %v2422, %v2634
        %v2636 = vpop.f32.mrb[0].mxu0
        %v2637 = vadd.f32 %v2424, %v2636
        %2638 = vmatprep.mubr.bf16.mxu0 0
        %2639 = vmatmul.mubr.bf16.gmra.mrb[0].mxu0 %v1900
        %v2640 = vpop.f32.mrb[0].mxu0
        %v2641 = vadd.f32 %v2428, %v2640
        %v2642 = vpop.f32.mrb[0].mxu0
        %v2643 = vadd.f32 %v2430, %v2642
        %v2644 = vpop.f32.mrb[0].mxu0
        %v2645 = vadd.f32 %v2432, %v2644
        %v2646 = vpop.f32.mrb[0].mxu0
        %v2647 = vadd.f32 %v2434, %v2646
        %2648 = vmatprep.mubr.bf16.mxu0 0
        %2649 = vmatmul.mubr.bf16.gmra.mrb[0].mxu0 %v1903
        %v2650 = vpop.f32.mrb[0].mxu0
        %v2651 = vadd.f32 %v2438, %v2650
        %v2652 = vpop.f32.mrb[0].mxu0
        %v2653 = vadd.f32 %v2440, %v2652
        %v2654 = vpop.f32.mrb[0].mxu0
        %v2655 = vadd.f32 %v2442, %v2654
        %v2656 = vpop.f32.mrb[0].mxu0
        %v2657 = vadd.f32 %v2444, %v2656
        %2658 = vmatprep.mubr.bf16.mxu0 0
        %2659 = vmatmul.mubr.bf16.gmra.mrb[0].mxu0 %v1906
        %v2660 = vpop.f32.mrb[0].mxu0
        %v2661 = vadd.f32 %v2448, %v2660
        %v2662 = vpop.f32.mrb[0].mxu0
        %v2663 = vadd.f32 %v2450, %v2662
        %v2664 = vpop.f32.mrb[0].mxu0
        %v2665 = vadd.f32 %v2452, %v2664
        %v2666 = vpop.f32.mrb[0].mxu0
        %v2667 = vadd.f32 %v2454, %v2666
        %2668 = vmatprep.mubr.bf16.mxu0 0
        %2669 = vmatmul.mubr.bf16.gmra.mrb[0].mxu0 %v1909
        %v2670 = vpop.f32.mrb[0].mxu0
        %v2671 = vadd.f32 %v2458, %v2670
        %v2672 = vpop.f32.mrb[0].mxu0
        %v2673 = vadd.f32 %v2460, %v2672
        %v2674 = vpop.f32.mrb[0].mxu0
        %v2675 = vadd.f32 %v2462, %v2674
        %v2676 = vpop.f32.mrb[0].mxu0
        %v2677 = vadd.f32 %v2464, %v2676
        %2678 = vmatprep.mubr.bf16.mxu0 0
        %2679 = vmatmul.mubr.bf16.gmra.mrb[0].mxu0 %v1912
        %v2680 = vpop.f32.mrb[0].mxu0
        %v2681 = vadd.f32 %v2468, %v2680
        %v2682 = vpop.f32.mrb[0].mxu0
        %v2683 = vadd.f32 %v2470, %v2682
        %v2684 = vpop.f32.mrb[0].mxu0
        %v2685 = vadd.f32 %v2472, %v2684
        %v2686 = vpop.f32.mrb[0].mxu0
        %v2687 = vadd.f32 %v2474, %v2686
        %2688 = vmatprep.mubr.bf16.mxu0 0
        %2689 = vmatmul.mubr.bf16.gmra.mrb[0].mxu0 %v1915
        %v2690 = vpop.f32.mrb[0].mxu0
        %v2691 = vadd.f32 %v2478, %v2690
        %v2692 = vpop.f32.mrb[0].mxu0
        %v2693 = vadd.f32 %v2480, %v2692
        %v2694 = vpop.f32.mrb[0].mxu0
        %v2695 = vadd.f32 %v2482, %v2694
        %v2696 = vpop.f32.mrb[0].mxu0
        %v2697 = vadd.f32 %v2484, %v2696
        %2698 = vmatprep.mubr.bf16.mxu0 0
        %2699 = vmatmul.mubr.bf16.gmra.mrb[0].mxu0 %v1918
        %v2700 = vpop.f32.mrb[0].mxu0
        %v2701 = vadd.f32 %v2488, %v2700
        %v2702 = vpop.f32.mrb[0].mxu0
        %v2703 = vadd.f32 %v2490, %v2702
        %v2704 = vpop.f32.mrb[0].mxu0
        %v2705 = vadd.f32 %v2492, %v2704
        %v2706 = vpop.f32.mrb[0].mxu0
        %v2707 = vadd.f32 %v2494, %v2706
        %2708 = vmatprep.mubr.bf16.mxu0 0
        %2709 = vmatmul.mubr.bf16.gmra.mrb[0].mxu0 %v1921
        %v2710 = vpop.f32.mrb[0].mxu0
        %v2711 = vadd.f32 %v2498, %v2710
        %v2712 = vpop.f32.mrb[0].mxu0
        %v2713 = vadd.f32 %v2500, %v2712
        %v2714 = vpop.f32.mrb[0].mxu0
        %v2715 = vadd.f32 %v2502, %v2714
        %v2716 = vpop.f32.mrb[0].mxu0
        %v2717 = vadd.f32 %v2504, %v2716
        %2718 = vmatprep.mubr.bf16.mxu0 0
        %2719 = vmatmul.mubr.bf16.gmra.mrb[0].mxu0 %v1924
        %v2720 = vpop.f32.mrb[0].mxu0
        %v2721 = vadd.f32 %v2508, %v2720
        %v2722 = vpop.f32.mrb[0].mxu0
        %v2723 = vadd.f32 %v2510, %v2722
        %v2724 = vpop.f32.mrb[0].mxu0
        %v2725 = vadd.f32 %v2512, %v2724
        %v2726 = vpop.f32.mrb[0].mxu0
        %v2727 = vadd.f32 %v2514, %v2726
        %2728 = vmatprep.mubr.bf16.mxu0 0
        %2729 = vmatmul.mubr.bf16.gmra.mrb[0].mxu0 %v1927
        %v2730 = vpop.f32.mrb[0].mxu0
        %v2731 = vadd.f32 %v2518, %v2730
        %v2732 = vpop.f32.mrb[0].mxu0
        %v2733 = vadd.f32 %v2520, %v2732
        %v2734 = vpop.f32.mrb[0].mxu0
        %v2735 = vadd.f32 %v2522, %v2734
        %v2736 = vpop.f32.mrb[0].mxu0
        %v2737 = vadd.f32 %v2524, %v2736
        %2738 = vmatprep.mubr.bf16.mxu0 0
        %2739 = vmatmul.mubr.bf16.gmra.mrb[0].mxu0 %v1930
        %v2740 = vpop.f32.mrb[0].mxu0
        %v2741 = vadd.f32 %v2528, %v2740
        %v2742 = vpop.f32.mrb[0].mxu0
        %v2743 = vadd.f32 %v2530, %v2742
        %v2744 = vpop.f32.mrb[0].mxu0
        %v2745 = vadd.f32 %v2532, %v2744
        %v2746 = vpop.f32.mrb[0].mxu0
        %v2747 = vadd.f32 %v2534, %v2746
        %2748 = vmatprep.mubr.bf16.mxu0 0
        %2749 = vmatmul.mubr.bf16.gmra.mrb[0].mxu0 %v1933
        %v2750 = vpop.f32.mrb[0].mxu0
        %v2751 = vadd.f32 %v2538, %v2750
        %v2752 = vpop.f32.mrb[0].mxu0
        %v2753 = vadd.f32 %v2540, %v2752
        %v2754 = vpop.f32.mrb[0].mxu0
        %v2755 = vadd.f32 %v2542, %v2754
        %v2756 = vpop.f32.mrb[0].mxu0
        %v2757 = vadd.f32 %v2544, %v2756
        %2758 = vmatprep.mubr.bf16.mxu0 0
        %2759 = vmatmul.mubr.bf16.gmra.mrb[0].mxu0 %v1936
        %v2760 = vpop.f32.mrb[0].mxu0
        %v2761 = vadd.f32 %v2548, %v2760
        %v2762 = vpop.f32.mrb[0].mxu0
        %v2763 = vadd.f32 %v2550, %v2762
        %v2764 = vpop.f32.mrb[0].mxu0
        %v2765 = vadd.f32 %v2552, %v2764
        %v2766 = vpop.f32.mrb[0].mxu0
        %v2767 = vadd.f32 %v2554, %v2766
        %2768 = vmatprep.mubr.bf16.mxu0 0
        %2769 = vmatmul.mubr.bf16.gmra.mrb[0].mxu0 %v1939
        %v2770 = vpop.f32.mrb[0].mxu0
        %v2771 = vadd.f32 %v2558, %v2770
        %v2772 = vpop.f32.mrb[0].mxu0
        %v2773 = vadd.f32 %v2560, %v2772
        %v2774 = vpop.f32.mrb[0].mxu0
        %v2775 = vadd.f32 %v2562, %v2774
        %v2776 = vpop.f32.mrb[0].mxu0
        %v2777 = vadd.f32 %v2564, %v2776
        %2778 = vmatprep.mubr.bf16.mxu0 0
        %2779 = vmatmul.mubr.bf16.gmra.mrb[0].mxu0 %v1942
        %v2780 = vpop.f32.mrb[0].mxu0
        %v2781 = vadd.f32 %v2568, %v2780
        %v2782 = vpop.f32.mrb[0].mxu0
        %v2783 = vadd.f32 %v2570, %v2782
        %v2784 = vpop.f32.mrb[0].mxu0
        %v2785 = vadd.f32 %v2572, %v2784
        %v2786 = vpop.f32.mrb[0].mxu0
        %v2787 = vadd.f32 %v2574, %v2786
        %2788 = vmatprep.mubr.bf16.mxu0 0
        %2789 = vmatmul.mubr.bf16.gmra.mrb[0].mxu0 %v1945
        %v2790 = vpop.f32.mrb[0].mxu0
        %v2791 = vadd.f32 %v2578, %v2790
        %v2792 = vpop.f32.mrb[0].mxu0
        %v2793 = vadd.f32 %v2580, %v2792
        %v2794 = vpop.f32.mrb[0].mxu0
        %v2795 = vadd.f32 %v2582, %v2794
        %v2796 = vpop.f32.mrb[0].mxu0
        %v2797 = vadd.f32 %v2584, %v2796
        %2798 = vdwg.mxu0
        %v2799 = vmax.f32 %v2195, 0.0
        %v2800 = vmax.f32 %v2197, 0.0
        %v2801 = vmax.f32 %v2621, 0.0
        %v2802 = vmax.f32 %v2623, 0.0
        %v2803 = vmax.f32 %v2199, 0.0
        %v2804 = vmax.f32 %v2201, 0.0
        %v2805 = vmax.f32 %v2625, 0.0
        %v2806 = vmax.f32 %v2627, 0.0
        %v2807 = vmax.f32 %v2205, 0.0
        %v2808 = vmax.f32 %v2207, 0.0
        %v2809 = vmax.f32 %v2631, 0.0
        %v2810 = vmax.f32 %v2633, 0.0
        %v2811 = vmax.f32 %v2209, 0.0
        %v2812 = vmax.f32 %v2211, 0.0
        %v2813 = vmax.f32 %v2635, 0.0
        %v2814 = vmax.f32 %v2637, 0.0
        %v2815 = vmax.f32 %v2215, 0.0
        %v2816 = vmax.f32 %v2217, 0.0
        %v2817 = vmax.f32 %v2641, 0.0
        %v2818 = vmax.f32 %v2643, 0.0
        %v2819 = vmax.f32 %v2219, 0.0
        %v2820 = vmax.f32 %v2221, 0.0
        %v2821 = vmax.f32 %v2645, 0.0
        %v2822 = vmax.f32 %v2647, 0.0
        %v2823 = vmax.f32 %v2225, 0.0
        %v2824 = vmax.f32 %v2227, 0.0
        %v2825 = vmax.f32 %v2651, 0.0
        %v2826 = vmax.f32 %v2653, 0.0
        %v2827 = vmax.f32 %v2229, 0.0
        %v2828 = vmax.f32 %v2231, 0.0
        %v2829 = vmax.f32 %v2655, 0.0
        %v2830 = vmax.f32 %v2657, 0.0
        %v2831 = vmax.f32 %v2235, 0.0
        %v2832 = vmax.f32 %v2237, 0.0
        %v2833 = vmax.f32 %v2661, 0.0
        %v2834 = vmax.f32 %v2663, 0.0
        %v2835 = vmax.f32 %v2239, 0.0
        %v2836 = vmax.f32 %v2241, 0.0
        %v2837 = vmax.f32 %v2665, 0.0
        %v2838 = vmax.f32 %v2667, 0.0
        %v2839 = vmax.f32 %v2245, 0.0
        %v2840 = vmax.f32 %v2247, 0.0
        %v2841 = vmax.f32 %v2671, 0.0
        %v2842 = vmax.f32 %v2673, 0.0
        %v2843 = vmax.f32 %v2249, 0.0
        %v2844 = vmax.f32 %v2251, 0.0
        %v2845 = vmax.f32 %v2675, 0.0
        %v2846 = vmax.f32 %v2677, 0.0
        %v2847 = vmax.f32 %v2255, 0.0
        %v2848 = vmax.f32 %v2257, 0.0
        %v2849 = vmax.f32 %v2681, 0.0
        %v2850 = vmax.f32 %v2683, 0.0
        %v2851 = vmax.f32 %v2259, 0.0
        %v2852 = vmax.f32 %v2261, 0.0
        %v2853 = vmax.f32 %v2685, 0.0
        %v2854 = vmax.f32 %v2687, 0.0
        %v2855 = vmax.f32 %v2265, 0.0
        %v2856 = vmax.f32 %v2267, 0.0
        %v2857 = vmax.f32 %v2691, 0.0
        %v2858 = vmax.f32 %v2693, 0.0
        %v2859 = vmax.f32 %v2269, 0.0
        %v2860 = vmax.f32 %v2271, 0.0
        %v2861 = vmax.f32 %v2695, 0.0
        %v2862 = vmax.f32 %v2697, 0.0
        %v2863 = vmax.f32 %v2275, 0.0
        %v2864 = vmax.f32 %v2277, 0.0
        %v2865 = vmax.f32 %v2701, 0.0
        %v2866 = vmax.f32 %v2703, 0.0
        %v2867 = vmax.f32 %v2279, 0.0
        %v2868 = vmax.f32 %v2281, 0.0
        %v2869 = vmax.f32 %v2705, 0.0
        %v2870 = vmax.f32 %v2707, 0.0
        %v2871 = vmax.f32 %v2285, 0.0
        %v2872 = vmax.f32 %v2287, 0.0
        %v2873 = vmax.f32 %v2711, 0.0
        %v2874 = vmax.f32 %v2713, 0.0
        %v2875 = vmax.f32 %v2289, 0.0
        %v2876 = vmax.f32 %v2291, 0.0
        %v2877 = vmax.f32 %v2715, 0.0
        %v2878 = vmax.f32 %v2717, 0.0
        %v2879 = vmax.f32 %v2295, 0.0
        %v2880 = vmax.f32 %v2297, 0.0
        %v2881 = vmax.f32 %v2721, 0.0
        %v2882 = vmax.f32 %v2723, 0.0
        %v2883 = vmax.f32 %v2299, 0.0
        %v2884 = vmax.f32 %v2301, 0.0
        %v2885 = vmax.f32 %v2725, 0.0
        %v2886 = vmax.f32 %v2727, 0.0
        %v2887 = vmax.f32 %v2305, 0.0
        %v2888 = vmax.f32 %v2307, 0.0
        %v2889 = vmax.f32 %v2731, 0.0
        %v2890 = vmax.f32 %v2733, 0.0
        %v2891 = vmax.f32 %v2309, 0.0
        %v2892 = vmax.f32 %v2311, 0.0
        %v2893 = vmax.f32 %v2735, 0.0
        %v2894 = vmax.f32 %v2737, 0.0
        %v2895 = vmax.f32 %v2315, 0.0
        %v2896 = vmax.f32 %v2317, 0.0
        %v2897 = vmax.f32 %v2741, 0.0
        %v2898 = vmax.f32 %v2743, 0.0
        %v2899 = vmax.f32 %v2319, 0.0
        %v2900 = vmax.f32 %v2321, 0.0
        %v2901 = vmax.f32 %v2745, 0.0
        %v2902 = vmax.f32 %v2747, 0.0
        %v2903 = vmax.f32 %v2325, 0.0
        %v2904 = vmax.f32 %v2327, 0.0
        %v2905 = vmax.f32 %v2751, 0.0
        %v2906 = vmax.f32 %v2753, 0.0
        %v2907 = vmax.f32 %v2329, 0.0
        %v2908 = vmax.f32 %v2331, 0.0
        %v2909 = vmax.f32 %v2755, 0.0
        %v2910 = vmax.f32 %v2757, 0.0
        %v2911 = vmax.f32 %v2335, 0.0
        %v2912 = vmax.f32 %v2337, 0.0
        %v2913 = vmax.f32 %v2761, 0.0
        %v2914 = vmax.f32 %v2763, 0.0
        %v2915 = vmax.f32 %v2339, 0.0
        %v2916 = vmax.f32 %v2341, 0.0
        %v2917 = vmax.f32 %v2765, 0.0
        %v2918 = vmax.f32 %v2767, 0.0
        %v2919 = vmax.f32 %v2345, 0.0
        %v2920 = vmax.f32 %v2347, 0.0
        %v2921 = vmax.f32 %v2771, 0.0
        %v2922 = vmax.f32 %v2773, 0.0
        %v2923 = vmax.f32 %v2349, 0.0
        %v2924 = vmax.f32 %v2351, 0.0
        %v2925 = vmax.f32 %v2775, 0.0
        %v2926 = vmax.f32 %v2777, 0.0
        %v2927 = vmax.f32 %v2355, 0.0
        %v2928 = vmax.f32 %v2357, 0.0
        %v2929 = vmax.f32 %v2781, 0.0
        %v2930 = vmax.f32 %v2783, 0.0
        %v2931 = vmax.f32 %v2359, 0.0
        %v2932 = vmax.f32 %v2361, 0.0
        %v2933 = vmax.f32 %v2785, 0.0
        %v2934 = vmax.f32 %v2787, 0.0
        %v2935 = vmax.f32 %v2365, 0.0
        %v2936 = vmax.f32 %v2367, 0.0
        %v2937 = vmax.f32 %v2791, 0.0
        %v2938 = vmax.f32 %v2793, 0.0
        %v2939 = vmax.f32 %v2369, 0.0
        %v2940 = vmax.f32 %v2371, 0.0
        %v2941 = vmax.f32 %v2795, 0.0
        %v2942 = vmax.f32 %v2797, 0.0
        %v2943 = vpack.c.bf16 %v2803, %v2799
        %v2944 = vpack.c.bf16 %v2804, %v2800
        %v2945 = vpack.c.bf16 %v2805, %v2801
        %v2946 = vpack.c.bf16 %v2806, %v2802
        %v2947 = vpack.c.bf16 %v2811, %v2807
        %v2948 = vpack.c.bf16 %v2812, %v2808
        %v2949 = vpack.c.bf16 %v2813, %v2809
        %v2950 = vpack.c.bf16 %v2814, %v2810
        %v2951 = vpack.c.bf16 %v2819, %v2815
        %v2952 = vpack.c.bf16 %v2820, %v2816
        %v2953 = vpack.c.bf16 %v2821, %v2817
        %v2954 = vpack.c.bf16 %v2822, %v2818
        %v2955 = vpack.c.bf16 %v2827, %v2823
        %v2956 = vpack.c.bf16 %v2828, %v2824
        %v2957 = vpack.c.bf16 %v2829, %v2825
        %v2958 = vpack.c.bf16 %v2830, %v2826
        %v2959 = vpack.c.bf16 %v2835, %v2831
        %v2960 = vpack.c.bf16 %v2836, %v2832
        %v2961 = vpack.c.bf16 %v2837, %v2833
        %v2962 = vpack.c.bf16 %v2838, %v2834
        %v2963 = vpack.c.bf16 %v2843, %v2839
        %v2964 = vpack.c.bf16 %v2844, %v2840
        %v2965 = vpack.c.bf16 %v2845, %v2841
        %v2966 = vpack.c.bf16 %v2846, %v2842
        %v2967 = vpack.c.bf16 %v2851, %v2847
        %v2968 = vpack.c.bf16 %v2852, %v2848
        %v2969 = vpack.c.bf16 %v2853, %v2849
        %v2970 = vpack.c.bf16 %v2854, %v2850
        %v2971 = vpack.c.bf16 %v2859, %v2855
        %v2972 = vpack.c.bf16 %v2860, %v2856
        %v2973 = vpack.c.bf16 %v2861, %v2857
        %v2974 = vpack.c.bf16 %v2862, %v2858
        %v2975 = vpack.c.bf16 %v2867, %v2863
        %v2976 = vpack.c.bf16 %v2868, %v2864
        %v2977 = vpack.c.bf16 %v2869, %v2865
        %v2978 = vpack.c.bf16 %v2870, %v2866
        %v2979 = vpack.c.bf16 %v2875, %v2871
        %v2980 = vpack.c.bf16 %v2876, %v2872
        %v2981 = vpack.c.bf16 %v2877, %v2873
        %v2982 = vpack.c.bf16 %v2878, %v2874
        %v2983 = vpack.c.bf16 %v2883, %v2879
        %v2984 = vpack.c.bf16 %v2884, %v2880
        %v2985 = vpack.c.bf16 %v2885, %v2881
        %v2986 = vpack.c.bf16 %v2886, %v2882
        %v2987 = vpack.c.bf16 %v2891, %v2887
        %v2988 = vpack.c.bf16 %v2892, %v2888
        %v2989 = vpack.c.bf16 %v2893, %v2889
        %v2990 = vpack.c.bf16 %v2894, %v2890
        %v2991 = vpack.c.bf16 %v2899, %v2895
        %v2992 = vpack.c.bf16 %v2900, %v2896
        %v2993 = vpack.c.bf16 %v2901, %v2897
        %v2994 = vpack.c.bf16 %v2902, %v2898
        %v2995 = vpack.c.bf16 %v2907, %v2903
        %v2996 = vpack.c.bf16 %v2908, %v2904
        %v2997 = vpack.c.bf16 %v2909, %v2905
        %v2998 = vpack.c.bf16 %v2910, %v2906
        %v2999 = vpack.c.bf16 %v2915, %v2911
        %v3000 = vpack.c.bf16 %v2916, %v2912
        %v3001 = vpack.c.bf16 %v2917, %v2913
        %v3002 = vpack.c.bf16 %v2918, %v2914
        %v3003 = vpack.c.bf16 %v2923, %v2919
        %v3004 = vpack.c.bf16 %v2924, %v2920
        %v3005 = vpack.c.bf16 %v2925, %v2921
        %v3006 = vpack.c.bf16 %v2926, %v2922
        %v3007 = vpack.c.bf16 %v2931, %v2927
        %v3008 = vpack.c.bf16 %v2932, %v2928
        %v3009 = vpack.c.bf16 %v2933, %v2929
        %v3010 = vpack.c.bf16 %v2934, %v2930
        %v3011 = vpack.c.bf16 %v2939, %v2935
        %v3012 = vpack.c.bf16 %v2940, %v2936
        %v3013 = vpack.c.bf16 %v2941, %v2937
        %v3014 = vpack.c.bf16 %v2942, %v2938
        %v3015 = vld [vmem:[%s4] sm:$0xf]
        %v3016 = vld [vmem:[%s4 + $0x4] sm:$0xf]
        %v3017 = vld [vmem:[%s4 + $0x8] sm:$0xf]
        %v3018 = vld [vmem:[%s4 + $0xc] sm:$0xf]
        %v3019 = vld [vmem:[%s4 + $0x10] sm:$0xf]
        %v3020 = vld [vmem:[%s4 + $0x14] sm:$0xf]
        %v3021 = vld [vmem:[%s4 + $0x18] sm:$0xf]
        %v3022 = vld [vmem:[%s4 + $0x1c] sm:$0xf]
        %v3023 = vld [vmem:[%s4 + $0x20] sm:$0xf]
        %v3024 = vld [vmem:[%s4 + $0x24] sm:$0xf]
        %v3025 = vld [vmem:[%s4 + $0x28] sm:$0xf]
        %v3026 = vld [vmem:[%s4 + $0x2c] sm:$0xf]
        %v3027 = vld [vmem:[%s4 + $0x30] sm:$0xf]
        %v3028 = vld [vmem:[%s4 + $0x34] sm:$0xf]
        %v3029 = vld [vmem:[%s4 + $0x38] sm:$0xf]
        %v3030 = vld [vmem:[%s4 + $0x3c] sm:$0xf]
        %v3031 = vld [vmem:[%s4 + $0x40] sm:$0xf]
        %v3032 = vld [vmem:[%s4 + $0x44] sm:$0xf]
        %v3033 = vld [vmem:[%s4 + $0x48] sm:$0xf]
        %v3034 = vld [vmem:[%s4 + $0x4c] sm:$0xf]
        %v3035 = vld [vmem:[%s4 + $0x50] sm:$0xf]
        %v3036 = vld [vmem:[%s4 + $0x54] sm:$0xf]
        %v3037 = vld [vmem:[%s4 + $0x58] sm:$0xf]
        %v3038 = vld [vmem:[%s4 + $0x5c] sm:$0xf]
        %v3039 = vld [vmem:[%s4 + $0x60] sm:$0xf]
        %v3040 = vld [vmem:[%s4 + $0x64] sm:$0xf]
        %v3041 = vld [vmem:[%s4 + $0x68] sm:$0xf]
        %v3042 = vld [vmem:[%s4 + $0x6c] sm:$0xf]
        %v3043 = vld [vmem:[%s4 + $0x70] sm:$0xf]
        %v3044 = vld [vmem:[%s4 + $0x74] sm:$0xf]
        %v3045 = vld [vmem:[%s4 + $0x78] sm:$0xf]
        %v3046 = vld [vmem:[%s4 + $0x7c] sm:$0xf]
        %v3047 = vld [vmem:[%s4 + $0x80] sm:$0xf]
        %v3048 = vld [vmem:[%s4 + $0x84] sm:$0xf]
        %v3049 = vld [vmem:[%s4 + $0x88] sm:$0xf]
        %v3050 = vld [vmem:[%s4 + $0x8c] sm:$0xf]
        %v3051 = vld [vmem:[%s4 + $0x90] sm:$0xf]
        %v3052 = vld [vmem:[%s4 + $0x94] sm:$0xf]
        %v3053 = vld [vmem:[%s4 + $0x98] sm:$0xf]
        %v3054 = vld [vmem:[%s4 + $0x9c] sm:$0xf]
        %v3055 = vld [vmem:[%s4 + $0xa0] sm:$0xf]
        %v3056 = vld [vmem:[%s4 + $0xa4] sm:$0xf]
        %v3057 = vld [vmem:[%s4 + $0xa8] sm:$0xf]
        %v3058 = vld [vmem:[%s4 + $0xac] sm:$0xf]
        %v3059 = vld [vmem:[%s4 + $0xb0] sm:$0xf]
        %v3060 = vld [vmem:[%s4 + $0xb4] sm:$0xf]
        %v3061 = vld [vmem:[%s4 + $0xb8] sm:$0xf]
        %v3062 = vld [vmem:[%s4 + $0xbc] sm:$0xf]
        %v3063 = vld [vmem:[%s4 + $0xc0] sm:$0xf]
        %v3064 = vld [vmem:[%s4 + $0xc4] sm:$0xf]
        %v3065 = vld [vmem:[%s4 + $0xc8] sm:$0xf]
        %v3066 = vld [vmem:[%s4 + $0xcc] sm:$0xf]
        %v3067 = vld [vmem:[%s4 + $0xd0] sm:$0xf]
        %v3068 = vld [vmem:[%s4 + $0xd4] sm:$0xf]
        %v3069 = vld [vmem:[%s4 + $0xd8] sm:$0xf]
        %v3070 = vld [vmem:[%s4 + $0xdc] sm:$0xf]
        %v3071 = vld [vmem:[%s4 + $0xe0] sm:$0xf]
        %v3072 = vld [vmem:[%s4 + $0xe4] sm:$0xf]
        %v3073 = vld [vmem:[%s4 + $0xe8] sm:$0xf]
        %v3074 = vld [vmem:[%s4 + $0xec] sm:$0xf]
        %v3075 = vld [vmem:[%s4 + $0xf0] sm:$0xf]
        %v3076 = vld [vmem:[%s4 + $0xf4] sm:$0xf]
        %v3077 = vld [vmem:[%s4 + $0xf8] sm:$0xf]
        %v3078 = vld [vmem:[%s4 + $0xfc] sm:$0xf]
        %v3079 = vld [vmem:[%s5] sm:$0x1]
        %v3081 = vlaneseq
        %v3082 = vshrl.u32 %v3081, 7
        %v3083 = vsub.s32 0, %v3082
        %v3084 = vrot.slane %v3079, %v3083
        %v3150 = vunpack.c.l.b16 %v3015
        %v3151 = vunpack.c.l.b16 %v3016
        %v3152 = vunpack.c.l.b16 %v3017
        %v3153 = vunpack.c.l.b16 %v3018
        %v3154 = vunpack.c.l.b16 %v3019
        %v3155 = vunpack.c.l.b16 %v3020
        %v3156 = vunpack.c.l.b16 %v3021
        %v3157 = vunpack.c.l.b16 %v3022
        %v3158 = vunpack.c.l.b16 %v3023
        %v3159 = vunpack.c.l.b16 %v3024
        %v3160 = vunpack.c.l.b16 %v3025
        %v3161 = vunpack.c.l.b16 %v3026
        %v3162 = vunpack.c.l.b16 %v3027
        %v3163 = vunpack.c.l.b16 %v3028
        %v3164 = vunpack.c.l.b16 %v3029
        %v3165 = vunpack.c.l.b16 %v3030
        %v3166 = vunpack.c.l.b16 %v3031
        %v3167 = vunpack.c.l.b16 %v3032
        %v3168 = vunpack.c.l.b16 %v3033
        %v3169 = vunpack.c.l.b16 %v3034
        %v3170 = vunpack.c.l.b16 %v3035
        %v3171 = vunpack.c.l.b16 %v3036
        %v3172 = vunpack.c.l.b16 %v3037
        %v3173 = vunpack.c.l.b16 %v3038
        %v3174 = vunpack.c.l.b16 %v3039
        %v3175 = vunpack.c.l.b16 %v3040
        %v3176 = vunpack.c.l.b16 %v3041
        %v3177 = vunpack.c.l.b16 %v3042
        %v3178 = vunpack.c.l.b16 %v3043
        %v3179 = vunpack.c.l.b16 %v3044
        %v3180 = vunpack.c.l.b16 %v3045
        %v3181 = vunpack.c.l.b16 %v3046
        %v3182 = vunpack.c.l.b16 %v3047
        %v3183 = vunpack.c.l.b16 %v3048
        %v3184 = vunpack.c.l.b16 %v3049
        %v3185 = vunpack.c.l.b16 %v3050
        %v3186 = vunpack.c.l.b16 %v3051
        %v3187 = vunpack.c.l.b16 %v3052
        %v3188 = vunpack.c.l.b16 %v3053
        %v3189 = vunpack.c.l.b16 %v3054
        %v3190 = vunpack.c.l.b16 %v3055
        %v3191 = vunpack.c.l.b16 %v3056
        %v3192 = vunpack.c.l.b16 %v3057
        %v3193 = vunpack.c.l.b16 %v3058
        %v3194 = vunpack.c.l.b16 %v3059
        %v3195 = vunpack.c.l.b16 %v3060
        %v3196 = vunpack.c.l.b16 %v3061
        %v3197 = vunpack.c.l.b16 %v3062
        %v3198 = vunpack.c.l.b16 %v3063
        %v3199 = vunpack.c.l.b16 %v3064
        %v3200 = vunpack.c.l.b16 %v3065
        %v3201 = vunpack.c.l.b16 %v3066
        %v3202 = vunpack.c.l.b16 %v3067
        %v3203 = vunpack.c.l.b16 %v3068
        %v3204 = vunpack.c.l.b16 %v3069
        %v3205 = vunpack.c.l.b16 %v3070
        %v3206 = vunpack.c.l.b16 %v3071
        %v3207 = vunpack.c.l.b16 %v3072
        %v3208 = vunpack.c.l.b16 %v3073
        %v3209 = vunpack.c.l.b16 %v3074
        %v3210 = vunpack.c.l.b16 %v3075
        %v3211 = vunpack.c.l.b16 %v3076
        %v3212 = vunpack.c.l.b16 %v3077
        %v3213 = vunpack.c.l.b16 %v3078
        %v3214 = vpack.c.b16 %v3151, %v3150
        %v3215 = vpack.c.b16 %v3153, %v3152
        %v3216 = vpack.c.b16 %v3155, %v3154
        %v3217 = vpack.c.b16 %v3157, %v3156
        %v3218 = vpack.c.b16 %v3159, %v3158
        %v3219 = vpack.c.b16 %v3161, %v3160
        %v3220 = vpack.c.b16 %v3163, %v3162
        %v3221 = vpack.c.b16 %v3165, %v3164
        %v3222 = vpack.c.b16 %v3167, %v3166
        %v3223 = vpack.c.b16 %v3169, %v3168
        %v3224 = vpack.c.b16 %v3171, %v3170
        %v3225 = vpack.c.b16 %v3173, %v3172
        %v3226 = vpack.c.b16 %v3175, %v3174
        %v3227 = vpack.c.b16 %v3177, %v3176
        %v3228 = vpack.c.b16 %v3179, %v3178
        %v3229 = vpack.c.b16 %v3181, %v3180
        %v3230 = vpack.c.b16 %v3183, %v3182
        %v3231 = vpack.c.b16 %v3185, %v3184
        %v3232 = vpack.c.b16 %v3187, %v3186
        %v3233 = vpack.c.b16 %v3189, %v3188
        %v3234 = vpack.c.b16 %v3191, %v3190
        %v3235 = vpack.c.b16 %v3193, %v3192
        %v3236 = vpack.c.b16 %v3195, %v3194
        %v3237 = vpack.c.b16 %v3197, %v3196
        %v3238 = vpack.c.b16 %v3199, %v3198
        %v3239 = vpack.c.b16 %v3201, %v3200
        %v3240 = vpack.c.b16 %v3203, %v3202
        %v3241 = vpack.c.b16 %v3205, %v3204
        %v3242 = vpack.c.b16 %v3207, %v3206
        %v3243 = vpack.c.b16 %v3209, %v3208
        %v3244 = vpack.c.b16 %v3211, %v3210
        %v3245 = vpack.c.b16 %v3213, %v3212
        %3278 = vmatprep.subr.bf16.mxu0 0
        %3279 = vmatpush1.bf16.msra.mxu0 %v3214
        %3280 = vmatprep.subr.bf16.mxu0 0
        %3281 = vmatpush1.bf16.msra.mxu0 %v3215
        %3282 = vmatprep.subr.bf16.mxu0 0
        %3283 = vmatpush1.bf16.msra.mxu0 %v3216
        %3284 = vmatprep.subr.bf16.mxu0 0
        %3285 = vmatpush1.bf16.msra.mxu0 %v3217
        %3286 = vmatprep.subr.bf16.mxu0 0
        %3287 = vmatpush1.bf16.msra.mxu0 %v3218
        %3288 = vmatprep.subr.bf16.mxu0 0
        %3289 = vmatpush1.bf16.msra.mxu0 %v3219
        %3290 = vmatprep.subr.bf16.mxu0 0
        %3291 = vmatpush1.bf16.msra.mxu0 %v3220
        %3292 = vmatprep.subr.bf16.mxu0 0
        %3293 = vmatpush1.bf16.msra.mxu0 %v3221
        %3294 = vmatprep.subr.bf16.mxu0 0
        %3295 = vmatpush1.bf16.msra.mxu0 %v3222
        %3296 = vmatprep.subr.bf16.mxu0 0
        %3297 = vmatpush1.bf16.msra.mxu0 %v3223
        %3298 = vmatprep.subr.bf16.mxu0 0
        %3299 = vmatpush1.bf16.msra.mxu0 %v3224
        %3300 = vmatprep.subr.bf16.mxu0 0
        %3301 = vmatpush1.bf16.msra.mxu0 %v3225
        %3302 = vmatprep.subr.bf16.mxu0 0
        %3303 = vmatpush1.bf16.msra.mxu0 %v3226
        %3304 = vmatprep.subr.bf16.mxu0 0
        %3305 = vmatpush1.bf16.msra.mxu0 %v3227
        %3306 = vmatprep.subr.bf16.mxu0 0
        %3307 = vmatpush1.bf16.msra.mxu0 %v3228
        %3308 = vmatprep.subr.bf16.mxu0 0
        %3309 = vmatpush1.bf16.msra.mxu0 %v3229
        %3310 = vmatprep.mubr.bf16.mxu0 %v2944
        %3311 = vmatmul.mubr.bf16.gmra.mrb[0].mxu0 %v2943
        %v3312 = vpop.f32.mrb[0].mxu0
        %v3313 = vadd.f32 %v3084, %v3312
        %v3314 = vpop.f32.mrb[0].mxu0
        %v3315 = vpop.f32.mrb[0].mxu0
        %v3316 = vadd.f32 %v3084, %v3315
        %v3317 = vpop.f32.mrb[0].mxu0
        %3318 = vmatprep.mubr.bf16.mxu0 %v2948
        %3319 = vmatmul.mubr.bf16.gmra.mrb[0].mxu0 %v2947
        %v3320 = vpop.f32.mrb[0].mxu0
        %v3321 = vadd.f32 %v3084, %v3320
        %v3322 = vpop.f32.mrb[0].mxu0
        %v3323 = vpop.f32.mrb[0].mxu0
        %v3324 = vadd.f32 %v3084, %v3323
        %v3325 = vpop.f32.mrb[0].mxu0
        %3326 = vmatprep.mubr.bf16.mxu0 %v2952
        %3327 = vmatmul.mubr.bf16.gmra.mrb[0].mxu0 %v2951
        %v3328 = vpop.f32.mrb[0].mxu0
        %v3329 = vadd.f32 %v3084, %v3328
        %v3330 = vpop.f32.mrb[0].mxu0
        %v3331 = vpop.f32.mrb[0].mxu0
        %v3332 = vadd.f32 %v3084, %v3331
        %v3333 = vpop.f32.mrb[0].mxu0
        %3334 = vmatprep.mubr.bf16.mxu0 %v2956
        %3335 = vmatmul.mubr.bf16.gmra.mrb[0].mxu0 %v2955
        %v3336 = vpop.f32.mrb[0].mxu0
        %v3337 = vadd.f32 %v3084, %v3336
        %v3338 = vpop.f32.mrb[0].mxu0
        %v3339 = vpop.f32.mrb[0].mxu0
        %v3340 = vadd.f32 %v3084, %v3339
        %v3341 = vpop.f32.mrb[0].mxu0
        %3342 = vmatprep.mubr.bf16.mxu0 %v2960
        %3343 = vmatmul.mubr.bf16.gmra.mrb[0].mxu0 %v2959
        %v3344 = vpop.f32.mrb[0].mxu0
        %v3345 = vadd.f32 %v3084, %v3344
        %v3346 = vpop.f32.mrb[0].mxu0
        %v3347 = vpop.f32.mrb[0].mxu0
        %v3348 = vadd.f32 %v3084, %v3347
        %v3349 = vpop.f32.mrb[0].mxu0
        %3350 = vmatprep.mubr.bf16.mxu0 %v2964
        %3351 = vmatmul.mubr.bf16.gmra.mrb[0].mxu0 %v2963
        %v3352 = vpop.f32.mrb[0].mxu0
        %v3353 = vadd.f32 %v3084, %v3352
        %v3354 = vpop.f32.mrb[0].mxu0
        %v3355 = vpop.f32.mrb[0].mxu0
        %v3356 = vadd.f32 %v3084, %v3355
        %v3357 = vpop.f32.mrb[0].mxu0
        %3358 = vmatprep.mubr.bf16.mxu0 %v2968
        %3359 = vmatmul.mubr.bf16.gmra.mrb[0].mxu0 %v2967
        %v3360 = vpop.f32.mrb[0].mxu0
        %v3361 = vadd.f32 %v3084, %v3360
        %v3362 = vpop.f32.mrb[0].mxu0
        %v3363 = vpop.f32.mrb[0].mxu0
        %v3364 = vadd.f32 %v3084, %v3363
        %v3365 = vpop.f32.mrb[0].mxu0
        %3366 = vmatprep.mubr.bf16.mxu0 %v2972
        %3367 = vmatmul.mubr.bf16.gmra.mrb[0].mxu0 %v2971
        %v3368 = vpop.f32.mrb[0].mxu0
        %v3369 = vadd.f32 %v3084, %v3368
        %v3370 = vpop.f32.mrb[0].mxu0
        %v3371 = vpop.f32.mrb[0].mxu0
        %v3372 = vadd.f32 %v3084, %v3371
        %v3373 = vpop.f32.mrb[0].mxu0
        %3374 = vmatprep.mubr.bf16.mxu0 %v2976
        %3375 = vmatmul.mubr.bf16.gmra.mrb[0].mxu0 %v2975
        %v3376 = vpop.f32.mrb[0].mxu0
        %v3377 = vadd.f32 %v3084, %v3376
        %v3378 = vpop.f32.mrb[0].mxu0
        %v3379 = vpop.f32.mrb[0].mxu0
        %v3380 = vadd.f32 %v3084, %v3379
        %v3381 = vpop.f32.mrb[0].mxu0
        %3382 = vmatprep.mubr.bf16.mxu0 %v2980
        %3383 = vmatmul.mubr.bf16.gmra.mrb[0].mxu0 %v2979
        %v3384 = vpop.f32.mrb[0].mxu0
        %v3385 = vadd.f32 %v3084, %v3384
        %v3386 = vpop.f32.mrb[0].mxu0
        %v3387 = vpop.f32.mrb[0].mxu0
        %v3388 = vadd.f32 %v3084, %v3387
        %v3389 = vpop.f32.mrb[0].mxu0
        %3390 = vmatprep.mubr.bf16.mxu0 %v2984
        %3391 = vmatmul.mubr.bf16.gmra.mrb[0].mxu0 %v2983
        %v3392 = vpop.f32.mrb[0].mxu0
        %v3393 = vadd.f32 %v3084, %v3392
        %v3394 = vpop.f32.mrb[0].mxu0
        %v3395 = vpop.f32.mrb[0].mxu0
        %v3396 = vadd.f32 %v3084, %v3395
        %v3397 = vpop.f32.mrb[0].mxu0
        %3398 = vmatprep.mubr.bf16.mxu0 %v2988
        %3399 = vmatmul.mubr.bf16.gmra.mrb[0].mxu0 %v2987
        %v3400 = vpop.f32.mrb[0].mxu0
        %v3401 = vadd.f32 %v3084, %v3400
        %v3402 = vpop.f32.mrb[0].mxu0
        %v3403 = vpop.f32.mrb[0].mxu0
        %v3404 = vadd.f32 %v3084, %v3403
        %v3405 = vpop.f32.mrb[0].mxu0
        %3406 = vmatprep.mubr.bf16.mxu0 %v2992
        %3407 = vmatmul.mubr.bf16.gmra.mrb[0].mxu0 %v2991
        %v3408 = vpop.f32.mrb[0].mxu0
        %v3409 = vadd.f32 %v3084, %v3408
        %v3410 = vpop.f32.mrb[0].mxu0
        %v3411 = vpop.f32.mrb[0].mxu0
        %v3412 = vadd.f32 %v3084, %v3411
        %v3413 = vpop.f32.mrb[0].mxu0
        %3414 = vmatprep.mubr.bf16.mxu0 %v2996
        %3415 = vmatmul.mubr.bf16.gmra.mrb[0].mxu0 %v2995
        %v3416 = vpop.f32.mrb[0].mxu0
        %v3417 = vadd.f32 %v3084, %v3416
        %v3418 = vpop.f32.mrb[0].mxu0
        %v3419 = vpop.f32.mrb[0].mxu0
        %v3420 = vadd.f32 %v3084, %v3419
        %v3421 = vpop.f32.mrb[0].mxu0
        %3422 = vmatprep.mubr.bf16.mxu0 %v3000
        %3423 = vmatmul.mubr.bf16.gmra.mrb[0].mxu0 %v2999
        %v3424 = vpop.f32.mrb[0].mxu0
        %v3425 = vadd.f32 %v3084, %v3424
        %v3426 = vpop.f32.mrb[0].mxu0
        %v3427 = vpop.f32.mrb[0].mxu0
        %v3428 = vadd.f32 %v3084, %v3427
        %v3429 = vpop.f32.mrb[0].mxu0
        %3430 = vmatprep.mubr.bf16.mxu0 %v3004
        %3431 = vmatmul.mubr.bf16.gmra.mrb[0].mxu0 %v3003
        %v3432 = vpop.f32.mrb[0].mxu0
        %v3433 = vadd.f32 %v3084, %v3432
        %v3434 = vpop.f32.mrb[0].mxu0
        %v3435 = vpop.f32.mrb[0].mxu0
        %v3436 = vadd.f32 %v3084, %v3435
        %v3437 = vpop.f32.mrb[0].mxu0
        %3438 = vmatprep.mubr.bf16.mxu0 %v3008
        %3439 = vmatmul.mubr.bf16.gmra.mrb[0].mxu0 %v3007
        %v3440 = vpop.f32.mrb[0].mxu0
        %v3441 = vadd.f32 %v3084, %v3440
        %v3442 = vpop.f32.mrb[0].mxu0
        %v3443 = vpop.f32.mrb[0].mxu0
        %v3444 = vadd.f32 %v3084, %v3443
        %v3445 = vpop.f32.mrb[0].mxu0
        %3446 = vmatprep.mubr.bf16.mxu0 %v3012
        %3447 = vmatmul.mubr.bf16.gmra.mrb[0].mxu0 %v3011
        %v3448 = vpop.f32.mrb[0].mxu0
        %v3449 = vadd.f32 %v3084, %v3448
        %v3450 = vpop.f32.mrb[0].mxu0
        %v3451 = vpop.f32.mrb[0].mxu0
        %v3452 = vadd.f32 %v3084, %v3451
        %v3453 = vpop.f32.mrb[0].mxu0
        %3454 = vdwg.mxu0
        %3455 = vmatprep.subr.bf16.mxu0 0
        %3456 = vmatpush1.bf16.msra.mxu0 %v3230
        %3457 = vmatprep.subr.bf16.mxu0 0
        %3458 = vmatpush1.bf16.msra.mxu0 %v3231
        %3459 = vmatprep.subr.bf16.mxu0 0
        %3460 = vmatpush1.bf16.msra.mxu0 %v3232
        %3461 = vmatprep.subr.bf16.mxu0 0
        %3462 = vmatpush1.bf16.msra.mxu0 %v3233
        %3463 = vmatprep.subr.bf16.mxu0 0
        %3464 = vmatpush1.bf16.msra.mxu0 %v3234
        %3465 = vmatprep.subr.bf16.mxu0 0
        %3466 = vmatpush1.bf16.msra.mxu0 %v3235
        %3467 = vmatprep.subr.bf16.mxu0 0
        %3468 = vmatpush1.bf16.msra.mxu0 %v3236
        %3469 = vmatprep.subr.bf16.mxu0 0
        %3470 = vmatpush1.bf16.msra.mxu0 %v3237
        %3471 = vmatprep.subr.bf16.mxu0 0
        %3472 = vmatpush1.bf16.msra.mxu0 %v3238
        %3473 = vmatprep.subr.bf16.mxu0 0
        %3474 = vmatpush1.bf16.msra.mxu0 %v3239
        %3475 = vmatprep.subr.bf16.mxu0 0
        %3476 = vmatpush1.bf16.msra.mxu0 %v3240
        %3477 = vmatprep.subr.bf16.mxu0 0
        %3478 = vmatpush1.bf16.msra.mxu0 %v3241
        %3479 = vmatprep.subr.bf16.mxu0 0
        %3480 = vmatpush1.bf16.msra.mxu0 %v3242
        %3481 = vmatprep.subr.bf16.mxu0 0
        %3482 = vmatpush1.bf16.msra.mxu0 %v3243
        %3483 = vmatprep.subr.bf16.mxu0 0
        %3484 = vmatpush1.bf16.msra.mxu0 %v3244
        %3485 = vmatprep.subr.bf16.mxu0 0
        %3486 = vmatpush1.bf16.msra.mxu0 %v3245
        %3487 = vmatprep.mubr.bf16.mxu0 %v2946
        %3488 = vmatmul.mubr.bf16.gmra.mrb[0].mxu0 %v2945
        %v3489 = vpop.f32.mrb[0].mxu0
        %v3490 = vadd.f32 %v3313, %v3489
        %v3491 = vpop.f32.mrb[0].mxu0
        %v3492 = vpop.f32.mrb[0].mxu0
        %v3493 = vadd.f32 %v3316, %v3492
        %v3494 = vpop.f32.mrb[0].mxu0
        %3495 = vmatprep.mubr.bf16.mxu0 %v2950
        %3496 = vmatmul.mubr.bf16.gmra.mrb[0].mxu0 %v2949
        %v3497 = vpop.f32.mrb[0].mxu0
        %v3498 = vadd.f32 %v3321, %v3497
        %v3499 = vpop.f32.mrb[0].mxu0
        %v3500 = vpop.f32.mrb[0].mxu0
        %v3501 = vadd.f32 %v3324, %v3500
        %v3502 = vpop.f32.mrb[0].mxu0
        %3503 = vmatprep.mubr.bf16.mxu0 %v2954
        %3504 = vmatmul.mubr.bf16.gmra.mrb[0].mxu0 %v2953
        %v3505 = vpop.f32.mrb[0].mxu0
        %v3506 = vadd.f32 %v3329, %v3505
        %v3507 = vpop.f32.mrb[0].mxu0
        %v3508 = vpop.f32.mrb[0].mxu0
        %v3509 = vadd.f32 %v3332, %v3508
        %v3510 = vpop.f32.mrb[0].mxu0
        %3511 = vmatprep.mubr.bf16.mxu0 %v2958
        %3512 = vmatmul.mubr.bf16.gmra.mrb[0].mxu0 %v2957
        %v3513 = vpop.f32.mrb[0].mxu0
        %v3514 = vadd.f32 %v3337, %v3513
        %v3515 = vpop.f32.mrb[0].mxu0
        %v3516 = vpop.f32.mrb[0].mxu0
        %v3517 = vadd.f32 %v3340, %v3516
        %v3518 = vpop.f32.mrb[0].mxu0
        %3519 = vmatprep.mubr.bf16.mxu0 %v2962
        %3520 = vmatmul.mubr.bf16.gmra.mrb[0].mxu0 %v2961
        %v3521 = vpop.f32.mrb[0].mxu0
        %v3522 = vadd.f32 %v3345, %v3521
        %v3523 = vpop.f32.mrb[0].mxu0
        %v3524 = vpop.f32.mrb[0].mxu0
        %v3525 = vadd.f32 %v3348, %v3524
        %v3526 = vpop.f32.mrb[0].mxu0
        %3527 = vmatprep.mubr.bf16.mxu0 %v2966
        %3528 = vmatmul.mubr.bf16.gmra.mrb[0].mxu0 %v2965
        %v3529 = vpop.f32.mrb[0].mxu0
        %v3530 = vadd.f32 %v3353, %v3529
        %v3531 = vpop.f32.mrb[0].mxu0
        %v3532 = vpop.f32.mrb[0].mxu0
        %v3533 = vadd.f32 %v3356, %v3532
        %v3534 = vpop.f32.mrb[0].mxu0
        %3535 = vmatprep.mubr.bf16.mxu0 %v2970
        %3536 = vmatmul.mubr.bf16.gmra.mrb[0].mxu0 %v2969
        %v3537 = vpop.f32.mrb[0].mxu0
        %v3538 = vadd.f32 %v3361, %v3537
        %v3539 = vpop.f32.mrb[0].mxu0
        %v3540 = vpop.f32.mrb[0].mxu0
        %v3541 = vadd.f32 %v3364, %v3540
        %v3542 = vpop.f32.mrb[0].mxu0
        %3543 = vmatprep.mubr.bf16.mxu0 %v2974
        %3544 = vmatmul.mubr.bf16.gmra.mrb[0].mxu0 %v2973
        %v3545 = vpop.f32.mrb[0].mxu0
        %v3546 = vadd.f32 %v3369, %v3545
        %v3547 = vpop.f32.mrb[0].mxu0
        %v3548 = vpop.f32.mrb[0].mxu0
        %v3549 = vadd.f32 %v3372, %v3548
        %v3550 = vpop.f32.mrb[0].mxu0
        %3551 = vmatprep.mubr.bf16.mxu0 %v2978
        %3552 = vmatmul.mubr.bf16.gmra.mrb[0].mxu0 %v2977
        %v3553 = vpop.f32.mrb[0].mxu0
        %v3554 = vadd.f32 %v3377, %v3553
        %v3555 = vpop.f32.mrb[0].mxu0
        %v3556 = vpop.f32.mrb[0].mxu0
        %v3557 = vadd.f32 %v3380, %v3556
        %v3558 = vpop.f32.mrb[0].mxu0
        %3559 = vmatprep.mubr.bf16.mxu0 %v2982
        %3560 = vmatmul.mubr.bf16.gmra.mrb[0].mxu0 %v2981
        %v3561 = vpop.f32.mrb[0].mxu0
        %v3562 = vadd.f32 %v3385, %v3561
        %v3563 = vpop.f32.mrb[0].mxu0
        %v3564 = vpop.f32.mrb[0].mxu0
        %v3565 = vadd.f32 %v3388, %v3564
        %v3566 = vpop.f32.mrb[0].mxu0
        %3567 = vmatprep.mubr.bf16.mxu0 %v2986
        %3568 = vmatmul.mubr.bf16.gmra.mrb[0].mxu0 %v2985
        %v3569 = vpop.f32.mrb[0].mxu0
        %v3570 = vadd.f32 %v3393, %v3569
        %v3571 = vpop.f32.mrb[0].mxu0
        %v3572 = vpop.f32.mrb[0].mxu0
        %v3573 = vadd.f32 %v3396, %v3572
        %v3574 = vpop.f32.mrb[0].mxu0
        %3575 = vmatprep.mubr.bf16.mxu0 %v2990
        %3576 = vmatmul.mubr.bf16.gmra.mrb[0].mxu0 %v2989
        %v3577 = vpop.f32.mrb[0].mxu0
        %v3578 = vadd.f32 %v3401, %v3577
        %v3579 = vpop.f32.mrb[0].mxu0
        %v3580 = vpop.f32.mrb[0].mxu0
        %v3581 = vadd.f32 %v3404, %v3580
        %v3582 = vpop.f32.mrb[0].mxu0
        %3583 = vmatprep.mubr.bf16.mxu0 %v2994
        %3584 = vmatmul.mubr.bf16.gmra.mrb[0].mxu0 %v2993
        %v3585 = vpop.f32.mrb[0].mxu0
        %v3586 = vadd.f32 %v3409, %v3585
        %v3587 = vpop.f32.mrb[0].mxu0
        %v3588 = vpop.f32.mrb[0].mxu0
        %v3589 = vadd.f32 %v3412, %v3588
        %v3590 = vpop.f32.mrb[0].mxu0
        %3591 = vmatprep.mubr.bf16.mxu0 %v2998
        %3592 = vmatmul.mubr.bf16.gmra.mrb[0].mxu0 %v2997
        %v3593 = vpop.f32.mrb[0].mxu0
        %v3594 = vadd.f32 %v3417, %v3593
        %v3595 = vpop.f32.mrb[0].mxu0
        %v3596 = vpop.f32.mrb[0].mxu0
        %v3597 = vadd.f32 %v3420, %v3596
        %v3598 = vpop.f32.mrb[0].mxu0
        %3599 = vmatprep.mubr.bf16.mxu0 %v3002
        %3600 = vmatmul.mubr.bf16.gmra.mrb[0].mxu0 %v3001
        %v3601 = vpop.f32.mrb[0].mxu0
        %v3602 = vadd.f32 %v3425, %v3601
        %v3603 = vpop.f32.mrb[0].mxu0
        %v3604 = vpop.f32.mrb[0].mxu0
        %v3605 = vadd.f32 %v3428, %v3604
        %v3606 = vpop.f32.mrb[0].mxu0
        %3607 = vmatprep.mubr.bf16.mxu0 %v3006
        %3608 = vmatmul.mubr.bf16.gmra.mrb[0].mxu0 %v3005
        %v3609 = vpop.f32.mrb[0].mxu0
        %v3610 = vadd.f32 %v3433, %v3609
        %v3611 = vpop.f32.mrb[0].mxu0
        %v3612 = vpop.f32.mrb[0].mxu0
        %v3613 = vadd.f32 %v3436, %v3612
        %v3614 = vpop.f32.mrb[0].mxu0
        %3615 = vmatprep.mubr.bf16.mxu0 %v3010
        %3616 = vmatmul.mubr.bf16.gmra.mrb[0].mxu0 %v3009
        %v3617 = vpop.f32.mrb[0].mxu0
        %v3618 = vadd.f32 %v3441, %v3617
        %v3619 = vpop.f32.mrb[0].mxu0
        %v3620 = vpop.f32.mrb[0].mxu0
        %v3621 = vadd.f32 %v3444, %v3620
        %v3622 = vpop.f32.mrb[0].mxu0
        %3623 = vmatprep.mubr.bf16.mxu0 %v3014
        %3624 = vmatmul.mubr.bf16.gmra.mrb[0].mxu0 %v3013
        %v3625 = vpop.f32.mrb[0].mxu0
        %v3626 = vadd.f32 %v3449, %v3625
        %v3627 = vpop.f32.mrb[0].mxu0
        %v3628 = vpop.f32.mrb[0].mxu0
        %v3629 = vadd.f32 %v3452, %v3628
        %v3630 = vpop.f32.mrb[0].mxu0
        %3631 = vdwg.mxu0
        %v3632 = vlaneseq
        %v3633 = vand.u32 %v3632, 127
        %vm3634 = vcmp.ge.s32.totalorder %v3633, 27
        %vm3635 = vcmp.lt.s32.totalorder %v3633, 48
        %vm3636 = vmand %vm3634, %vm3635
        %v3637 = vxor.u32 %v3490, 2147483648
        %v3638 = vxor.u32 %v3493, 2147483648
        %v3639 = vxor.u32 %v3498, 2147483648
        %v3640 = vxor.u32 %v3501, 2147483648
        %v3641 = vxor.u32 %v3506, 2147483648
        %v3642 = vxor.u32 %v3509, 2147483648
        %v3643 = vxor.u32 %v3514, 2147483648
        %v3644 = vxor.u32 %v3517, 2147483648
        %v3645 = vxor.u32 %v3522, 2147483648
        %v3646 = vxor.u32 %v3525, 2147483648
        %v3647 = vxor.u32 %v3530, 2147483648
        %v3648 = vxor.u32 %v3533, 2147483648
        %v3649 = vxor.u32 %v3538, 2147483648
        %v3650 = vxor.u32 %v3541, 2147483648
        %v3651 = vxor.u32 %v3546, 2147483648
        %v3652 = vxor.u32 %v3549, 2147483648
        %v3653 = vxor.u32 %v3554, 2147483648
        %v3654 = vxor.u32 %v3557, 2147483648
        %v3655 = vxor.u32 %v3562, 2147483648
        %v3656 = vxor.u32 %v3565, 2147483648
        %v3657 = vxor.u32 %v3570, 2147483648
        %v3658 = vxor.u32 %v3573, 2147483648
        %v3659 = vxor.u32 %v3578, 2147483648
        %v3660 = vxor.u32 %v3581, 2147483648
        %v3661 = vxor.u32 %v3586, 2147483648
        %v3662 = vxor.u32 %v3589, 2147483648
        %v3663 = vxor.u32 %v3594, 2147483648
        %v3664 = vxor.u32 %v3597, 2147483648
        %v3665 = vxor.u32 %v3602, 2147483648
        %v3666 = vxor.u32 %v3605, 2147483648
        %v3667 = vxor.u32 %v3610, 2147483648
        %v3668 = vxor.u32 %v3613, 2147483648
        %v3669 = vxor.u32 %v3618, 2147483648
        %v3670 = vxor.u32 %v3621, 2147483648
        %v3671 = vxor.u32 %v3626, 2147483648
        %v3672 = vxor.u32 %v3629, 2147483648
        %v3673 = vmul.f32 %v3637, 1.442695
        %v3674 = vpow.pop %v3673
        %v3675 = vmul.f32 %v3638, 1.442695
        %v3676 = vpow.pop %v3675
        %v3677 = vmul.f32 %v3639, 1.442695
        %v3678 = vpow.pop %v3677
        %v3679 = vmul.f32 %v3640, 1.442695
        %v3680 = vpow.pop %v3679
        %v3681 = vmul.f32 %v3641, 1.442695
        %v3682 = vpow.pop %v3681
        %v3683 = vmul.f32 %v3642, 1.442695
        %v3684 = vpow.pop %v3683
        %v3685 = vmul.f32 %v3643, 1.442695
        %v3686 = vpow.pop %v3685
        %v3687 = vmul.f32 %v3644, 1.442695
        %v3688 = vpow.pop %v3687
        %v3689 = vmul.f32 %v3645, 1.442695
        %v3690 = vpow.pop %v3689
        %v3691 = vmul.f32 %v3646, 1.442695
        %v3692 = vpow.pop %v3691
        %v3693 = vmul.f32 %v3647, 1.442695
        %v3694 = vpow.pop %v3693
        %v3695 = vmul.f32 %v3648, 1.442695
        %v3696 = vpow.pop %v3695
        %v3697 = vmul.f32 %v3649, 1.442695
        %v3698 = vpow.pop %v3697
        %v3699 = vmul.f32 %v3650, 1.442695
        %v3700 = vpow.pop %v3699
        %v3701 = vmul.f32 %v3651, 1.442695
        %v3702 = vpow.pop %v3701
        %v3703 = vmul.f32 %v3652, 1.442695
        %v3704 = vpow.pop %v3703
        %v3705 = vmul.f32 %v3653, 1.442695
        %v3706 = vpow.pop %v3705
        %v3707 = vmul.f32 %v3654, 1.442695
        %v3708 = vpow.pop %v3707
        %v3709 = vmul.f32 %v3655, 1.442695
        %v3710 = vpow.pop %v3709
        %v3711 = vmul.f32 %v3656, 1.442695
        %v3712 = vpow.pop %v3711
        %v3713 = vmul.f32 %v3657, 1.442695
        %v3714 = vpow.pop %v3713
        %v3715 = vmul.f32 %v3658, 1.442695
        %v3716 = vpow.pop %v3715
        %v3717 = vmul.f32 %v3659, 1.442695
        %v3718 = vpow.pop %v3717
        %v3719 = vmul.f32 %v3660, 1.442695
        %v3720 = vpow.pop %v3719
        %v3721 = vmul.f32 %v3661, 1.442695
        %v3722 = vpow.pop %v3721
        %v3723 = vmul.f32 %v3662, 1.442695
        %v3724 = vpow.pop %v3723
        %v3725 = vmul.f32 %v3663, 1.442695
        %v3726 = vpow.pop %v3725
        %v3727 = vmul.f32 %v3664, 1.442695
        %v3728 = vpow.pop %v3727
        %v3729 = vmul.f32 %v3665, 1.442695
        %v3730 = vpow.pop %v3729
        %v3731 = vmul.f32 %v3666, 1.442695
        %v3732 = vpow.pop %v3731
        %v3733 = vmul.f32 %v3667, 1.442695
        %v3734 = vpow.pop %v3733
        %v3735 = vmul.f32 %v3668, 1.442695
        %v3736 = vpow.pop %v3735
        %v3737 = vmul.f32 %v3669, 1.442695
        %v3738 = vpow.pop %v3737
        %v3739 = vmul.f32 %v3670, 1.442695
        %v3740 = vpow.pop %v3739
        %v3741 = vmul.f32 %v3671, 1.442695
        %v3742 = vpow.pop %v3741
        %v3743 = vmul.f32 %v3672, 1.442695
        %v3744 = vpow.pop %v3743
        %v3745 = vadd.f32 %v3674, 1.0
        %v3746 = vadd.f32 %v3676, 1.0
        %v3747 = vadd.f32 %v3678, 1.0
        %v3748 = vadd.f32 %v3680, 1.0
        %v3749 = vadd.f32 %v3682, 1.0
        %v3750 = vadd.f32 %v3684, 1.0
        %v3751 = vadd.f32 %v3686, 1.0
        %v3752 = vadd.f32 %v3688, 1.0
        %v3753 = vadd.f32 %v3690, 1.0
        %v3754 = vadd.f32 %v3692, 1.0
        %v3755 = vadd.f32 %v3694, 1.0
        %v3756 = vadd.f32 %v3696, 1.0
        %v3757 = vadd.f32 %v3698, 1.0
        %v3758 = vadd.f32 %v3700, 1.0
        %v3759 = vadd.f32 %v3702, 1.0
        %v3760 = vadd.f32 %v3704, 1.0
        %v3761 = vadd.f32 %v3706, 1.0
        %v3762 = vadd.f32 %v3708, 1.0
        %v3763 = vadd.f32 %v3710, 1.0
        %v3764 = vadd.f32 %v3712, 1.0
        %v3765 = vadd.f32 %v3714, 1.0
        %v3766 = vadd.f32 %v3716, 1.0
        %v3767 = vadd.f32 %v3718, 1.0
        %v3768 = vadd.f32 %v3720, 1.0
        %v3769 = vadd.f32 %v3722, 1.0
        %v3770 = vadd.f32 %v3724, 1.0
        %v3771 = vadd.f32 %v3726, 1.0
        %v3772 = vadd.f32 %v3728, 1.0
        %v3773 = vadd.f32 %v3730, 1.0
        %v3774 = vadd.f32 %v3732, 1.0
        %v3775 = vadd.f32 %v3734, 1.0
        %v3776 = vadd.f32 %v3736, 1.0
        %v3777 = vadd.f32 %v3738, 1.0
        %v3778 = vadd.f32 %v3740, 1.0
        %v3779 = vadd.f32 %v3742, 1.0
        %v3780 = vadd.f32 %v3744, 1.0
        %v3781 = vrcp.pop %v3745
        %v3782 = vmul.f32 1.0, %v3781
        %v3783 = vrcp.pop %v3746
        %v3784 = vmul.f32 1.0, %v3783
        %v3785 = vrcp.pop %v3747
        %v3786 = vmul.f32 1.0, %v3785
        %v3787 = vrcp.pop %v3748
        %v3788 = vmul.f32 1.0, %v3787
        %v3789 = vrcp.pop %v3749
        %v3790 = vmul.f32 1.0, %v3789
        %v3791 = vrcp.pop %v3750
        %v3792 = vmul.f32 1.0, %v3791
        %v3793 = vrcp.pop %v3751
        %v3794 = vmul.f32 1.0, %v3793
        %v3795 = vrcp.pop %v3752
        %v3796 = vmul.f32 1.0, %v3795
        %v3797 = vrcp.pop %v3753
        %v3798 = vmul.f32 1.0, %v3797
        %v3799 = vrcp.pop %v3754
        %v3800 = vmul.f32 1.0, %v3799
        %v3801 = vrcp.pop %v3755
        %v3802 = vmul.f32 1.0, %v3801
        %v3803 = vrcp.pop %v3756
        %v3804 = vmul.f32 1.0, %v3803
        %v3805 = vrcp.pop %v3757
        %v3806 = vmul.f32 1.0, %v3805
        %v3807 = vrcp.pop %v3758
        %v3808 = vmul.f32 1.0, %v3807
        %v3809 = vrcp.pop %v3759
        %v3810 = vmul.f32 1.0, %v3809
        %v3811 = vrcp.pop %v3760
        %v3812 = vmul.f32 1.0, %v3811
        %v3813 = vrcp.pop %v3761
        %v3814 = vmul.f32 1.0, %v3813
        %v3815 = vrcp.pop %v3762
        %v3816 = vmul.f32 1.0, %v3815
        %v3817 = vrcp.pop %v3763
        %v3818 = vmul.f32 1.0, %v3817
        %v3819 = vrcp.pop %v3764
        %v3820 = vmul.f32 1.0, %v3819
        %v3821 = vrcp.pop %v3765
        %v3822 = vmul.f32 1.0, %v3821
        %v3823 = vrcp.pop %v3766
        %v3824 = vmul.f32 1.0, %v3823
        %v3825 = vrcp.pop %v3767
        %v3826 = vmul.f32 1.0, %v3825
        %v3827 = vrcp.pop %v3768
        %v3828 = vmul.f32 1.0, %v3827
        %v3829 = vrcp.pop %v3769
        %v3830 = vmul.f32 1.0, %v3829
        %v3831 = vrcp.pop %v3770
        %v3832 = vmul.f32 1.0, %v3831
        %v3833 = vrcp.pop %v3771
        %v3834 = vmul.f32 1.0, %v3833
        %v3835 = vrcp.pop %v3772
        %v3836 = vmul.f32 1.0, %v3835
        %v3837 = vrcp.pop %v3773
        %v3838 = vmul.f32 1.0, %v3837
        %v3839 = vrcp.pop %v3774
        %v3840 = vmul.f32 1.0, %v3839
        %v3841 = vrcp.pop %v3775
        %v3842 = vmul.f32 1.0, %v3841
        %v3843 = vrcp.pop %v3776
        %v3844 = vmul.f32 1.0, %v3843
        %v3845 = vrcp.pop %v3777
        %v3846 = vmul.f32 1.0, %v3845
        %v3847 = vrcp.pop %v3778
        %v3848 = vmul.f32 1.0, %v3847
        %v3849 = vrcp.pop %v3779
        %v3850 = vmul.f32 1.0, %v3849
        %v3851 = vrcp.pop %v3780
        %v3852 = vmul.f32 1.0, %v3851
        %v3853 = vsel %vm3636, 1, 0
        %vm3854 = vcmp.eq.s32.totalorder %v3853, 1
        %v3855 = vsel %vm3854, %v3782, %v3490
        %v3856 = vsel %vm3854, %v3784, %v3493
        %v3857 = vsel %vm3854, %v3786, %v3498
        %v3858 = vsel %vm3854, %v3788, %v3501
        %v3859 = vsel %vm3854, %v3790, %v3506
        %v3860 = vsel %vm3854, %v3792, %v3509
        %v3861 = vsel %vm3854, %v3794, %v3514
        %v3862 = vsel %vm3854, %v3796, %v3517
        %v3863 = vsel %vm3854, %v3798, %v3522
        %v3864 = vsel %vm3854, %v3800, %v3525
        %v3865 = vsel %vm3854, %v3802, %v3530
        %v3866 = vsel %vm3854, %v3804, %v3533
        %v3867 = vsel %vm3854, %v3806, %v3538
        %v3868 = vsel %vm3854, %v3808, %v3541
        %v3869 = vsel %vm3854, %v3810, %v3546
        %v3870 = vsel %vm3854, %v3812, %v3549
        %v3871 = vsel %vm3854, %v3814, %v3554
        %v3872 = vsel %vm3854, %v3816, %v3557
        %v3873 = vsel %vm3854, %v3818, %v3562
        %v3874 = vsel %vm3854, %v3820, %v3565
        %v3875 = vsel %vm3854, %v3822, %v3570
        %v3876 = vsel %vm3854, %v3824, %v3573
        %v3877 = vsel %vm3854, %v3826, %v3578
        %v3878 = vsel %vm3854, %v3828, %v3581
        %v3879 = vsel %vm3854, %v3830, %v3586
        %v3880 = vsel %vm3854, %v3832, %v3589
        %v3881 = vsel %vm3854, %v3834, %v3594
        %v3882 = vsel %vm3854, %v3836, %v3597
        %v3883 = vsel %vm3854, %v3838, %v3602
        %v3884 = vsel %vm3854, %v3840, %v3605
        %v3885 = vsel %vm3854, %v3842, %v3610
        %v3886 = vsel %vm3854, %v3844, %v3613
        %v3887 = vsel %vm3854, %v3846, %v3618
        %v3888 = vsel %vm3854, %v3848, %v3621
        %v3889 = vsel %vm3854, %v3850, %v3626
        %v3890 = vsel %vm3854, %v3852, %v3629
        %3891 = vst [vmem:[%s329] sm:$0xff] %v3855
        %3892 = vst [vmem:[%s329 + $0x8] sm:$0xff] %v3856
        %3893 = vst [vmem:[%s329 + $0x10] sm:$0xff] %v3857
        %3894 = vst [vmem:[%s329 + $0x18] sm:$0xff] %v3858
        %3895 = vst [vmem:[%s329 + $0x20] sm:$0xff] %v3859
        %3896 = vst [vmem:[%s329 + $0x28] sm:$0xff] %v3860
        %3897 = vst [vmem:[%s329 + $0x30] sm:$0xff] %v3861
        %3898 = vst [vmem:[%s329 + $0x38] sm:$0xff] %v3862
        %3899 = vst [vmem:[%s329 + $0x40] sm:$0xff] %v3863
        %3900 = vst [vmem:[%s329 + $0x48] sm:$0xff] %v3864
        %3901 = vst [vmem:[%s329 + $0x50] sm:$0xff] %v3865
        %3902 = vst [vmem:[%s329 + $0x58] sm:$0xff] %v3866
        %3903 = vst [vmem:[%s329 + $0x60] sm:$0xff] %v3867
        %3904 = vst [vmem:[%s329 + $0x68] sm:$0xff] %v3868
        %3905 = vst [vmem:[%s329 + $0x70] sm:$0xff] %v3869
        %3906 = vst [vmem:[%s329 + $0x78] sm:$0xff] %v3870
        %3907 = vst [vmem:[%s329 + $0x80] sm:$0xff] %v3871
        %3908 = vst [vmem:[%s329 + $0x88] sm:$0xff] %v3872
        %3909 = vst [vmem:[%s329 + $0x90] sm:$0xff] %v3873
        %3910 = vst [vmem:[%s329 + $0x98] sm:$0xff] %v3874
        %3911 = vst [vmem:[%s329 + $0xa0] sm:$0xff] %v3875
        %3912 = vst [vmem:[%s329 + $0xa8] sm:$0xff] %v3876
        %3913 = vst [vmem:[%s329 + $0xb0] sm:$0xff] %v3877
        %3914 = vst [vmem:[%s329 + $0xb8] sm:$0xff] %v3878
        %3915 = vst [vmem:[%s329 + $0xc0] sm:$0xff] %v3879
        %3916 = vst [vmem:[%s329 + $0xc8] sm:$0xff] %v3880
        %3917 = vst [vmem:[%s329 + $0xd0] sm:$0xff] %v3881
        %3918 = vst [vmem:[%s329 + $0xd8] sm:$0xff] %v3882
        %3919 = vst [vmem:[%s329 + $0xe0] sm:$0xff] %v3883
        %3920 = vst [vmem:[%s329 + $0xe8] sm:$0xff] %v3884
        %3921 = vst [vmem:[%s329 + $0xf0] sm:$0xff] %v3885
        %3922 = vst [vmem:[%s329 + $0xf8] sm:$0xff] %v3886
        %3923 = vst [vmem:[%s329 + $0x100] sm:$0xff] %v3887
        %3924 = vst [vmem:[%s329 + $0x108] sm:$0xff] %v3888
        %3925 = vst [vmem:[%s329 + $0x110] sm:$0xff] %v3889
        %3926 = vst [vmem:[%s329 + $0x118] sm:$0xff] %v3890
        %s3927 = sand.u32 %s186, 1
        %s3928 = scalar_lea.sflag [#allocation3], %s3927
        %s3929 = sand.u32 %s186, 1
        %s3930 = smul.addr %s3929, 288
        %s3931 = scalar_lea.vmem [#allocation2], %s3930
        // Predicated region
        $region45: #{tpu_custom_call.1} parent=43 // pred_check
          %p3932 = pneg %p196
        $region46: #{tpu_custom_call.1} parent=43 // pred_check_branch
          %3934 = sbr.rel (%p3932) target = $region48
        $region47: #{tpu_custom_call.1} parent=43 // pred_region
          %s3935 = smul.u32 36, %s25
          %s3937 = ssub.s32 4608, 4608
          %3938 = vsyncadd %s3928, %s3937
          %s3939 = smul.addr %s24, 36
          %s3940 = sadd.s32 %s3935, %s3939
          %s3941 = smul.addr %s3940, 128
          %s3942 = scalar_lea.hbm %s6, %s3941
          %s3943 = sshll.u32 %s3931, 4
          %s3944 = int_to_ptr.vmem [resolvable:$true] %s3943
          %3949 = dma.vmem_to_hbm [thread:$0]  %s3944, 4608, %s3942, %s3928, 128, 128, 8
        $region48: #{tpu_custom_call.1} parent=43 // pred_fallthru
          _
      $region44: #{tpu_custom_call.1} parent=5 // pred_fallthru
        _
      %p3950 = scmp.le.s32.totalorder 2, %s15
      // Predicated region
      $region49: #{tpu_custom_call.1} parent=5 // pred_check
        %p3951 = pneg %p3950
      $region50: #{tpu_custom_call.1} parent=5 // pred_check_branch
        %3953 = sbr.rel (%p3951) target = $region52
      $region51: #{tpu_custom_call.1} parent=5 // pred_region
        %s3954 = ssub.s32 %s15, 2
        // Predicated region
        $region53: #{tpu_custom_call.1} parent=51 // pred_check
          %p3955 = pneg %p202
        $region54: #{tpu_custom_call.1} parent=51 // pred_check_branch
          %3957 = sbr.rel (%p3955) target = $region56
        $region55: #{tpu_custom_call.1} parent=51 // pred_region
          %s3958 = sand.u32 %s187, 1
          %s3959 = scalar_lea.sflag [#allocation3], %s3958
          %s3960 = sand.u32 %s187, 1
          %s3961 = smul.addr %s3960, 288
          %s3962 = scalar_lea.vmem [#allocation2], %s3961
          %3963 = dma.done %s3959, 4608
        $region56: #{tpu_custom_call.1} parent=51 // pred_fallthru
          _
      $region52: #{tpu_custom_call.1} parent=5 // pred_fallthru
        _
    $region6: #{tpu_custom_call.1} parent=1 // loop_footer
      %s19 = sadd.s32 1, %s15
    $region7: #{tpu_custom_call.1} parent=1 // loop_footer_branch
      %14 = sbr.rel target = $region3
    $region8: #{tpu_custom_call.1} parent=1 // loop_exit
      _
    %3964 = vsyncpa [#allocation3], 1
    %s3965 = scalar_lea.sflag [#allocation3], 1
    %3966 = vsyncpa %s3965, 1

// kernel: tpu_custom_call.1
$region0: #{tpu_custom_call.1}
  #allocation0 [shape = 'u32[]', space=smem, size = 0x4, offset = 0x4, fixed_abs, tag = 'smem constant byte address 0x4 - core index']
  #allocation1 [shape = 'u32[144,128]{1,0:T(1,128)}', space=vmem, size = 0x12000, scoped, tag = 'internal scratch']
  %s0 = inlined_call_operand.vmem [shape: bf16[2,342,32], index: 0, kind: input, shape index: {}]
  %s1 = inlined_call_operand.vmem [shape: bf16[2,342,32], index: 1, kind: input, shape index: {}]
  %s2 = inlined_call_operand.vmem [shape: bf16[288,512], index: 2, kind: input, shape index: {}]
  %s3 = inlined_call_operand.vmem [shape: f32[1,512], index: 3, kind: input, shape index: {}]
  %s4 = inlined_call_operand.vmem [shape: bf16[512,128], index: 4, kind: input, shape index: {}]
  %s5 = inlined_call_operand.vmem [shape: f32[1,128], index: 5, kind: input, shape index: {}]
  %s6 = inlined_call_operand.hbm [shape: f32[2,288,128], index: 6, kind: output, shape index: {}]
  %s7 = sld [smem:[#allocation0]]
  $region57: #{tpu_custom_call.1} parent=0
    _
  %s9 = ssub.s32 1, %s7
  %s10 = scalar_select 0, %s9, %s7
  $region1: #{tpu_custom_call.1} parent=0
    #allocation2 [shape = 'u8[294912]{0}', space=vmem, size = 0x48000, scoped, tag = 'output window, operand 0']
    #allocation3 [shape = 's32[2]{0}', space=sflag, size = 0x8, scoped, tag = 'scoped memory for tpu_custom_call.1']
    %11 = vsyncpa [#allocation3], 0
    %s12 = scalar_lea.sflag [#allocation3], 1
    %13 = vsyncpa %s12, 0
    loop: start=0, step=1, limit=4
    $region2: #{tpu_custom_call.1} parent=1 // loop_pre_header
      _
    $region3: #{tpu_custom_call.1} parent=1 // loop_header
      %s15 = sphi 0, %s19
      %p16 = scmp.ge.s32.totalorder %s15, 4
      %s22 = sphi 0, %s34
      %s23 = sphi 0, %s30
      %s24 = sphi 0, %s22
      %s25 = sphi 0, %s23
      %s26 = sphi 0, %s24
      %s27 = sphi 0, %s25
      %s39 = sphi 0, %s41
      %s42 = sphi 0, %s39
      %s43 = sphi 0, %s42
      %s59 = sphi 0, %s43
      %s71 = sphi 0, %s73
      %s74 = sphi 0, %s71
      %s75 = sphi 0, %s74
      %s91 = sphi 0, %s75
      %s95 = sphi 0, %s95
      %s97 = sphi 0, %s95
      %s98 = sphi 0, %s97
      %s112 = sphi 0, %s98
      %s116 = sphi 0, %s116
      %s118 = sphi 0, %s116
      %s119 = sphi 0, %s118
      %s133 = sphi 0, %s119
      %s137 = sphi 0, %s137
      %s139 = sphi 0, %s137
      %s140 = sphi 0, %s139
      %s154 = sphi 0, %s140
      %s158 = sphi 0, %s158
      %s160 = sphi 0, %s158
      %s161 = sphi 0, %s160
      %s175 = sphi 0, %s161
      %s183 = sphi 0, %s185
      %s186 = sphi 0, %s183
      %s187 = sphi 0, %s186
      %s203 = sphi 0, %s187
    $region4: #{tpu_custom_call.1} parent=1 // loop_header_branch
      %18 = sbr.rel (%p16) target = $region8
    $region5: #{tpu_custom_call.1} parent=1 // loop_body
      %s20 = ssub.s32 %s15, 1
      %s21 = ssub.s32 %s15, 2
      %s28 = sadd.s32 1, %s23
      %p29 = scmp.ge.s32.totalorder %s28, 1
      %s30 = scalar_select %p29, 0, %s28
      %s31 = sadd.s32 1, %s22
      %s32 = scalar_select %p29, %s31, %s22
      %p33 = scmp.ge.s32.totalorder %s32, 2
      %s34 = scalar_select %p33, 0, %s32
      %s35 = ssub.s32 %s22, %s34
      %s36 = ssub.s32 %s23, %s30
      %s37 = sor.u32 %s35, %s36
      %p38 = scmp.eq.s32.totalorder %s37, 0
      %s40 = sadd.s32 %s39, 1
      %s41 = scalar_select %p38, %s39, %s40
      %p44 = pneg %p38
      %p45 = scmp.eq.s32.totalorder %s15, 1
      %p46 = por %p44, %p45
      %p47 = scmp.ne.s32.totalorder %s39, %s42
      %p48 = scmp.eq.s32.totalorder %s15, 0
      %p49 = por %p47, %p48
      %p50 = scmp.ne.s32.totalorder %s39, %s42
      %p51 = scmp.eq.s32.totalorder %s20, 1
      %p52 = por %p50, %p51
      %p53 = scmp.ne.s32.totalorder %s42, %s43
      %p54 = scmp.eq.s32.totalorder %s20, 0
      %p55 = por %p53, %p54
      %p56 = scmp.ne.s32.totalorder %s42, %s43
      %p57 = scmp.eq.s32.totalorder %s21, 1
      %p58 = por %p56, %p57
      %p60 = scmp.ne.s32.totalorder %s43, %s59
      %p61 = scmp.eq.s32.totalorder %s21, 0
      %p62 = por %p60, %p61
      %s63 = sadd.s32 %s23, 1
      %s64 = smul.u32 %s63, 6
      %s65 = sadd.s32 %s30, 1
      %s66 = smul.u32 %s65, 6
      %s67 = ssub.s32 %s22, %s34
      %s68 = ssub.s32 %s64, %s66
      %s69 = sor.u32 %s67, %s68
      %p70 = scmp.eq.s32.totalorder %s69, 0
      %s72 = sadd.s32 %s71, 1
      %s73 = scalar_select %p70, %s71, %s72
      %p76 = pneg %p70
      %p77 = scmp.eq.s32.totalorder %s15, 1
      %p78 = por %p76, %p77
      %p79 = scmp.ne.s32.totalorder %s71, %s74
      %p80 = scmp.eq.s32.totalorder %s15, 0
      %p81 = por %p79, %p80
      %p82 = scmp.ne.s32.totalorder %s71, %s74
      %p83 = scmp.eq.s32.totalorder %s20, 1
      %p84 = por %p82, %p83
      %p85 = scmp.ne.s32.totalorder %s74, %s75
      %p86 = scmp.eq.s32.totalorder %s20, 0
      %p87 = por %p85, %p86
      %p88 = scmp.ne.s32.totalorder %s74, %s75
      %p89 = scmp.eq.s32.totalorder %s21, 1
      %p90 = por %p88, %p89
      %p92 = scmp.ne.s32.totalorder %s75, %s91
      %p93 = scmp.eq.s32.totalorder %s21, 0
      %p94 = por %p92, %p93
      %s96 = sadd.s32 %s95, 1
      %p99 = scmp.eq.s32.totalorder %s15, 1
      %p100 = scmp.ne.s32.totalorder %s95, %s97
      %p101 = scmp.eq.s32.totalorder %s15, 0
      %p102 = por %p100, %p101
      %p103 = scmp.ne.s32.totalorder %s95, %s97
      %p104 = scmp.eq.s32.totalorder %s20, 1
      %p105 = por %p103, %p104
      %p106 = scmp.ne.s32.totalorder %s97, %s98
      %p107 = scmp.eq.s32.totalorder %s20, 0
      %p108 = por %p106, %p107
      %p109 = scmp.ne.s32.totalorder %s97, %s98
      %p110 = scmp.eq.s32.totalorder %s21, 1
      %p111 = por %p109, %p110
      %p113 = scmp.ne.s32.totalorder %s98, %s112
      %p114 = scmp.eq.s32.totalorder %s21, 0
      %p115 = por %p113, %p114
      %s117 = sadd.s32 %s116, 1
      %p120 = scmp.eq.s32.totalorder %s15, 1
      %p121 = scmp.ne.s32.totalorder %s116, %s118
      %p122 = scmp.eq.s32.totalorder %s15, 0
      %p123 = por %p121, %p122
      %p124 = scmp.ne.s32.totalorder %s116, %s118
      %p125 = scmp.eq.s32.totalorder %s20, 1
      %p126 = por %p124, %p125
      %p127 = scmp.ne.s32.totalorder %s118, %s119
      %p128 = scmp.eq.s32.totalorder %s20, 0
      %p129 = por %p127, %p128
      %p130 = scmp.ne.s32.totalorder %s118, %s119
      %p131 = scmp.eq.s32.totalorder %s21, 1
      %p132 = por %p130, %p131
      %p134 = scmp.ne.s32.totalorder %s119, %s133
      %p135 = scmp.eq.s32.totalorder %s21, 0
      %p136 = por %p134, %p135
      %s138 = sadd.s32 %s137, 1
      %p141 = scmp.eq.s32.totalorder %s15, 1
      %p142 = scmp.ne.s32.totalorder %s137, %s139
      %p143 = scmp.eq.s32.totalorder %s15, 0
      %p144 = por %p142, %p143
      %p145 = scmp.ne.s32.totalorder %s137, %s139
      %p146 = scmp.eq.s32.totalorder %s20, 1
      %p147 = por %p145, %p146
      %p148 = scmp.ne.s32.totalorder %s139, %s140
      %p149 = scmp.eq.s32.totalorder %s20, 0
      %p150 = por %p148, %p149
      %p151 = scmp.ne.s32.totalorder %s139, %s140
      %p152 = scmp.eq.s32.totalorder %s21, 1
      %p153 = por %p151, %p152
      %p155 = scmp.ne.s32.totalorder %s140, %s154
      %p156 = scmp.eq.s32.totalorder %s21, 0
      %p157 = por %p155, %p156
      %s159 = sadd.s32 %s158, 1
      %p162 = scmp.eq.s32.totalorder %s15, 1
      %p163 = scmp.ne.s32.totalorder %s158, %s160
      %p164 = scmp.eq.s32.totalorder %s15, 0
      %p165 = por %p163, %p164
      %p166 = scmp.ne.s32.totalorder %s158, %s160
      %p167 = scmp.eq.s32.totalorder %s20, 1
      %p168 = por %p166, %p167
      %p169 = scmp.ne.s32.totalorder %s160, %s161
      %p170 = scmp.eq.s32.totalorder %s20, 0
      %p171 = por %p169, %p170
      %p172 = scmp.ne.s32.totalorder %s160, %s161
      %p173 = scmp.eq.s32.totalorder %s21, 1
      %p174 = por %p172, %p173
      %p176 = scmp.ne.s32.totalorder %s161, %s175
      %p177 = scmp.eq.s32.totalorder %s21, 0
      %p178 = por %p176, %p177
      %s179 = ssub.s32 %s22, %s34
      %s180 = ssub.s32 %s23, %s30
      %s181 = sor.u32 %s179, %s180
      %p182 = scmp.eq.s32.totalorder %s181, 0
      %s184 = sadd.s32 %s183, 1
      %s185 = scalar_select %p182, %s183, %s184
      %p188 = pneg %p182
      %p189 = scmp.eq.s32.totalorder %s15, 1
      %p190 = por %p188, %p189
      %p191 = scmp.ne.s32.totalorder %s183, %s186
      %p192 = scmp.eq.s32.totalorder %s15, 0
      %p193 = por %p191, %p192
      %p194 = scmp.ne.s32.totalorder %s183, %s186
      %p195 = scmp.eq.s32.totalorder %s20, 1
      %p196 = por %p194, %p195
      %p197 = scmp.ne.s32.totalorder %s186, %s187
      %p198 = scmp.eq.s32.totalorder %s20, 0
      %p199 = por %p197, %p198
      %p200 = scmp.ne.s32.totalorder %s186, %s187
      %p201 = scmp.eq.s32.totalorder %s21, 1
      %p202 = por %p200, %p201
      %p204 = scmp.ne.s32.totalorder %s187, %s203
      %p205 = scmp.eq.s32.totalorder %s21, 0
      %p206 = por %p204, %p205
      %p207 = scmp.le.s32.totalorder 1, %s15
      %p208 = scmp.lt.s32.totalorder %s15, 3
      %p209 = pnand %p207, %p208
      %p210 = pneg %p209
      // Predicated region
      $region9: #{tpu_custom_call.1} parent=5 // pred_check
        _
      $region10: #{tpu_custom_call.1} parent=5 // pred_check_branch
        %212 = sbr.rel (%p209) target = $region12
      $region11: #{tpu_custom_call.1} parent=5 // pred_region
        %s213 = ssub.s32 %s15, 1
        // Predicated region
        $region13: #{tpu_custom_call.1} parent=11 // pred_check
          %p214 = pneg %p108
        $region14: #{tpu_custom_call.1} parent=11 // pred_check_branch
          %216 = sbr.rel (%p214) target = $region16
        $region15: #{tpu_custom_call.1} parent=11 // pred_region
          _
        $region16: #{tpu_custom_call.1} parent=11 // pred_fallthru
          _
        // Predicated region
        $region17: #{tpu_custom_call.1} parent=11 // pred_check
          %p217 = pneg %p129
        $region18: #{tpu_custom_call.1} parent=11 // pred_check_branch
          %219 = sbr.rel (%p217) target = $region20
        $region19: #{tpu_custom_call.1} parent=11 // pred_region
          _
        $region20: #{tpu_custom_call.1} parent=11 // pred_fallthru
          _
        // Predicated region
        $region21: #{tpu_custom_call.1} parent=11 // pred_check
          %p220 = pneg %p150
        $region22: #{tpu_custom_call.1} parent=11 // pred_check_branch
          %222 = sbr.rel (%p220) target = $region24
        $region23: #{tpu_custom_call.1} parent=11 // pred_region
          _
        $region24: #{tpu_custom_call.1} parent=11 // pred_fallthru
          _
        // Predicated region
        $region25: #{tpu_custom_call.1} parent=11 // pred_check
          %p223 = pneg %p171
        $region26: #{tpu_custom_call.1} parent=11 // pred_check_branch
          %225 = sbr.rel (%p223) target = $region28
        $region27: #{tpu_custom_call.1} parent=11 // pred_region
          _
        $region28: #{tpu_custom_call.1} parent=11 // pred_fallthru
          _
      $region12: #{tpu_custom_call.1} parent=5 // pred_fallthru
        _
      %p226 = scmp.lt.s32.totalorder %s15, 2
      // Predicated region
      $region29: #{tpu_custom_call.1} parent=5 // pred_check
        %p227 = pneg %p226
      $region30: #{tpu_custom_call.1} parent=5 // pred_check_branch
        %229 = sbr.rel (%p227) target = $region32
      $region31: #{tpu_custom_call.1} parent=5 // pred_region
        // Predicated region
        $region33: #{tpu_custom_call.1} parent=31 // pred_check
          %p230 = pneg %p49
        $region34: #{tpu_custom_call.1} parent=31 // pred_check_branch
          %232 = sbr.rel (%p230) target = $region36
        $region35: #{tpu_custom_call.1} parent=31 // pred_region
          %s233 = smul.u32 36, %s23
          %s234 = ssub.s32 43, %s233
          %p235 = scmp.lt.s32.totalorder %s234, 36
          %s236 = scalar_select %p235, %s234, 36
          %s237 = smul.u32 64, %s236
          %p238 = scmp.lt.s32.totalorder %s22, 1
          %s239 = scalar_select %p238, %s22, 1
          %p240 = scmp.lt.s32.totalorder %s233, 42
          %s241 = scalar_select %p240, %s233, 42
          %s242 = smul.addr %s239, 43
          %s243 = sadd.s32 %s241, %s242
          %s244 = smul.addr %s243, 4
          %s245 = scalar_lea.vmem %s0, %s244
          %s246 = smul.u32 36, %s23
          %s247 = ssub.s32 43, %s246
          %p248 = scmp.lt.s32.totalorder %s247, 36
          %s249 = scalar_select %p248, %s247, 36
          %s250 = smul.u32 64, %s249
        $region36: #{tpu_custom_call.1} parent=31 // pred_fallthru
          _
        // Predicated region
        $region37: #{tpu_custom_call.1} parent=31 // pred_check
          %p251 = pneg %p81
        $region38: #{tpu_custom_call.1} parent=31 // pred_check_branch
          %253 = sbr.rel (%p251) target = $region40
        $region39: #{tpu_custom_call.1} parent=31 // pred_region
          %s254 = sadd.s32 %s23, 1
          %s255 = smul.u32 %s254, 6
          %s256 = smul.u32 6, %s255
          %s257 = ssub.s32 43, %s256
          %p258 = scmp.lt.s32.totalorder %s257, 6
          %s259 = scalar_select %p258, %s257, 6
          %s260 = smul.u32 64, %s259
          %p261 = scmp.lt.s32.totalorder %s22, 1
          %s262 = scalar_select %p261, %s22, 1
          %p263 = scmp.lt.s32.totalorder %s256, 42
          %s264 = scalar_select %p263, %s256, 42
          %s265 = smul.addr %s262, 43
          %s266 = sadd.s32 %s264, %s265
          %s267 = smul.addr %s266, 4
          %s268 = scalar_lea.vmem %s1, %s267
          %s269 = sadd.s32 %s23, 1
          %s270 = smul.u32 %s269, 6
          %s271 = smul.u32 6, %s270
          %s272 = ssub.s32 43, %s271
          %p273 = scmp.lt.s32.totalorder %s272, 6
          %s274 = scalar_select %p273, %s272, 6
          %s275 = smul.u32 64, %s274
        $region40: #{tpu_custom_call.1} parent=31 // pred_fallthru
          _
      $region32: #{tpu_custom_call.1} parent=5 // pred_fallthru
        _
      %p276 = scmp.le.s32.totalorder 1, %s15
      %p277 = scmp.lt.s32.totalorder %s15, 3
      %p278 = pnand %p276, %p277
      %p279 = pneg %p278
      // Predicated region
      $region41: #{tpu_custom_call.1} parent=5 // pred_check
        _
      $region42: #{tpu_custom_call.1} parent=5 // pred_check_branch
        %281 = sbr.rel (%p278) target = $region44
      $region43: #{tpu_custom_call.1} parent=5 // pred_region
        %s282 = ssub.s32 %s15, 1
        %s283 = smul.u32 36, %s25
        %s284 = ssub.s32 43, %s283
        %p285 = scmp.lt.s32.totalorder %s284, 36
        %s286 = scalar_select %p285, %s284, 36
        %s287 = smul.u32 64, %s286
        %p288 = scmp.lt.s32.totalorder %s24, 1
        %s289 = scalar_select %p288, %s24, 1
        %p290 = scmp.lt.s32.totalorder %s283, 42
        %s291 = scalar_select %p290, %s283, 42
        %s292 = smul.addr %s289, 43
        %s293 = sadd.s32 %s291, %s292
        %s294 = smul.addr %s293, 4
        %s295 = scalar_lea.vmem %s0, %s294
        %p296 = pneg %p55
        %p297 = pneg %p52
        %s298 = sadd.s32 %s25, 1
        %s299 = smul.u32 %s298, 6
        %s300 = smul.u32 6, %s299
        %s301 = ssub.s32 43, %s300
        %p302 = scmp.lt.s32.totalorder %s301, 6
        %s303 = scalar_select %p302, %s301, 6
        %s304 = smul.u32 64, %s303
        %p305 = scmp.lt.s32.totalorder %s24, 1
        %s306 = scalar_select %p305, %s24, 1
        %p307 = scmp.lt.s32.totalorder %s300, 42
        %s308 = scalar_select %p307, %s300, 42
        %s309 = smul.addr %s306, 43
        %s310 = sadd.s32 %s308, %s309
        %s311 = smul.addr %s310, 4
        %s312 = scalar_lea.vmem %s1, %s311
        %p313 = pneg %p87
        %p314 = pneg %p84
        %p315 = pneg %p108
        %p316 = pneg %p105
        %p317 = pneg %p129
        %p318 = pneg %p126
        %p319 = pneg %p150
        %p320 = pneg %p147
        %p321 = pneg %p171
        %p322 = pneg %p168
        %p323 = pneg %p199
        %p324 = pneg %p196
        %s325 = sand.u32 %s186, 1
        %s326 = scalar_lea.sflag [#allocation3], %s325
        %s327 = sand.u32 %s186, 1
        %s328 = smul.addr %s327, 288
        %s329 = scalar_lea.vmem [#allocation2], %s328
        %s330 = smul.u32 36, %s25
        %s331 = ssub.s32 43, %s330
        %p332 = scmp.lt.s32.totalorder %s331, 36
        %s333 = scalar_select %p332, %s331, 36
        %s334 = smul.u32 64, %s333
        %p335 = scmp.lt.s32.totalorder %s24, 1
        %s336 = scalar_select %p335, %s24, 1
        %p337 = scmp.lt.s32.totalorder %s330, 42
        %s338 = scalar_select %p337, %s330, 42
        %s339 = smul.addr %s336, 43
        %s340 = sadd.s32 %s338, %s339
        %s341 = smul.addr %s340, 4
        %s342 = scalar_lea.vmem %s0, %s341
        %s343 = smul.u32 36, %s25
        %s344 = ssub.s32 43, %s343
        %p345 = scmp.lt.s32.totalorder %s344, 36
        %s346 = scalar_select %p345, %s344, 36
        %s347 = smul.u32 64, %s346
        %s348 = sadd.s32 %s25, 1
        %s349 = smul.u32 %s348, 6
        %s350 = smul.u32 6, %s349
        %s351 = ssub.s32 43, %s350
        %p352 = scmp.lt.s32.totalorder %s351, 6
        %s353 = scalar_select %p352, %s351, 6
        %s354 = smul.u32 64, %s353
        %p355 = scmp.lt.s32.totalorder %s24, 1
        %s356 = scalar_select %p355, %s24, 1
        %p357 = scmp.lt.s32.totalorder %s350, 42
        %s358 = scalar_select %p357, %s350, 42
        %s359 = smul.addr %s356, 43
        %s360 = sadd.s32 %s358, %s359
        %s361 = smul.addr %s360, 4
        %s362 = scalar_lea.vmem %s1, %s361
        %s363 = sadd.s32 %s25, 1
        %s364 = smul.u32 %s363, 6
        %s365 = smul.u32 6, %s364
        %s366 = ssub.s32 43, %s365
        %p367 = scmp.lt.s32.totalorder %s366, 6
        %s368 = scalar_select %p367, %s366, 6
        %s369 = smul.u32 64, %s368
        %s370 = smul.u32 36, %s25
        %v372 = vld [vmem:[%s342] sm:$0xf]
        %v373 = vld [vmem:[%s342 + $0x4] sm:$0xf]
        %v374 = vld [vmem:[%s342 + $0x8] sm:$0xf]
        %v375 = vld [vmem:[%s342 + $0xc] sm:$0xf]
        %v376 = vld [vmem:[%s342 + $0x10] sm:$0xf]
        %v377 = vld [vmem:[%s342 + $0x14] sm:$0xf]
        %v378 = vld [vmem:[%s342 + $0x18] sm:$0xf]
        %v379 = vld [vmem:[%s342 + $0x1c] sm:$0xf]
        %v380 = vld [vmem:[%s342 + $0x20] sm:$0xf]
        %v381 = vld [vmem:[%s342 + $0x24] sm:$0xf]
        %v382 = vld [vmem:[%s342 + $0x28] sm:$0xf]
        %v383 = vld [vmem:[%s342 + $0x2c] sm:$0xf]
        %v384 = vld [vmem:[%s342 + $0x30] sm:$0xf]
        %v385 = vld [vmem:[%s342 + $0x34] sm:$0xf]
        %v386 = vld [vmem:[%s342 + $0x38] sm:$0xf]
        %v387 = vld [vmem:[%s342 + $0x3c] sm:$0xf]
        %v388 = vld [vmem:[%s342 + $0x40] sm:$0xf]
        %v389 = vld [vmem:[%s342 + $0x44] sm:$0xf]
        %v390 = vld [vmem:[%s342 + $0x48] sm:$0xf]
        %v391 = vld [vmem:[%s342 + $0x4c] sm:$0xf]
        %v392 = vld [vmem:[%s342 + $0x50] sm:$0xf]
        %v393 = vld [vmem:[%s342 + $0x54] sm:$0xf]
        %v394 = vld [vmem:[%s342 + $0x58] sm:$0xf]
        %v395 = vld [vmem:[%s342 + $0x5c] sm:$0xf]
        %v396 = vld [vmem:[%s342 + $0x60] sm:$0xf]
        %v397 = vld [vmem:[%s342 + $0x64] sm:$0xf]
        %v398 = vld [vmem:[%s342 + $0x68] sm:$0xf]
        %v399 = vld [vmem:[%s342 + $0x6c] sm:$0xf]
        %v400 = vld [vmem:[%s342 + $0x70] sm:$0xf]
        %v401 = vld [vmem:[%s342 + $0x74] sm:$0xf]
        %v402 = vld [vmem:[%s342 + $0x78] sm:$0xf]
        %v403 = vld [vmem:[%s342 + $0x7c] sm:$0xf]
        %v404 = vld [vmem:[%s342 + $0x80] sm:$0xf]
        %v405 = vld [vmem:[%s342 + $0x84] sm:$0xf]
        %v406 = vld [vmem:[%s342 + $0x88] sm:$0xf]
        %v407 = vld [vmem:[%s342 + $0x8c] sm:$0xf]
        %v408 = vld [vmem:[%s362] sm:$0xf]
        %v409 = vld [vmem:[%s362 + $0x4] sm:$0xf]
        %v410 = vld [vmem:[%s362 + $0x8] sm:$0xf]
        %v411 = vld [vmem:[%s362 + $0xc] sm:$0xf]
        %v412 = vld [vmem:[%s362 + $0x10] sm:$0xf]
        %v413 = vld [vmem:[%s362 + $0x14] sm:$0xf]
        %v450 = vunpack.c.l.b16 %v372
        %v451 = vunpack.c.l.b16 %v373
        %v452 = vunpack.c.l.b16 %v374
        %v453 = vunpack.c.l.b16 %v375
        %v454 = vunpack.c.l.b16 %v376
        %v455 = vunpack.c.l.b16 %v377
        %v456 = vunpack.c.l.b16 %v378
        %v457 = vunpack.c.l.b16 %v379
        %v458 = vunpack.c.l.b16 %v380
        %v459 = vunpack.c.l.b16 %v381
        %v460 = vunpack.c.l.b16 %v382
        %v461 = vunpack.c.l.b16 %v383
        %v462 = vunpack.c.l.b16 %v384
        %v463 = vunpack.c.l.b16 %v385
        %v464 = vunpack.c.l.b16 %v386
        %v465 = vunpack.c.l.b16 %v387
        %v466 = vunpack.c.l.b16 %v388
        %v467 = vunpack.c.l.b16 %v389
        %v468 = vunpack.c.l.b16 %v390
        %v469 = vunpack.c.l.b16 %v391
        %v470 = vunpack.c.l.b16 %v392
        %v471 = vunpack.c.l.b16 %v393
        %v472 = vunpack.c.l.b16 %v394
        %v473 = vunpack.c.l.b16 %v395
        %v474 = vunpack.c.l.b16 %v396
        %v475 = vunpack.c.l.b16 %v397
        %v476 = vunpack.c.l.b16 %v398
        %v477 = vunpack.c.l.b16 %v399
        %v478 = vunpack.c.l.b16 %v400
        %v479 = vunpack.c.l.b16 %v401
        %v480 = vunpack.c.l.b16 %v402
        %v481 = vunpack.c.l.b16 %v403
        %v482 = vunpack.c.l.b16 %v404
        %v483 = vunpack.c.l.b16 %v405
        %v484 = vunpack.c.l.b16 %v406
        %v485 = vunpack.c.l.b16 %v407
        %v486 = vpack.c.b16 %v451, %v450
        %v487 = vpack.c.b16 %v453, %v452
        %v488 = vpack.c.b16 %v455, %v454
        %v489 = vpack.c.b16 %v457, %v456
        %v490 = vpack.c.b16 %v459, %v458
        %v491 = vpack.c.b16 %v461, %v460
        %v492 = vpack.c.b16 %v463, %v462
        %v493 = vpack.c.b16 %v465, %v464
        %v494 = vpack.c.b16 %v467, %v466
        %v495 = vpack.c.b16 %v469, %v468
        %v496 = vpack.c.b16 %v471, %v470
        %v497 = vpack.c.b16 %v473, %v472
        %v498 = vpack.c.b16 %v475, %v474
        %v499 = vpack.c.b16 %v477, %v476
        %v500 = vpack.c.b16 %v479, %v478
        %v501 = vpack.c.b16 %v481, %v480
        %v502 = vpack.c.b16 %v483, %v482
        %v503 = vpack.c.b16 %v485, %v484
        %v510 = vunpack.c.l.b16 %v408
        %v511 = vunpack.c.l.b16 %v409
        %v512 = vunpack.c.l.b16 %v410
        %v513 = vunpack.c.l.b16 %v411
        %v514 = vunpack.c.l.b16 %v412
        %v515 = vunpack.c.l.b16 %v413
        %v516 = vpack.c.b16 %v511, %v510
        %v517 = vpack.c.b16 %v513, %v512
        %v518 = vpack.c.b16 %v515, %v514
        %vm519 = vsmask.f32 7424
        %v521 = vshrl.u32 %v486, 16
        %v523 = vshll.u32 %v486, 16
        %v525 = vrot.slane %v523, 1
        %v526 = vor.u32 %v521, %v525
        %v528 = vshll.u32 %v487, 16
        %v530 = vrot.slane %v528, 1
        %v531 = vsel %vm519, %v526, %v530
        %v532 = vshrl.u32 %v487, 16
        %v534 = vor.u32 %v532, %v530
        %v536 = vshll.u32 %v488, 16
        %v538 = vrot.slane %v536, 1
        %v539 = vsel %vm519, %v534, %v538
        %v540 = vshrl.u32 %v488, 16
        %v542 = vor.u32 %v540, %v538
        %v544 = vshll.u32 %v489, 16
        %v546 = vrot.slane %v544, 1
        %v547 = vsel %vm519, %v542, %v546
        %v548 = vshrl.u32 %v489, 16
        %v550 = vor.u32 %v548, %v546
        %v552 = vshll.u32 %v490, 16
        %v554 = vrot.slane %v552, 1
        %v555 = vsel %vm519, %v550, %v554
        %v556 = vshrl.u32 %v490, 16
        %v558 = vor.u32 %v556, %v554
        %v560 = vshll.u32 %v491, 16
        %v562 = vrot.slane %v560, 1
        %v563 = vsel %vm519, %v558, %v562
        %v564 = vshrl.u32 %v491, 16
        %v566 = vor.u32 %v564, %v562
        %v568 = vshll.u32 %v492, 16
        %v570 = vrot.slane %v568, 1
        %v571 = vsel %vm519, %v566, %v570
        %v572 = vshrl.u32 %v492, 16
        %v574 = vor.u32 %v572, %v570
        %v576 = vshll.u32 %v493, 16
        %v578 = vrot.slane %v576, 1
        %v579 = vsel %vm519, %v574, %v578
        %v580 = vshrl.u32 %v493, 16
        %v582 = vor.u32 %v580, %v578
        %v584 = vshll.u32 %v494, 16
        %v586 = vrot.slane %v584, 1
        %v587 = vsel %vm519, %v582, %v586
        %v588 = vshrl.u32 %v494, 16
        %v590 = vor.u32 %v588, %v586
        %v592 = vshll.u32 %v495, 16
        %v594 = vrot.slane %v592, 1
        %v595 = vsel %vm519, %v590, %v594
        %v596 = vshrl.u32 %v495, 16
        %v598 = vor.u32 %v596, %v594
        %v600 = vshll.u32 %v496, 16
        %v602 = vrot.slane %v600, 1
        %v603 = vsel %vm519, %v598, %v602
        %v604 = vshrl.u32 %v496, 16
        %v606 = vor.u32 %v604, %v602
        %v608 = vshll.u32 %v497, 16
        %v610 = vrot.slane %v608, 1
        %v611 = vsel %vm519, %v606, %v610
        %v612 = vshrl.u32 %v497, 16
        %v614 = vor.u32 %v612, %v610
        %v616 = vshll.u32 %v498, 16
        %v618 = vrot.slane %v616, 1
        %v619 = vsel %vm519, %v614, %v618
        %v620 = vshrl.u32 %v498, 16
        %v622 = vor.u32 %v620, %v618
        %v624 = vshll.u32 %v499, 16
        %v626 = vrot.slane %v624, 1
        %v627 = vsel %vm519, %v622, %v626
        %v628 = vshrl.u32 %v499, 16
        %v630 = vor.u32 %v628, %v626
        %v632 = vshll.u32 %v500, 16
        %v634 = vrot.slane %v632, 1
        %v635 = vsel %vm519, %v630, %v634
        %v636 = vshrl.u32 %v500, 16
        %v638 = vor.u32 %v636, %v634
        %v640 = vshll.u32 %v501, 16
        %v642 = vrot.slane %v640, 1
        %v643 = vsel %vm519, %v638, %v642
        %v644 = vshrl.u32 %v501, 16
        %v646 = vor.u32 %v644, %v642
        %v648 = vshll.u32 %v502, 16
        %v650 = vrot.slane %v648, 1
        %v651 = vsel %vm519, %v646, %v650
        %v652 = vshrl.u32 %v502, 16
        %v654 = vor.u32 %v652, %v650
        %v656 = vshll.u32 %v503, 16
        %v658 = vrot.slane %v656, 1
        %v659 = vsel %vm519, %v654, %v658
        %v660 = vshrl.u32 %v503, 16
        %v662 = vor.u32 %v660, %v658
        %v664 = vshll.u32 %v516, 16
        %v666 = vrot.slane %v664, 1
        %v667 = vsel %vm519, %v662, %v666
        %668 = vrot.lane.b32.xlu0 %v531, 32
        %v669 = vpop.permute.xlu0 %668
        %670 = vrot.lane.b32.xlu0 %v539, 32
        %v671 = vpop.permute.xlu0 %670
        %672 = vrot.lane.b32.xlu0 %v547, 32
        %v673 = vpop.permute.xlu0 %672
        %674 = vrot.lane.b32.xlu0 %v555, 32
        %v675 = vpop.permute.xlu0 %674
        %676 = vrot.lane.b32.xlu0 %v563, 32
        %v677 = vpop.permute.xlu0 %676
        %678 = vrot.lane.b32.xlu0 %v571, 32
        %v679 = vpop.permute.xlu0 %678
        %680 = vrot.lane.b32.xlu0 %v579, 32
        %v681 = vpop.permute.xlu0 %680
        %682 = vrot.lane.b32.xlu0 %v587, 32
        %v683 = vpop.permute.xlu0 %682
        %684 = vrot.lane.b32.xlu0 %v595, 32
        %v685 = vpop.permute.xlu0 %684
        %686 = vrot.lane.b32.xlu0 %v603, 32
        %v687 = vpop.permute.xlu0 %686
        %688 = vrot.lane.b32.xlu0 %v611, 32
        %v689 = vpop.permute.xlu0 %688
        %690 = vrot.lane.b32.xlu0 %v619, 32
        %v691 = vpop.permute.xlu0 %690
        %692 = vrot.lane.b32.xlu0 %v627, 32
        %v693 = vpop.permute.xlu0 %692
        %694 = vrot.lane.b32.xlu0 %v635, 32
        %v695 = vpop.permute.xlu0 %694
        %696 = vrot.lane.b32.xlu0 %v643, 32
        %v697 = vpop.permute.xlu0 %696
        %698 = vrot.lane.b32.xlu0 %v651, 32
        %v699 = vpop.permute.xlu0 %698
        %700 = vrot.lane.b32.xlu0 %v659, 32
        %v701 = vpop.permute.xlu0 %700
        %702 = vrot.lane.b32.xlu0 %v667, 32
        %v703 = vpop.permute.xlu0 %702
        %vm704 = vcmask 1046528
        %v705 = vrot.slane %v486, 1
        %v706 = vrot.slane %v487, 1
        %v707 = vsel %vm704, %v705, %v706
        %v708 = vrot.slane %v488, 1
        %v709 = vsel %vm704, %v706, %v708
        %v710 = vrot.slane %v489, 1
        %v711 = vsel %vm704, %v708, %v710
        %v712 = vrot.slane %v490, 1
        %v713 = vsel %vm704, %v710, %v712
        %v714 = vrot.slane %v491, 1
        %v715 = vsel %vm704, %v712, %v714
        %v716 = vrot.slane %v492, 1
        %v717 = vsel %vm704, %v714, %v716
        %v718 = vrot.slane %v493, 1
        %v719 = vsel %vm704, %v716, %v718
        %v720 = vrot.slane %v494, 1
        %v721 = vsel %vm704, %v718, %v720
        %v722 = vrot.slane %v495, 1
        %v723 = vsel %vm704, %v720, %v722
        %v724 = vrot.slane %v496, 1
        %v725 = vsel %vm704, %v722, %v724
        %v726 = vrot.slane %v497, 1
        %v727 = vsel %vm704, %v724, %v726
        %v728 = vrot.slane %v498, 1
        %v729 = vsel %vm704, %v726, %v728
        %v730 = vrot.slane %v499, 1
        %v731 = vsel %vm704, %v728, %v730
        %v732 = vrot.slane %v500, 1
        %v733 = vsel %vm704, %v730, %v732
        %v734 = vrot.slane %v501, 1
        %v735 = vsel %vm704, %v732, %v734
        %v736 = vrot.slane %v502, 1
        %v737 = vsel %vm704, %v734, %v736
        %v738 = vrot.slane %v503, 1
        %v739 = vsel %vm704, %v736, %v738
        %v740 = vrot.slane %v516, 1
        %v741 = vsel %vm704, %v738, %v740
        %742 = vrot.lane.b32.xlu0 %v707, 64
        %v743 = vpop.permute.xlu0 %742
        %744 = vrot.lane.b32.xlu0 %v709, 64
        %v745 = vpop.permute.xlu0 %744
        %746 = vrot.lane.b32.xlu0 %v711, 64
        %v747 = vpop.permute.xlu0 %746
        %748 = vrot.lane.b32.xlu0 %v713, 64
        %v749 = vpop.permute.xlu0 %748
        %750 = vrot.lane.b32.xlu0 %v715, 64
        %v751 = vpop.permute.xlu0 %750
        %752 = vrot.lane.b32.xlu0 %v717, 64
        %v753 = vpop.permute.xlu0 %752
        %754 = vrot.lane.b32.xlu0 %v719, 64
        %v755 = vpop.permute.xlu0 %754
        %756 = vrot.lane.b32.xlu0 %v721, 64
        %v757 = vpop.permute.xlu0 %756
        %758 = vrot.lane.b32.xlu0 %v723, 64
        %v759 = vpop.permute.xlu0 %758
        %760 = vrot.lane.b32.xlu0 %v725, 64
        %v761 = vpop.permute.xlu0 %760
        %762 = vrot.lane.b32.xlu0 %v727, 64
        %v763 = vpop.permute.xlu0 %762
        %764 = vrot.lane.b32.xlu0 %v729, 64
        %v765 = vpop.permute.xlu0 %764
        %766 = vrot.lane.b32.xlu0 %v731, 64
        %v767 = vpop.permute.xlu0 %766
        %768 = vrot.lane.b32.xlu0 %v733, 64
        %v769 = vpop.permute.xlu0 %768
        %770 = vrot.lane.b32.xlu0 %v735, 64
        %v771 = vpop.permute.xlu0 %770
        %772 = vrot.lane.b32.xlu0 %v737, 64
        %v773 = vpop.permute.xlu0 %772
        %774 = vrot.lane.b32.xlu0 %v739, 64
        %v775 = vpop.permute.xlu0 %774
        %776 = vrot.lane.b32.xlu0 %v741, 64
        %v777 = vpop.permute.xlu0 %776
        %v778 = vrot.slane %v517, 1
        %v779 = vsel %vm704, %v740, %v778
        %780 = vrot.lane.b32.xlu0 %v709, 96
        %v781 = vpop.permute.xlu0 %780
        %782 = vrot.lane.b32.xlu0 %v711, 96
        %v783 = vpop.permute.xlu0 %782
        %784 = vrot.lane.b32.xlu0 %v713, 96
        %v785 = vpop.permute.xlu0 %784
        %786 = vrot.lane.b32.xlu0 %v715, 96
        %v787 = vpop.permute.xlu0 %786
        %788 = vrot.lane.b32.xlu0 %v717, 96
        %v789 = vpop.permute.xlu0 %788
        %790 = vrot.lane.b32.xlu0 %v719, 96
        %v791 = vpop.permute.xlu0 %790
        %792 = vrot.lane.b32.xlu0 %v721, 96
        %v793 = vpop.permute.xlu0 %792
        %794 = vrot.lane.b32.xlu0 %v723, 96
        %v795 = vpop.permute.xlu0 %794
        %796 = vrot.lane.b32.xlu0 %v725, 96
        %v797 = vpop.permute.xlu0 %796
        %798 = vrot.lane.b32.xlu0 %v727, 96
        %v799 = vpop.permute.xlu0 %798
        %800 = vrot.lane.b32.xlu0 %v729, 96
        %v801 = vpop.permute.xlu0 %800
        %802 = vrot.lane.b32.xlu0 %v731, 96
        %v803 = vpop.permute.xlu0 %802
        %804 = vrot.lane.b32.xlu0 %v733, 96
        %v805 = vpop.permute.xlu0 %804
        %806 = vrot.lane.b32.xlu0 %v735, 96
        %v807 = vpop.permute.xlu0 %806
        %808 = vrot.lane.b32.xlu0 %v737, 96
        %v809 = vpop.permute.xlu0 %808
        %810 = vrot.lane.b32.xlu0 %v739, 96
        %v811 = vpop.permute.xlu0 %810
        %812 = vrot.lane.b32.xlu0 %v741, 96
        %v813 = vpop.permute.xlu0 %812
        %814 = vrot.lane.b32.xlu0 %v779, 96
        %v815 = vpop.permute.xlu0 %814
        %vm816 = vsmask.f32 6400
        %v817 = vrot.slane %v532, 1
        %v818 = vrot.slane %v528, 2
        %v819 = vor.u32 %v817, %v818
        %v820 = vrot.slane %v540, 1
        %v821 = vrot.slane %v536, 2
        %v822 = vor.u32 %v820, %v821
        %v823 = vsel %vm816, %v819, %v822
        %v824 = vrot.slane %v548, 1
        %v825 = vrot.slane %v544, 2
        %v826 = vor.u32 %v824, %v825
        %v827 = vsel %vm816, %v822, %v826
        %v828 = vrot.slane %v556, 1
        %v829 = vrot.slane %v552, 2
        %v830 = vor.u32 %v828, %v829
        %v831 = vsel %vm816, %v826, %v830
        %v832 = vrot.slane %v564, 1
        %v833 = vrot.slane %v560, 2
        %v834 = vor.u32 %v832, %v833
        %v835 = vsel %vm816, %v830, %v834
        %v836 = vrot.slane %v572, 1
        %v837 = vrot.slane %v568, 2
        %v838 = vor.u32 %v836, %v837
        %v839 = vsel %vm816, %v834, %v838
        %v840 = vrot.slane %v580, 1
        %v841 = vrot.slane %v576, 2
        %v842 = vor.u32 %v840, %v841
        %v843 = vsel %vm816, %v838, %v842
        %v844 = vrot.slane %v588, 1
        %v845 = vrot.slane %v584, 2
        %v846 = vor.u32 %v844, %v845
        %v847 = vsel %vm816, %v842, %v846
        %v848 = vrot.slane %v596, 1
        %v849 = vrot.slane %v592, 2
        %v850 = vor.u32 %v848, %v849
        %v851 = vsel %vm816, %v846, %v850
        %v852 = vrot.slane %v604, 1
        %v853 = vrot.slane %v600, 2
        %v854 = vor.u32 %v852, %v853
        %v855 = vsel %vm816, %v850, %v854
        %v856 = vrot.slane %v612, 1
        %v857 = vrot.slane %v608, 2
        %v858 = vor.u32 %v856, %v857
        %v859 = vsel %vm816, %v854, %v858
        %v860 = vrot.slane %v620, 1
        %v861 = vrot.slane %v616, 2
        %v862 = vor.u32 %v860, %v861
        %v863 = vsel %vm816, %v858, %v862
        %v864 = vrot.slane %v628, 1
        %v865 = vrot.slane %v624, 2
        %v866 = vor.u32 %v864, %v865
        %v867 = vsel %vm816, %v862, %v866
        %v868 = vrot.slane %v636, 1
        %v869 = vrot.slane %v632, 2
        %v870 = vor.u32 %v868, %v869
        %v871 = vsel %vm816, %v866, %v870
        %v872 = vrot.slane %v644, 1
        %v873 = vrot.slane %v640, 2
        %v874 = vor.u32 %v872, %v873
        %v875 = vsel %vm816, %v870, %v874
        %v876 = vrot.slane %v652, 1
        %v877 = vrot.slane %v648, 2
        %v878 = vor.u32 %v876, %v877
        %v879 = vsel %vm816, %v874, %v878
        %v880 = vrot.slane %v660, 1
        %v881 = vrot.slane %v656, 2
        %v882 = vor.u32 %v880, %v881
        %v883 = vsel %vm816, %v878, %v882
        %v884 = vshrl.u32 %v516, 16
        %v886 = vrot.slane %v884, 1
        %v887 = vrot.slane %v664, 2
        %v888 = vor.u32 %v886, %v887
        %v889 = vsel %vm816, %v882, %v888
        %v891 = vshrl.u32 %v517, 16
        %v893 = vrot.slane %v891, 1
        %v894 = vshll.u32 %v517, 16
        %v896 = vrot.slane %v894, 2
        %v897 = vor.u32 %v893, %v896
        %v898 = vsel %vm816, %v888, %v897
        %vm899 = vcmask 1045504
        %v900 = vrot.slane %v487, 2
        %v901 = vrot.slane %v488, 2
        %v902 = vsel %vm899, %v900, %v901
        %v903 = vrot.slane %v489, 2
        %v904 = vsel %vm899, %v901, %v903
        %v905 = vrot.slane %v490, 2
        %v906 = vsel %vm899, %v903, %v905
        %v907 = vrot.slane %v491, 2
        %v908 = vsel %vm899, %v905, %v907
        %v909 = vrot.slane %v492, 2
        %v910 = vsel %vm899, %v907, %v909
        %v911 = vrot.slane %v493, 2
        %v912 = vsel %vm899, %v909, %v911
        %v913 = vrot.slane %v494, 2
        %v914 = vsel %vm899, %v911, %v913
        %v915 = vrot.slane %v495, 2
        %v916 = vsel %vm899, %v913, %v915
        %v917 = vrot.slane %v496, 2
        %v918 = vsel %vm899, %v915, %v917
        %v919 = vrot.slane %v497, 2
        %v920 = vsel %vm899, %v917, %v919
        %v921 = vrot.slane %v498, 2
        %v922 = vsel %vm899, %v919, %v921
        %v923 = vrot.slane %v499, 2
        %v924 = vsel %vm899, %v921, %v923
        %v925 = vrot.slane %v500, 2
        %v926 = vsel %vm899, %v923, %v925
        %v927 = vrot.slane %v501, 2
        %v928 = vsel %vm899, %v925, %v927
        %v929 = vrot.slane %v502, 2
        %v930 = vsel %vm899, %v927, %v929
        %v931 = vrot.slane %v503, 2
        %v932 = vsel %vm899, %v929, %v931
        %v933 = vrot.slane %v516, 2
        %v934 = vsel %vm899, %v931, %v933
        %v935 = vrot.slane %v517, 2
        %v936 = vsel %vm899, %v933, %v935
        %937 = vrot.lane.b32.xlu0 %v902, 32
        %v938 = vpop.permute.xlu0 %937
        %939 = vrot.lane.b32.xlu0 %v904, 32
        %v940 = vpop.permute.xlu0 %939
        %941 = vrot.lane.b32.xlu0 %v906, 32
        %v942 = vpop.permute.xlu0 %941
        %943 = vrot.lane.b32.xlu0 %v908, 32
        %v944 = vpop.permute.xlu0 %943
        %945 = vrot.lane.b32.xlu0 %v910, 32
        %v946 = vpop.permute.xlu0 %945
        %947 = vrot.lane.b32.xlu0 %v912, 32
        %v948 = vpop.permute.xlu0 %947
        %949 = vrot.lane.b32.xlu0 %v914, 32
        %v950 = vpop.permute.xlu0 %949
        %951 = vrot.lane.b32.xlu0 %v916, 32
        %v952 = vpop.permute.xlu0 %951
        %953 = vrot.lane.b32.xlu0 %v918, 32
        %v954 = vpop.permute.xlu0 %953
        %955 = vrot.lane.b32.xlu0 %v920, 32
        %v956 = vpop.permute.xlu0 %955
        %957 = vrot.lane.b32.xlu0 %v922, 32
        %v958 = vpop.permute.xlu0 %957
        %959 = vrot.lane.b32.xlu0 %v924, 32
        %v960 = vpop.permute.xlu0 %959
        %961 = vrot.lane.b32.xlu0 %v926, 32
        %v962 = vpop.permute.xlu0 %961
        %963 = vrot.lane.b32.xlu0 %v928, 32
        %v964 = vpop.permute.xlu0 %963
        %965 = vrot.lane.b32.xlu0 %v930, 32
        %v966 = vpop.permute.xlu0 %965
        %967 = vrot.lane.b32.xlu0 %v932, 32
        %v968 = vpop.permute.xlu0 %967
        %969 = vrot.lane.b32.xlu0 %v934, 32
        %v970 = vpop.permute.xlu0 %969
        %971 = vrot.lane.b32.xlu0 %v936, 32
        %v972 = vpop.permute.xlu0 %971
        %v973 = vrot.slane %v518, 2
        %v974 = vsel %vm899, %v935, %v973
        %975 = vrot.lane.b32.xlu0 %v904, 64
        %v976 = vpop.permute.xlu0 %975
        %977 = vrot.lane.b32.xlu0 %v906, 64
        %v978 = vpop.permute.xlu0 %977
        %979 = vrot.lane.b32.xlu0 %v908, 64
        %v980 = vpop.permute.xlu0 %979
        %981 = vrot.lane.b32.xlu0 %v910, 64
        %v982 = vpop.permute.xlu0 %981
        %983 = vrot.lane.b32.xlu0 %v912, 64
        %v984 = vpop.permute.xlu0 %983
        %985 = vrot.lane.b32.xlu0 %v914, 64
        %v986 = vpop.permute.xlu0 %985
        %987 = vrot.lane.b32.xlu0 %v916, 64
        %v988 = vpop.permute.xlu0 %987
        %989 = vrot.lane.b32.xlu0 %v918, 64
        %v990 = vpop.permute.xlu0 %989
        %991 = vrot.lane.b32.xlu0 %v920, 64
        %v992 = vpop.permute.xlu0 %991
        %993 = vrot.lane.b32.xlu0 %v922, 64
        %v994 = vpop.permute.xlu0 %993
        %995 = vrot.lane.b32.xlu0 %v924, 64
        %v996 = vpop.permute.xlu0 %995
        %997 = vrot.lane.b32.xlu0 %v926, 64
        %v998 = vpop.permute.xlu0 %997
        %999 = vrot.lane.b32.xlu0 %v928, 64
        %v1000 = vpop.permute.xlu0 %999
        %1001 = vrot.lane.b32.xlu0 %v930, 64
        %v1002 = vpop.permute.xlu0 %1001
        %1003 = vrot.lane.b32.xlu0 %v932, 64
        %v1004 = vpop.permute.xlu0 %1003
        %1005 = vrot.lane.b32.xlu0 %v934, 64
        %v1006 = vpop.permute.xlu0 %1005
        %1007 = vrot.lane.b32.xlu0 %v936, 64
        %v1008 = vpop.permute.xlu0 %1007
        %1009 = vrot.lane.b32.xlu0 %v974, 64
        %v1010 = vpop.permute.xlu0 %1009
        %vm1011 = vsmask.f32 5376
        %v1012 = vrot.slane %v540, 2
        %v1013 = vrot.slane %v536, 3
        %v1014 = vor.u32 %v1012, %v1013
        %v1015 = vrot.slane %v548, 2
        %v1016 = vrot.slane %v544, 3
        %v1017 = vor.u32 %v1015, %v1016
        %v1018 = vsel %vm1011, %v1014, %v1017
        %v1019 = vrot.slane %v556, 2
        %v1020 = vrot.slane %v552, 3
        %v1021 = vor.u32 %v1019, %v1020
        %v1022 = vsel %vm1011, %v1017, %v1021
        %v1023 = vrot.slane %v564, 2
        %v1024 = vrot.slane %v560, 3
        %v1025 = vor.u32 %v1023, %v1024
        %v1026 = vsel %vm1011, %v1021, %v1025
        %v1027 = vrot.slane %v572, 2
        %v1028 = vrot.slane %v568, 3
        %v1029 = vor.u32 %v1027, %v1028
        %v1030 = vsel %vm1011, %v1025, %v1029
        %v1031 = vrot.slane %v580, 2
        %v1032 = vrot.slane %v576, 3
        %v1033 = vor.u32 %v1031, %v1032
        %v1034 = vsel %vm1011, %v1029, %v1033
        %v1035 = vrot.slane %v588, 2
        %v1036 = vrot.slane %v584, 3
        %v1037 = vor.u32 %v1035, %v1036
        %v1038 = vsel %vm1011, %v1033, %v1037
        %v1039 = vrot.slane %v596, 2
        %v1040 = vrot.slane %v592, 3
        %v1041 = vor.u32 %v1039, %v1040
        %v1042 = vsel %vm1011, %v1037, %v1041
        %v1043 = vrot.slane %v604, 2
        %v1044 = vrot.slane %v600, 3
        %v1045 = vor.u32 %v1043, %v1044
        %v1046 = vsel %vm1011, %v1041, %v1045
        %v1047 = vrot.slane %v612, 2
        %v1048 = vrot.slane %v608, 3
        %v1049 = vor.u32 %v1047, %v1048
        %v1050 = vsel %vm1011, %v1045, %v1049
        %v1051 = vrot.slane %v620, 2
        %v1052 = vrot.slane %v616, 3
        %v1053 = vor.u32 %v1051, %v1052
        %v1054 = vsel %vm1011, %v1049, %v1053
        %v1055 = vrot.slane %v628, 2
        %v1056 = vrot.slane %v624, 3
        %v1057 = vor.u32 %v1055, %v1056
        %v1058 = vsel %vm1011, %v1053, %v1057
        %v1059 = vrot.slane %v636, 2
        %v1060 = vrot.slane %v632, 3
        %v1061 = vor.u32 %v1059, %v1060
        %v1062 = vsel %vm1011, %v1057, %v1061
        %v1063 = vrot.slane %v644, 2
        %v1064 = vrot.slane %v640, 3
        %v1065 = vor.u32 %v1063, %v1064
        %v1066 = vsel %vm1011, %v1061, %v1065
        %v1067 = vrot.slane %v652, 2
        %v1068 = vrot.slane %v648, 3
        %v1069 = vor.u32 %v1067, %v1068
        %v1070 = vsel %vm1011, %v1065, %v1069
        %v1071 = vrot.slane %v660, 2
        %v1072 = vrot.slane %v656, 3
        %v1073 = vor.u32 %v1071, %v1072
        %v1074 = vsel %vm1011, %v1069, %v1073
        %v1075 = vrot.slane %v884, 2
        %v1076 = vrot.slane %v664, 3
        %v1077 = vor.u32 %v1075, %v1076
        %v1078 = vsel %vm1011, %v1073, %v1077
        %v1079 = vrot.slane %v891, 2
        %v1080 = vrot.slane %v894, 3
        %v1081 = vor.u32 %v1079, %v1080
        %v1082 = vsel %vm1011, %v1077, %v1081
        %v1084 = vshrl.u32 %v518, 16
        %v1086 = vrot.slane %v1084, 2
        %v1087 = vshll.u32 %v518, 16
        %v1089 = vrot.slane %v1087, 3
        %v1090 = vor.u32 %v1086, %v1089
        %v1091 = vsel %vm1011, %v1081, %v1090
        %1092 = vrot.lane.b32.xlu0 %v1018, 96
        %v1093 = vpop.permute.xlu0 %1092
        %1094 = vrot.lane.b32.xlu0 %v1022, 96
        %v1095 = vpop.permute.xlu0 %1094
        %1096 = vrot.lane.b32.xlu0 %v1026, 96
        %v1097 = vpop.permute.xlu0 %1096
        %1098 = vrot.lane.b32.xlu0 %v1030, 96
        %v1099 = vpop.permute.xlu0 %1098
        %1100 = vrot.lane.b32.xlu0 %v1034, 96
        %v1101 = vpop.permute.xlu0 %1100
        %1102 = vrot.lane.b32.xlu0 %v1038, 96
        %v1103 = vpop.permute.xlu0 %1102
        %1104 = vrot.lane.b32.xlu0 %v1042, 96
        %v1105 = vpop.permute.xlu0 %1104
        %1106 = vrot.lane.b32.xlu0 %v1046, 96
        %v1107 = vpop.permute.xlu0 %1106
        %1108 = vrot.lane.b32.xlu0 %v1050, 96
        %v1109 = vpop.permute.xlu0 %1108
        %1110 = vrot.lane.b32.xlu0 %v1054, 96
        %v1111 = vpop.permute.xlu0 %1110
        %1112 = vrot.lane.b32.xlu0 %v1058, 96
        %v1113 = vpop.permute.xlu0 %1112
        %1114 = vrot.lane.b32.xlu0 %v1062, 96
        %v1115 = vpop.permute.xlu0 %1114
        %1116 = vrot.lane.b32.xlu0 %v1066, 96
        %v1117 = vpop.permute.xlu0 %1116
        %1118 = vrot.lane.b32.xlu0 %v1070, 96
        %v1119 = vpop.permute.xlu0 %1118
        %1120 = vrot.lane.b32.xlu0 %v1074, 96
        %v1121 = vpop.permute.xlu0 %1120
        %1122 = vrot.lane.b32.xlu0 %v1078, 96
        %v1123 = vpop.permute.xlu0 %1122
        %1124 = vrot.lane.b32.xlu0 %v1082, 96
        %v1125 = vpop.permute.xlu0 %1124
        %1126 = vrot.lane.b32.xlu0 %v1091, 96
        %v1127 = vpop.permute.xlu0 %1126
        %vm1128 = vcmask 1044480
        %v1129 = vrot.slane %v488, 3
        %v1130 = vrot.slane %v489, 3
        %v1131 = vsel %vm1128, %v1129, %v1130
        %v1132 = vrot.slane %v490, 3
        %v1133 = vsel %vm1128, %v1130, %v1132
        %v1134 = vrot.slane %v491, 3
        %v1135 = vsel %vm1128, %v1132, %v1134
        %v1136 = vrot.slane %v492, 3
        %v1137 = vsel %vm1128, %v1134, %v1136
        %v1138 = vrot.slane %v493, 3
        %v1139 = vsel %vm1128, %v1136, %v1138
        %v1140 = vrot.slane %v494, 3
        %v1141 = vsel %vm1128, %v1138, %v1140
        %v1142 = vrot.slane %v495, 3
        %v1143 = vsel %vm1128, %v1140, %v1142
        %v1144 = vrot.slane %v496, 3
        %v1145 = vsel %vm1128, %v1142, %v1144
        %v1146 = vrot.slane %v497, 3
        %v1147 = vsel %vm1128, %v1144, %v1146
        %v1148 = vrot.slane %v498, 3
        %v1149 = vsel %vm1128, %v1146, %v1148
        %v1150 = vrot.slane %v499, 3
        %v1151 = vsel %vm1128, %v1148, %v1150
        %v1152 = vrot.slane %v500, 3
        %v1153 = vsel %vm1128, %v1150, %v1152
        %v1154 = vrot.slane %v501, 3
        %v1155 = vsel %vm1128, %v1152, %v1154
        %v1156 = vrot.slane %v502, 3
        %v1157 = vsel %vm1128, %v1154, %v1156
        %v1158 = vrot.slane %v503, 3
        %v1159 = vsel %vm1128, %v1156, %v1158
        %v1160 = vrot.slane %v516, 3
        %v1161 = vsel %vm1128, %v1158, %v1160
        %v1162 = vrot.slane %v517, 3
        %v1163 = vsel %vm1128, %v1160, %v1162
        %v1164 = vrot.slane %v518, 3
        %v1165 = vsel %vm1128, %v1162, %v1164
        %vm1166 = vcmask 261120
        %v1168 = vsel %vm1166, %v486, %v669
        %v1170 = vsel %vm1166, %v487, %v671
        %v1172 = vsel %vm1166, %v488, %v673
        %v1174 = vsel %vm1166, %v489, %v675
        %v1176 = vsel %vm1166, %v490, %v677
        %v1178 = vsel %vm1166, %v491, %v679
        %v1180 = vsel %vm1166, %v492, %v681
        %v1182 = vsel %vm1166, %v493, %v683
        %v1184 = vsel %vm1166, %v494, %v685
        %v1186 = vsel %vm1166, %v495, %v687
        %v1188 = vsel %vm1166, %v496, %v689
        %v1190 = vsel %vm1166, %v497, %v691
        %v1192 = vsel %vm1166, %v498, %v693
        %v1194 = vsel %vm1166, %v499, %v695
        %v1196 = vsel %vm1166, %v500, %v697
        %v1198 = vsel %vm1166, %v501, %v699
        %v1200 = vsel %vm1166, %v502, %v701
        %v1202 = vsel %vm1166, %v503, %v703
        %vm1203 = vcmask 523264
        %v1205 = vsel %vm1203, %v1168, %v743
        %v1207 = vsel %vm1203, %v1170, %v745
        %v1209 = vsel %vm1203, %v1172, %v747
        %v1211 = vsel %vm1203, %v1174, %v749
        %v1213 = vsel %vm1203, %v1176, %v751
        %v1215 = vsel %vm1203, %v1178, %v753
        %v1217 = vsel %vm1203, %v1180, %v755
        %v1219 = vsel %vm1203, %v1182, %v757
        %v1221 = vsel %vm1203, %v1184, %v759
        %v1223 = vsel %vm1203, %v1186, %v761
        %v1225 = vsel %vm1203, %v1188, %v763
        %v1227 = vsel %vm1203, %v1190, %v765
        %v1229 = vsel %vm1203, %v1192, %v767
        %v1231 = vsel %vm1203, %v1194, %v769
        %v1233 = vsel %vm1203, %v1196, %v771
        %v1235 = vsel %vm1203, %v1198, %v773
        %v1237 = vsel %vm1203, %v1200, %v775
        %v1239 = vsel %vm1203, %v1202, %v777
        %vm1240 = vcmask 785408
        %v1242 = vsel %vm1240, %v1205, %v781
        %v1245 = vsel %vm1240, %v1207, %v783
        %v1248 = vsel %vm1240, %v1209, %v785
        %v1251 = vsel %vm1240, %v1211, %v787
        %v1254 = vsel %vm1240, %v1213, %v789
        %v1257 = vsel %vm1240, %v1215, %v791
        %v1260 = vsel %vm1240, %v1217, %v793
        %v1263 = vsel %vm1240, %v1219, %v795
        %v1266 = vsel %vm1240, %v1221, %v797
        %v1269 = vsel %vm1240, %v1223, %v799
        %v1272 = vsel %vm1240, %v1225, %v801
        %v1275 = vsel %vm1240, %v1227, %v803
        %v1278 = vsel %vm1240, %v1229, %v805
        %v1281 = vsel %vm1240, %v1231, %v807
        %v1284 = vsel %vm1240, %v1233, %v809
        %v1287 = vsel %vm1240, %v1235, %v811
        %v1290 = vsel %vm1240, %v1237, %v813
        %v1293 = vsel %vm1240, %v1239, %v815
        %v1297 = vsel %vm1166, %v823, %v938
        %v1300 = vsel %vm1166, %v827, %v940
        %v1303 = vsel %vm1166, %v831, %v942
        %v1306 = vsel %vm1166, %v835, %v944
        %v1309 = vsel %vm1166, %v839, %v946
        %v1312 = vsel %vm1166, %v843, %v948
        %v1315 = vsel %vm1166, %v847, %v950
        %v1318 = vsel %vm1166, %v851, %v952
        %v1321 = vsel %vm1166, %v855, %v954
        %v1324 = vsel %vm1166, %v859, %v956
        %v1327 = vsel %vm1166, %v863, %v958
        %v1330 = vsel %vm1166, %v867, %v960
        %v1333 = vsel %vm1166, %v871, %v962
        %v1336 = vsel %vm1166, %v875, %v964
        %v1339 = vsel %vm1166, %v879, %v966
        %v1342 = vsel %vm1166, %v883, %v968
        %v1345 = vsel %vm1166, %v889, %v970
        %v1348 = vsel %vm1166, %v898, %v972
        %v1350 = vsel %vm1203, %v1297, %v976
        %v1352 = vsel %vm1203, %v1300, %v978
        %v1354 = vsel %vm1203, %v1303, %v980
        %v1356 = vsel %vm1203, %v1306, %v982
        %v1358 = vsel %vm1203, %v1309, %v984
        %v1360 = vsel %vm1203, %v1312, %v986
        %v1362 = vsel %vm1203, %v1315, %v988
        %v1364 = vsel %vm1203, %v1318, %v990
        %v1366 = vsel %vm1203, %v1321, %v992
        %v1368 = vsel %vm1203, %v1324, %v994
        %v1370 = vsel %vm1203, %v1327, %v996
        %v1372 = vsel %vm1203, %v1330, %v998
        %v1374 = vsel %vm1203, %v1333, %v1000
        %v1376 = vsel %vm1203, %v1336, %v1002
        %v1378 = vsel %vm1203, %v1339, %v1004
        %v1380 = vsel %vm1203, %v1342, %v1006
        %v1382 = vsel %vm1203, %v1345, %v1008
        %v1384 = vsel %vm1203, %v1348, %v1010
        %v1386 = vsel %vm1240, %v1350, %v1093
        %v1389 = vsel %vm1240, %v1352, %v1095
        %v1392 = vsel %vm1240, %v1354, %v1097
        %v1395 = vsel %vm1240, %v1356, %v1099
        %v1398 = vsel %vm1240, %v1358, %v1101
        %v1401 = vsel %vm1240, %v1360, %v1103
        %v1404 = vsel %vm1240, %v1362, %v1105
        %v1407 = vsel %vm1240, %v1364, %v1107
        %v1410 = vsel %vm1240, %v1366, %v1109
        %v1413 = vsel %vm1240, %v1368, %v1111
        %v1416 = vsel %vm1240, %v1370, %v1113
        %v1419 = vsel %vm1240, %v1372, %v1115
        %v1422 = vsel %vm1240, %v1374, %v1117
        %v1425 = vsel %vm1240, %v1376, %v1119
        %v1428 = vsel %vm1240, %v1378, %v1121
        %v1431 = vsel %vm1240, %v1380, %v1123
        %v1434 = vsel %vm1240, %v1382, %v1125
        %v1437 = vsel %vm1240, %v1384, %v1127
        %v1439 = vld [vmem:[%s2] sm:$0xff]
        %v1440 = vld [vmem:[%s2 + $0x8] sm:$0xff]
        %v1441 = vld [vmem:[%s2 + $0x10] sm:$0xff]
        %v1442 = vld [vmem:[%s2 + $0x18] sm:$0xff]
        %v1443 = vld [vmem:[%s2 + $0x20] sm:$0xff]
        %v1444 = vld [vmem:[%s2 + $0x28] sm:$0xff]
        %v1445 = vld [vmem:[%s2 + $0x30] sm:$0xff]
        %v1446 = vld [vmem:[%s2 + $0x38] sm:$0xff]
        %v1447 = vld [vmem:[%s2 + $0x40] sm:$0xff]
        %v1448 = vld [vmem:[%s2 + $0x48] sm:$0xff]
        %v1449 = vld [vmem:[%s2 + $0x50] sm:$0xff]
        %v1450 = vld [vmem:[%s2 + $0x58] sm:$0xff]
        %v1451 = vld [vmem:[%s2 + $0x60] sm:$0xff]
        %v1452 = vld [vmem:[%s2 + $0x68] sm:$0xff]
        %v1453 = vld [vmem:[%s2 + $0x70] sm:$0xff]
        %v1454 = vld [vmem:[%s2 + $0x78] sm:$0xff]
        %v1455 = vld [vmem:[%s2 + $0x80] sm:$0xff]
        %v1456 = vld [vmem:[%s2 + $0x88] sm:$0xff]
        %v1457 = vld [vmem:[%s2 + $0x90] sm:$0xff]
        %v1458 = vld [vmem:[%s2 + $0x98] sm:$0xff]
        %v1459 = vld [vmem:[%s2 + $0xa0] sm:$0xff]
        %v1460 = vld [vmem:[%s2 + $0xa8] sm:$0xff]
        %v1461 = vld [vmem:[%s2 + $0xb0] sm:$0xff]
        %v1462 = vld [vmem:[%s2 + $0xb8] sm:$0xff]
        %v1463 = vld [vmem:[%s2 + $0xc0] sm:$0xff]
        %v1464 = vld [vmem:[%s2 + $0xc8] sm:$0xff]
        %v1465 = vld [vmem:[%s2 + $0xd0] sm:$0xff]
        %v1466 = vld [vmem:[%s2 + $0xd8] sm:$0xff]
        %v1467 = vld [vmem:[%s2 + $0xe0] sm:$0xff]
        %v1468 = vld [vmem:[%s2 + $0xe8] sm:$0xff]
        %v1469 = vld [vmem:[%s2 + $0xf0] sm:$0xff]
        %v1470 = vld [vmem:[%s2 + $0xf8] sm:$0xff]
        %v1471 = vld [vmem:[%s2 + $0x100] sm:$0xff]
        %v1472 = vld [vmem:[%s2 + $0x108] sm:$0xff]
        %v1473 = vld [vmem:[%s2 + $0x110] sm:$0xff]
        %v1474 = vld [vmem:[%s2 + $0x118] sm:$0xff]
        %v1475 = vld [vmem:[%s2 + $0x120] sm:$0xff]
        %v1476 = vld [vmem:[%s2 + $0x128] sm:$0xff]
        %v1477 = vld [vmem:[%s2 + $0x130] sm:$0xff]
        %v1478 = vld [vmem:[%s2 + $0x138] sm:$0xff]
        %v1479 = vld [vmem:[%s2 + $0x140] sm:$0xff]
        %v1480 = vld [vmem:[%s2 + $0x148] sm:$0xff]
        %v1481 = vld [vmem:[%s2 + $0x150] sm:$0xff]
        %v1482 = vld [vmem:[%s2 + $0x158] sm:$0xff]
        %v1483 = vld [vmem:[%s2 + $0x160] sm:$0xff]
        %v1484 = vld [vmem:[%s2 + $0x168] sm:$0xff]
        %v1485 = vld [vmem:[%s2 + $0x170] sm:$0xff]
        %v1486 = vld [vmem:[%s2 + $0x178] sm:$0xff]
        %v1487 = vld [vmem:[%s2 + $0x180] sm:$0xff]
        %v1488 = vld [vmem:[%s2 + $0x188] sm:$0xff]
        %v1489 = vld [vmem:[%s2 + $0x190] sm:$0xff]
        %v1490 = vld [vmem:[%s2 + $0x198] sm:$0xff]
        %v1491 = vld [vmem:[%s2 + $0x1a0] sm:$0xff]
        %v1492 = vld [vmem:[%s2 + $0x1a8] sm:$0xff]
        %v1493 = vld [vmem:[%s2 + $0x1b0] sm:$0xff]
        %v1494 = vld [vmem:[%s2 + $0x1b8] sm:$0xff]
        %v1495 = vld [vmem:[%s2 + $0x1c0] sm:$0xff]
        %v1496 = vld [vmem:[%s2 + $0x1c8] sm:$0xff]
        %v1497 = vld [vmem:[%s2 + $0x1d0] sm:$0xff]
        %v1498 = vld [vmem:[%s2 + $0x1d8] sm:$0xff]
        %v1499 = vld [vmem:[%s2 + $0x1e0] sm:$0xff]
        %v1500 = vld [vmem:[%s2 + $0x1e8] sm:$0xff]
        %v1501 = vld [vmem:[%s2 + $0x1f0] sm:$0xff]
        %v1502 = vld [vmem:[%s2 + $0x1f8] sm:$0xff]
        %v1503 = vld [vmem:[%s2 + $0x200] sm:$0xff]
        %v1504 = vld [vmem:[%s2 + $0x208] sm:$0xff]
        %v1505 = vld [vmem:[%s2 + $0x210] sm:$0xff]
        %v1506 = vld [vmem:[%s2 + $0x218] sm:$0xff]
        %v1507 = vld [vmem:[%s2 + $0x220] sm:$0xff]
        %v1508 = vld [vmem:[%s2 + $0x228] sm:$0xff]
        %v1509 = vld [vmem:[%s2 + $0x230] sm:$0xff]
        %v1510 = vld [vmem:[%s2 + $0x238] sm:$0xff]
        %v1511 = vld [vmem:[%s3] sm:$0xf]
        %v1513 = vlaneseq
        %v1514 = vshrl.u32 %v1513, 7
        %v1515 = vsub.s32 0, %v1514
        %v1516 = vrot.slane %v1511, %v1515
        %v1517 = vlaneseq
        %v1518 = vshrl.u32 %v1517, 7
        %v1519 = vsub.s32 1, %v1518
        %v1520 = vrot.slane %v1511, %v1519
        %v1521 = vlaneseq
        %v1522 = vshrl.u32 %v1521, 7
        %v1523 = vsub.s32 2, %v1522
        %v1524 = vrot.slane %v1511, %v1523
        %v1525 = vlaneseq
        %v1526 = vshrl.u32 %v1525, 7
        %v1527 = vsub.s32 3, %v1526
        %v1528 = vrot.slane %v1511, %v1527
        %v1605 = vunpack.c.l.b16 %v1439
        %v1606 = vunpack.c.h.b16 %v1439
        %v1607 = vunpack.c.l.b16 %v1440
        %v1608 = vunpack.c.h.b16 %v1440
        %v1609 = vunpack.c.l.b16 %v1441
        %v1610 = vunpack.c.h.b16 %v1441
        %v1611 = vunpack.c.l.b16 %v1442
        %v1612 = vunpack.c.h.b16 %v1442
        %v1613 = vunpack.c.l.b16 %v1443
        %v1614 = vunpack.c.h.b16 %v1443
        %v1615 = vunpack.c.l.b16 %v1444
        %v1616 = vunpack.c.h.b16 %v1444
        %v1617 = vunpack.c.l.b16 %v1445
        %v1618 = vunpack.c.h.b16 %v1445
        %v1619 = vunpack.c.l.b16 %v1446
        %v1620 = vunpack.c.h.b16 %v1446
        %v1621 = vunpack.c.l.b16 %v1447
        %v1622 = vunpack.c.h.b16 %v1447
        %v1623 = vunpack.c.l.b16 %v1448
        %v1624 = vunpack.c.h.b16 %v1448
        %v1625 = vunpack.c.l.b16 %v1449
        %v1626 = vunpack.c.h.b16 %v1449
        %v1627 = vunpack.c.l.b16 %v1450
        %v1628 = vunpack.c.h.b16 %v1450
        %v1629 = vunpack.c.l.b16 %v1451
        %v1630 = vunpack.c.h.b16 %v1451
        %v1631 = vunpack.c.l.b16 %v1452
        %v1632 = vunpack.c.h.b16 %v1452
        %v1633 = vunpack.c.l.b16 %v1453
        %v1634 = vunpack.c.h.b16 %v1453
        %v1635 = vunpack.c.l.b16 %v1454
        %v1636 = vunpack.c.h.b16 %v1454
        %v1637 = vunpack.c.l.b16 %v1455
        %v1638 = vunpack.c.h.b16 %v1455
        %v1639 = vunpack.c.l.b16 %v1456
        %v1640 = vunpack.c.h.b16 %v1456
        %v1641 = vunpack.c.l.b16 %v1457
        %v1642 = vunpack.c.h.b16 %v1457
        %v1643 = vunpack.c.l.b16 %v1458
        %v1644 = vunpack.c.h.b16 %v1458
        %v1645 = vunpack.c.l.b16 %v1459
        %v1646 = vunpack.c.h.b16 %v1459
        %v1647 = vunpack.c.l.b16 %v1460
        %v1648 = vunpack.c.h.b16 %v1460
        %v1649 = vunpack.c.l.b16 %v1461
        %v1650 = vunpack.c.h.b16 %v1461
        %v1651 = vunpack.c.l.b16 %v1462
        %v1652 = vunpack.c.h.b16 %v1462
        %v1653 = vunpack.c.l.b16 %v1463
        %v1654 = vunpack.c.h.b16 %v1463
        %v1655 = vunpack.c.l.b16 %v1464
        %v1656 = vunpack.c.h.b16 %v1464
        %v1657 = vunpack.c.l.b16 %v1465
        %v1658 = vunpack.c.h.b16 %v1465
        %v1659 = vunpack.c.l.b16 %v1466
        %v1660 = vunpack.c.h.b16 %v1466
        %v1661 = vunpack.c.l.b16 %v1467
        %v1662 = vunpack.c.h.b16 %v1467
        %v1663 = vunpack.c.l.b16 %v1468
        %v1664 = vunpack.c.h.b16 %v1468
        %v1665 = vunpack.c.l.b16 %v1469
        %v1666 = vunpack.c.h.b16 %v1469
        %v1667 = vunpack.c.l.b16 %v1470
        %v1668 = vunpack.c.h.b16 %v1470
        %v1669 = vunpack.c.l.b16 %v1471
        %v1670 = vunpack.c.h.b16 %v1471
        %v1671 = vunpack.c.l.b16 %v1472
        %v1672 = vunpack.c.h.b16 %v1472
        %v1673 = vunpack.c.l.b16 %v1473
        %v1674 = vunpack.c.h.b16 %v1473
        %v1675 = vunpack.c.l.b16 %v1474
        %v1676 = vunpack.c.h.b16 %v1474
        %v1677 = vunpack.c.l.b16 %v1475
        %v1678 = vunpack.c.h.b16 %v1475
        %v1679 = vunpack.c.l.b16 %v1476
        %v1680 = vunpack.c.h.b16 %v1476
        %v1681 = vunpack.c.l.b16 %v1477
        %v1682 = vunpack.c.h.b16 %v1477
        %v1683 = vunpack.c.l.b16 %v1478
        %v1684 = vunpack.c.h.b16 %v1478
        %v1685 = vunpack.c.l.b16 %v1479
        %v1686 = vunpack.c.h.b16 %v1479
        %v1687 = vunpack.c.l.b16 %v1480
        %v1688 = vunpack.c.h.b16 %v1480
        %v1689 = vunpack.c.l.b16 %v1481
        %v1690 = vunpack.c.h.b16 %v1481
        %v1691 = vunpack.c.l.b16 %v1482
        %v1692 = vunpack.c.h.b16 %v1482
        %v1693 = vunpack.c.l.b16 %v1483
        %v1694 = vunpack.c.h.b16 %v1483
        %v1695 = vunpack.c.l.b16 %v1484
        %v1696 = vunpack.c.h.b16 %v1484
        %v1697 = vunpack.c.l.b16 %v1485
        %v1698 = vunpack.c.h.b16 %v1485
        %v1699 = vunpack.c.l.b16 %v1486
        %v1700 = vunpack.c.h.b16 %v1486
        %v1701 = vunpack.c.l.b16 %v1487
        %v1702 = vunpack.c.h.b16 %v1487
        %v1703 = vunpack.c.l.b16 %v1488
        %v1704 = vunpack.c.h.b16 %v1488
        %v1705 = vunpack.c.l.b16 %v1489
        %v1706 = vunpack.c.h.b16 %v1489
        %v1707 = vunpack.c.l.b16 %v1490
        %v1708 = vunpack.c.h.b16 %v1490
        %v1709 = vunpack.c.l.b16 %v1491
        %v1710 = vunpack.c.h.b16 %v1491
        %v1711 = vunpack.c.l.b16 %v1492
        %v1712 = vunpack.c.h.b16 %v1492
        %v1713 = vunpack.c.l.b16 %v1493
        %v1714 = vunpack.c.h.b16 %v1493
        %v1715 = vunpack.c.l.b16 %v1494
        %v1716 = vunpack.c.h.b16 %v1494
        %v1717 = vunpack.c.l.b16 %v1495
        %v1718 = vunpack.c.h.b16 %v1495
        %v1719 = vunpack.c.l.b16 %v1496
        %v1720 = vunpack.c.h.b16 %v1496
        %v1721 = vunpack.c.l.b16 %v1497
        %v1722 = vunpack.c.h.b16 %v1497
        %v1723 = vunpack.c.l.b16 %v1498
        %v1724 = vunpack.c.h.b16 %v1498
        %v1725 = vunpack.c.l.b16 %v1499
        %v1726 = vunpack.c.h.b16 %v1499
        %v1727 = vunpack.c.l.b16 %v1500
        %v1728 = vunpack.c.h.b16 %v1500
        %v1729 = vunpack.c.l.b16 %v1501
        %v1730 = vunpack.c.h.b16 %v1501
        %v1731 = vunpack.c.l.b16 %v1502
        %v1732 = vunpack.c.h.b16 %v1502
        %v1733 = vunpack.c.l.b16 %v1503
        %v1734 = vunpack.c.h.b16 %v1503
        %v1735 = vunpack.c.l.b16 %v1504
        %v1736 = vunpack.c.h.b16 %v1504
        %v1737 = vunpack.c.l.b16 %v1505
        %v1738 = vunpack.c.h.b16 %v1505
        %v1739 = vunpack.c.l.b16 %v1506
        %v1740 = vunpack.c.h.b16 %v1506
        %v1741 = vunpack.c.l.b16 %v1507
        %v1742 = vunpack.c.h.b16 %v1507
        %v1743 = vunpack.c.l.b16 %v1508
        %v1744 = vunpack.c.h.b16 %v1508
        %v1745 = vunpack.c.l.b16 %v1509
        %v1746 = vunpack.c.h.b16 %v1509
        %v1747 = vunpack.c.l.b16 %v1510
        %v1748 = vunpack.c.h.b16 %v1510
        %v1749 = vpack.c.b16 %v1609, %v1605
        %v1750 = vpack.c.b16 %v1610, %v1606
        %v1751 = vpack.c.b16 %v1611, %v1607
        %v1752 = vpack.c.b16 %v1612, %v1608
        %v1753 = vpack.c.b16 %v1617, %v1613
        %v1754 = vpack.c.b16 %v1618, %v1614
        %v1755 = vpack.c.b16 %v1619, %v1615
        %v1756 = vpack.c.b16 %v1620, %v1616
        %v1757 = vpack.c.b16 %v1625, %v1621
        %v1758 = vpack.c.b16 %v1626, %v1622
        %v1759 = vpack.c.b16 %v1627, %v1623
        %v1760 = vpack.c.b16 %v1628, %v1624
        %v1761 = vpack.c.b16 %v1633, %v1629
        %v1762 = vpack.c.b16 %v1634, %v1630
        %v1763 = vpack.c.b16 %v1635, %v1631
        %v1764 = vpack.c.b16 %v1636, %v1632
        %v1765 = vpack.c.b16 %v1641, %v1637
        %v1766 = vpack.c.b16 %v1642, %v1638
        %v1767 = vpack.c.b16 %v1643, %v1639
        %v1768 = vpack.c.b16 %v1644, %v1640
        %v1769 = vpack.c.b16 %v1649, %v1645
        %v1770 = vpack.c.b16 %v1650, %v1646
        %v1771 = vpack.c.b16 %v1651, %v1647
        %v1772 = vpack.c.b16 %v1652, %v1648
        %v1773 = vpack.c.b16 %v1657, %v1653
        %v1774 = vpack.c.b16 %v1658, %v1654
        %v1775 = vpack.c.b16 %v1659, %v1655
        %v1776 = vpack.c.b16 %v1660, %v1656
        %v1777 = vpack.c.b16 %v1665, %v1661
        %v1778 = vpack.c.b16 %v1666, %v1662
        %v1779 = vpack.c.b16 %v1667, %v1663
        %v1780 = vpack.c.b16 %v1668, %v1664
        %v1781 = vpack.c.b16 %v1673, %v1669
        %v1782 = vpack.c.b16 %v1674, %v1670
        %v1783 = vpack.c.b16 %v1675, %v1671
        %v1784 = vpack.c.b16 %v1676, %v1672
        %v1785 = vpack.c.b16 %v1681, %v1677
        %v1786 = vpack.c.b16 %v1682, %v1678
        %v1787 = vpack.c.b16 %v1683, %v1679
        %v1788 = vpack.c.b16 %v1684, %v1680
        %v1789 = vpack.c.b16 %v1689, %v1685
        %v1790 = vpack.c.b16 %v1690, %v1686
        %v1791 = vpack.c.b16 %v1691, %v1687
        %v1792 = vpack.c.b16 %v1692, %v1688
        %v1793 = vpack.c.b16 %v1697, %v1693
        %v1794 = vpack.c.b16 %v1698, %v1694
        %v1795 = vpack.c.b16 %v1699, %v1695
        %v1796 = vpack.c.b16 %v1700, %v1696
        %v1797 = vpack.c.b16 %v1705, %v1701
        %v1798 = vpack.c.b16 %v1706, %v1702
        %v1799 = vpack.c.b16 %v1707, %v1703
        %v1800 = vpack.c.b16 %v1708, %v1704
        %v1801 = vpack.c.b16 %v1713, %v1709
        %v1802 = vpack.c.b16 %v1714, %v1710
        %v1803 = vpack.c.b16 %v1715, %v1711
        %v1804 = vpack.c.b16 %v1716, %v1712
        %v1805 = vpack.c.b16 %v1721, %v1717
        %v1806 = vpack.c.b16 %v1722, %v1718
        %v1807 = vpack.c.b16 %v1723, %v1719
        %v1808 = vpack.c.b16 %v1724, %v1720
        %v1809 = vpack.c.b16 %v1729, %v1725
        %v1810 = vpack.c.b16 %v1730, %v1726
        %v1811 = vpack.c.b16 %v1731, %v1727
        %v1812 = vpack.c.b16 %v1732, %v1728
        %v1813 = vpack.c.b16 %v1737, %v1733
        %v1814 = vpack.c.b16 %v1738, %v1734
        %v1815 = vpack.c.b16 %v1739, %v1735
        %v1816 = vpack.c.b16 %v1740, %v1736
        %v1817 = vpack.c.b16 %v1745, %v1741
        %v1818 = vpack.c.b16 %v1746, %v1742
        %v1819 = vpack.c.b16 %v1747, %v1743
        %v1820 = vpack.c.b16 %v1748, %v1744
        %v1894 = vsel %vm1166, %v1131, 0
        %v1897 = vsel %vm1166, %v1133, 0
        %v1900 = vsel %vm1166, %v1135, 0
        %v1903 = vsel %vm1166, %v1137, 0
        %v1906 = vsel %vm1166, %v1139, 0
        %v1909 = vsel %vm1166, %v1141, 0
        %v1912 = vsel %vm1166, %v1143, 0
        %v1915 = vsel %vm1166, %v1145, 0
        %v1918 = vsel %vm1166, %v1147, 0
        %v1921 = vsel %vm1166, %v1149, 0
        %v1924 = vsel %vm1166, %v1151, 0
        %v1927 = vsel %vm1166, %v1153, 0
        %v1930 = vsel %vm1166, %v1155, 0
        %v1933 = vsel %vm1166, %v1157, 0
        %v1936 = vsel %vm1166, %v1159, 0
        %v1939 = vsel %vm1166, %v1161, 0
        %v1942 = vsel %vm1166, %v1163, 0
        %v1945 = vsel %vm1166, %v1165, 0
        %1947 = vmatprep.subr.bf16.mxu0 %v1750
        %1948 = vmatpush1.bf16.msra.mxu0 %v1749
        %1949 = vmatprep.subr.bf16.mxu0 %v1754
        %1950 = vmatpush1.bf16.msra.mxu0 %v1753
        %1951 = vmatprep.subr.bf16.mxu0 %v1758
        %1952 = vmatpush1.bf16.msra.mxu0 %v1757
        %1953 = vmatprep.subr.bf16.mxu0 %v1762
        %1954 = vmatpush1.bf16.msra.mxu0 %v1761
        %1955 = vmatprep.subr.bf16.mxu0 %v1766
        %1956 = vmatpush1.bf16.msra.mxu0 %v1765
        %1957 = vmatprep.subr.bf16.mxu0 %v1770
        %1958 = vmatpush1.bf16.msra.mxu0 %v1769
        %1959 = vmatprep.subr.bf16.mxu0 %v1774
        %1960 = vmatpush1.bf16.msra.mxu0 %v1773
        %1961 = vmatprep.subr.bf16.mxu0 %v1778
        %1962 = vmatpush1.bf16.msra.mxu0 %v1777
        %1963 = vmatprep.subr.bf16.mxu0 %v1782
        %1964 = vmatpush1.bf16.msra.mxu0 %v1781
        %1965 = vmatprep.subr.bf16.mxu0 %v1786
        %1966 = vmatpush1.bf16.msra.mxu0 %v1785
        %1967 = vmatprep.subr.bf16.mxu0 %v1790
        %1968 = vmatpush1.bf16.msra.mxu0 %v1789
        %1969 = vmatprep.subr.bf16.mxu0 %v1794
        %1970 = vmatpush1.bf16.msra.mxu0 %v1793
        %1971 = vmatprep.subr.bf16.mxu0 %v1798
        %1972 = vmatpush1.bf16.msra.mxu0 %v1797
        %1973 = vmatprep.subr.bf16.mxu0 %v1802
        %1974 = vmatpush1.bf16.msra.mxu0 %v1801
        %1975 = vmatprep.subr.bf16.mxu0 %v1806
        %1976 = vmatpush1.bf16.msra.mxu0 %v1805
        %1977 = vmatprep.subr.bf16.mxu0 %v1810
        %1978 = vmatpush1.bf16.msra.mxu0 %v1809
        %1979 = vmatprep.mubr.bf16.mxu0 %v1386
        %1980 = vmatmul.mubr.bf16.gmra.mrb[0].mxu0 %v1242
        %v1981 = vpop.f32.mrb[0].mxu0
        %v1982 = vadd.f32 %v1516, %v1981
        %v1983 = vpop.f32.mrb[0].mxu0
        %v1984 = vadd.f32 %v1520, %v1983
        %v1985 = vpop.f32.mrb[0].mxu0
        %v1986 = vadd.f32 %v1516, %v1985
        %v1987 = vpop.f32.mrb[0].mxu0
        %v1988 = vadd.f32 %v1520, %v1987
        %1989 = vmatprep.mubr.bf16.mxu0 %v1389
        %1990 = vmatmul.mubr.bf16.gmra.mrb[0].mxu0 %v1245
        %v1991 = vpop.f32.mrb[0].mxu0
        %v1992 = vadd.f32 %v1516, %v1991
        %v1993 = vpop.f32.mrb[0].mxu0
        %v1994 = vadd.f32 %v1520, %v1993
        %v1995 = vpop.f32.mrb[0].mxu0
        %v1996 = vadd.f32 %v1516, %v1995
        %v1997 = vpop.f32.mrb[0].mxu0
        %v1998 = vadd.f32 %v1520, %v1997
        %1999 = vmatprep.mubr.bf16.mxu0 %v1392
        %2000 = vmatmul.mubr.bf16.gmra.mrb[0].mxu0 %v1248
        %v2001 = vpop.f32.mrb[0].mxu0
        %v2002 = vadd.f32 %v1516, %v2001
        %v2003 = vpop.f32.mrb[0].mxu0
        %v2004 = vadd.f32 %v1520, %v2003
        %v2005 = vpop.f32.mrb[0].mxu0
        %v2006 = vadd.f32 %v1516, %v2005
        %v2007 = vpop.f32.mrb[0].mxu0
        %v2008 = vadd.f32 %v1520, %v2007
        %2009 = vmatprep.mubr.bf16.mxu0 %v1395
        %2010 = vmatmul.mubr.bf16.gmra.mrb[0].mxu0 %v1251
        %v2011 = vpop.f32.mrb[0].mxu0
        %v2012 = vadd.f32 %v1516, %v2011
        %v2013 = vpop.f32.mrb[0].mxu0
        %v2014 = vadd.f32 %v1520, %v2013
        %v2015 = vpop.f32.mrb[0].mxu0
        %v2016 = vadd.f32 %v1516, %v2015
        %v2017 = vpop.f32.mrb[0].mxu0
        %v2018 = vadd.f32 %v1520, %v2017
        %2019 = vmatprep.mubr.bf16.mxu0 %v1398
        %2020 = vmatmul.mubr.bf16.gmra.mrb[0].mxu0 %v1254
        %v2021 = vpop.f32.mrb[0].mxu0
        %v2022 = vadd.f32 %v1516, %v2021
        %v2023 = vpop.f32.mrb[0].mxu0
        %v2024 = vadd.f32 %v1520, %v2023
        %v2025 = vpop.f32.mrb[0].mxu0
        %v2026 = vadd.f32 %v1516, %v2025
        %v2027 = vpop.f32.mrb[0].mxu0
        %v2028 = vadd.f32 %v1520, %v2027
        %2029 = vmatprep.mubr.bf16.mxu0 %v1401
        %2030 = vmatmul.mubr.bf16.gmra.mrb[0].mxu0 %v1257
        %v2031 = vpop.f32.mrb[0].mxu0
        %v2032 = vadd.f32 %v1516, %v2031
        %v2033 = vpop.f32.mrb[0].mxu0
        %v2034 = vadd.f32 %v1520, %v2033
        %v2035 = vpop.f32.mrb[0].mxu0
        %v2036 = vadd.f32 %v1516, %v2035
        %v2037 = vpop.f32.mrb[0].mxu0
        %v2038 = vadd.f32 %v1520, %v2037
        %2039 = vmatprep.mubr.bf16.mxu0 %v1404
        %2040 = vmatmul.mubr.bf16.gmra.mrb[0].mxu0 %v1260
        %v2041 = vpop.f32.mrb[0].mxu0
        %v2042 = vadd.f32 %v1516, %v2041
        %v2043 = vpop.f32.mrb[0].mxu0
        %v2044 = vadd.f32 %v1520, %v2043
        %v2045 = vpop.f32.mrb[0].mxu0
        %v2046 = vadd.f32 %v1516, %v2045
        %v2047 = vpop.f32.mrb[0].mxu0
        %v2048 = vadd.f32 %v1520, %v2047
        %2049 = vmatprep.mubr.bf16.mxu0 %v1407
        %2050 = vmatmul.mubr.bf16.gmra.mrb[0].mxu0 %v1263
        %v2051 = vpop.f32.mrb[0].mxu0
        %v2052 = vadd.f32 %v1516, %v2051
        %v2053 = vpop.f32.mrb[0].mxu0
        %v2054 = vadd.f32 %v1520, %v2053
        %v2055 = vpop.f32.mrb[0].mxu0
        %v2056 = vadd.f32 %v1516, %v2055
        %v2057 = vpop.f32.mrb[0].mxu0
        %v2058 = vadd.f32 %v1520, %v2057
        %2059 = vmatprep.mubr.bf16.mxu0 %v1410
        %2060 = vmatmul.mubr.bf16.gmra.mrb[0].mxu0 %v1266
        %v2061 = vpop.f32.mrb[0].mxu0
        %v2062 = vadd.f32 %v1516, %v2061
        %v2063 = vpop.f32.mrb[0].mxu0
        %v2064 = vadd.f32 %v1520, %v2063
        %v2065 = vpop.f32.mrb[0].mxu0
        %v2066 = vadd.f32 %v1516, %v2065
        %v2067 = vpop.f32.mrb[0].mxu0
        %v2068 = vadd.f32 %v1520, %v2067
        %2069 = vmatprep.mubr.bf16.mxu0 %v1413
        %2070 = vmatmul.mubr.bf16.gmra.mrb[0].mxu0 %v1269
        %v2071 = vpop.f32.mrb[0].mxu0
        %v2072 = vadd.f32 %v1516, %v2071
        %v2073 = vpop.f32.mrb[0].mxu0
        %v2074 = vadd.f32 %v1520, %v2073
        %v2075 = vpop.f32.mrb[0].mxu0
        %v2076 = vadd.f32 %v1516, %v2075
        %v2077 = vpop.f32.mrb[0].mxu0
        %v2078 = vadd.f32 %v1520, %v2077
        %2079 = vmatprep.mubr.bf16.mxu0 %v1416
        %2080 = vmatmul.mubr.bf16.gmra.mrb[0].mxu0 %v1272
        %v2081 = vpop.f32.mrb[0].mxu0
        %v2082 = vadd.f32 %v1516, %v2081
        %v2083 = vpop.f32.mrb[0].mxu0
        %v2084 = vadd.f32 %v1520, %v2083
        %v2085 = vpop.f32.mrb[0].mxu0
        %v2086 = vadd.f32 %v1516, %v2085
        %v2087 = vpop.f32.mrb[0].mxu0
        %v2088 = vadd.f32 %v1520, %v2087
        %2089 = vmatprep.mubr.bf16.mxu0 %v1419
        %2090 = vmatmul.mubr.bf16.gmra.mrb[0].mxu0 %v1275
        %v2091 = vpop.f32.mrb[0].mxu0
        %v2092 = vadd.f32 %v1516, %v2091
        %v2093 = vpop.f32.mrb[0].mxu0
        %v2094 = vadd.f32 %v1520, %v2093
        %v2095 = vpop.f32.mrb[0].mxu0
        %v2096 = vadd.f32 %v1516, %v2095
        %v2097 = vpop.f32.mrb[0].mxu0
        %v2098 = vadd.f32 %v1520, %v2097
        %2099 = vmatprep.mubr.bf16.mxu0 %v1422
        %2100 = vmatmul.mubr.bf16.gmra.mrb[0].mxu0 %v1278
        %v2101 = vpop.f32.mrb[0].mxu0
        %v2102 = vadd.f32 %v1516, %v2101
        %v2103 = vpop.f32.mrb[0].mxu0
        %v2104 = vadd.f32 %v1520, %v2103
        %v2105 = vpop.f32.mrb[0].mxu0
        %v2106 = vadd.f32 %v1516, %v2105
        %v2107 = vpop.f32.mrb[0].mxu0
        %v2108 = vadd.f32 %v1520, %v2107
        %2109 = vmatprep.mubr.bf16.mxu0 %v1425
        %2110 = vmatmul.mubr.bf16.gmra.mrb[0].mxu0 %v1281
        %v2111 = vpop.f32.mrb[0].mxu0
        %v2112 = vadd.f32 %v1516, %v2111
        %v2113 = vpop.f32.mrb[0].mxu0
        %v2114 = vadd.f32 %v1520, %v2113
        %v2115 = vpop.f32.mrb[0].mxu0
        %v2116 = vadd.f32 %v1516, %v2115
        %v2117 = vpop.f32.mrb[0].mxu0
        %v2118 = vadd.f32 %v1520, %v2117
        %2119 = vmatprep.mubr.bf16.mxu0 %v1428
        %2120 = vmatmul.mubr.bf16.gmra.mrb[0].mxu0 %v1284
        %v2121 = vpop.f32.mrb[0].mxu0
        %v2122 = vadd.f32 %v1516, %v2121
        %v2123 = vpop.f32.mrb[0].mxu0
        %v2124 = vadd.f32 %v1520, %v2123
        %v2125 = vpop.f32.mrb[0].mxu0
        %v2126 = vadd.f32 %v1516, %v2125
        %v2127 = vpop.f32.mrb[0].mxu0
        %v2128 = vadd.f32 %v1520, %v2127
        %2129 = vmatprep.mubr.bf16.mxu0 %v1431
        %2130 = vmatmul.mubr.bf16.gmra.mrb[0].mxu0 %v1287
        %v2131 = vpop.f32.mrb[0].mxu0
        %v2132 = vadd.f32 %v1516, %v2131
        %v2133 = vpop.f32.mrb[0].mxu0
        %v2134 = vadd.f32 %v1520, %v2133
        %v2135 = vpop.f32.mrb[0].mxu0
        %v2136 = vadd.f32 %v1516, %v2135
        %v2137 = vpop.f32.mrb[0].mxu0
        %v2138 = vadd.f32 %v1520, %v2137
        %2139 = vmatprep.mubr.bf16.mxu0 %v1434
        %2140 = vmatmul.mubr.bf16.gmra.mrb[0].mxu0 %v1290
        %v2141 = vpop.f32.mrb[0].mxu0
        %v2142 = vadd.f32 %v1516, %v2141
        %v2143 = vpop.f32.mrb[0].mxu0
        %v2144 = vadd.f32 %v1520, %v2143
        %v2145 = vpop.f32.mrb[0].mxu0
        %v2146 = vadd.f32 %v1516, %v2145
        %v2147 = vpop.f32.mrb[0].mxu0
        %v2148 = vadd.f32 %v1520, %v2147
        %2149 = vmatprep.mubr.bf16.mxu0 %v1437
        %2150 = vmatmul.mubr.bf16.gmra.mrb[0].mxu0 %v1293
        %v2151 = vpop.f32.mrb[0].mxu0
        %v2152 = vadd.f32 %v1516, %v2151
        %v2153 = vpop.f32.mrb[0].mxu0
        %v2154 = vadd.f32 %v1520, %v2153
        %v2155 = vpop.f32.mrb[0].mxu0
        %v2156 = vadd.f32 %v1516, %v2155
        %v2157 = vpop.f32.mrb[0].mxu0
        %v2158 = vadd.f32 %v1520, %v2157
        %2159 = vdwg.mxu0
        %2160 = vmatprep.subr.bf16.mxu0 %v1814
        %2161 = vmatpush1.bf16.msra.mxu0 %v1813
        %2162 = vmatprep.subr.bf16.mxu0 %v1818
        %2163 = vmatpush1.bf16.msra.mxu0 %v1817
        %2164 = vmatprep.subr.bf16.mxu0 0
        %2165 = vmatpush1.bf16.msra.mxu0 0
        %2166 = vmatprep.subr.bf16.mxu0 0
        %2167 = vmatpush1.bf16.msra.mxu0 0
        %2168 = vmatprep.subr.bf16.mxu0 0
        %2169 = vmatpush1.bf16.msra.mxu0 0
        %2170 = vmatprep.subr.bf16.mxu0 0
        %2171 = vmatpush1.bf16.msra.mxu0 0
        %2172 = vmatprep.subr.bf16.mxu0 0
        %2173 = vmatpush1.bf16.msra.mxu0 0
        %2174 = vmatprep.subr.bf16.mxu0 0
        %2175 = vmatpush1.bf16.msra.mxu0 0
        %2176 = vmatprep.subr.bf16.mxu0 0
        %2177 = vmatpush1.bf16.msra.mxu0 0
        %2178 = vmatprep.subr.bf16.mxu0 0
        %2179 = vmatpush1.bf16.msra.mxu0 0
        %2180 = vmatprep.subr.bf16.mxu0 0
        %2181 = vmatpush1.bf16.msra.mxu0 0
        %2182 = vmatprep.subr.bf16.mxu0 0
        %2183 = vmatpush1.bf16.msra.mxu0 0
        %2184 = vmatprep.subr.bf16.mxu0 0
        %2185 = vmatpush1.bf16.msra.mxu0 0
        %2186 = vmatprep.subr.bf16.mxu0 0
        %2187 = vmatpush1.bf16.msra.mxu0 0
        %2188 = vmatprep.subr.bf16.mxu0 0
        %2189 = vmatpush1.bf16.msra.mxu0 0
        %2190 = vmatprep.subr.bf16.mxu0 0
        %2191 = vmatpush1.bf16.msra.mxu0 0
        %2192 = vmatprep.mubr.bf16.mxu0 0
        %2193 = vmatmul.mubr.bf16.gmra.mrb[0].mxu0 %v1894
        %v2194 = vpop.f32.mrb[0].mxu0
        %v2195 = vadd.f32 %v1982, %v2194
        %v2196 = vpop.f32.mrb[0].mxu0
        %v2197 = vadd.f32 %v1984, %v2196
        %v2198 = vpop.f32.mrb[0].mxu0
        %v2199 = vadd.f32 %v1986, %v2198
        %v2200 = vpop.f32.mrb[0].mxu0
        %v2201 = vadd.f32 %v1988, %v2200
        %2202 = vmatprep.mubr.bf16.mxu0 0
        %2203 = vmatmul.mubr.bf16.gmra.mrb[0].mxu0 %v1897
        %v2204 = vpop.f32.mrb[0].mxu0
        %v2205 = vadd.f32 %v1992, %v2204
        %v2206 = vpop.f32.mrb[0].mxu0
        %v2207 = vadd.f32 %v1994, %v2206
        %v2208 = vpop.f32.mrb[0].mxu0
        %v2209 = vadd.f32 %v1996, %v2208
        %v2210 = vpop.f32.mrb[0].mxu0
        %v2211 = vadd.f32 %v1998, %v2210
        %2212 = vmatprep.mubr.bf16.mxu0 0
        %2213 = vmatmul.mubr.bf16.gmra.mrb[0].mxu0 %v1900
        %v2214 = vpop.f32.mrb[0].mxu0
        %v2215 = vadd.f32 %v2002, %v2214
        %v2216 = vpop.f32.mrb[0].mxu0
        %v2217 = vadd.f32 %v2004, %v2216
        %v2218 = vpop.f32.mrb[0].mxu0
        %v2219 = vadd.f32 %v2006, %v2218
        %v2220 = vpop.f32.mrb[0].mxu0
        %v2221 = vadd.f32 %v2008, %v2220
        %2222 = vmatprep.mubr.bf16.mxu0 0
        %2223 = vmatmul.mubr.bf16.gmra.mrb[0].mxu0 %v1903
        %v2224 = vpop.f32.mrb[0].mxu0
        %v2225 = vadd.f32 %v2012, %v2224
        %v2226 = vpop.f32.mrb[0].mxu0
        %v2227 = vadd.f32 %v2014, %v2226
        %v2228 = vpop.f32.mrb[0].mxu0
        %v2229 = vadd.f32 %v2016, %v2228
        %v2230 = vpop.f32.mrb[0].mxu0
        %v2231 = vadd.f32 %v2018, %v2230
        %2232 = vmatprep.mubr.bf16.mxu0 0
        %2233 = vmatmul.mubr.bf16.gmra.mrb[0].mxu0 %v1906
        %v2234 = vpop.f32.mrb[0].mxu0
        %v2235 = vadd.f32 %v2022, %v2234
        %v2236 = vpop.f32.mrb[0].mxu0
        %v2237 = vadd.f32 %v2024, %v2236
        %v2238 = vpop.f32.mrb[0].mxu0
        %v2239 = vadd.f32 %v2026, %v2238
        %v2240 = vpop.f32.mrb[0].mxu0
        %v2241 = vadd.f32 %v2028, %v2240
        %2242 = vmatprep.mubr.bf16.mxu0 0
        %2243 = vmatmul.mubr.bf16.gmra.mrb[0].mxu0 %v1909
        %v2244 = vpop.f32.mrb[0].mxu0
        %v2245 = vadd.f32 %v2032, %v2244
        %v2246 = vpop.f32.mrb[0].mxu0
        %v2247 = vadd.f32 %v2034, %v2246
        %v2248 = vpop.f32.mrb[0].mxu0
        %v2249 = vadd.f32 %v2036, %v2248
        %v2250 = vpop.f32.mrb[0].mxu0
        %v2251 = vadd.f32 %v2038, %v2250
        %2252 = vmatprep.mubr.bf16.mxu0 0
        %2253 = vmatmul.mubr.bf16.gmra.mrb[0].mxu0 %v1912
        %v2254 = vpop.f32.mrb[0].mxu0
        %v2255 = vadd.f32 %v2042, %v2254
        %v2256 = vpop.f32.mrb[0].mxu0
        %v2257 = vadd.f32 %v2044, %v2256
        %v2258 = vpop.f32.mrb[0].mxu0
        %v2259 = vadd.f32 %v2046, %v2258
        %v2260 = vpop.f32.mrb[0].mxu0
        %v2261 = vadd.f32 %v2048, %v2260
        %2262 = vmatprep.mubr.bf16.mxu0 0
        %2263 = vmatmul.mubr.bf16.gmra.mrb[0].mxu0 %v1915
        %v2264 = vpop.f32.mrb[0].mxu0
        %v2265 = vadd.f32 %v2052, %v2264
        %v2266 = vpop.f32.mrb[0].mxu0
        %v2267 = vadd.f32 %v2054, %v2266
        %v2268 = vpop.f32.mrb[0].mxu0
        %v2269 = vadd.f32 %v2056, %v2268
        %v2270 = vpop.f32.mrb[0].mxu0
        %v2271 = vadd.f32 %v2058, %v2270
        %2272 = vmatprep.mubr.bf16.mxu0 0
        %2273 = vmatmul.mubr.bf16.gmra.mrb[0].mxu0 %v1918
        %v2274 = vpop.f32.mrb[0].mxu0
        %v2275 = vadd.f32 %v2062, %v2274
        %v2276 = vpop.f32.mrb[0].mxu0
        %v2277 = vadd.f32 %v2064, %v2276
        %v2278 = vpop.f32.mrb[0].mxu0
        %v2279 = vadd.f32 %v2066, %v2278
        %v2280 = vpop.f32.mrb[0].mxu0
        %v2281 = vadd.f32 %v2068, %v2280
        %2282 = vmatprep.mubr.bf16.mxu0 0
        %2283 = vmatmul.mubr.bf16.gmra.mrb[0].mxu0 %v1921
        %v2284 = vpop.f32.mrb[0].mxu0
        %v2285 = vadd.f32 %v2072, %v2284
        %v2286 = vpop.f32.mrb[0].mxu0
        %v2287 = vadd.f32 %v2074, %v2286
        %v2288 = vpop.f32.mrb[0].mxu0
        %v2289 = vadd.f32 %v2076, %v2288
        %v2290 = vpop.f32.mrb[0].mxu0
        %v2291 = vadd.f32 %v2078, %v2290
        %2292 = vmatprep.mubr.bf16.mxu0 0
        %2293 = vmatmul.mubr.bf16.gmra.mrb[0].mxu0 %v1924
        %v2294 = vpop.f32.mrb[0].mxu0
        %v2295 = vadd.f32 %v2082, %v2294
        %v2296 = vpop.f32.mrb[0].mxu0
        %v2297 = vadd.f32 %v2084, %v2296
        %v2298 = vpop.f32.mrb[0].mxu0
        %v2299 = vadd.f32 %v2086, %v2298
        %v2300 = vpop.f32.mrb[0].mxu0
        %v2301 = vadd.f32 %v2088, %v2300
        %2302 = vmatprep.mubr.bf16.mxu0 0
        %2303 = vmatmul.mubr.bf16.gmra.mrb[0].mxu0 %v1927
        %v2304 = vpop.f32.mrb[0].mxu0
        %v2305 = vadd.f32 %v2092, %v2304
        %v2306 = vpop.f32.mrb[0].mxu0
        %v2307 = vadd.f32 %v2094, %v2306
        %v2308 = vpop.f32.mrb[0].mxu0
        %v2309 = vadd.f32 %v2096, %v2308
        %v2310 = vpop.f32.mrb[0].mxu0
        %v2311 = vadd.f32 %v2098, %v2310
        %2312 = vmatprep.mubr.bf16.mxu0 0
        %2313 = vmatmul.mubr.bf16.gmra.mrb[0].mxu0 %v1930
        %v2314 = vpop.f32.mrb[0].mxu0
        %v2315 = vadd.f32 %v2102, %v2314
        %v2316 = vpop.f32.mrb[0].mxu0
        %v2317 = vadd.f32 %v2104, %v2316
        %v2318 = vpop.f32.mrb[0].mxu0
        %v2319 = vadd.f32 %v2106, %v2318
        %v2320 = vpop.f32.mrb[0].mxu0
        %v2321 = vadd.f32 %v2108, %v2320
        %2322 = vmatprep.mubr.bf16.mxu0 0
        %2323 = vmatmul.mubr.bf16.gmra.mrb[0].mxu0 %v1933
        %v2324 = vpop.f32.mrb[0].mxu0
        %v2325 = vadd.f32 %v2112, %v2324
        %v2326 = vpop.f32.mrb[0].mxu0
        %v2327 = vadd.f32 %v2114, %v2326
        %v2328 = vpop.f32.mrb[0].mxu0
        %v2329 = vadd.f32 %v2116, %v2328
        %v2330 = vpop.f32.mrb[0].mxu0
        %v2331 = vadd.f32 %v2118, %v2330
        %2332 = vmatprep.mubr.bf16.mxu0 0
        %2333 = vmatmul.mubr.bf16.gmra.mrb[0].mxu0 %v1936
        %v2334 = vpop.f32.mrb[0].mxu0
        %v2335 = vadd.f32 %v2122, %v2334
        %v2336 = vpop.f32.mrb[0].mxu0
        %v2337 = vadd.f32 %v2124, %v2336
        %v2338 = vpop.f32.mrb[0].mxu0
        %v2339 = vadd.f32 %v2126, %v2338
        %v2340 = vpop.f32.mrb[0].mxu0
        %v2341 = vadd.f32 %v2128, %v2340
        %2342 = vmatprep.mubr.bf16.mxu0 0
        %2343 = vmatmul.mubr.bf16.gmra.mrb[0].mxu0 %v1939
        %v2344 = vpop.f32.mrb[0].mxu0
        %v2345 = vadd.f32 %v2132, %v2344
        %v2346 = vpop.f32.mrb[0].mxu0
        %v2347 = vadd.f32 %v2134, %v2346
        %v2348 = vpop.f32.mrb[0].mxu0
        %v2349 = vadd.f32 %v2136, %v2348
        %v2350 = vpop.f32.mrb[0].mxu0
        %v2351 = vadd.f32 %v2138, %v2350
        %2352 = vmatprep.mubr.bf16.mxu0 0
        %2353 = vmatmul.mubr.bf16.gmra.mrb[0].mxu0 %v1942
        %v2354 = vpop.f32.mrb[0].mxu0
        %v2355 = vadd.f32 %v2142, %v2354
        %v2356 = vpop.f32.mrb[0].mxu0
        %v2357 = vadd.f32 %v2144, %v2356
        %v2358 = vpop.f32.mrb[0].mxu0
        %v2359 = vadd.f32 %v2146, %v2358
        %v2360 = vpop.f32.mrb[0].mxu0
        %v2361 = vadd.f32 %v2148, %v2360
        %2362 = vmatprep.mubr.bf16.mxu0 0
        %2363 = vmatmul.mubr.bf16.gmra.mrb[0].mxu0 %v1945
        %v2364 = vpop.f32.mrb[0].mxu0
        %v2365 = vadd.f32 %v2152, %v2364
        %v2366 = vpop.f32.mrb[0].mxu0
        %v2367 = vadd.f32 %v2154, %v2366
        %v2368 = vpop.f32.mrb[0].mxu0
        %v2369 = vadd.f32 %v2156, %v2368
        %v2370 = vpop.f32.mrb[0].mxu0
        %v2371 = vadd.f32 %v2158, %v2370
        %2372 = vdwg.mxu0
        %2373 = vmatprep.subr.bf16.mxu0 %v1752
        %2374 = vmatpush1.bf16.msra.mxu0 %v1751
        %2375 = vmatprep.subr.bf16.mxu0 %v1756
        %2376 = vmatpush1.bf16.msra.mxu0 %v1755
        %2377 = vmatprep.subr.bf16.mxu0 %v1760
        %2378 = vmatpush1.bf16.msra.mxu0 %v1759
        %2379 = vmatprep.subr.bf16.mxu0 %v1764
        %2380 = vmatpush1.bf16.msra.mxu0 %v1763
        %2381 = vmatprep.subr.bf16.mxu0 %v1768
        %2382 = vmatpush1.bf16.msra.mxu0 %v1767
        %2383 = vmatprep.subr.bf16.mxu0 %v1772
        %2384 = vmatpush1.bf16.msra.mxu0 %v1771
        %2385 = vmatprep.subr.bf16.mxu0 %v1776
        %2386 = vmatpush1.bf16.msra.mxu0 %v1775
        %2387 = vmatprep.subr.bf16.mxu0 %v1780
        %2388 = vmatpush1.bf16.msra.mxu0 %v1779
        %2389 = vmatprep.subr.bf16.mxu0 %v1784
        %2390 = vmatpush1.bf16.msra.mxu0 %v1783
        %2391 = vmatprep.subr.bf16.mxu0 %v1788
        %2392 = vmatpush1.bf16.msra.mxu0 %v1787
        %2393 = vmatprep.subr.bf16.mxu0 %v1792
        %2394 = vmatpush1.bf16.msra.mxu0 %v1791
        %2395 = vmatprep.subr.bf16.mxu0 %v1796
        %2396 = vmatpush1.bf16.msra.mxu0 %v1795
        %2397 = vmatprep.subr.bf16.mxu0 %v1800
        %2398 = vmatpush1.bf16.msra.mxu0 %v1799
        %2399 = vmatprep.subr.bf16.mxu0 %v1804
        %2400 = vmatpush1.bf16.msra.mxu0 %v1803
        %2401 = vmatprep.subr.bf16.mxu0 %v1808
        %2402 = vmatpush1.bf16.msra.mxu0 %v1807
        %2403 = vmatprep.subr.bf16.mxu0 %v1812
        %2404 = vmatpush1.bf16.msra.mxu0 %v1811
        %2405 = vmatprep.mubr.bf16.mxu0 %v1386
        %2406 = vmatmul.mubr.bf16.gmra.mrb[0].mxu0 %v1242
        %v2407 = vpop.f32.mrb[0].mxu0
        %v2408 = vadd.f32 %v1524, %v2407
        %v2409 = vpop.f32.mrb[0].mxu0
        %v2410 = vadd.f32 %v1528, %v2409
        %v2411 = vpop.f32.mrb[0].mxu0
        %v2412 = vadd.f32 %v1524, %v2411
        %v2413 = vpop.f32.mrb[0].mxu0
        %v2414 = vadd.f32 %v1528, %v2413
        %2415 = vmatprep.mubr.bf16.mxu0 %v1389
        %2416 = vmatmul.mubr.bf16.gmra.mrb[0].mxu0 %v1245
        %v2417 = vpop.f32.mrb[0].mxu0
        %v2418 = vadd.f32 %v1524, %v2417
        %v2419 = vpop.f32.mrb[0].mxu0
        %v2420 = vadd.f32 %v1528, %v2419
        %v2421 = vpop.f32.mrb[0].mxu0
        %v2422 = vadd.f32 %v1524, %v2421
        %v2423 = vpop.f32.mrb[0].mxu0
        %v2424 = vadd.f32 %v1528, %v2423
        %2425 = vmatprep.mubr.bf16.mxu0 %v1392
        %2426 = vmatmul.mubr.bf16.gmra.mrb[0].mxu0 %v1248
        %v2427 = vpop.f32.mrb[0].mxu0
        %v2428 = vadd.f32 %v1524, %v2427
        %v2429 = vpop.f32.mrb[0].mxu0
        %v2430 = vadd.f32 %v1528, %v2429
        %v2431 = vpop.f32.mrb[0].mxu0
        %v2432 = vadd.f32 %v1524, %v2431
        %v2433 = vpop.f32.mrb[0].mxu0
        %v2434 = vadd.f32 %v1528, %v2433
        %2435 = vmatprep.mubr.bf16.mxu0 %v1395
        %2436 = vmatmul.mubr.bf16.gmra.mrb[0].mxu0 %v1251
        %v2437 = vpop.f32.mrb[0].mxu0
        %v2438 = vadd.f32 %v1524, %v2437
        %v2439 = vpop.f32.mrb[0].mxu0
        %v2440 = vadd.f32 %v1528, %v2439
        %v2441 = vpop.f32.mrb[0].mxu0
        %v2442 = vadd.f32 %v1524, %v2441
        %v2443 = vpop.f32.mrb[0].mxu0
        %v2444 = vadd.f32 %v1528, %v2443
        %2445 = vmatprep.mubr.bf16.mxu0 %v1398
        %2446 = vmatmul.mubr.bf16.gmra.mrb[0].mxu0 %v1254
        %v2447 = vpop.f32.mrb[0].mxu0
        %v2448 = vadd.f32 %v1524, %v2447
        %v2449 = vpop.f32.mrb[0].mxu0
        %v2450 = vadd.f32 %v1528, %v2449
        %v2451 = vpop.f32.mrb[0].mxu0
        %v2452 = vadd.f32 %v1524, %v2451
        %v2453 = vpop.f32.mrb[0].mxu0
        %v2454 = vadd.f32 %v1528, %v2453
        %2455 = vmatprep.mubr.bf16.mxu0 %v1401
        %2456 = vmatmul.mubr.bf16.gmra.mrb[0].mxu0 %v1257
        %v2457 = vpop.f32.mrb[0].mxu0
        %v2458 = vadd.f32 %v1524, %v2457
        %v2459 = vpop.f32.mrb[0].mxu0
        %v2460 = vadd.f32 %v1528, %v2459
        %v2461 = vpop.f32.mrb[0].mxu0
        %v2462 = vadd.f32 %v1524, %v2461
        %v2463 = vpop.f32.mrb[0].mxu0
        %v2464 = vadd.f32 %v1528, %v2463
        %2465 = vmatprep.mubr.bf16.mxu0 %v1404
        %2466 = vmatmul.mubr.bf16.gmra.mrb[0].mxu0 %v1260
        %v2467 = vpop.f32.mrb[0].mxu0
        %v2468 = vadd.f32 %v1524, %v2467
        %v2469 = vpop.f32.mrb[0].mxu0
        %v2470 = vadd.f32 %v1528, %v2469
        %v2471 = vpop.f32.mrb[0].mxu0
        %v2472 = vadd.f32 %v1524, %v2471
        %v2473 = vpop.f32.mrb[0].mxu0
        %v2474 = vadd.f32 %v1528, %v2473
        %2475 = vmatprep.mubr.bf16.mxu0 %v1407
        %2476 = vmatmul.mubr.bf16.gmra.mrb[0].mxu0 %v1263
        %v2477 = vpop.f32.mrb[0].mxu0
        %v2478 = vadd.f32 %v1524, %v2477
        %v2479 = vpop.f32.mrb[0].mxu0
        %v2480 = vadd.f32 %v1528, %v2479
        %v2481 = vpop.f32.mrb[0].mxu0
        %v2482 = vadd.f32 %v1524, %v2481
        %v2483 = vpop.f32.mrb[0].mxu0
        %v2484 = vadd.f32 %v1528, %v2483
        %2485 = vmatprep.mubr.bf16.mxu0 %v1410
        %2486 = vmatmul.mubr.bf16.gmra.mrb[0].mxu0 %v1266
        %v2487 = vpop.f32.mrb[0].mxu0
        %v2488 = vadd.f32 %v1524, %v2487
        %v2489 = vpop.f32.mrb[0].mxu0
        %v2490 = vadd.f32 %v1528, %v2489
        %v2491 = vpop.f32.mrb[0].mxu0
        %v2492 = vadd.f32 %v1524, %v2491
        %v2493 = vpop.f32.mrb[0].mxu0
        %v2494 = vadd.f32 %v1528, %v2493
        %2495 = vmatprep.mubr.bf16.mxu0 %v1413
        %2496 = vmatmul.mubr.bf16.gmra.mrb[0].mxu0 %v1269
        %v2497 = vpop.f32.mrb[0].mxu0
        %v2498 = vadd.f32 %v1524, %v2497
        %v2499 = vpop.f32.mrb[0].mxu0
        %v2500 = vadd.f32 %v1528, %v2499
        %v2501 = vpop.f32.mrb[0].mxu0
        %v2502 = vadd.f32 %v1524, %v2501
        %v2503 = vpop.f32.mrb[0].mxu0
        %v2504 = vadd.f32 %v1528, %v2503
        %2505 = vmatprep.mubr.bf16.mxu0 %v1416
        %2506 = vmatmul.mubr.bf16.gmra.mrb[0].mxu0 %v1272
        %v2507 = vpop.f32.mrb[0].mxu0
        %v2508 = vadd.f32 %v1524, %v2507
        %v2509 = vpop.f32.mrb[0].mxu0
        %v2510 = vadd.f32 %v1528, %v2509
        %v2511 = vpop.f32.mrb[0].mxu0
        %v2512 = vadd.f32 %v1524, %v2511
        %v2513 = vpop.f32.mrb[0].mxu0
        %v2514 = vadd.f32 %v1528, %v2513
        %2515 = vmatprep.mubr.bf16.mxu0 %v1419
        %2516 = vmatmul.mubr.bf16.gmra.mrb[0].mxu0 %v1275
        %v2517 = vpop.f32.mrb[0].mxu0
        %v2518 = vadd.f32 %v1524, %v2517
        %v2519 = vpop.f32.mrb[0].mxu0
        %v2520 = vadd.f32 %v1528, %v2519
        %v2521 = vpop.f32.mrb[0].mxu0
        %v2522 = vadd.f32 %v1524, %v2521
        %v2523 = vpop.f32.mrb[0].mxu0
        %v2524 = vadd.f32 %v1528, %v2523
        %2525 = vmatprep.mubr.bf16.mxu0 %v1422
        %2526 = vmatmul.mubr.bf16.gmra.mrb[0].mxu0 %v1278
        %v2527 = vpop.f32.mrb[0].mxu0
        %v2528 = vadd.f32 %v1524, %v2527
        %v2529 = vpop.f32.mrb[0].mxu0
        %v2530 = vadd.f32 %v1528, %v2529
        %v2531 = vpop.f32.mrb[0].mxu0
        %v2532 = vadd.f32 %v1524, %v2531
        %v2533 = vpop.f32.mrb[0].mxu0
        %v2534 = vadd.f32 %v1528, %v2533
        %2535 = vmatprep.mubr.bf16.mxu0 %v1425
        %2536 = vmatmul.mubr.bf16.gmra.mrb[0].mxu0 %v1281
        %v2537 = vpop.f32.mrb[0].mxu0
        %v2538 = vadd.f32 %v1524, %v2537
        %v2539 = vpop.f32.mrb[0].mxu0
        %v2540 = vadd.f32 %v1528, %v2539
        %v2541 = vpop.f32.mrb[0].mxu0
        %v2542 = vadd.f32 %v1524, %v2541
        %v2543 = vpop.f32.mrb[0].mxu0
        %v2544 = vadd.f32 %v1528, %v2543
        %2545 = vmatprep.mubr.bf16.mxu0 %v1428
        %2546 = vmatmul.mubr.bf16.gmra.mrb[0].mxu0 %v1284
        %v2547 = vpop.f32.mrb[0].mxu0
        %v2548 = vadd.f32 %v1524, %v2547
        %v2549 = vpop.f32.mrb[0].mxu0
        %v2550 = vadd.f32 %v1528, %v2549
        %v2551 = vpop.f32.mrb[0].mxu0
        %v2552 = vadd.f32 %v1524, %v2551
        %v2553 = vpop.f32.mrb[0].mxu0
        %v2554 = vadd.f32 %v1528, %v2553
        %2555 = vmatprep.mubr.bf16.mxu0 %v1431
        %2556 = vmatmul.mubr.bf16.gmra.mrb[0].mxu0 %v1287
        %v2557 = vpop.f32.mrb[0].mxu0
        %v2558 = vadd.f32 %v1524, %v2557
        %v2559 = vpop.f32.mrb[0].mxu0
        %v2560 = vadd.f32 %v1528, %v2559
        %v2561 = vpop.f32.mrb[0].mxu0
        %v2562 = vadd.f32 %v1524, %v2561
        %v2563 = vpop.f32.mrb[0].mxu0
        %v2564 = vadd.f32 %v1528, %v2563
        %2565 = vmatprep.mubr.bf16.mxu0 %v1434
        %2566 = vmatmul.mubr.bf16.gmra.mrb[0].mxu0 %v1290
        %v2567 = vpop.f32.mrb[0].mxu0
        %v2568 = vadd.f32 %v1524, %v2567
        %v2569 = vpop.f32.mrb[0].mxu0
        %v2570 = vadd.f32 %v1528, %v2569
        %v2571 = vpop.f32.mrb[0].mxu0
        %v2572 = vadd.f32 %v1524, %v2571
        %v2573 = vpop.f32.mrb[0].mxu0
        %v2574 = vadd.f32 %v1528, %v2573
        %2575 = vmatprep.mubr.bf16.mxu0 %v1437
        %2576 = vmatmul.mubr.bf16.gmra.mrb[0].mxu0 %v1293
        %v2577 = vpop.f32.mrb[0].mxu0
        %v2578 = vadd.f32 %v1524, %v2577
        %v2579 = vpop.f32.mrb[0].mxu0
        %v2580 = vadd.f32 %v1528, %v2579
        %v2581 = vpop.f32.mrb[0].mxu0
        %v2582 = vadd.f32 %v1524, %v2581
        %v2583 = vpop.f32.mrb[0].mxu0
        %v2584 = vadd.f32 %v1528, %v2583
        %2585 = vdwg.mxu0
        %2586 = vmatprep.subr.bf16.mxu0 %v1816
        %2587 = vmatpush1.bf16.msra.mxu0 %v1815
        %2588 = vmatprep.subr.bf16.mxu0 %v1820
        %2589 = vmatpush1.bf16.msra.mxu0 %v1819
        %2590 = vmatprep.subr.bf16.mxu0 0
        %2591 = vmatpush1.bf16.msra.mxu0 0
        %2592 = vmatprep.subr.bf16.mxu0 0
        %2593 = vmatpush1.bf16.msra.mxu0 0
        %2594 = vmatprep.subr.bf16.mxu0 0
        %2595 = vmatpush1.bf16.msra.mxu0 0
        %2596 = vmatprep.subr.bf16.mxu0 0
        %2597 = vmatpush1.bf16.msra.mxu0 0
        %2598 = vmatprep.subr.bf16.mxu0 0
        %2599 = vmatpush1.bf16.msra.mxu0 0
        %2600 = vmatprep.subr.bf16.mxu0 0
        %2601 = vmatpush1.bf16.msra.mxu0 0
        %2602 = vmatprep.subr.bf16.mxu0 0
        %2603 = vmatpush1.bf16.msra.mxu0 0
        %2604 = vmatprep.subr.bf16.mxu0 0
        %2605 = vmatpush1.bf16.msra.mxu0 0
        %2606 = vmatprep.subr.bf16.mxu0 0
        %2607 = vmatpush1.bf16.msra.mxu0 0
        %2608 = vmatprep.subr.bf16.mxu0 0
        %2609 = vmatpush1.bf16.msra.mxu0 0
        %2610 = vmatprep.subr.bf16.mxu0 0
        %2611 = vmatpush1.bf16.msra.mxu0 0
        %2612 = vmatprep.subr.bf16.mxu0 0
        %2613 = vmatpush1.bf16.msra.mxu0 0
        %2614 = vmatprep.subr.bf16.mxu0 0
        %2615 = vmatpush1.bf16.msra.mxu0 0
        %2616 = vmatprep.subr.bf16.mxu0 0
        %2617 = vmatpush1.bf16.msra.mxu0 0
        %2618 = vmatprep.mubr.bf16.mxu0 0
        %2619 = vmatmul.mubr.bf16.gmra.mrb[0].mxu0 %v1894
        %v2620 = vpop.f32.mrb[0].mxu0
        %v2621 = vadd.f32 %v2408, %v2620
        %v2622 = vpop.f32.mrb[0].mxu0
        %v2623 = vadd.f32 %v2410, %v2622
        %v2624 = vpop.f32.mrb[0].mxu0
        %v2625 = vadd.f32 %v2412, %v2624
        %v2626 = vpop.f32.mrb[0].mxu0
        %v2627 = vadd.f32 %v2414, %v2626
        %2628 = vmatprep.mubr.bf16.mxu0 0
        %2629 = vmatmul.mubr.bf16.gmra.mrb[0].mxu0 %v1897
        %v2630 = vpop.f32.mrb[0].mxu0
        %v2631 = vadd.f32 %v2418, %v2630
        %v2632 = vpop.f32.mrb[0].mxu0
        %v2633 = vadd.f32 %v2420, %v2632
        %v2634 = vpop.f32.mrb[0].mxu0
        %v2635 = vadd.f32 %v2422, %v2634
        %v2636 = vpop.f32.mrb[0].mxu0
        %v2637 = vadd.f32 %v2424, %v2636
        %2638 = vmatprep.mubr.bf16.mxu0 0
        %2639 = vmatmul.mubr.bf16.gmra.mrb[0].mxu0 %v1900
        %v2640 = vpop.f32.mrb[0].mxu0
        %v2641 = vadd.f32 %v2428, %v2640
        %v2642 = vpop.f32.mrb[0].mxu0
        %v2643 = vadd.f32 %v2430, %v2642
        %v2644 = vpop.f32.mrb[0].mxu0
        %v2645 = vadd.f32 %v2432, %v2644
        %v2646 = vpop.f32.mrb[0].mxu0
        %v2647 = vadd.f32 %v2434, %v2646
        %2648 = vmatprep.mubr.bf16.mxu0 0
        %2649 = vmatmul.mubr.bf16.gmra.mrb[0].mxu0 %v1903
        %v2650 = vpop.f32.mrb[0].mxu0
        %v2651 = vadd.f32 %v2438, %v2650
        %v2652 = vpop.f32.mrb[0].mxu0
        %v2653 = vadd.f32 %v2440, %v2652
        %v2654 = vpop.f32.mrb[0].mxu0
        %v2655 = vadd.f32 %v2442, %v2654
        %v2656 = vpop.f32.mrb[0].mxu0
        %v2657 = vadd.f32 %v2444, %v2656
        %2658 = vmatprep.mubr.bf16.mxu0 0
        %2659 = vmatmul.mubr.bf16.gmra.mrb[0].mxu0 %v1906
        %v2660 = vpop.f32.mrb[0].mxu0
        %v2661 = vadd.f32 %v2448, %v2660
        %v2662 = vpop.f32.mrb[0].mxu0
        %v2663 = vadd.f32 %v2450, %v2662
        %v2664 = vpop.f32.mrb[0].mxu0
        %v2665 = vadd.f32 %v2452, %v2664
        %v2666 = vpop.f32.mrb[0].mxu0
        %v2667 = vadd.f32 %v2454, %v2666
        %2668 = vmatprep.mubr.bf16.mxu0 0
        %2669 = vmatmul.mubr.bf16.gmra.mrb[0].mxu0 %v1909
        %v2670 = vpop.f32.mrb[0].mxu0
        %v2671 = vadd.f32 %v2458, %v2670
        %v2672 = vpop.f32.mrb[0].mxu0
        %v2673 = vadd.f32 %v2460, %v2672
        %v2674 = vpop.f32.mrb[0].mxu0
        %v2675 = vadd.f32 %v2462, %v2674
        %v2676 = vpop.f32.mrb[0].mxu0
        %v2677 = vadd.f32 %v2464, %v2676
        %2678 = vmatprep.mubr.bf16.mxu0 0
        %2679 = vmatmul.mubr.bf16.gmra.mrb[0].mxu0 %v1912
        %v2680 = vpop.f32.mrb[0].mxu0
        %v2681 = vadd.f32 %v2468, %v2680
        %v2682 = vpop.f32.mrb[0].mxu0
        %v2683 = vadd.f32 %v2470, %v2682
        %v2684 = vpop.f32.mrb[0].mxu0
        %v2685 = vadd.f32 %v2472, %v2684
        %v2686 = vpop.f32.mrb[0].mxu0
        %v2687 = vadd.f32 %v2474, %v2686
        %2688 = vmatprep.mubr.bf16.mxu0 0
        %2689 = vmatmul.mubr.bf16.gmra.mrb[0].mxu0 %v1915
        %v2690 = vpop.f32.mrb[0].mxu0
        %v2691 = vadd.f32 %v2478, %v2690
        %v2692 = vpop.f32.mrb[0].mxu0
        %v2693 = vadd.f32 %v2480, %v2692
        %v2694 = vpop.f32.mrb[0].mxu0
        %v2695 = vadd.f32 %v2482, %v2694
        %v2696 = vpop.f32.mrb[0].mxu0
        %v2697 = vadd.f32 %v2484, %v2696
        %2698 = vmatprep.mubr.bf16.mxu0 0
        %2699 = vmatmul.mubr.bf16.gmra.mrb[0].mxu0 %v1918
        %v2700 = vpop.f32.mrb[0].mxu0
        %v2701 = vadd.f32 %v2488, %v2700
        %v2702 = vpop.f32.mrb[0].mxu0
        %v2703 = vadd.f32 %v2490, %v2702
        %v2704 = vpop.f32.mrb[0].mxu0
        %v2705 = vadd.f32 %v2492, %v2704
        %v2706 = vpop.f32.mrb[0].mxu0
        %v2707 = vadd.f32 %v2494, %v2706
        %2708 = vmatprep.mubr.bf16.mxu0 0
        %2709 = vmatmul.mubr.bf16.gmra.mrb[0].mxu0 %v1921
        %v2710 = vpop.f32.mrb[0].mxu0
        %v2711 = vadd.f32 %v2498, %v2710
        %v2712 = vpop.f32.mrb[0].mxu0
        %v2713 = vadd.f32 %v2500, %v2712
        %v2714 = vpop.f32.mrb[0].mxu0
        %v2715 = vadd.f32 %v2502, %v2714
        %v2716 = vpop.f32.mrb[0].mxu0
        %v2717 = vadd.f32 %v2504, %v2716
        %2718 = vmatprep.mubr.bf16.mxu0 0
        %2719 = vmatmul.mubr.bf16.gmra.mrb[0].mxu0 %v1924
        %v2720 = vpop.f32.mrb[0].mxu0
        %v2721 = vadd.f32 %v2508, %v2720
        %v2722 = vpop.f32.mrb[0].mxu0
        %v2723 = vadd.f32 %v2510, %v2722
        %v2724 = vpop.f32.mrb[0].mxu0
        %v2725 = vadd.f32 %v2512, %v2724
        %v2726 = vpop.f32.mrb[0].mxu0
        %v2727 = vadd.f32 %v2514, %v2726
        %2728 = vmatprep.mubr.bf16.mxu0 0
        %2729 = vmatmul.mubr.bf16.gmra.mrb[0].mxu0 %v1927
        %v2730 = vpop.f32.mrb[0].mxu0
        %v2731 = vadd.f32 %v2518, %v2730
        %v2732 = vpop.f32.mrb[0].mxu0
        %v2733 = vadd.f32 %v2520, %v2732
        %v2734 = vpop.f32.mrb[0].mxu0
        %v2735 = vadd.f32 %v2522, %v2734
        %v2736 = vpop.f32.mrb[0].mxu0
        %v2737 = vadd.f32 %v2524, %v2736
        %2738 = vmatprep.mubr.bf16.mxu0 0
        %2739 = vmatmul.mubr.bf16.gmra.mrb[0].mxu0 %v1930
        %v2740 = vpop.f32.mrb[0].mxu0
        %v2741 = vadd.f32 %v2528, %v2740
        %v2742 = vpop.f32.mrb[0].mxu0
        %v2743 = vadd.f32 %v2530, %v2742
        %v2744 = vpop.f32.mrb[0].mxu0
        %v2745 = vadd.f32 %v2532, %v2744
        %v2746 = vpop.f32.mrb[0].mxu0
        %v2747 = vadd.f32 %v2534, %v2746
        %2748 = vmatprep.mubr.bf16.mxu0 0
        %2749 = vmatmul.mubr.bf16.gmra.mrb[0].mxu0 %v1933
        %v2750 = vpop.f32.mrb[0].mxu0
        %v2751 = vadd.f32 %v2538, %v2750
        %v2752 = vpop.f32.mrb[0].mxu0
        %v2753 = vadd.f32 %v2540, %v2752
        %v2754 = vpop.f32.mrb[0].mxu0
        %v2755 = vadd.f32 %v2542, %v2754
        %v2756 = vpop.f32.mrb[0].mxu0
        %v2757 = vadd.f32 %v2544, %v2756
        %2758 = vmatprep.mubr.bf16.mxu0 0
        %2759 = vmatmul.mubr.bf16.gmra.mrb[0].mxu0 %v1936
        %v2760 = vpop.f32.mrb[0].mxu0
        %v2761 = vadd.f32 %v2548, %v2760
        %v2762 = vpop.f32.mrb[0].mxu0
        %v2763 = vadd.f32 %v2550, %v2762
        %v2764 = vpop.f32.mrb[0].mxu0
        %v2765 = vadd.f32 %v2552, %v2764
        %v2766 = vpop.f32.mrb[0].mxu0
        %v2767 = vadd.f32 %v2554, %v2766
        %2768 = vmatprep.mubr.bf16.mxu0 0
        %2769 = vmatmul.mubr.bf16.gmra.mrb[0].mxu0 %v1939
        %v2770 = vpop.f32.mrb[0].mxu0
        %v2771 = vadd.f32 %v2558, %v2770
        %v2772 = vpop.f32.mrb[0].mxu0
        %v2773 = vadd.f32 %v2560, %v2772
        %v2774 = vpop.f32.mrb[0].mxu0
        %v2775 = vadd.f32 %v2562, %v2774
        %v2776 = vpop.f32.mrb[0].mxu0
        %v2777 = vadd.f32 %v2564, %v2776
        %2778 = vmatprep.mubr.bf16.mxu0 0
        %2779 = vmatmul.mubr.bf16.gmra.mrb[0].mxu0 %v1942
        %v2780 = vpop.f32.mrb[0].mxu0
        %v2781 = vadd.f32 %v2568, %v2780
        %v2782 = vpop.f32.mrb[0].mxu0
        %v2783 = vadd.f32 %v2570, %v2782
        %v2784 = vpop.f32.mrb[0].mxu0
        %v2785 = vadd.f32 %v2572, %v2784
        %v2786 = vpop.f32.mrb[0].mxu0
        %v2787 = vadd.f32 %v2574, %v2786
        %2788 = vmatprep.mubr.bf16.mxu0 0
        %2789 = vmatmul.mubr.bf16.gmra.mrb[0].mxu0 %v1945
        %v2790 = vpop.f32.mrb[0].mxu0
        %v2791 = vadd.f32 %v2578, %v2790
        %v2792 = vpop.f32.mrb[0].mxu0
        %v2793 = vadd.f32 %v2580, %v2792
        %v2794 = vpop.f32.mrb[0].mxu0
        %v2795 = vadd.f32 %v2582, %v2794
        %v2796 = vpop.f32.mrb[0].mxu0
        %v2797 = vadd.f32 %v2584, %v2796
        %2798 = vdwg.mxu0
        %v2799 = vmax.f32 %v2195, 0.0
        %v2800 = vmax.f32 %v2197, 0.0
        %v2801 = vmax.f32 %v2621, 0.0
        %v2802 = vmax.f32 %v2623, 0.0
        %v2803 = vmax.f32 %v2199, 0.0
        %v2804 = vmax.f32 %v2201, 0.0
        %v2805 = vmax.f32 %v2625, 0.0
        %v2806 = vmax.f32 %v2627, 0.0
        %v2807 = vmax.f32 %v2205, 0.0
        %v2808 = vmax.f32 %v2207, 0.0
        %v2809 = vmax.f32 %v2631, 0.0
        %v2810 = vmax.f32 %v2633, 0.0
        %v2811 = vmax.f32 %v2209, 0.0
        %v2812 = vmax.f32 %v2211, 0.0
        %v2813 = vmax.f32 %v2635, 0.0
        %v2814 = vmax.f32 %v2637, 0.0
        %v2815 = vmax.f32 %v2215, 0.0
        %v2816 = vmax.f32 %v2217, 0.0
        %v2817 = vmax.f32 %v2641, 0.0
        %v2818 = vmax.f32 %v2643, 0.0
        %v2819 = vmax.f32 %v2219, 0.0
        %v2820 = vmax.f32 %v2221, 0.0
        %v2821 = vmax.f32 %v2645, 0.0
        %v2822 = vmax.f32 %v2647, 0.0
        %v2823 = vmax.f32 %v2225, 0.0
        %v2824 = vmax.f32 %v2227, 0.0
        %v2825 = vmax.f32 %v2651, 0.0
        %v2826 = vmax.f32 %v2653, 0.0
        %v2827 = vmax.f32 %v2229, 0.0
        %v2828 = vmax.f32 %v2231, 0.0
        %v2829 = vmax.f32 %v2655, 0.0
        %v2830 = vmax.f32 %v2657, 0.0
        %v2831 = vmax.f32 %v2235, 0.0
        %v2832 = vmax.f32 %v2237, 0.0
        %v2833 = vmax.f32 %v2661, 0.0
        %v2834 = vmax.f32 %v2663, 0.0
        %v2835 = vmax.f32 %v2239, 0.0
        %v2836 = vmax.f32 %v2241, 0.0
        %v2837 = vmax.f32 %v2665, 0.0
        %v2838 = vmax.f32 %v2667, 0.0
        %v2839 = vmax.f32 %v2245, 0.0
        %v2840 = vmax.f32 %v2247, 0.0
        %v2841 = vmax.f32 %v2671, 0.0
        %v2842 = vmax.f32 %v2673, 0.0
        %v2843 = vmax.f32 %v2249, 0.0
        %v2844 = vmax.f32 %v2251, 0.0
        %v2845 = vmax.f32 %v2675, 0.0
        %v2846 = vmax.f32 %v2677, 0.0
        %v2847 = vmax.f32 %v2255, 0.0
        %v2848 = vmax.f32 %v2257, 0.0
        %v2849 = vmax.f32 %v2681, 0.0
        %v2850 = vmax.f32 %v2683, 0.0
        %v2851 = vmax.f32 %v2259, 0.0
        %v2852 = vmax.f32 %v2261, 0.0
        %v2853 = vmax.f32 %v2685, 0.0
        %v2854 = vmax.f32 %v2687, 0.0
        %v2855 = vmax.f32 %v2265, 0.0
        %v2856 = vmax.f32 %v2267, 0.0
        %v2857 = vmax.f32 %v2691, 0.0
        %v2858 = vmax.f32 %v2693, 0.0
        %v2859 = vmax.f32 %v2269, 0.0
        %v2860 = vmax.f32 %v2271, 0.0
        %v2861 = vmax.f32 %v2695, 0.0
        %v2862 = vmax.f32 %v2697, 0.0
        %v2863 = vmax.f32 %v2275, 0.0
        %v2864 = vmax.f32 %v2277, 0.0
        %v2865 = vmax.f32 %v2701, 0.0
        %v2866 = vmax.f32 %v2703, 0.0
        %v2867 = vmax.f32 %v2279, 0.0
        %v2868 = vmax.f32 %v2281, 0.0
        %v2869 = vmax.f32 %v2705, 0.0
        %v2870 = vmax.f32 %v2707, 0.0
        %v2871 = vmax.f32 %v2285, 0.0
        %v2872 = vmax.f32 %v2287, 0.0
        %v2873 = vmax.f32 %v2711, 0.0
        %v2874 = vmax.f32 %v2713, 0.0
        %v2875 = vmax.f32 %v2289, 0.0
        %v2876 = vmax.f32 %v2291, 0.0
        %v2877 = vmax.f32 %v2715, 0.0
        %v2878 = vmax.f32 %v2717, 0.0
        %v2879 = vmax.f32 %v2295, 0.0
        %v2880 = vmax.f32 %v2297, 0.0
        %v2881 = vmax.f32 %v2721, 0.0
        %v2882 = vmax.f32 %v2723, 0.0
        %v2883 = vmax.f32 %v2299, 0.0
        %v2884 = vmax.f32 %v2301, 0.0
        %v2885 = vmax.f32 %v2725, 0.0
        %v2886 = vmax.f32 %v2727, 0.0
        %v2887 = vmax.f32 %v2305, 0.0
        %v2888 = vmax.f32 %v2307, 0.0
        %v2889 = vmax.f32 %v2731, 0.0
        %v2890 = vmax.f32 %v2733, 0.0
        %v2891 = vmax.f32 %v2309, 0.0
        %v2892 = vmax.f32 %v2311, 0.0
        %v2893 = vmax.f32 %v2735, 0.0
        %v2894 = vmax.f32 %v2737, 0.0
        %v2895 = vmax.f32 %v2315, 0.0
        %v2896 = vmax.f32 %v2317, 0.0
        %v2897 = vmax.f32 %v2741, 0.0
        %v2898 = vmax.f32 %v2743, 0.0
        %v2899 = vmax.f32 %v2319, 0.0
        %v2900 = vmax.f32 %v2321, 0.0
        %v2901 = vmax.f32 %v2745, 0.0
        %v2902 = vmax.f32 %v2747, 0.0
        %v2903 = vmax.f32 %v2325, 0.0
        %v2904 = vmax.f32 %v2327, 0.0
        %v2905 = vmax.f32 %v2751, 0.0
        %v2906 = vmax.f32 %v2753, 0.0
        %v2907 = vmax.f32 %v2329, 0.0
        %v2908 = vmax.f32 %v2331, 0.0
        %v2909 = vmax.f32 %v2755, 0.0
        %v2910 = vmax.f32 %v2757, 0.0
        %v2911 = vmax.f32 %v2335, 0.0
        %v2912 = vmax.f32 %v2337, 0.0
        %v2913 = vmax.f32 %v2761, 0.0
        %v2914 = vmax.f32 %v2763, 0.0
        %v2915 = vmax.f32 %v2339, 0.0
        %v2916 = vmax.f32 %v2341, 0.0
        %v2917 = vmax.f32 %v2765, 0.0
        %v2918 = vmax.f32 %v2767, 0.0
        %v2919 = vmax.f32 %v2345, 0.0
        %v2920 = vmax.f32 %v2347, 0.0
        %v2921 = vmax.f32 %v2771, 0.0
        %v2922 = vmax.f32 %v2773, 0.0
        %v2923 = vmax.f32 %v2349, 0.0
        %v2924 = vmax.f32 %v2351, 0.0
        %v2925 = vmax.f32 %v2775, 0.0
        %v2926 = vmax.f32 %v2777, 0.0
        %v2927 = vmax.f32 %v2355, 0.0
        %v2928 = vmax.f32 %v2357, 0.0
        %v2929 = vmax.f32 %v2781, 0.0
        %v2930 = vmax.f32 %v2783, 0.0
        %v2931 = vmax.f32 %v2359, 0.0
        %v2932 = vmax.f32 %v2361, 0.0
        %v2933 = vmax.f32 %v2785, 0.0
        %v2934 = vmax.f32 %v2787, 0.0
        %v2935 = vmax.f32 %v2365, 0.0
        %v2936 = vmax.f32 %v2367, 0.0
        %v2937 = vmax.f32 %v2791, 0.0
        %v2938 = vmax.f32 %v2793, 0.0
        %v2939 = vmax.f32 %v2369, 0.0
        %v2940 = vmax.f32 %v2371, 0.0
        %v2941 = vmax.f32 %v2795, 0.0
        %v2942 = vmax.f32 %v2797, 0.0
        %v2943 = vpack.c.bf16 %v2803, %v2799
        %v2944 = vpack.c.bf16 %v2804, %v2800
        %v2945 = vpack.c.bf16 %v2805, %v2801
        %v2946 = vpack.c.bf16 %v2806, %v2802
        %v2947 = vpack.c.bf16 %v2811, %v2807
        %v2948 = vpack.c.bf16 %v2812, %v2808
        %v2949 = vpack.c.bf16 %v2813, %v2809
        %v2950 = vpack.c.bf16 %v2814, %v2810
        %v2951 = vpack.c.bf16 %v2819, %v2815
        %v2952 = vpack.c.bf16 %v2820, %v2816
        %v2953 = vpack.c.bf16 %v2821, %v2817
        %v2954 = vpack.c.bf16 %v2822, %v2818
        %v2955 = vpack.c.bf16 %v2827, %v2823
        %v2956 = vpack.c.bf16 %v2828, %v2824
        %v2957 = vpack.c.bf16 %v2829, %v2825
        %v2958 = vpack.c.bf16 %v2830, %v2826
        %v2959 = vpack.c.bf16 %v2835, %v2831
        %v2960 = vpack.c.bf16 %v2836, %v2832
        %v2961 = vpack.c.bf16 %v2837, %v2833
        %v2962 = vpack.c.bf16 %v2838, %v2834
        %v2963 = vpack.c.bf16 %v2843, %v2839
        %v2964 = vpack.c.bf16 %v2844, %v2840
        %v2965 = vpack.c.bf16 %v2845, %v2841
        %v2966 = vpack.c.bf16 %v2846, %v2842
        %v2967 = vpack.c.bf16 %v2851, %v2847
        %v2968 = vpack.c.bf16 %v2852, %v2848
        %v2969 = vpack.c.bf16 %v2853, %v2849
        %v2970 = vpack.c.bf16 %v2854, %v2850
        %v2971 = vpack.c.bf16 %v2859, %v2855
        %v2972 = vpack.c.bf16 %v2860, %v2856
        %v2973 = vpack.c.bf16 %v2861, %v2857
        %v2974 = vpack.c.bf16 %v2862, %v2858
        %v2975 = vpack.c.bf16 %v2867, %v2863
        %v2976 = vpack.c.bf16 %v2868, %v2864
        %v2977 = vpack.c.bf16 %v2869, %v2865
        %v2978 = vpack.c.bf16 %v2870, %v2866
        %v2979 = vpack.c.bf16 %v2875, %v2871
        %v2980 = vpack.c.bf16 %v2876, %v2872
        %v2981 = vpack.c.bf16 %v2877, %v2873
        %v2982 = vpack.c.bf16 %v2878, %v2874
        %v2983 = vpack.c.bf16 %v2883, %v2879
        %v2984 = vpack.c.bf16 %v2884, %v2880
        %v2985 = vpack.c.bf16 %v2885, %v2881
        %v2986 = vpack.c.bf16 %v2886, %v2882
        %v2987 = vpack.c.bf16 %v2891, %v2887
        %v2988 = vpack.c.bf16 %v2892, %v2888
        %v2989 = vpack.c.bf16 %v2893, %v2889
        %v2990 = vpack.c.bf16 %v2894, %v2890
        %v2991 = vpack.c.bf16 %v2899, %v2895
        %v2992 = vpack.c.bf16 %v2900, %v2896
        %v2993 = vpack.c.bf16 %v2901, %v2897
        %v2994 = vpack.c.bf16 %v2902, %v2898
        %v2995 = vpack.c.bf16 %v2907, %v2903
        %v2996 = vpack.c.bf16 %v2908, %v2904
        %v2997 = vpack.c.bf16 %v2909, %v2905
        %v2998 = vpack.c.bf16 %v2910, %v2906
        %v2999 = vpack.c.bf16 %v2915, %v2911
        %v3000 = vpack.c.bf16 %v2916, %v2912
        %v3001 = vpack.c.bf16 %v2917, %v2913
        %v3002 = vpack.c.bf16 %v2918, %v2914
        %v3003 = vpack.c.bf16 %v2923, %v2919
        %v3004 = vpack.c.bf16 %v2924, %v2920
        %v3005 = vpack.c.bf16 %v2925, %v2921
        %v3006 = vpack.c.bf16 %v2926, %v2922
        %v3007 = vpack.c.bf16 %v2931, %v2927
        %v3008 = vpack.c.bf16 %v2932, %v2928
        %v3009 = vpack.c.bf16 %v2933, %v2929
        %v3010 = vpack.c.bf16 %v2934, %v2930
        %v3011 = vpack.c.bf16 %v2939, %v2935
        %v3012 = vpack.c.bf16 %v2940, %v2936
        %v3013 = vpack.c.bf16 %v2941, %v2937
        %v3014 = vpack.c.bf16 %v2942, %v2938
        %v3015 = vld [vmem:[%s4] sm:$0xf]
        %v3016 = vld [vmem:[%s4 + $0x4] sm:$0xf]
        %v3017 = vld [vmem:[%s4 + $0x8] sm:$0xf]
        %v3018 = vld [vmem:[%s4 + $0xc] sm:$0xf]
        %v3019 = vld [vmem:[%s4 + $0x10] sm:$0xf]
        %v3020 = vld [vmem:[%s4 + $0x14] sm:$0xf]
        %v3021 = vld [vmem:[%s4 + $0x18] sm:$0xf]
        %v3022 = vld [vmem:[%s4 + $0x1c] sm:$0xf]
        %v3023 = vld [vmem:[%s4 + $0x20] sm:$0xf]
        %v3024 = vld [vmem:[%s4 + $0x24] sm:$0xf]
        %v3025 = vld [vmem:[%s4 + $0x28] sm:$0xf]
        %v3026 = vld [vmem:[%s4 + $0x2c] sm:$0xf]
        %v3027 = vld [vmem:[%s4 + $0x30] sm:$0xf]
        %v3028 = vld [vmem:[%s4 + $0x34] sm:$0xf]
        %v3029 = vld [vmem:[%s4 + $0x38] sm:$0xf]
        %v3030 = vld [vmem:[%s4 + $0x3c] sm:$0xf]
        %v3031 = vld [vmem:[%s4 + $0x40] sm:$0xf]
        %v3032 = vld [vmem:[%s4 + $0x44] sm:$0xf]
        %v3033 = vld [vmem:[%s4 + $0x48] sm:$0xf]
        %v3034 = vld [vmem:[%s4 + $0x4c] sm:$0xf]
        %v3035 = vld [vmem:[%s4 + $0x50] sm:$0xf]
        %v3036 = vld [vmem:[%s4 + $0x54] sm:$0xf]
        %v3037 = vld [vmem:[%s4 + $0x58] sm:$0xf]
        %v3038 = vld [vmem:[%s4 + $0x5c] sm:$0xf]
        %v3039 = vld [vmem:[%s4 + $0x60] sm:$0xf]
        %v3040 = vld [vmem:[%s4 + $0x64] sm:$0xf]
        %v3041 = vld [vmem:[%s4 + $0x68] sm:$0xf]
        %v3042 = vld [vmem:[%s4 + $0x6c] sm:$0xf]
        %v3043 = vld [vmem:[%s4 + $0x70] sm:$0xf]
        %v3044 = vld [vmem:[%s4 + $0x74] sm:$0xf]
        %v3045 = vld [vmem:[%s4 + $0x78] sm:$0xf]
        %v3046 = vld [vmem:[%s4 + $0x7c] sm:$0xf]
        %v3047 = vld [vmem:[%s4 + $0x80] sm:$0xf]
        %v3048 = vld [vmem:[%s4 + $0x84] sm:$0xf]
        %v3049 = vld [vmem:[%s4 + $0x88] sm:$0xf]
        %v3050 = vld [vmem:[%s4 + $0x8c] sm:$0xf]
        %v3051 = vld [vmem:[%s4 + $0x90] sm:$0xf]
        %v3052 = vld [vmem:[%s4 + $0x94] sm:$0xf]
        %v3053 = vld [vmem:[%s4 + $0x98] sm:$0xf]
        %v3054 = vld [vmem:[%s4 + $0x9c] sm:$0xf]
        %v3055 = vld [vmem:[%s4 + $0xa0] sm:$0xf]
        %v3056 = vld [vmem:[%s4 + $0xa4] sm:$0xf]
        %v3057 = vld [vmem:[%s4 + $0xa8] sm:$0xf]
        %v3058 = vld [vmem:[%s4 + $0xac] sm:$0xf]
        %v3059 = vld [vmem:[%s4 + $0xb0] sm:$0xf]
        %v3060 = vld [vmem:[%s4 + $0xb4] sm:$0xf]
        %v3061 = vld [vmem:[%s4 + $0xb8] sm:$0xf]
        %v3062 = vld [vmem:[%s4 + $0xbc] sm:$0xf]
        %v3063 = vld [vmem:[%s4 + $0xc0] sm:$0xf]
        %v3064 = vld [vmem:[%s4 + $0xc4] sm:$0xf]
        %v3065 = vld [vmem:[%s4 + $0xc8] sm:$0xf]
        %v3066 = vld [vmem:[%s4 + $0xcc] sm:$0xf]
        %v3067 = vld [vmem:[%s4 + $0xd0] sm:$0xf]
        %v3068 = vld [vmem:[%s4 + $0xd4] sm:$0xf]
        %v3069 = vld [vmem:[%s4 + $0xd8] sm:$0xf]
        %v3070 = vld [vmem:[%s4 + $0xdc] sm:$0xf]
        %v3071 = vld [vmem:[%s4 + $0xe0] sm:$0xf]
        %v3072 = vld [vmem:[%s4 + $0xe4] sm:$0xf]
        %v3073 = vld [vmem:[%s4 + $0xe8] sm:$0xf]
        %v3074 = vld [vmem:[%s4 + $0xec] sm:$0xf]
        %v3075 = vld [vmem:[%s4 + $0xf0] sm:$0xf]
        %v3076 = vld [vmem:[%s4 + $0xf4] sm:$0xf]
        %v3077 = vld [vmem:[%s4 + $0xf8] sm:$0xf]
        %v3078 = vld [vmem:[%s4 + $0xfc] sm:$0xf]
        %v3079 = vld [vmem:[%s5] sm:$0x1]
        %v3081 = vlaneseq
        %v3082 = vshrl.u32 %v3081, 7
        %v3083 = vsub.s32 0, %v3082
        %v3084 = vrot.slane %v3079, %v3083
        %v3150 = vunpack.c.l.b16 %v3015
        %v3151 = vunpack.c.l.b16 %v3016
        %v3152 = vunpack.c.l.b16 %v3017
        %v3153 = vunpack.c.l.b16 %v3018
        %v3154 = vunpack.c.l.b16 %v3019
        %v3155 = vunpack.c.l.b16 %v3020
        %v3156 = vunpack.c.l.b16 %v3021
        %v3157 = vunpack.c.l.b16 %v3022
        %v3158 = vunpack.c.l.b16 %v3023
        %v3159 = vunpack.c.l.b16 %v3024
        %v3160 = vunpack.c.l.b16 %v3025
        %v3161 = vunpack.c.l.b16 %v3026
        %v3162 = vunpack.c.l.b16 %v3027
        %v3163 = vunpack.c.l.b16 %v3028
        %v3164 = vunpack.c.l.b16 %v3029
        %v3165 = vunpack.c.l.b16 %v3030
        %v3166 = vunpack.c.l.b16 %v3031
        %v3167 = vunpack.c.l.b16 %v3032
        %v3168 = vunpack.c.l.b16 %v3033
        %v3169 = vunpack.c.l.b16 %v3034
        %v3170 = vunpack.c.l.b16 %v3035
        %v3171 = vunpack.c.l.b16 %v3036
        %v3172 = vunpack.c.l.b16 %v3037
        %v3173 = vunpack.c.l.b16 %v3038
        %v3174 = vunpack.c.l.b16 %v3039
        %v3175 = vunpack.c.l.b16 %v3040
        %v3176 = vunpack.c.l.b16 %v3041
        %v3177 = vunpack.c.l.b16 %v3042
        %v3178 = vunpack.c.l.b16 %v3043
        %v3179 = vunpack.c.l.b16 %v3044
        %v3180 = vunpack.c.l.b16 %v3045
        %v3181 = vunpack.c.l.b16 %v3046
        %v3182 = vunpack.c.l.b16 %v3047
        %v3183 = vunpack.c.l.b16 %v3048
        %v3184 = vunpack.c.l.b16 %v3049
        %v3185 = vunpack.c.l.b16 %v3050
        %v3186 = vunpack.c.l.b16 %v3051
        %v3187 = vunpack.c.l.b16 %v3052
        %v3188 = vunpack.c.l.b16 %v3053
        %v3189 = vunpack.c.l.b16 %v3054
        %v3190 = vunpack.c.l.b16 %v3055
        %v3191 = vunpack.c.l.b16 %v3056
        %v3192 = vunpack.c.l.b16 %v3057
        %v3193 = vunpack.c.l.b16 %v3058
        %v3194 = vunpack.c.l.b16 %v3059
        %v3195 = vunpack.c.l.b16 %v3060
        %v3196 = vunpack.c.l.b16 %v3061
        %v3197 = vunpack.c.l.b16 %v3062
        %v3198 = vunpack.c.l.b16 %v3063
        %v3199 = vunpack.c.l.b16 %v3064
        %v3200 = vunpack.c.l.b16 %v3065
        %v3201 = vunpack.c.l.b16 %v3066
        %v3202 = vunpack.c.l.b16 %v3067
        %v3203 = vunpack.c.l.b16 %v3068
        %v3204 = vunpack.c.l.b16 %v3069
        %v3205 = vunpack.c.l.b16 %v3070
        %v3206 = vunpack.c.l.b16 %v3071
        %v3207 = vunpack.c.l.b16 %v3072
        %v3208 = vunpack.c.l.b16 %v3073
        %v3209 = vunpack.c.l.b16 %v3074
        %v3210 = vunpack.c.l.b16 %v3075
        %v3211 = vunpack.c.l.b16 %v3076
        %v3212 = vunpack.c.l.b16 %v3077
        %v3213 = vunpack.c.l.b16 %v3078
        %v3214 = vpack.c.b16 %v3151, %v3150
        %v3215 = vpack.c.b16 %v3153, %v3152
        %v3216 = vpack.c.b16 %v3155, %v3154
        %v3217 = vpack.c.b16 %v3157, %v3156
        %v3218 = vpack.c.b16 %v3159, %v3158
        %v3219 = vpack.c.b16 %v3161, %v3160
        %v3220 = vpack.c.b16 %v3163, %v3162
        %v3221 = vpack.c.b16 %v3165, %v3164
        %v3222 = vpack.c.b16 %v3167, %v3166
        %v3223 = vpack.c.b16 %v3169, %v3168
        %v3224 = vpack.c.b16 %v3171, %v3170
        %v3225 = vpack.c.b16 %v3173, %v3172
        %v3226 = vpack.c.b16 %v3175, %v3174
        %v3227 = vpack.c.b16 %v3177, %v3176
        %v3228 = vpack.c.b16 %v3179, %v3178
        %v3229 = vpack.c.b16 %v3181, %v3180
        %v3230 = vpack.c.b16 %v3183, %v3182
        %v3231 = vpack.c.b16 %v3185, %v3184
        %v3232 = vpack.c.b16 %v3187, %v3186
        %v3233 = vpack.c.b16 %v3189, %v3188
        %v3234 = vpack.c.b16 %v3191, %v3190
        %v3235 = vpack.c.b16 %v3193, %v3192
        %v3236 = vpack.c.b16 %v3195, %v3194
        %v3237 = vpack.c.b16 %v3197, %v3196
        %v3238 = vpack.c.b16 %v3199, %v3198
        %v3239 = vpack.c.b16 %v3201, %v3200
        %v3240 = vpack.c.b16 %v3203, %v3202
        %v3241 = vpack.c.b16 %v3205, %v3204
        %v3242 = vpack.c.b16 %v3207, %v3206
        %v3243 = vpack.c.b16 %v3209, %v3208
        %v3244 = vpack.c.b16 %v3211, %v3210
        %v3245 = vpack.c.b16 %v3213, %v3212
        %3278 = vmatprep.subr.bf16.mxu0 0
        %3279 = vmatpush1.bf16.msra.mxu0 %v3214
        %3280 = vmatprep.subr.bf16.mxu0 0
        %3281 = vmatpush1.bf16.msra.mxu0 %v3215
        %3282 = vmatprep.subr.bf16.mxu0 0
        %3283 = vmatpush1.bf16.msra.mxu0 %v3216
        %3284 = vmatprep.subr.bf16.mxu0 0
        %3285 = vmatpush1.bf16.msra.mxu0 %v3217
        %3286 = vmatprep.subr.bf16.mxu0 0
        %3287 = vmatpush1.bf16.msra.mxu0 %v3218
        %3288 = vmatprep.subr.bf16.mxu0 0
        %3289 = vmatpush1.bf16.msra.mxu0 %v3219
        %3290 = vmatprep.subr.bf16.mxu0 0
        %3291 = vmatpush1.bf16.msra.mxu0 %v3220
        %3292 = vmatprep.subr.bf16.mxu0 0
        %3293 = vmatpush1.bf16.msra.mxu0 %v3221
        %3294 = vmatprep.subr.bf16.mxu0 0
        %3295 = vmatpush1.bf16.msra.mxu0 %v3222
        %3296 = vmatprep.subr.bf16.mxu0 0
        %3297 = vmatpush1.bf16.msra.mxu0 %v3223
        %3298 = vmatprep.subr.bf16.mxu0 0
        %3299 = vmatpush1.bf16.msra.mxu0 %v3224
        %3300 = vmatprep.subr.bf16.mxu0 0
        %3301 = vmatpush1.bf16.msra.mxu0 %v3225
        %3302 = vmatprep.subr.bf16.mxu0 0
        %3303 = vmatpush1.bf16.msra.mxu0 %v3226
        %3304 = vmatprep.subr.bf16.mxu0 0
        %3305 = vmatpush1.bf16.msra.mxu0 %v3227
        %3306 = vmatprep.subr.bf16.mxu0 0
        %3307 = vmatpush1.bf16.msra.mxu0 %v3228
        %3308 = vmatprep.subr.bf16.mxu0 0
        %3309 = vmatpush1.bf16.msra.mxu0 %v3229
        %3310 = vmatprep.mubr.bf16.mxu0 %v2944
        %3311 = vmatmul.mubr.bf16.gmra.mrb[0].mxu0 %v2943
        %v3312 = vpop.f32.mrb[0].mxu0
        %v3313 = vadd.f32 %v3084, %v3312
        %v3314 = vpop.f32.mrb[0].mxu0
        %v3315 = vpop.f32.mrb[0].mxu0
        %v3316 = vadd.f32 %v3084, %v3315
        %v3317 = vpop.f32.mrb[0].mxu0
        %3318 = vmatprep.mubr.bf16.mxu0 %v2948
        %3319 = vmatmul.mubr.bf16.gmra.mrb[0].mxu0 %v2947
        %v3320 = vpop.f32.mrb[0].mxu0
        %v3321 = vadd.f32 %v3084, %v3320
        %v3322 = vpop.f32.mrb[0].mxu0
        %v3323 = vpop.f32.mrb[0].mxu0
        %v3324 = vadd.f32 %v3084, %v3323
        %v3325 = vpop.f32.mrb[0].mxu0
        %3326 = vmatprep.mubr.bf16.mxu0 %v2952
        %3327 = vmatmul.mubr.bf16.gmra.mrb[0].mxu0 %v2951
        %v3328 = vpop.f32.mrb[0].mxu0
        %v3329 = vadd.f32 %v3084, %v3328
        %v3330 = vpop.f32.mrb[0].mxu0
        %v3331 = vpop.f32.mrb[0].mxu0
        %v3332 = vadd.f32 %v3084, %v3331
        %v3333 = vpop.f32.mrb[0].mxu0
        %3334 = vmatprep.mubr.bf16.mxu0 %v2956
        %3335 = vmatmul.mubr.bf16.gmra.mrb[0].mxu0 %v2955
        %v3336 = vpop.f32.mrb[0].mxu0
        %v3337 = vadd.f32 %v3084, %v3336
        %v3338 = vpop.f32.mrb[0].mxu0
        %v3339 = vpop.f32.mrb[0].mxu0
        %v3340 = vadd.f32 %v3084, %v3339
        %v3341 = vpop.f32.mrb[0].mxu0
        %3342 = vmatprep.mubr.bf16.mxu0 %v2960
        %3343 = vmatmul.mubr.bf16.gmra.mrb[0].mxu0 %v2959
        %v3344 = vpop.f32.mrb[0].mxu0
        %v3345 = vadd.f32 %v3084, %v3344
        %v3346 = vpop.f32.mrb[0].mxu0
        %v3347 = vpop.f32.mrb[0].mxu0
        %v3348 = vadd.f32 %v3084, %v3347
        %v3349 = vpop.f32.mrb[0].mxu0
        %3350 = vmatprep.mubr.bf16.mxu0 %v2964
        %3351 = vmatmul.mubr.bf16.gmra.mrb[0].mxu0 %v2963
        %v3352 = vpop.f32.mrb[0].mxu0
        %v3353 = vadd.f32 %v3084, %v3352
        %v3354 = vpop.f32.mrb[0].mxu0
        %v3355 = vpop.f32.mrb[0].mxu0
        %v3356 = vadd.f32 %v3084, %v3355
        %v3357 = vpop.f32.mrb[0].mxu0
        %3358 = vmatprep.mubr.bf16.mxu0 %v2968
        %3359 = vmatmul.mubr.bf16.gmra.mrb[0].mxu0 %v2967
        %v3360 = vpop.f32.mrb[0].mxu0
        %v3361 = vadd.f32 %v3084, %v3360
        %v3362 = vpop.f32.mrb[0].mxu0
        %v3363 = vpop.f32.mrb[0].mxu0
        %v3364 = vadd.f32 %v3084, %v3363
        %v3365 = vpop.f32.mrb[0].mxu0
        %3366 = vmatprep.mubr.bf16.mxu0 %v2972
        %3367 = vmatmul.mubr.bf16.gmra.mrb[0].mxu0 %v2971
        %v3368 = vpop.f32.mrb[0].mxu0
        %v3369 = vadd.f32 %v3084, %v3368
        %v3370 = vpop.f32.mrb[0].mxu0
        %v3371 = vpop.f32.mrb[0].mxu0
        %v3372 = vadd.f32 %v3084, %v3371
        %v3373 = vpop.f32.mrb[0].mxu0
        %3374 = vmatprep.mubr.bf16.mxu0 %v2976
        %3375 = vmatmul.mubr.bf16.gmra.mrb[0].mxu0 %v2975
        %v3376 = vpop.f32.mrb[0].mxu0
        %v3377 = vadd.f32 %v3084, %v3376
        %v3378 = vpop.f32.mrb[0].mxu0
        %v3379 = vpop.f32.mrb[0].mxu0
        %v3380 = vadd.f32 %v3084, %v3379
        %v3381 = vpop.f32.mrb[0].mxu0
        %3382 = vmatprep.mubr.bf16.mxu0 %v2980
        %3383 = vmatmul.mubr.bf16.gmra.mrb[0].mxu0 %v2979
        %v3384 = vpop.f32.mrb[0].mxu0
        %v3385 = vadd.f32 %v3084, %v3384
        %v3386 = vpop.f32.mrb[0].mxu0
        %v3387 = vpop.f32.mrb[0].mxu0
        %v3388 = vadd.f32 %v3084, %v3387
        %v3389 = vpop.f32.mrb[0].mxu0
        %3390 = vmatprep.mubr.bf16.mxu0 %v2984
        %3391 = vmatmul.mubr.bf16.gmra.mrb[0].mxu0 %v2983
        %v3392 = vpop.f32.mrb[0].mxu0
        %v3393 = vadd.f32 %v3084, %v3392
        %v3394 = vpop.f32.mrb[0].mxu0
        %v3395 = vpop.f32.mrb[0].mxu0
        %v3396 = vadd.f32 %v3084, %v3395
        %v3397 = vpop.f32.mrb[0].mxu0
        %3398 = vmatprep.mubr.bf16.mxu0 %v2988
        %3399 = vmatmul.mubr.bf16.gmra.mrb[0].mxu0 %v2987
        %v3400 = vpop.f32.mrb[0].mxu0
        %v3401 = vadd.f32 %v3084, %v3400
        %v3402 = vpop.f32.mrb[0].mxu0
        %v3403 = vpop.f32.mrb[0].mxu0
        %v3404 = vadd.f32 %v3084, %v3403
        %v3405 = vpop.f32.mrb[0].mxu0
        %3406 = vmatprep.mubr.bf16.mxu0 %v2992
        %3407 = vmatmul.mubr.bf16.gmra.mrb[0].mxu0 %v2991
        %v3408 = vpop.f32.mrb[0].mxu0
        %v3409 = vadd.f32 %v3084, %v3408
        %v3410 = vpop.f32.mrb[0].mxu0
        %v3411 = vpop.f32.mrb[0].mxu0
        %v3412 = vadd.f32 %v3084, %v3411
        %v3413 = vpop.f32.mrb[0].mxu0
        %3414 = vmatprep.mubr.bf16.mxu0 %v2996
        %3415 = vmatmul.mubr.bf16.gmra.mrb[0].mxu0 %v2995
        %v3416 = vpop.f32.mrb[0].mxu0
        %v3417 = vadd.f32 %v3084, %v3416
        %v3418 = vpop.f32.mrb[0].mxu0
        %v3419 = vpop.f32.mrb[0].mxu0
        %v3420 = vadd.f32 %v3084, %v3419
        %v3421 = vpop.f32.mrb[0].mxu0
        %3422 = vmatprep.mubr.bf16.mxu0 %v3000
        %3423 = vmatmul.mubr.bf16.gmra.mrb[0].mxu0 %v2999
        %v3424 = vpop.f32.mrb[0].mxu0
        %v3425 = vadd.f32 %v3084, %v3424
        %v3426 = vpop.f32.mrb[0].mxu0
        %v3427 = vpop.f32.mrb[0].mxu0
        %v3428 = vadd.f32 %v3084, %v3427
        %v3429 = vpop.f32.mrb[0].mxu0
        %3430 = vmatprep.mubr.bf16.mxu0 %v3004
        %3431 = vmatmul.mubr.bf16.gmra.mrb[0].mxu0 %v3003
        %v3432 = vpop.f32.mrb[0].mxu0
        %v3433 = vadd.f32 %v3084, %v3432
        %v3434 = vpop.f32.mrb[0].mxu0
        %v3435 = vpop.f32.mrb[0].mxu0
        %v3436 = vadd.f32 %v3084, %v3435
        %v3437 = vpop.f32.mrb[0].mxu0
        %3438 = vmatprep.mubr.bf16.mxu0 %v3008
        %3439 = vmatmul.mubr.bf16.gmra.mrb[0].mxu0 %v3007
        %v3440 = vpop.f32.mrb[0].mxu0
        %v3441 = vadd.f32 %v3084, %v3440
        %v3442 = vpop.f32.mrb[0].mxu0
        %v3443 = vpop.f32.mrb[0].mxu0
        %v3444 = vadd.f32 %v3084, %v3443
        %v3445 = vpop.f32.mrb[0].mxu0
        %3446 = vmatprep.mubr.bf16.mxu0 %v3012
        %3447 = vmatmul.mubr.bf16.gmra.mrb[0].mxu0 %v3011
        %v3448 = vpop.f32.mrb[0].mxu0
        %v3449 = vadd.f32 %v3084, %v3448
        %v3450 = vpop.f32.mrb[0].mxu0
        %v3451 = vpop.f32.mrb[0].mxu0
        %v3452 = vadd.f32 %v3084, %v3451
        %v3453 = vpop.f32.mrb[0].mxu0
        %3454 = vdwg.mxu0
        %3455 = vmatprep.subr.bf16.mxu0 0
        %3456 = vmatpush1.bf16.msra.mxu0 %v3230
        %3457 = vmatprep.subr.bf16.mxu0 0
        %3458 = vmatpush1.bf16.msra.mxu0 %v3231
        %3459 = vmatprep.subr.bf16.mxu0 0
        %3460 = vmatpush1.bf16.msra.mxu0 %v3232
        %3461 = vmatprep.subr.bf16.mxu0 0
        %3462 = vmatpush1.bf16.msra.mxu0 %v3233
        %3463 = vmatprep.subr.bf16.mxu0 0
        %3464 = vmatpush1.bf16.msra.mxu0 %v3234
        %3465 = vmatprep.subr.bf16.mxu0 0
        %3466 = vmatpush1.bf16.msra.mxu0 %v3235
        %3467 = vmatprep.subr.bf16.mxu0 0
        %3468 = vmatpush1.bf16.msra.mxu0 %v3236
        %3469 = vmatprep.subr.bf16.mxu0 0
        %3470 = vmatpush1.bf16.msra.mxu0 %v3237
        %3471 = vmatprep.subr.bf16.mxu0 0
        %3472 = vmatpush1.bf16.msra.mxu0 %v3238
        %3473 = vmatprep.subr.bf16.mxu0 0
        %3474 = vmatpush1.bf16.msra.mxu0 %v3239
        %3475 = vmatprep.subr.bf16.mxu0 0
        %3476 = vmatpush1.bf16.msra.mxu0 %v3240
        %3477 = vmatprep.subr.bf16.mxu0 0
        %3478 = vmatpush1.bf16.msra.mxu0 %v3241
        %3479 = vmatprep.subr.bf16.mxu0 0
        %3480 = vmatpush1.bf16.msra.mxu0 %v3242
        %3481 = vmatprep.subr.bf16.mxu0 0
        %3482 = vmatpush1.bf16.msra.mxu0 %v3243
        %3483 = vmatprep.subr.bf16.mxu0 0
        %3484 = vmatpush1.bf16.msra.mxu0 %v3244
        %3485 = vmatprep.subr.bf16.mxu0 0
        %3486 = vmatpush1.bf16.msra.mxu0 %v3245
        %3487 = vmatprep.mubr.bf16.mxu0 %v2946
        %3488 = vmatmul.mubr.bf16.gmra.mrb[0].mxu0 %v2945
        %v3489 = vpop.f32.mrb[0].mxu0
        %v3490 = vadd.f32 %v3313, %v3489
        %v3491 = vpop.f32.mrb[0].mxu0
        %v3492 = vpop.f32.mrb[0].mxu0
        %v3493 = vadd.f32 %v3316, %v3492
        %v3494 = vpop.f32.mrb[0].mxu0
        %3495 = vmatprep.mubr.bf16.mxu0 %v2950
        %3496 = vmatmul.mubr.bf16.gmra.mrb[0].mxu0 %v2949
        %v3497 = vpop.f32.mrb[0].mxu0
        %v3498 = vadd.f32 %v3321, %v3497
        %v3499 = vpop.f32.mrb[0].mxu0
        %v3500 = vpop.f32.mrb[0].mxu0
        %v3501 = vadd.f32 %v3324, %v3500
        %v3502 = vpop.f32.mrb[0].mxu0
        %3503 = vmatprep.mubr.bf16.mxu0 %v2954
        %3504 = vmatmul.mubr.bf16.gmra.mrb[0].mxu0 %v2953
        %v3505 = vpop.f32.mrb[0].mxu0
        %v3506 = vadd.f32 %v3329, %v3505
        %v3507 = vpop.f32.mrb[0].mxu0
        %v3508 = vpop.f32.mrb[0].mxu0
        %v3509 = vadd.f32 %v3332, %v3508
        %v3510 = vpop.f32.mrb[0].mxu0
        %3511 = vmatprep.mubr.bf16.mxu0 %v2958
        %3512 = vmatmul.mubr.bf16.gmra.mrb[0].mxu0 %v2957
        %v3513 = vpop.f32.mrb[0].mxu0
        %v3514 = vadd.f32 %v3337, %v3513
        %v3515 = vpop.f32.mrb[0].mxu0
        %v3516 = vpop.f32.mrb[0].mxu0
        %v3517 = vadd.f32 %v3340, %v3516
        %v3518 = vpop.f32.mrb[0].mxu0
        %3519 = vmatprep.mubr.bf16.mxu0 %v2962
        %3520 = vmatmul.mubr.bf16.gmra.mrb[0].mxu0 %v2961
        %v3521 = vpop.f32.mrb[0].mxu0
        %v3522 = vadd.f32 %v3345, %v3521
        %v3523 = vpop.f32.mrb[0].mxu0
        %v3524 = vpop.f32.mrb[0].mxu0
        %v3525 = vadd.f32 %v3348, %v3524
        %v3526 = vpop.f32.mrb[0].mxu0
        %3527 = vmatprep.mubr.bf16.mxu0 %v2966
        %3528 = vmatmul.mubr.bf16.gmra.mrb[0].mxu0 %v2965
        %v3529 = vpop.f32.mrb[0].mxu0
        %v3530 = vadd.f32 %v3353, %v3529
        %v3531 = vpop.f32.mrb[0].mxu0
        %v3532 = vpop.f32.mrb[0].mxu0
        %v3533 = vadd.f32 %v3356, %v3532
        %v3534 = vpop.f32.mrb[0].mxu0
        %3535 = vmatprep.mubr.bf16.mxu0 %v2970
        %3536 = vmatmul.mubr.bf16.gmra.mrb[0].mxu0 %v2969
        %v3537 = vpop.f32.mrb[0].mxu0
        %v3538 = vadd.f32 %v3361, %v3537
        %v3539 = vpop.f32.mrb[0].mxu0
        %v3540 = vpop.f32.mrb[0].mxu0
        %v3541 = vadd.f32 %v3364, %v3540
        %v3542 = vpop.f32.mrb[0].mxu0
        %3543 = vmatprep.mubr.bf16.mxu0 %v2974
        %3544 = vmatmul.mubr.bf16.gmra.mrb[0].mxu0 %v2973
        %v3545 = vpop.f32.mrb[0].mxu0
        %v3546 = vadd.f32 %v3369, %v3545
        %v3547 = vpop.f32.mrb[0].mxu0
        %v3548 = vpop.f32.mrb[0].mxu0
        %v3549 = vadd.f32 %v3372, %v3548
        %v3550 = vpop.f32.mrb[0].mxu0
        %3551 = vmatprep.mubr.bf16.mxu0 %v2978
        %3552 = vmatmul.mubr.bf16.gmra.mrb[0].mxu0 %v2977
        %v3553 = vpop.f32.mrb[0].mxu0
        %v3554 = vadd.f32 %v3377, %v3553
        %v3555 = vpop.f32.mrb[0].mxu0
        %v3556 = vpop.f32.mrb[0].mxu0
        %v3557 = vadd.f32 %v3380, %v3556
        %v3558 = vpop.f32.mrb[0].mxu0
        %3559 = vmatprep.mubr.bf16.mxu0 %v2982
        %3560 = vmatmul.mubr.bf16.gmra.mrb[0].mxu0 %v2981
        %v3561 = vpop.f32.mrb[0].mxu0
        %v3562 = vadd.f32 %v3385, %v3561
        %v3563 = vpop.f32.mrb[0].mxu0
        %v3564 = vpop.f32.mrb[0].mxu0
        %v3565 = vadd.f32 %v3388, %v3564
        %v3566 = vpop.f32.mrb[0].mxu0
        %3567 = vmatprep.mubr.bf16.mxu0 %v2986
        %3568 = vmatmul.mubr.bf16.gmra.mrb[0].mxu0 %v2985
        %v3569 = vpop.f32.mrb[0].mxu0
        %v3570 = vadd.f32 %v3393, %v3569
        %v3571 = vpop.f32.mrb[0].mxu0
        %v3572 = vpop.f32.mrb[0].mxu0
        %v3573 = vadd.f32 %v3396, %v3572
        %v3574 = vpop.f32.mrb[0].mxu0
        %3575 = vmatprep.mubr.bf16.mxu0 %v2990
        %3576 = vmatmul.mubr.bf16.gmra.mrb[0].mxu0 %v2989
        %v3577 = vpop.f32.mrb[0].mxu0
        %v3578 = vadd.f32 %v3401, %v3577
        %v3579 = vpop.f32.mrb[0].mxu0
        %v3580 = vpop.f32.mrb[0].mxu0
        %v3581 = vadd.f32 %v3404, %v3580
        %v3582 = vpop.f32.mrb[0].mxu0
        %3583 = vmatprep.mubr.bf16.mxu0 %v2994
        %3584 = vmatmul.mubr.bf16.gmra.mrb[0].mxu0 %v2993
        %v3585 = vpop.f32.mrb[0].mxu0
        %v3586 = vadd.f32 %v3409, %v3585
        %v3587 = vpop.f32.mrb[0].mxu0
        %v3588 = vpop.f32.mrb[0].mxu0
        %v3589 = vadd.f32 %v3412, %v3588
        %v3590 = vpop.f32.mrb[0].mxu0
        %3591 = vmatprep.mubr.bf16.mxu0 %v2998
        %3592 = vmatmul.mubr.bf16.gmra.mrb[0].mxu0 %v2997
        %v3593 = vpop.f32.mrb[0].mxu0
        %v3594 = vadd.f32 %v3417, %v3593
        %v3595 = vpop.f32.mrb[0].mxu0
        %v3596 = vpop.f32.mrb[0].mxu0
        %v3597 = vadd.f32 %v3420, %v3596
        %v3598 = vpop.f32.mrb[0].mxu0
        %3599 = vmatprep.mubr.bf16.mxu0 %v3002
        %3600 = vmatmul.mubr.bf16.gmra.mrb[0].mxu0 %v3001
        %v3601 = vpop.f32.mrb[0].mxu0
        %v3602 = vadd.f32 %v3425, %v3601
        %v3603 = vpop.f32.mrb[0].mxu0
        %v3604 = vpop.f32.mrb[0].mxu0
        %v3605 = vadd.f32 %v3428, %v3604
        %v3606 = vpop.f32.mrb[0].mxu0
        %3607 = vmatprep.mubr.bf16.mxu0 %v3006
        %3608 = vmatmul.mubr.bf16.gmra.mrb[0].mxu0 %v3005
        %v3609 = vpop.f32.mrb[0].mxu0
        %v3610 = vadd.f32 %v3433, %v3609
        %v3611 = vpop.f32.mrb[0].mxu0
        %v3612 = vpop.f32.mrb[0].mxu0
        %v3613 = vadd.f32 %v3436, %v3612
        %v3614 = vpop.f32.mrb[0].mxu0
        %3615 = vmatprep.mubr.bf16.mxu0 %v3010
        %3616 = vmatmul.mubr.bf16.gmra.mrb[0].mxu0 %v3009
        %v3617 = vpop.f32.mrb[0].mxu0
        %v3618 = vadd.f32 %v3441, %v3617
        %v3619 = vpop.f32.mrb[0].mxu0
        %v3620 = vpop.f32.mrb[0].mxu0
        %v3621 = vadd.f32 %v3444, %v3620
        %v3622 = vpop.f32.mrb[0].mxu0
        %3623 = vmatprep.mubr.bf16.mxu0 %v3014
        %3624 = vmatmul.mubr.bf16.gmra.mrb[0].mxu0 %v3013
        %v3625 = vpop.f32.mrb[0].mxu0
        %v3626 = vadd.f32 %v3449, %v3625
        %v3627 = vpop.f32.mrb[0].mxu0
        %v3628 = vpop.f32.mrb[0].mxu0
        %v3629 = vadd.f32 %v3452, %v3628
        %v3630 = vpop.f32.mrb[0].mxu0
        %3631 = vdwg.mxu0
        %v3632 = vlaneseq
        %v3633 = vand.u32 %v3632, 127
        %vm3634 = vcmp.ge.s32.totalorder %v3633, 27
        %vm3635 = vcmp.lt.s32.totalorder %v3633, 48
        %vm3636 = vmand %vm3634, %vm3635
        %v3637 = vxor.u32 %v3490, 2147483648
        %v3638 = vxor.u32 %v3493, 2147483648
        %v3639 = vxor.u32 %v3498, 2147483648
        %v3640 = vxor.u32 %v3501, 2147483648
        %v3641 = vxor.u32 %v3506, 2147483648
        %v3642 = vxor.u32 %v3509, 2147483648
        %v3643 = vxor.u32 %v3514, 2147483648
        %v3644 = vxor.u32 %v3517, 2147483648
        %v3645 = vxor.u32 %v3522, 2147483648
        %v3646 = vxor.u32 %v3525, 2147483648
        %v3647 = vxor.u32 %v3530, 2147483648
        %v3648 = vxor.u32 %v3533, 2147483648
        %v3649 = vxor.u32 %v3538, 2147483648
        %v3650 = vxor.u32 %v3541, 2147483648
        %v3651 = vxor.u32 %v3546, 2147483648
        %v3652 = vxor.u32 %v3549, 2147483648
        %v3653 = vxor.u32 %v3554, 2147483648
        %v3654 = vxor.u32 %v3557, 2147483648
        %v3655 = vxor.u32 %v3562, 2147483648
        %v3656 = vxor.u32 %v3565, 2147483648
        %v3657 = vxor.u32 %v3570, 2147483648
        %v3658 = vxor.u32 %v3573, 2147483648
        %v3659 = vxor.u32 %v3578, 2147483648
        %v3660 = vxor.u32 %v3581, 2147483648
        %v3661 = vxor.u32 %v3586, 2147483648
        %v3662 = vxor.u32 %v3589, 2147483648
        %v3663 = vxor.u32 %v3594, 2147483648
        %v3664 = vxor.u32 %v3597, 2147483648
        %v3665 = vxor.u32 %v3602, 2147483648
        %v3666 = vxor.u32 %v3605, 2147483648
        %v3667 = vxor.u32 %v3610, 2147483648
        %v3668 = vxor.u32 %v3613, 2147483648
        %v3669 = vxor.u32 %v3618, 2147483648
        %v3670 = vxor.u32 %v3621, 2147483648
        %v3671 = vxor.u32 %v3626, 2147483648
        %v3672 = vxor.u32 %v3629, 2147483648
        %v3673 = vmul.f32 %v3637, 1.442695
        %v3674 = vpow.pop %v3673
        %v3675 = vmul.f32 %v3638, 1.442695
        %v3676 = vpow.pop %v3675
        %v3677 = vmul.f32 %v3639, 1.442695
        %v3678 = vpow.pop %v3677
        %v3679 = vmul.f32 %v3640, 1.442695
        %v3680 = vpow.pop %v3679
        %v3681 = vmul.f32 %v3641, 1.442695
        %v3682 = vpow.pop %v3681
        %v3683 = vmul.f32 %v3642, 1.442695
        %v3684 = vpow.pop %v3683
        %v3685 = vmul.f32 %v3643, 1.442695
        %v3686 = vpow.pop %v3685
        %v3687 = vmul.f32 %v3644, 1.442695
        %v3688 = vpow.pop %v3687
        %v3689 = vmul.f32 %v3645, 1.442695
        %v3690 = vpow.pop %v3689
        %v3691 = vmul.f32 %v3646, 1.442695
        %v3692 = vpow.pop %v3691
        %v3693 = vmul.f32 %v3647, 1.442695
        %v3694 = vpow.pop %v3693
        %v3695 = vmul.f32 %v3648, 1.442695
        %v3696 = vpow.pop %v3695
        %v3697 = vmul.f32 %v3649, 1.442695
        %v3698 = vpow.pop %v3697
        %v3699 = vmul.f32 %v3650, 1.442695
        %v3700 = vpow.pop %v3699
        %v3701 = vmul.f32 %v3651, 1.442695
        %v3702 = vpow.pop %v3701
        %v3703 = vmul.f32 %v3652, 1.442695
        %v3704 = vpow.pop %v3703
        %v3705 = vmul.f32 %v3653, 1.442695
        %v3706 = vpow.pop %v3705
        %v3707 = vmul.f32 %v3654, 1.442695
        %v3708 = vpow.pop %v3707
        %v3709 = vmul.f32 %v3655, 1.442695
        %v3710 = vpow.pop %v3709
        %v3711 = vmul.f32 %v3656, 1.442695
        %v3712 = vpow.pop %v3711
        %v3713 = vmul.f32 %v3657, 1.442695
        %v3714 = vpow.pop %v3713
        %v3715 = vmul.f32 %v3658, 1.442695
        %v3716 = vpow.pop %v3715
        %v3717 = vmul.f32 %v3659, 1.442695
        %v3718 = vpow.pop %v3717
        %v3719 = vmul.f32 %v3660, 1.442695
        %v3720 = vpow.pop %v3719
        %v3721 = vmul.f32 %v3661, 1.442695
        %v3722 = vpow.pop %v3721
        %v3723 = vmul.f32 %v3662, 1.442695
        %v3724 = vpow.pop %v3723
        %v3725 = vmul.f32 %v3663, 1.442695
        %v3726 = vpow.pop %v3725
        %v3727 = vmul.f32 %v3664, 1.442695
        %v3728 = vpow.pop %v3727
        %v3729 = vmul.f32 %v3665, 1.442695
        %v3730 = vpow.pop %v3729
        %v3731 = vmul.f32 %v3666, 1.442695
        %v3732 = vpow.pop %v3731
        %v3733 = vmul.f32 %v3667, 1.442695
        %v3734 = vpow.pop %v3733
        %v3735 = vmul.f32 %v3668, 1.442695
        %v3736 = vpow.pop %v3735
        %v3737 = vmul.f32 %v3669, 1.442695
        %v3738 = vpow.pop %v3737
        %v3739 = vmul.f32 %v3670, 1.442695
        %v3740 = vpow.pop %v3739
        %v3741 = vmul.f32 %v3671, 1.442695
        %v3742 = vpow.pop %v3741
        %v3743 = vmul.f32 %v3672, 1.442695
        %v3744 = vpow.pop %v3743
        %v3745 = vadd.f32 %v3674, 1.0
        %v3746 = vadd.f32 %v3676, 1.0
        %v3747 = vadd.f32 %v3678, 1.0
        %v3748 = vadd.f32 %v3680, 1.0
        %v3749 = vadd.f32 %v3682, 1.0
        %v3750 = vadd.f32 %v3684, 1.0
        %v3751 = vadd.f32 %v3686, 1.0
        %v3752 = vadd.f32 %v3688, 1.0
        %v3753 = vadd.f32 %v3690, 1.0
        %v3754 = vadd.f32 %v3692, 1.0
        %v3755 = vadd.f32 %v3694, 1.0
        %v3756 = vadd.f32 %v3696, 1.0
        %v3757 = vadd.f32 %v3698, 1.0
        %v3758 = vadd.f32 %v3700, 1.0
        %v3759 = vadd.f32 %v3702, 1.0
        %v3760 = vadd.f32 %v3704, 1.0
        %v3761 = vadd.f32 %v3706, 1.0
        %v3762 = vadd.f32 %v3708, 1.0
        %v3763 = vadd.f32 %v3710, 1.0
        %v3764 = vadd.f32 %v3712, 1.0
        %v3765 = vadd.f32 %v3714, 1.0
        %v3766 = vadd.f32 %v3716, 1.0
        %v3767 = vadd.f32 %v3718, 1.0
        %v3768 = vadd.f32 %v3720, 1.0
        %v3769 = vadd.f32 %v3722, 1.0
        %v3770 = vadd.f32 %v3724, 1.0
        %v3771 = vadd.f32 %v3726, 1.0
        %v3772 = vadd.f32 %v3728, 1.0
        %v3773 = vadd.f32 %v3730, 1.0
        %v3774 = vadd.f32 %v3732, 1.0
        %v3775 = vadd.f32 %v3734, 1.0
        %v3776 = vadd.f32 %v3736, 1.0
        %v3777 = vadd.f32 %v3738, 1.0
        %v3778 = vadd.f32 %v3740, 1.0
        %v3779 = vadd.f32 %v3742, 1.0
        %v3780 = vadd.f32 %v3744, 1.0
        %v3781 = vrcp.pop %v3745
        %v3782 = vmul.f32 1.0, %v3781
        %v3783 = vrcp.pop %v3746
        %v3784 = vmul.f32 1.0, %v3783
        %v3785 = vrcp.pop %v3747
        %v3786 = vmul.f32 1.0, %v3785
        %v3787 = vrcp.pop %v3748
        %v3788 = vmul.f32 1.0, %v3787
        %v3789 = vrcp.pop %v3749
        %v3790 = vmul.f32 1.0, %v3789
        %v3791 = vrcp.pop %v3750
        %v3792 = vmul.f32 1.0, %v3791
        %v3793 = vrcp.pop %v3751
        %v3794 = vmul.f32 1.0, %v3793
        %v3795 = vrcp.pop %v3752
        %v3796 = vmul.f32 1.0, %v3795
        %v3797 = vrcp.pop %v3753
        %v3798 = vmul.f32 1.0, %v3797
        %v3799 = vrcp.pop %v3754
        %v3800 = vmul.f32 1.0, %v3799
        %v3801 = vrcp.pop %v3755
        %v3802 = vmul.f32 1.0, %v3801
        %v3803 = vrcp.pop %v3756
        %v3804 = vmul.f32 1.0, %v3803
        %v3805 = vrcp.pop %v3757
        %v3806 = vmul.f32 1.0, %v3805
        %v3807 = vrcp.pop %v3758
        %v3808 = vmul.f32 1.0, %v3807
        %v3809 = vrcp.pop %v3759
        %v3810 = vmul.f32 1.0, %v3809
        %v3811 = vrcp.pop %v3760
        %v3812 = vmul.f32 1.0, %v3811
        %v3813 = vrcp.pop %v3761
        %v3814 = vmul.f32 1.0, %v3813
        %v3815 = vrcp.pop %v3762
        %v3816 = vmul.f32 1.0, %v3815
        %v3817 = vrcp.pop %v3763
        %v3818 = vmul.f32 1.0, %v3817
        %v3819 = vrcp.pop %v3764
        %v3820 = vmul.f32 1.0, %v3819
        %v3821 = vrcp.pop %v3765
        %v3822 = vmul.f32 1.0, %v3821
        %v3823 = vrcp.pop %v3766
        %v3824 = vmul.f32 1.0, %v3823
        %v3825 = vrcp.pop %v3767
        %v3826 = vmul.f32 1.0, %v3825
        %v3827 = vrcp.pop %v3768
        %v3828 = vmul.f32 1.0, %v3827
        %v3829 = vrcp.pop %v3769
        %v3830 = vmul.f32 1.0, %v3829
        %v3831 = vrcp.pop %v3770
        %v3832 = vmul.f32 1.0, %v3831
        %v3833 = vrcp.pop %v3771
        %v3834 = vmul.f32 1.0, %v3833
        %v3835 = vrcp.pop %v3772
        %v3836 = vmul.f32 1.0, %v3835
        %v3837 = vrcp.pop %v3773
        %v3838 = vmul.f32 1.0, %v3837
        %v3839 = vrcp.pop %v3774
        %v3840 = vmul.f32 1.0, %v3839
        %v3841 = vrcp.pop %v3775
        %v3842 = vmul.f32 1.0, %v3841
        %v3843 = vrcp.pop %v3776
        %v3844 = vmul.f32 1.0, %v3843
        %v3845 = vrcp.pop %v3777
        %v3846 = vmul.f32 1.0, %v3845
        %v3847 = vrcp.pop %v3778
        %v3848 = vmul.f32 1.0, %v3847
        %v3849 = vrcp.pop %v3779
        %v3850 = vmul.f32 1.0, %v3849
        %v3851 = vrcp.pop %v3780
        %v3852 = vmul.f32 1.0, %v3851
        %v3853 = vsel %vm3636, 1, 0
        %vm3854 = vcmp.eq.s32.totalorder %v3853, 1
        %v3855 = vsel %vm3854, %v3782, %v3490
        %v3856 = vsel %vm3854, %v3784, %v3493
        %v3857 = vsel %vm3854, %v3786, %v3498
        %v3858 = vsel %vm3854, %v3788, %v3501
        %v3859 = vsel %vm3854, %v3790, %v3506
        %v3860 = vsel %vm3854, %v3792, %v3509
        %v3861 = vsel %vm3854, %v3794, %v3514
        %v3862 = vsel %vm3854, %v3796, %v3517
        %v3863 = vsel %vm3854, %v3798, %v3522
        %v3864 = vsel %vm3854, %v3800, %v3525
        %v3865 = vsel %vm3854, %v3802, %v3530
        %v3866 = vsel %vm3854, %v3804, %v3533
        %v3867 = vsel %vm3854, %v3806, %v3538
        %v3868 = vsel %vm3854, %v3808, %v3541
        %v3869 = vsel %vm3854, %v3810, %v3546
        %v3870 = vsel %vm3854, %v3812, %v3549
        %v3871 = vsel %vm3854, %v3814, %v3554
        %v3872 = vsel %vm3854, %v3816, %v3557
        %v3873 = vsel %vm3854, %v3818, %v3562
        %v3874 = vsel %vm3854, %v3820, %v3565
        %v3875 = vsel %vm3854, %v3822, %v3570
        %v3876 = vsel %vm3854, %v3824, %v3573
        %v3877 = vsel %vm3854, %v3826, %v3578
        %v3878 = vsel %vm3854, %v3828, %v3581
        %v3879 = vsel %vm3854, %v3830, %v3586
        %v3880 = vsel %vm3854, %v3832, %v3589
        %v3881 = vsel %vm3854, %v3834, %v3594
        %v3882 = vsel %vm3854, %v3836, %v3597
        %v3883 = vsel %vm3854, %v3838, %v3602
        %v3884 = vsel %vm3854, %v3840, %v3605
        %v3885 = vsel %vm3854, %v3842, %v3610
        %v3886 = vsel %vm3854, %v3844, %v3613
        %v3887 = vsel %vm3854, %v3846, %v3618
        %v3888 = vsel %vm3854, %v3848, %v3621
        %v3889 = vsel %vm3854, %v3850, %v3626
        %v3890 = vsel %vm3854, %v3852, %v3629
        %3891 = vst [vmem:[%s329] sm:$0xff] %v3855
        %3892 = vst [vmem:[%s329 + $0x8] sm:$0xff] %v3856
        %3893 = vst [vmem:[%s329 + $0x10] sm:$0xff] %v3857
        %3894 = vst [vmem:[%s329 + $0x18] sm:$0xff] %v3858
        %3895 = vst [vmem:[%s329 + $0x20] sm:$0xff] %v3859
        %3896 = vst [vmem:[%s329 + $0x28] sm:$0xff] %v3860
        %3897 = vst [vmem:[%s329 + $0x30] sm:$0xff] %v3861
        %3898 = vst [vmem:[%s329 + $0x38] sm:$0xff] %v3862
        %3899 = vst [vmem:[%s329 + $0x40] sm:$0xff] %v3863
        %3900 = vst [vmem:[%s329 + $0x48] sm:$0xff] %v3864
        %3901 = vst [vmem:[%s329 + $0x50] sm:$0xff] %v3865
        %3902 = vst [vmem:[%s329 + $0x58] sm:$0xff] %v3866
        %3903 = vst [vmem:[%s329 + $0x60] sm:$0xff] %v3867
        %3904 = vst [vmem:[%s329 + $0x68] sm:$0xff] %v3868
        %3905 = vst [vmem:[%s329 + $0x70] sm:$0xff] %v3869
        %3906 = vst [vmem:[%s329 + $0x78] sm:$0xff] %v3870
        %3907 = vst [vmem:[%s329 + $0x80] sm:$0xff] %v3871
        %3908 = vst [vmem:[%s329 + $0x88] sm:$0xff] %v3872
        %3909 = vst [vmem:[%s329 + $0x90] sm:$0xff] %v3873
        %3910 = vst [vmem:[%s329 + $0x98] sm:$0xff] %v3874
        %3911 = vst [vmem:[%s329 + $0xa0] sm:$0xff] %v3875
        %3912 = vst [vmem:[%s329 + $0xa8] sm:$0xff] %v3876
        %3913 = vst [vmem:[%s329 + $0xb0] sm:$0xff] %v3877
        %3914 = vst [vmem:[%s329 + $0xb8] sm:$0xff] %v3878
        %3915 = vst [vmem:[%s329 + $0xc0] sm:$0xff] %v3879
        %3916 = vst [vmem:[%s329 + $0xc8] sm:$0xff] %v3880
        %3917 = vst [vmem:[%s329 + $0xd0] sm:$0xff] %v3881
        %3918 = vst [vmem:[%s329 + $0xd8] sm:$0xff] %v3882
        %3919 = vst [vmem:[%s329 + $0xe0] sm:$0xff] %v3883
        %3920 = vst [vmem:[%s329 + $0xe8] sm:$0xff] %v3884
        %3921 = vst [vmem:[%s329 + $0xf0] sm:$0xff] %v3885
        %3922 = vst [vmem:[%s329 + $0xf8] sm:$0xff] %v3886
        %3923 = vst [vmem:[%s329 + $0x100] sm:$0xff] %v3887
        %3924 = vst [vmem:[%s329 + $0x108] sm:$0xff] %v3888
        %3925 = vst [vmem:[%s329 + $0x110] sm:$0xff] %v3889
        %3926 = vst [vmem:[%s329 + $0x118] sm:$0xff] %v3890
        %s3927 = sand.u32 %s186, 1
        %s3928 = scalar_lea.sflag [#allocation3], %s3927
        %s3929 = sand.u32 %s186, 1
        %s3930 = smul.addr %s3929, 288
        %s3931 = scalar_lea.vmem [#allocation2], %s3930
        // Predicated region
        $region45: #{tpu_custom_call.1} parent=43 // pred_check
          %p3932 = pneg %p196
        $region46: #{tpu_custom_call.1} parent=43 // pred_check_branch
          %3934 = sbr.rel (%p3932) target = $region48
        $region47: #{tpu_custom_call.1} parent=43 // pred_region
          %s3935 = smul.u32 36, %s25
          %s3937 = ssub.s32 4608, 4608
          %3938 = vsyncadd %s3928, %s3937
          %s3939 = smul.addr %s24, 36
          %s3940 = sadd.s32 %s3935, %s3939
          %s3941 = smul.addr %s3940, 128
          %s3942 = scalar_lea.hbm %s6, %s3941
          %s3943 = sshll.u32 %s3931, 4
          %s3944 = int_to_ptr.vmem [resolvable:$true] %s3943
          %3949 = dma.vmem_to_hbm [thread:$0]  %s3944, 4608, %s3942, %s3928, 128, 128, 8
        $region48: #{tpu_custom_call.1} parent=43 // pred_fallthru
          _
      $region44: #{tpu_custom_call.1} parent=5 // pred_fallthru
        _
      %p3950 = scmp.le.s32.totalorder 2, %s15
      // Predicated region
      $region49: #{tpu_custom_call.1} parent=5 // pred_check
        %p3951 = pneg %p3950
      $region50: #{tpu_custom_call.1} parent=5 // pred_check_branch
        %3953 = sbr.rel (%p3951) target = $region52
      $region51: #{tpu_custom_call.1} parent=5 // pred_region
        %s3954 = ssub.s32 %s15, 2
        // Predicated region
        $region53: #{tpu_custom_call.1} parent=51 // pred_check
          %p3955 = pneg %p202
        $region54: #{tpu_custom_call.1} parent=51 // pred_check_branch
          %3957 = sbr.rel (%p3955) target = $region56
        $region55: #{tpu_custom_call.1} parent=51 // pred_region
          %s3958 = sand.u32 %s187, 1
          %s3959 = scalar_lea.sflag [#allocation3], %s3958
          %s3960 = sand.u32 %s187, 1
          %s3961 = smul.addr %s3960, 288
          %s3962 = scalar_lea.vmem [#allocation2], %s3961
          %3963 = dma.done %s3959, 4608
        $region56: #{tpu_custom_call.1} parent=51 // pred_fallthru
          _
      $region52: #{tpu_custom_call.1} parent=5 // pred_fallthru
        _
    $region6: #{tpu_custom_call.1} parent=1 // loop_footer
      %s19 = sadd.s32 1, %s15
    $region7: #{tpu_custom_call.1} parent=1 // loop_footer_branch
      %14 = sbr.rel target = $region3
    $region8: #{tpu_custom_call.1} parent=1 // loop_exit
      _
    %3964 = vsyncpa [#allocation3], 1
    %s3965 = scalar_lea.sflag [#allocation3], 1
    %3966 = vsyncpa %s3965, 1

</llo_original>
